<compile_context>
chip_gen: v5e
topology: v5e:2x2
jax: 0.10.0
libtpu: 0.0.40
codegen_flags: <defaults>
</compile_context>

<pallas_src>
import jax
import jax.numpy as jnp
from jax import lax
from jax.experimental import pallas as pl
from jax.experimental.pallas import tpu as pltpu

_INNER_MLP_MULT = 2
_BN_EPS = 1e-5
_DMID_PAD = 128          # pad inner MLP width (2*H = 64) to one full 128-lane vreg


def _bn_relu(x, gamma, beta):
    """BatchNorm1d (training-mode batch stats, biased variance, eps=1e-5) + ReLU.

    Two-pass moments (mean first, then variance of the centered values) for
    numerical safety; the affine is folded into the normalization scale so the
    output pass is one fused multiply-add + max, all in f32."""
    inv_m = 1.0 / x.shape[0]
    mu = jnp.sum(x, axis=0, keepdims=True) * inv_m
    xc = x - mu
    var = jnp.sum(xc * xc, axis=0, keepdims=True) * inv_m
    scale = gamma * lax.rsqrt(var + _BN_EPS)
    return jnp.maximum(xc * scale + beta, 0.0)


def _pair_swap_rows(x):
    """Swap rows 2e <-> 2e+1 of a [2E, C] array (2E even) via two sublane rolls."""
    two_e = x.shape[0]
    up = pltpu.roll(x, shift=two_e - 1, axis=0)    # row i <- row (i+1) mod 2E
    down = pltpu.roll(x, shift=1, axis=0)          # row i <- row (i-1) mod 2E
    parity = lax.broadcasted_iota(jnp.int32, x.shape, 0) & 1
    return jnp.where(parity == 0, up, down)


def _edge_node_kernel(
        atoms_col_ref, atoms_row_ref, node_ref, edge_ref,
        ew1a_ref, ew1bc_ref, ew1c_ref, eg1_ref, eb1_ref, ew2_ref, eg2_ref, eb2_ref,
        nw1a_ref, nw1b_ref, ng1_ref, nb1_ref, nw2_ref, ng2_ref, nb2_ref,
        node_out_ref, edge_out_ref):
    f32, bf16 = jnp.float32, jnp.bfloat16
    n_nodes, h_dim = node_ref.shape
    two_e = edge_ref.shape[0]

    node_bf = node_ref[...].astype(bf16)
    edge_bf = edge_ref[...].astype(bf16)

    # --- gather_from_ptensors(node_rep, G, edge): one-hot row-select on the MXU
    col_ids = lax.broadcasted_iota(jnp.int32, (two_e, n_nodes), 1)
    onehot_g = (atoms_col_ref[...] == col_ids).astype(bf16)              # [2E, N]
    node2edge = jnp.dot(onehot_g, node_bf, preferred_element_type=f32)   # [2E, H]

    # --- linmaps P1->P1 broadcast half: bcast = node2edge + pair_swap(node2edge)
    # (pair swap on the XLU, no second [2E,N]@[N,H] gather matmul; W1b+W1c is
    #  folded in the wrapper so bcast itself is never materialized.)
    swapped_bf = _pair_swap_rows(node2edge).astype(bf16)
    n2e_bf = node2edge.astype(bf16)

    # --- edge MLP on cat([edge_rep, node2edge, bcast], -1) as partial dots -----
    h = jnp.dot(edge_bf, ew1a_ref[...], preferred_element_type=f32)
    h = h + jnp.dot(n2e_bf, ew1bc_ref[...], preferred_element_type=f32)
    h = h + jnp.dot(swapped_bf, ew1c_ref[...], preferred_element_type=f32)
    h = _bn_relu(h, eg1_ref[...], eb1_ref[...])
    edge_out = _bn_relu(
        jnp.dot(h.astype(bf16), ew2_ref[...], preferred_element_type=f32),
        eg2_ref[...], eb2_ref[...])                                      # [2E, H]
    edge_out_ref[...] = edge_out

    # --- gather_from_ptensors(edge_out, G, node): scatter-add via a one-hot
    # built directly in [N, 2E] orientation (no in-kernel transpose).
    row_ids = lax.broadcasted_iota(jnp.int32, (n_nodes, two_e), 0)
    onehot_s = (atoms_row_ref[...] == row_ids).astype(bf16)              # [N, 2E]
    edge2node = jnp.dot(onehot_s, edge_out.astype(bf16),
                        preferred_element_type=f32)                      # [N, H]

    # --- node MLP on cat([node_rep, edge2node], -1) as partial dots ------------
    g = jnp.dot(node_bf, nw1a_ref[...], preferred_element_type=f32)
    g = g + jnp.dot(edge2node.astype(bf16), nw1b_ref[...],
                    preferred_element_type=f32)
    g = _bn_relu(g, ng1_ref[...], nb1_ref[...])
    node_out_ref[...] = _bn_relu(
        jnp.dot(g.astype(bf16), nw2_ref[...], preferred_element_type=f32),
        ng2_ref[...], nb2_ref[...])


def _uniform(key, shape, fan_in):
    bound = 1.0 / float(fan_in) ** 0.5
    return jax.random.uniform(key, shape, jnp.float32, -bound, bound)


def init_edge_mlp_params(key, hidden_dim):
    """edge_mlp = Linear(3H->2H, no bias) BN ReLU Linear(2H->H, no bias) BN ReLU.

    W1 is returned pre-split into its three H-row blocks (edge_rep / node2edge /
    bcast); the node2edge and bcast blocks are folded (W1bc = W1b + W1c) because
    bcast = node2edge + pair_swap(node2edge).  Inner width 2H is zero-padded to
    128 lanes (inert for inference: padded h columns are exactly 0 through
    BN/ReLU with gamma=1/beta=0, padded W2 rows are 0)."""
    dmid = hidden_dim * _INNER_MLP_MULT
    assert dmid <= _DMID_PAD
    k1, k2 = jax.random.split(key)
    w1 = _uniform(k1, (3 * hidden_dim, dmid), 3 * hidden_dim)
    w2 = _uniform(k2, (dmid, hidden_dim), dmid)
    w1p = jnp.zeros((3 * hidden_dim, _DMID_PAD), jnp.float32).at[:, :dmid].set(w1)
    w2p = jnp.zeros((_DMID_PAD, hidden_dim), jnp.float32).at[:dmid, :].set(w2)
    w1a = w1p[:hidden_dim]
    w1b = w1p[hidden_dim:2 * hidden_dim]
    w1c = w1p[2 * hidden_dim:]
    gamma1 = jnp.ones((1, _DMID_PAD), jnp.float32)
    beta1 = jnp.zeros((1, _DMID_PAD), jnp.float32)
    gamma2 = jnp.ones((1, hidden_dim), jnp.float32)
    beta2 = jnp.zeros((1, hidden_dim), jnp.float32)
    return (w1a.astype(jnp.bfloat16), (w1b + w1c).astype(jnp.bfloat16),
            w1c.astype(jnp.bfloat16), gamma1, beta1,
            w2p.astype(jnp.bfloat16), gamma2, beta2)


def init_node_mlp_params(key, hidden_dim):
    """node_mlp = Linear(2H->2H, no bias) BN ReLU Linear(2H->H, no bias) BN ReLU."""
    dmid = hidden_dim * _INNER_MLP_MULT
    assert dmid <= _DMID_PAD
    k1, k2 = jax.random.split(key)
    w1 = _uniform(k1, (2 * hidden_dim, dmid), 2 * hidden_dim)
    w2 = _uniform(k2, (dmid, hidden_dim), dmid)
    w1p = jnp.zeros((2 * hidden_dim, _DMID_PAD), jnp.float32).at[:, :dmid].set(w1)
    w2p = jnp.zeros((_DMID_PAD, hidden_dim), jnp.float32).at[:dmid, :].set(w2)
    gamma1 = jnp.ones((1, _DMID_PAD), jnp.float32)
    beta1 = jnp.zeros((1, _DMID_PAD), jnp.float32)
    gamma2 = jnp.ones((1, hidden_dim), jnp.float32)
    beta2 = jnp.zeros((1, hidden_dim), jnp.float32)
    return (w1p[:hidden_dim].astype(jnp.bfloat16),
            w1p[hidden_dim:].astype(jnp.bfloat16), gamma1, beta1,
            w2p.astype(jnp.bfloat16), gamma2, beta2)


def edge_atom_indices(edges):
    """edges [E,2] int32 -> (atoms_col [2E,1], atoms_row [1,2E]).

    Row 2e of the edge-atom layout holds endpoint edges[e,0], row 2e+1 holds
    edges[e,1].  Both orientations of the index vector are built here (free
    wrapper-side layout plumbing) so the kernel forms the gather one-hot [2E,N]
    and the scatter one-hot [N,2E] directly, with no in-kernel transpose."""
    flat = edges.reshape(-1).astype(jnp.int32)
    return flat.reshape(-1, 1), flat.reshape(1, -1)


@jax.jit
def edge_node_forward(node_rep, edge_rep, atoms_col, atoms_row,
                      edge_mlp_params, node_mlp_params):
    """Fused Pallas port of Edge_node.forward. Returns (node_out [N,H], edge_out [2E,H])."""
    n_nodes, h = node_rep.shape
    two_e = edge_rep.shape[0]
    vmem = pl.BlockSpec(memory_space=pltpu.MemorySpace.VMEM)
    n_inputs = 4 + len(edge_mlp_params) + len(node_mlp_params)
    node_out, edge_out = pl.pallas_call(
        _edge_node_kernel,
        out_shape=(jax.ShapeDtypeStruct((n_nodes, h), jnp.float32),
                   jax.ShapeDtypeStruct((two_e, h), jnp.float32)),
        in_specs=[vmem] * n_inputs,
        out_specs=(vmem, vmem),
        compiler_params=pltpu.CompilerParams(vmem_limit_bytes=32 * 1024 * 1024),
    )(atoms_col, atoms_row, node_rep, edge_rep,
      *edge_mlp_params, *node_mlp_params)
    return node_out, edge_out


if __name__ == "__main__":
    hidden_dim = 32
    nodes_per_graph = 8
    num_graphs = 32   # batch graphs so MXU M-dims are 256 (node rows) / 768 (edge-atom rows)

    # Deterministic small graph per batch element: 8-cycle + 4 chords -> 12 edges.
    base_edges = jnp.array(
        [[0, 1], [1, 2], [2, 3], [3, 4], [4, 5], [5, 6], [6, 7], [7, 0],
         [0, 4], [1, 5], [2, 6], [3, 7]], dtype=jnp.int32)
    offsets = (jnp.arange(num_graphs, dtype=jnp.int32) * nodes_per_graph)[:, None, None]
    edges = (base_edges[None, :, :] + offsets).reshape(-1, 2)   # block-diagonal batch

    num_nodes = num_graphs * nodes_per_graph      # 256
    num_edges = edges.shape[0]                    # 384 edges -> 768 edge-atom rows

    key = jax.random.PRNGKey(0)
    k_node, k_edge, k_em, k_nm = jax.random.split(key, 4)

    node_rep = jax.random.normal(k_node, (num_nodes, hidden_dim), jnp.float32)
    edge_rep = jax.random.normal(k_edge, (2 * num_edges, hidden_dim), jnp.float32)

    edge_mlp_params = init_edge_mlp_params(k_em, hidden_dim)
    node_mlp_params = init_node_mlp_params(k_nm, hidden_dim)
    atoms_col, atoms_row = edge_atom_indices(edges)

    node_out, edge_out = edge_node_forward(
        node_rep, edge_rep, atoms_col, atoms_row, edge_mlp_params, node_mlp_params)
    jax.block_until_ready((node_out, edge_out))

    assert node_out.shape == (num_nodes, hidden_dim)
    assert edge_out.shape == (2 * num_edges, hidden_dim)
    assert bool(jnp.all(jnp.isfinite(node_out))) and bool(jnp.all(jnp.isfinite(edge_out)))

    print("KERNEL_OK")
</pallas_src>

<mosaic_0001>
module attributes {stable_mosaic.version = 11 : i64} {
  func.func @_edge_node_kernel(%arg0: memref<768x1xi32, #tpu.memory_space<vmem>>, %arg1: memref<1x768xi32, #tpu.memory_space<vmem>>, %arg2: memref<256x32xf32, #tpu.memory_space<vmem>>, %arg3: memref<768x32xf32, #tpu.memory_space<vmem>>, %arg4: memref<32x128xbf16, #tpu.memory_space<vmem>>, %arg5: memref<32x128xbf16, #tpu.memory_space<vmem>>, %arg6: memref<32x128xbf16, #tpu.memory_space<vmem>>, %arg7: memref<1x128xf32, #tpu.memory_space<vmem>>, %arg8: memref<1x128xf32, #tpu.memory_space<vmem>>, %arg9: memref<128x32xbf16, #tpu.memory_space<vmem>>, %arg10: memref<1x32xf32, #tpu.memory_space<vmem>>, %arg11: memref<1x32xf32, #tpu.memory_space<vmem>>, %arg12: memref<32x128xbf16, #tpu.memory_space<vmem>>, %arg13: memref<32x128xbf16, #tpu.memory_space<vmem>>, %arg14: memref<1x128xf32, #tpu.memory_space<vmem>>, %arg15: memref<1x128xf32, #tpu.memory_space<vmem>>, %arg16: memref<128x32xbf16, #tpu.memory_space<vmem>>, %arg17: memref<1x32xf32, #tpu.memory_space<vmem>>, %arg18: memref<1x32xf32, #tpu.memory_space<vmem>>, %arg19: memref<256x32xf32, #tpu.memory_space<vmem>>, %arg20: memref<768x32xf32, #tpu.memory_space<vmem>>) attributes {dimension_semantics = [], scalar_prefetch = 0 : i64, scratch_operands = 0 : i64, tpu.core_type = #tpu.core_type<tc>} {
    %c0 = arith.constant 0 : index
    %c0_0 = arith.constant 0 : index
    %0 = vector.load %arg2[%c0, %c0_0] : memref<256x32xf32, #tpu.memory_space<vmem>>, vector<256x32xf32>
    %1 = arith.truncf %0 : vector<256x32xf32> to vector<256x32xbf16>
    %c0_1 = arith.constant 0 : index
    %c0_2 = arith.constant 0 : index
    %2 = vector.load %arg3[%c0_1, %c0_2] : memref<768x32xf32, #tpu.memory_space<vmem>>, vector<768x32xf32>
    %3 = arith.truncf %2 : vector<768x32xf32> to vector<768x32xbf16>
    %4 = tpu.iota {dimensions = array<i32: 1>} : vector<768x256xi32>
    %c0_3 = arith.constant 0 : index
    %c0_4 = arith.constant 0 : index
    %5 = vector.load %arg0[%c0_3, %c0_4] : memref<768x1xi32, #tpu.memory_space<vmem>>, vector<768x1xi32>
    %6 = vector.broadcast %5 : vector<768x1xi32> to vector<768x256xi32>
    %7 = arith.cmpi eq, %6, %4 : vector<768x256xi32>
    %8 = arith.extui %7 : vector<768x256xi1> to vector<768x256xi32>
    %9 = arith.sitofp %8 : vector<768x256xi32> to vector<768x256xf32>
    %10 = arith.truncf %9 : vector<768x256xf32> to vector<768x256xbf16>
    %cst = arith.constant dense<0.000000e+00> : vector<768x32xf32>
    %11 = tpu.matmul %10, %1, %cst {dimension_numbers = #tpu.dot_dimension_numbers<[1], [0], [0], [1], [0, 0, 1, 1], [], []>} : vector<768x256xbf16>, vector<256x32xbf16>, vector<768x32xf32> -> vector<768x32xf32>
    %c767_i32 = arith.constant 767 : i32
    %12 = tpu.dynamic_rotate %11 by %c767_i32 dim 0 : vector<768x32xf32>, i32 -> vector<768x32xf32>
    %c1_i32 = arith.constant 1 : i32
    %13 = tpu.dynamic_rotate %11 by %c1_i32 dim 0 : vector<768x32xf32>, i32 -> vector<768x32xf32>
    %14 = tpu.iota {dimensions = array<i32: 0>} : vector<768x32xi32>
    %c1_i32_5 = arith.constant 1 : i32
    %15 = vector.broadcast %c1_i32_5 : i32 to vector<768x32xi32>
    %16 = arith.andi %14, %15 : vector<768x32xi32>
    %c0_i32 = arith.constant 0 : i32
    %17 = vector.broadcast %c0_i32 : i32 to vector<768x32xi32>
    %18 = arith.cmpi eq, %16, %17 : vector<768x32xi32>
    %19 = arith.select %18, %12, %13 : vector<768x32xi1>, vector<768x32xf32>
    %20 = arith.truncf %19 : vector<768x32xf32> to vector<768x32xbf16>
    %21 = arith.truncf %11 : vector<768x32xf32> to vector<768x32xbf16>
    %c0_6 = arith.constant 0 : index
    %c0_7 = arith.constant 0 : index
    %22 = vector.load %arg4[%c0_6, %c0_7] : memref<32x128xbf16, #tpu.memory_space<vmem>>, vector<32x128xbf16>
    %cst_8 = arith.constant dense<0.000000e+00> : vector<768x128xf32>
    %23 = tpu.matmul %3, %22, %cst_8 {dimension_numbers = #tpu.dot_dimension_numbers<[1], [0], [0], [1], [0, 0, 1, 1], [], []>} : vector<768x32xbf16>, vector<32x128xbf16>, vector<768x128xf32> -> vector<768x128xf32>
    %c0_9 = arith.constant 0 : index
    %c0_10 = arith.constant 0 : index
    %24 = vector.load %arg5[%c0_9, %c0_10] : memref<32x128xbf16, #tpu.memory_space<vmem>>, vector<32x128xbf16>
    %cst_11 = arith.constant dense<0.000000e+00> : vector<768x128xf32>
    %25 = tpu.matmul %21, %24, %cst_11 {dimension_numbers = #tpu.dot_dimension_numbers<[1], [0], [0], [1], [0, 0, 1, 1], [], []>} : vector<768x32xbf16>, vector<32x128xbf16>, vector<768x128xf32> -> vector<768x128xf32>
    %26 = arith.addf %23, %25 : vector<768x128xf32>
    %c0_12 = arith.constant 0 : index
    %c0_13 = arith.constant 0 : index
    %27 = vector.load %arg6[%c0_12, %c0_13] : memref<32x128xbf16, #tpu.memory_space<vmem>>, vector<32x128xbf16>
    %cst_14 = arith.constant dense<0.000000e+00> : vector<768x128xf32>
    %28 = tpu.matmul %20, %27, %cst_14 {dimension_numbers = #tpu.dot_dimension_numbers<[1], [0], [0], [1], [0, 0, 1, 1], [], []>} : vector<768x32xbf16>, vector<32x128xbf16>, vector<768x128xf32> -> vector<768x128xf32>
    %29 = arith.addf %26, %28 : vector<768x128xf32>
    %c0_15 = arith.constant 0 : index
    %c0_16 = arith.constant 0 : index
    %30 = vector.load %arg7[%c0_15, %c0_16] : memref<1x128xf32, #tpu.memory_space<vmem>>, vector<1x128xf32>
    %c0_17 = arith.constant 0 : index
    %c0_18 = arith.constant 0 : index
    %31 = vector.load %arg8[%c0_17, %c0_18] : memref<1x128xf32, #tpu.memory_space<vmem>>, vector<1x128xf32>
    %cst_19 = arith.constant dense<0.000000e+00> : vector<128xf32>
    %32 = vector.multi_reduction <add>, %29, %cst_19 [0] : vector<768x128xf32> to vector<128xf32>
    %33 = vector.shape_cast %32 : vector<128xf32> to vector<1x128xf32>
    %cst_20 = arith.constant 0.00130208337 : f32
    %34 = vector.broadcast %cst_20 : f32 to vector<1x128xf32>
    %35 = arith.mulf %33, %34 : vector<1x128xf32>
    %36 = vector.broadcast %35 : vector<1x128xf32> to vector<768x128xf32>
    %37 = arith.subf %29, %36 : vector<768x128xf32>
    %38 = arith.mulf %37, %37 : vector<768x128xf32>
    %cst_21 = arith.constant dense<0.000000e+00> : vector<128xf32>
    %39 = vector.multi_reduction <add>, %38, %cst_21 [0] : vector<768x128xf32> to vector<128xf32>
    %40 = vector.shape_cast %39 : vector<128xf32> to vector<1x128xf32>
    %cst_22 = arith.constant 0.00130208337 : f32
    %41 = vector.broadcast %cst_22 : f32 to vector<1x128xf32>
    %42 = arith.mulf %40, %41 : vector<1x128xf32>
    %cst_23 = arith.constant 9.99999974E-6 : f32
    %43 = vector.broadcast %cst_23 : f32 to vector<1x128xf32>
    %44 = arith.addf %42, %43 : vector<1x128xf32>
    %45 = math.rsqrt %44 : vector<1x128xf32>
    %46 = arith.mulf %30, %45 : vector<1x128xf32>
    %47 = vector.broadcast %46 : vector<1x128xf32> to vector<768x128xf32>
    %48 = arith.mulf %37, %47 : vector<768x128xf32>
    %49 = vector.broadcast %31 : vector<1x128xf32> to vector<768x128xf32>
    %50 = arith.addf %48, %49 : vector<768x128xf32>
    %cst_24 = arith.constant 0.000000e+00 : f32
    %51 = vector.broadcast %cst_24 : f32 to vector<768x128xf32>
    %52 = arith.maximumf %50, %51 : vector<768x128xf32>
    %53 = arith.truncf %52 : vector<768x128xf32> to vector<768x128xbf16>
    %c0_25 = arith.constant 0 : index
    %c0_26 = arith.constant 0 : index
    %54 = vector.load %arg9[%c0_25, %c0_26] : memref<128x32xbf16, #tpu.memory_space<vmem>>, vector<128x32xbf16>
    %cst_27 = arith.constant dense<0.000000e+00> : vector<768x32xf32>
    %55 = tpu.matmul %53, %54, %cst_27 {dimension_numbers = #tpu.dot_dimension_numbers<[1], [0], [0], [1], [0, 0, 1, 1], [], []>} : vector<768x128xbf16>, vector<128x32xbf16>, vector<768x32xf32> -> vector<768x32xf32>
    %c0_28 = arith.constant 0 : index
    %c0_29 = arith.constant 0 : index
    %56 = vector.load %arg10[%c0_28, %c0_29] : memref<1x32xf32, #tpu.memory_space<vmem>>, vector<1x32xf32>
    %c0_30 = arith.constant 0 : index
    %c0_31 = arith.constant 0 : index
    %57 = vector.load %arg11[%c0_30, %c0_31] : memref<1x32xf32, #tpu.memory_space<vmem>>, vector<1x32xf32>
    %cst_32 = arith.constant dense<0.000000e+00> : vector<32xf32>
    %58 = vector.multi_reduction <add>, %55, %cst_32 [0] : vector<768x32xf32> to vector<32xf32>
    %59 = vector.shape_cast %58 : vector<32xf32> to vector<1x32xf32>
    %cst_33 = arith.constant 0.00130208337 : f32
    %60 = vector.broadcast %cst_33 : f32 to vector<1x32xf32>
    %61 = arith.mulf %59, %60 : vector<1x32xf32>
    %62 = vector.broadcast %61 : vector<1x32xf32> to vector<768x32xf32>
    %63 = arith.subf %55, %62 : vector<768x32xf32>
    %64 = arith.mulf %63, %63 : vector<768x32xf32>
    %cst_34 = arith.constant dense<0.000000e+00> : vector<32xf32>
    %65 = vector.multi_reduction <add>, %64, %cst_34 [0] : vector<768x32xf32> to vector<32xf32>
    %66 = vector.shape_cast %65 : vector<32xf32> to vector<1x32xf32>
    %cst_35 = arith.constant 0.00130208337 : f32
    %67 = vector.broadcast %cst_35 : f32 to vector<1x32xf32>
    %68 = arith.mulf %66, %67 : vector<1x32xf32>
    %cst_36 = arith.constant 9.99999974E-6 : f32
    %69 = vector.broadcast %cst_36 : f32 to vector<1x32xf32>
    %70 = arith.addf %68, %69 : vector<1x32xf32>
    %71 = math.rsqrt %70 : vector<1x32xf32>
    %72 = arith.mulf %56, %71 : vector<1x32xf32>
    %73 = vector.broadcast %72 : vector<1x32xf32> to vector<768x32xf32>
    %74 = arith.mulf %63, %73 : vector<768x32xf32>
    %75 = vector.broadcast %57 : vector<1x32xf32> to vector<768x32xf32>
    %76 = arith.addf %74, %75 : vector<768x32xf32>
    %cst_37 = arith.constant 0.000000e+00 : f32
    %77 = vector.broadcast %cst_37 : f32 to vector<768x32xf32>
    %78 = arith.maximumf %76, %77 : vector<768x32xf32>
    %c0_38 = arith.constant 0 : index
    %c0_39 = arith.constant 0 : index
    %79 = vector.load %arg20[%c0_38, %c0_39] : memref<768x32xf32, #tpu.memory_space<vmem>>, vector<768x32xf32>
    tpu.vector_store %arg20[%c0_38, %c0_39], %78 {strides = array<i32>} : memref<768x32xf32, #tpu.memory_space<vmem>>, vector<768x32xf32>,
    %80 = tpu.iota {dimensions = array<i32: 0>} : vector<256x768xi32>
    %c0_40 = arith.constant 0 : index
    %c0_41 = arith.constant 0 : index
    %81 = vector.load %arg1[%c0_40, %c0_41] : memref<1x768xi32, #tpu.memory_space<vmem>>, vector<1x768xi32>
    %82 = vector.broadcast %81 : vector<1x768xi32> to vector<256x768xi32>
    %83 = arith.cmpi eq, %82, %80 : vector<256x768xi32>
    %84 = arith.extui %83 : vector<256x768xi1> to vector<256x768xi32>
    %85 = arith.sitofp %84 : vector<256x768xi32> to vector<256x768xf32>
    %86 = arith.truncf %85 : vector<256x768xf32> to vector<256x768xbf16>
    %87 = arith.truncf %78 : vector<768x32xf32> to vector<768x32xbf16>
    %cst_42 = arith.constant dense<0.000000e+00> : vector<256x32xf32>
    %88 = tpu.matmul %86, %87, %cst_42 {dimension_numbers = #tpu.dot_dimension_numbers<[1], [0], [0], [1], [0, 0, 1, 1], [], []>} : vector<256x768xbf16>, vector<768x32xbf16>, vector<256x32xf32> -> vector<256x32xf32>
    %c0_43 = arith.constant 0 : index
    %c0_44 = arith.constant 0 : index
    %89 = vector.load %arg12[%c0_43, %c0_44] : memref<32x128xbf16, #tpu.memory_space<vmem>>, vector<32x128xbf16>
    %cst_45 = arith.constant dense<0.000000e+00> : vector<256x128xf32>
    %90 = tpu.matmul %1, %89, %cst_45 {dimension_numbers = #tpu.dot_dimension_numbers<[1], [0], [0], [1], [0, 0, 1, 1], [], []>} : vector<256x32xbf16>, vector<32x128xbf16>, vector<256x128xf32> -> vector<256x128xf32>
    %91 = arith.truncf %88 : vector<256x32xf32> to vector<256x32xbf16>
    %c0_46 = arith.constant 0 : index
    %c0_47 = arith.constant 0 : index
    %92 = vector.load %arg13[%c0_46, %c0_47] : memref<32x128xbf16, #tpu.memory_space<vmem>>, vector<32x128xbf16>
    %cst_48 = arith.constant dense<0.000000e+00> : vector<256x128xf32>
    %93 = tpu.matmul %91, %92, %cst_48 {dimension_numbers = #tpu.dot_dimension_numbers<[1], [0], [0], [1], [0, 0, 1, 1], [], []>} : vector<256x32xbf16>, vector<32x128xbf16>, vector<256x128xf32> -> vector<256x128xf32>
    %94 = arith.addf %90, %93 : vector<256x128xf32>
    %c0_49 = arith.constant 0 : index
    %c0_50 = arith.constant 0 : index
    %95 = vector.load %arg14[%c0_49, %c0_50] : memref<1x128xf32, #tpu.memory_space<vmem>>, vector<1x128xf32>
    %c0_51 = arith.constant 0 : index
    %c0_52 = arith.constant 0 : index
    %96 = vector.load %arg15[%c0_51, %c0_52] : memref<1x128xf32, #tpu.memory_space<vmem>>, vector<1x128xf32>
    %cst_53 = arith.constant dense<0.000000e+00> : vector<128xf32>
    %97 = vector.multi_reduction <add>, %94, %cst_53 [0] : vector<256x128xf32> to vector<128xf32>
    %98 = vector.shape_cast %97 : vector<128xf32> to vector<1x128xf32>
    %cst_54 = arith.constant 3.906250e-03 : f32
    %99 = vector.broadcast %cst_54 : f32 to vector<1x128xf32>
    %100 = arith.mulf %98, %99 : vector<1x128xf32>
    %101 = vector.broadcast %100 : vector<1x128xf32> to vector<256x128xf32>
    %102 = arith.subf %94, %101 : vector<256x128xf32>
    %103 = arith.mulf %102, %102 : vector<256x128xf32>
    %cst_55 = arith.constant dense<0.000000e+00> : vector<128xf32>
    %104 = vector.multi_reduction <add>, %103, %cst_55 [0] : vector<256x128xf32> to vector<128xf32>
    %105 = vector.shape_cast %104 : vector<128xf32> to vector<1x128xf32>
    %cst_56 = arith.constant 3.906250e-03 : f32
    %106 = vector.broadcast %cst_56 : f32 to vector<1x128xf32>
    %107 = arith.mulf %105, %106 : vector<1x128xf32>
    %cst_57 = arith.constant 9.99999974E-6 : f32
    %108 = vector.broadcast %cst_57 : f32 to vector<1x128xf32>
    %109 = arith.addf %107, %108 : vector<1x128xf32>
    %110 = math.rsqrt %109 : vector<1x128xf32>
    %111 = arith.mulf %95, %110 : vector<1x128xf32>
    %112 = vector.broadcast %111 : vector<1x128xf32> to vector<256x128xf32>
    %113 = arith.mulf %102, %112 : vector<256x128xf32>
    %114 = vector.broadcast %96 : vector<1x128xf32> to vector<256x128xf32>
    %115 = arith.addf %113, %114 : vector<256x128xf32>
    %cst_58 = arith.constant 0.000000e+00 : f32
    %116 = vector.broadcast %cst_58 : f32 to vector<256x128xf32>
    %117 = arith.maximumf %115, %116 : vector<256x128xf32>
    %118 = arith.truncf %117 : vector<256x128xf32> to vector<256x128xbf16>
    %c0_59 = arith.constant 0 : index
    %c0_60 = arith.constant 0 : index
    %119 = vector.load %arg16[%c0_59, %c0_60] : memref<128x32xbf16, #tpu.memory_space<vmem>>, vector<128x32xbf16>
    %cst_61 = arith.constant dense<0.000000e+00> : vector<256x32xf32>
    %120 = tpu.matmul %118, %119, %cst_61 {dimension_numbers = #tpu.dot_dimension_numbers<[1], [0], [0], [1], [0, 0, 1, 1], [], []>} : vector<256x128xbf16>, vector<128x32xbf16>, vector<256x32xf32> -> vector<256x32xf32>
    %c0_62 = arith.constant 0 : index
    %c0_63 = arith.constant 0 : index
    %121 = vector.load %arg17[%c0_62, %c0_63] : memref<1x32xf32, #tpu.memory_space<vmem>>, vector<1x32xf32>
    %c0_64 = arith.constant 0 : index
    %c0_65 = arith.constant 0 : index
    %122 = vector.load %arg18[%c0_64, %c0_65] : memref<1x32xf32, #tpu.memory_space<vmem>>, vector<1x32xf32>
    %cst_66 = arith.constant dense<0.000000e+00> : vector<32xf32>
    %123 = vector.multi_reduction <add>, %120, %cst_66 [0] : vector<256x32xf32> to vector<32xf32>
    %124 = vector.shape_cast %123 : vector<32xf32> to vector<1x32xf32>
    %cst_67 = arith.constant 3.906250e-03 : f32
    %125 = vector.broadcast %cst_67 : f32 to vector<1x32xf32>
    %126 = arith.mulf %124, %125 : vector<1x32xf32>
    %127 = vector.broadcast %126 : vector<1x32xf32> to vector<256x32xf32>
    %128 = arith.subf %120, %127 : vector<256x32xf32>
    %129 = arith.mulf %128, %128 : vector<256x32xf32>
    %cst_68 = arith.constant dense<0.000000e+00> : vector<32xf32>
    %130 = vector.multi_reduction <add>, %129, %cst_68 [0] : vector<256x32xf32> to vector<32xf32>
    %131 = vector.shape_cast %130 : vector<32xf32> to vector<1x32xf32>
    %cst_69 = arith.constant 3.906250e-03 : f32
    %132 = vector.broadcast %cst_69 : f32 to vector<1x32xf32>
    %133 = arith.mulf %131, %132 : vector<1x32xf32>
    %cst_70 = arith.constant 9.99999974E-6 : f32
    %134 = vector.broadcast %cst_70 : f32 to vector<1x32xf32>
    %135 = arith.addf %133, %134 : vector<1x32xf32>
    %136 = math.rsqrt %135 : vector<1x32xf32>
    %137 = arith.mulf %121, %136 : vector<1x32xf32>
    %138 = vector.broadcast %137 : vector<1x32xf32> to vector<256x32xf32>
    %139 = arith.mulf %128, %138 : vector<256x32xf32>
    %140 = vector.broadcast %122 : vector<1x32xf32> to vector<256x32xf32>
    %141 = arith.addf %139, %140 : vector<256x32xf32>
    %cst_71 = arith.constant 0.000000e+00 : f32
    %142 = vector.broadcast %cst_71 : f32 to vector<256x32xf32>
    %143 = arith.maximumf %141, %142 : vector<256x32xf32>
    %c0_72 = arith.constant 0 : index
    %c0_73 = arith.constant 0 : index
    %144 = vector.load %arg19[%c0_72, %c0_73] : memref<256x32xf32, #tpu.memory_space<vmem>>, vector<256x32xf32>
    tpu.vector_store %arg19[%c0_72, %c0_73], %143 {strides = array<i32>} : memref<256x32xf32, #tpu.memory_space<vmem>>, vector<256x32xf32>,
    return
  }
}

</mosaic_0001>

<llo_original>
// kernel: edge_node_forward.1
$region0: #{edge_node_forward.1}
  #allocation0 [shape = 'u32[]', space=smem, size = 0x4, offset = 0x4, fixed_abs, tag = 'smem constant byte address 0x4 - core index']
  #allocation1 [shape = 'u32[72,128]{1,0:T(1,128)}', space=vmem, size = 0x9000, scoped, tag = 'internal scratch']
  %s0 = inlined_call_operand.vmem [shape: s32[768,1], index: 0, kind: input, shape index: {}]
  %s1 = inlined_call_operand.vmem [shape: s32[1,768], index: 1, kind: input, shape index: {}]
  %s2 = inlined_call_operand.vmem [shape: f32[256,32], index: 2, kind: input, shape index: {}]
  %s3 = inlined_call_operand.vmem [shape: f32[768,32], index: 3, kind: input, shape index: {}]
  %s4 = inlined_call_operand.vmem [shape: bf16[32,128], index: 4, kind: input, shape index: {}]
  %s5 = inlined_call_operand.vmem [shape: bf16[32,128], index: 5, kind: input, shape index: {}]
  %s6 = inlined_call_operand.vmem [shape: bf16[32,128], index: 6, kind: input, shape index: {}]
  %s7 = inlined_call_operand.vmem [shape: f32[1,128], index: 7, kind: input, shape index: {}]
  %s8 = inlined_call_operand.vmem [shape: f32[1,128], index: 8, kind: input, shape index: {}]
  %s9 = inlined_call_operand.vmem [shape: bf16[128,32], index: 9, kind: input, shape index: {}]
  %s10 = inlined_call_operand.vmem [shape: f32[1,32], index: 10, kind: input, shape index: {}]
  %s11 = inlined_call_operand.vmem [shape: f32[1,32], index: 11, kind: input, shape index: {}]
  %s12 = inlined_call_operand.vmem [shape: bf16[32,128], index: 12, kind: input, shape index: {}]
  %s13 = inlined_call_operand.vmem [shape: bf16[32,128], index: 13, kind: input, shape index: {}]
  %s14 = inlined_call_operand.vmem [shape: f32[1,128], index: 14, kind: input, shape index: {}]
  %s15 = inlined_call_operand.vmem [shape: f32[1,128], index: 15, kind: input, shape index: {}]
  %s16 = inlined_call_operand.vmem [shape: bf16[128,32], index: 16, kind: input, shape index: {}]
  %s17 = inlined_call_operand.vmem [shape: f32[1,32], index: 17, kind: input, shape index: {}]
  %s18 = inlined_call_operand.vmem [shape: f32[1,32], index: 18, kind: input, shape index: {}]
  %s19 = inlined_call_operand.vmem [shape: f32[256,32], index: 19, kind: output, shape index: {0}]
  %s20 = inlined_call_operand.vmem [shape: f32[768,32], index: 20, kind: output, shape index: {1}]
  %21 = xla_tuple %s19, %s20
  %s22 = sld [smem:[#allocation0]]
  $region94: #{edge_node_forward.1} parent=0
    _
  %s24 = ssub.s32 1, %s22
  %s25 = scalar_select 0, %s24, %s22
  // Predicated region
  $region2: #{edge_node_forward.1} parent=0 // pred_check
    _
  $region3: #{edge_node_forward.1} parent=0 // pred_check_branch
    %27 = sbr.rel (0) target = $region5
  $region4: #{edge_node_forward.1} parent=0 // pred_region
    _
  $region5: #{edge_node_forward.1} parent=0 // pred_fallthru
    _
  // Predicated region
  $region6: #{edge_node_forward.1} parent=0 // pred_check
    _
  $region7: #{edge_node_forward.1} parent=0 // pred_check_branch
    %29 = sbr.rel (0) target = $region9
  $region8: #{edge_node_forward.1} parent=0 // pred_region
    _
  $region9: #{edge_node_forward.1} parent=0 // pred_fallthru
    _
  // Predicated region
  $region10: #{edge_node_forward.1} parent=0 // pred_check
    _
  $region11: #{edge_node_forward.1} parent=0 // pred_check_branch
    %31 = sbr.rel (0) target = $region13
  $region12: #{edge_node_forward.1} parent=0 // pred_region
    _
  $region13: #{edge_node_forward.1} parent=0 // pred_fallthru
    _
  // Predicated region
  $region14: #{edge_node_forward.1} parent=0 // pred_check
    _
  $region15: #{edge_node_forward.1} parent=0 // pred_check_branch
    %33 = sbr.rel (0) target = $region17
  $region16: #{edge_node_forward.1} parent=0 // pred_region
    _
  $region17: #{edge_node_forward.1} parent=0 // pred_fallthru
    _
  // Predicated region
  $region18: #{edge_node_forward.1} parent=0 // pred_check
    _
  $region19: #{edge_node_forward.1} parent=0 // pred_check_branch
    %35 = sbr.rel (0) target = $region21
  $region20: #{edge_node_forward.1} parent=0 // pred_region
    _
  $region21: #{edge_node_forward.1} parent=0 // pred_fallthru
    _
  // Predicated region
  $region22: #{edge_node_forward.1} parent=0 // pred_check
    _
  $region23: #{edge_node_forward.1} parent=0 // pred_check_branch
    %37 = sbr.rel (0) target = $region25
  $region24: #{edge_node_forward.1} parent=0 // pred_region
    _
  $region25: #{edge_node_forward.1} parent=0 // pred_fallthru
    _
  // Predicated region
  $region26: #{edge_node_forward.1} parent=0 // pred_check
    _
  $region27: #{edge_node_forward.1} parent=0 // pred_check_branch
    %39 = sbr.rel (0) target = $region29
  $region28: #{edge_node_forward.1} parent=0 // pred_region
    _
  $region29: #{edge_node_forward.1} parent=0 // pred_fallthru
    _
  // Predicated region
  $region30: #{edge_node_forward.1} parent=0 // pred_check
    _
  $region31: #{edge_node_forward.1} parent=0 // pred_check_branch
    %41 = sbr.rel (0) target = $region33
  $region32: #{edge_node_forward.1} parent=0 // pred_region
    _
  $region33: #{edge_node_forward.1} parent=0 // pred_fallthru
    _
  // Predicated region
  $region34: #{edge_node_forward.1} parent=0 // pred_check
    _
  $region35: #{edge_node_forward.1} parent=0 // pred_check_branch
    %43 = sbr.rel (0) target = $region37
  $region36: #{edge_node_forward.1} parent=0 // pred_region
    _
  $region37: #{edge_node_forward.1} parent=0 // pred_fallthru
    _
  // Predicated region
  $region38: #{edge_node_forward.1} parent=0 // pred_check
    _
  $region39: #{edge_node_forward.1} parent=0 // pred_check_branch
    %45 = sbr.rel (0) target = $region41
  $region40: #{edge_node_forward.1} parent=0 // pred_region
    _
  $region41: #{edge_node_forward.1} parent=0 // pred_fallthru
    _
  // Predicated region
  $region42: #{edge_node_forward.1} parent=0 // pred_check
    _
  $region43: #{edge_node_forward.1} parent=0 // pred_check_branch
    %47 = sbr.rel (0) target = $region45
  $region44: #{edge_node_forward.1} parent=0 // pred_region
    _
  $region45: #{edge_node_forward.1} parent=0 // pred_fallthru
    _
  // Predicated region
  $region46: #{edge_node_forward.1} parent=0 // pred_check
    _
  $region47: #{edge_node_forward.1} parent=0 // pred_check_branch
    %49 = sbr.rel (0) target = $region49
  $region48: #{edge_node_forward.1} parent=0 // pred_region
    _
  $region49: #{edge_node_forward.1} parent=0 // pred_fallthru
    _
  // Predicated region
  $region50: #{edge_node_forward.1} parent=0 // pred_check
    _
  $region51: #{edge_node_forward.1} parent=0 // pred_check_branch
    %51 = sbr.rel (0) target = $region53
  $region52: #{edge_node_forward.1} parent=0 // pred_region
    _
  $region53: #{edge_node_forward.1} parent=0 // pred_fallthru
    _
  // Predicated region
  $region54: #{edge_node_forward.1} parent=0 // pred_check
    _
  $region55: #{edge_node_forward.1} parent=0 // pred_check_branch
    %53 = sbr.rel (0) target = $region57
  $region56: #{edge_node_forward.1} parent=0 // pred_region
    _
  $region57: #{edge_node_forward.1} parent=0 // pred_fallthru
    _
  // Predicated region
  $region58: #{edge_node_forward.1} parent=0 // pred_check
    _
  $region59: #{edge_node_forward.1} parent=0 // pred_check_branch
    %55 = sbr.rel (0) target = $region61
  $region60: #{edge_node_forward.1} parent=0 // pred_region
    _
  $region61: #{edge_node_forward.1} parent=0 // pred_fallthru
    _
  // Predicated region
  $region62: #{edge_node_forward.1} parent=0 // pred_check
    _
  $region63: #{edge_node_forward.1} parent=0 // pred_check_branch
    %57 = sbr.rel (0) target = $region65
  $region64: #{edge_node_forward.1} parent=0 // pred_region
    _
  $region65: #{edge_node_forward.1} parent=0 // pred_fallthru
    _
  // Predicated region
  $region66: #{edge_node_forward.1} parent=0 // pred_check
    _
  $region67: #{edge_node_forward.1} parent=0 // pred_check_branch
    %59 = sbr.rel (0) target = $region69
  $region68: #{edge_node_forward.1} parent=0 // pred_region
    _
  $region69: #{edge_node_forward.1} parent=0 // pred_fallthru
    _
  // Predicated region
  $region70: #{edge_node_forward.1} parent=0 // pred_check
    _
  $region71: #{edge_node_forward.1} parent=0 // pred_check_branch
    %61 = sbr.rel (0) target = $region73
  $region72: #{edge_node_forward.1} parent=0 // pred_region
    _
  $region73: #{edge_node_forward.1} parent=0 // pred_fallthru
    _
  // Predicated region
  $region74: #{edge_node_forward.1} parent=0 // pred_check
    _
  $region75: #{edge_node_forward.1} parent=0 // pred_check_branch
    %63 = sbr.rel (0) target = $region77
  $region76: #{edge_node_forward.1} parent=0 // pred_region
    _
  $region77: #{edge_node_forward.1} parent=0 // pred_fallthru
    _
  %v65 = vld [vmem:[%s2] sm:$0xff]
  %v66 = vld [vmem:[%s2 + $0x8] sm:$0xff]
  %v67 = vld [vmem:[%s2 + $0x10] sm:$0xff]
  %v68 = vld [vmem:[%s2 + $0x18] sm:$0xff]
  %v69 = vld [vmem:[%s2 + $0x20] sm:$0xff]
  %v70 = vld [vmem:[%s2 + $0x28] sm:$0xff]
  %v71 = vld [vmem:[%s2 + $0x30] sm:$0xff]
  %v72 = vld [vmem:[%s2 + $0x38] sm:$0xff]
  %v73 = vld [vmem:[%s2 + $0x40] sm:$0xff]
  %v74 = vld [vmem:[%s2 + $0x48] sm:$0xff]
  %v75 = vld [vmem:[%s2 + $0x50] sm:$0xff]
  %v76 = vld [vmem:[%s2 + $0x58] sm:$0xff]
  %v77 = vld [vmem:[%s2 + $0x60] sm:$0xff]
  %v78 = vld [vmem:[%s2 + $0x68] sm:$0xff]
  %v79 = vld [vmem:[%s2 + $0x70] sm:$0xff]
  %v80 = vld [vmem:[%s2 + $0x78] sm:$0xff]
  %v81 = vld [vmem:[%s2 + $0x80] sm:$0xff]
  %v82 = vld [vmem:[%s2 + $0x88] sm:$0xff]
  %v83 = vld [vmem:[%s2 + $0x90] sm:$0xff]
  %v84 = vld [vmem:[%s2 + $0x98] sm:$0xff]
  %v85 = vld [vmem:[%s2 + $0xa0] sm:$0xff]
  %v86 = vld [vmem:[%s2 + $0xa8] sm:$0xff]
  %v87 = vld [vmem:[%s2 + $0xb0] sm:$0xff]
  %v88 = vld [vmem:[%s2 + $0xb8] sm:$0xff]
  %v89 = vld [vmem:[%s2 + $0xc0] sm:$0xff]
  %v90 = vld [vmem:[%s2 + $0xc8] sm:$0xff]
  %v91 = vld [vmem:[%s2 + $0xd0] sm:$0xff]
  %v92 = vld [vmem:[%s2 + $0xd8] sm:$0xff]
  %v93 = vld [vmem:[%s2 + $0xe0] sm:$0xff]
  %v94 = vld [vmem:[%s2 + $0xe8] sm:$0xff]
  %v95 = vld [vmem:[%s2 + $0xf0] sm:$0xff]
  %v96 = vld [vmem:[%s2 + $0xf8] sm:$0xff]
  %v97 = vpack.c.bf16 %v66, %v65
  %v98 = vpack.c.bf16 %v68, %v67
  %v99 = vpack.c.bf16 %v70, %v69
  %v100 = vpack.c.bf16 %v72, %v71
  %v101 = vpack.c.bf16 %v74, %v73
  %v102 = vpack.c.bf16 %v76, %v75
  %v103 = vpack.c.bf16 %v78, %v77
  %v104 = vpack.c.bf16 %v80, %v79
  %v105 = vpack.c.bf16 %v82, %v81
  %v106 = vpack.c.bf16 %v84, %v83
  %v107 = vpack.c.bf16 %v86, %v85
  %v108 = vpack.c.bf16 %v88, %v87
  %v109 = vpack.c.bf16 %v90, %v89
  %v110 = vpack.c.bf16 %v92, %v91
  %v111 = vpack.c.bf16 %v94, %v93
  %v112 = vpack.c.bf16 %v96, %v95
  %v113 = vld [vmem:[%s3] sm:$0xff]
  %v114 = vld [vmem:[%s3 + $0x8] sm:$0xff]
  %v115 = vld [vmem:[%s3 + $0x10] sm:$0xff]
  %v116 = vld [vmem:[%s3 + $0x18] sm:$0xff]
  %v117 = vld [vmem:[%s3 + $0x20] sm:$0xff]
  %v118 = vld [vmem:[%s3 + $0x28] sm:$0xff]
  %v119 = vld [vmem:[%s3 + $0x30] sm:$0xff]
  %v120 = vld [vmem:[%s3 + $0x38] sm:$0xff]
  %v121 = vld [vmem:[%s3 + $0x40] sm:$0xff]
  %v122 = vld [vmem:[%s3 + $0x48] sm:$0xff]
  %v123 = vld [vmem:[%s3 + $0x50] sm:$0xff]
  %v124 = vld [vmem:[%s3 + $0x58] sm:$0xff]
  %v125 = vld [vmem:[%s3 + $0x60] sm:$0xff]
  %v126 = vld [vmem:[%s3 + $0x68] sm:$0xff]
  %v127 = vld [vmem:[%s3 + $0x70] sm:$0xff]
  %v128 = vld [vmem:[%s3 + $0x78] sm:$0xff]
  %v129 = vld [vmem:[%s3 + $0x80] sm:$0xff]
  %v130 = vld [vmem:[%s3 + $0x88] sm:$0xff]
  %v131 = vld [vmem:[%s3 + $0x90] sm:$0xff]
  %v132 = vld [vmem:[%s3 + $0x98] sm:$0xff]
  %v133 = vld [vmem:[%s3 + $0xa0] sm:$0xff]
  %v134 = vld [vmem:[%s3 + $0xa8] sm:$0xff]
  %v135 = vld [vmem:[%s3 + $0xb0] sm:$0xff]
  %v136 = vld [vmem:[%s3 + $0xb8] sm:$0xff]
  %v137 = vld [vmem:[%s3 + $0xc0] sm:$0xff]
  %v138 = vld [vmem:[%s3 + $0xc8] sm:$0xff]
  %v139 = vld [vmem:[%s3 + $0xd0] sm:$0xff]
  %v140 = vld [vmem:[%s3 + $0xd8] sm:$0xff]
  %v141 = vld [vmem:[%s3 + $0xe0] sm:$0xff]
  %v142 = vld [vmem:[%s3 + $0xe8] sm:$0xff]
  %v143 = vld [vmem:[%s3 + $0xf0] sm:$0xff]
  %v144 = vld [vmem:[%s3 + $0xf8] sm:$0xff]
  %v145 = vld [vmem:[%s3 + $0x100] sm:$0xff]
  %v146 = vld [vmem:[%s3 + $0x108] sm:$0xff]
  %v147 = vld [vmem:[%s3 + $0x110] sm:$0xff]
  %v148 = vld [vmem:[%s3 + $0x118] sm:$0xff]
  %v149 = vld [vmem:[%s3 + $0x120] sm:$0xff]
  %v150 = vld [vmem:[%s3 + $0x128] sm:$0xff]
  %v151 = vld [vmem:[%s3 + $0x130] sm:$0xff]
  %v152 = vld [vmem:[%s3 + $0x138] sm:$0xff]
  %v153 = vld [vmem:[%s3 + $0x140] sm:$0xff]
  %v154 = vld [vmem:[%s3 + $0x148] sm:$0xff]
  %v155 = vld [vmem:[%s3 + $0x150] sm:$0xff]
  %v156 = vld [vmem:[%s3 + $0x158] sm:$0xff]
  %v157 = vld [vmem:[%s3 + $0x160] sm:$0xff]
  %v158 = vld [vmem:[%s3 + $0x168] sm:$0xff]
  %v159 = vld [vmem:[%s3 + $0x170] sm:$0xff]
  %v160 = vld [vmem:[%s3 + $0x178] sm:$0xff]
  %v161 = vld [vmem:[%s3 + $0x180] sm:$0xff]
  %v162 = vld [vmem:[%s3 + $0x188] sm:$0xff]
  %v163 = vld [vmem:[%s3 + $0x190] sm:$0xff]
  %v164 = vld [vmem:[%s3 + $0x198] sm:$0xff]
  %v165 = vld [vmem:[%s3 + $0x1a0] sm:$0xff]
  %v166 = vld [vmem:[%s3 + $0x1a8] sm:$0xff]
  %v167 = vld [vmem:[%s3 + $0x1b0] sm:$0xff]
  %v168 = vld [vmem:[%s3 + $0x1b8] sm:$0xff]
  %v169 = vld [vmem:[%s3 + $0x1c0] sm:$0xff]
  %v170 = vld [vmem:[%s3 + $0x1c8] sm:$0xff]
  %v171 = vld [vmem:[%s3 + $0x1d0] sm:$0xff]
  %v172 = vld [vmem:[%s3 + $0x1d8] sm:$0xff]
  %v173 = vld [vmem:[%s3 + $0x1e0] sm:$0xff]
  %v174 = vld [vmem:[%s3 + $0x1e8] sm:$0xff]
  %v175 = vld [vmem:[%s3 + $0x1f0] sm:$0xff]
  %v176 = vld [vmem:[%s3 + $0x1f8] sm:$0xff]
  %v177 = vld [vmem:[%s3 + $0x200] sm:$0xff]
  %v178 = vld [vmem:[%s3 + $0x208] sm:$0xff]
  %v179 = vld [vmem:[%s3 + $0x210] sm:$0xff]
  %v180 = vld [vmem:[%s3 + $0x218] sm:$0xff]
  %v181 = vld [vmem:[%s3 + $0x220] sm:$0xff]
  %v182 = vld [vmem:[%s3 + $0x228] sm:$0xff]
  %v183 = vld [vmem:[%s3 + $0x230] sm:$0xff]
  %v184 = vld [vmem:[%s3 + $0x238] sm:$0xff]
  %v185 = vld [vmem:[%s3 + $0x240] sm:$0xff]
  %v186 = vld [vmem:[%s3 + $0x248] sm:$0xff]
  %v187 = vld [vmem:[%s3 + $0x250] sm:$0xff]
  %v188 = vld [vmem:[%s3 + $0x258] sm:$0xff]
  %v189 = vld [vmem:[%s3 + $0x260] sm:$0xff]
  %v190 = vld [vmem:[%s3 + $0x268] sm:$0xff]
  %v191 = vld [vmem:[%s3 + $0x270] sm:$0xff]
  %v192 = vld [vmem:[%s3 + $0x278] sm:$0xff]
  %v193 = vld [vmem:[%s3 + $0x280] sm:$0xff]
  %v194 = vld [vmem:[%s3 + $0x288] sm:$0xff]
  %v195 = vld [vmem:[%s3 + $0x290] sm:$0xff]
  %v196 = vld [vmem:[%s3 + $0x298] sm:$0xff]
  %v197 = vld [vmem:[%s3 + $0x2a0] sm:$0xff]
  %v198 = vld [vmem:[%s3 + $0x2a8] sm:$0xff]
  %v199 = vld [vmem:[%s3 + $0x2b0] sm:$0xff]
  %v200 = vld [vmem:[%s3 + $0x2b8] sm:$0xff]
  %v201 = vld [vmem:[%s3 + $0x2c0] sm:$0xff]
  %v202 = vld [vmem:[%s3 + $0x2c8] sm:$0xff]
  %v203 = vld [vmem:[%s3 + $0x2d0] sm:$0xff]
  %v204 = vld [vmem:[%s3 + $0x2d8] sm:$0xff]
  %v205 = vld [vmem:[%s3 + $0x2e0] sm:$0xff]
  %v206 = vld [vmem:[%s3 + $0x2e8] sm:$0xff]
  %v207 = vld [vmem:[%s3 + $0x2f0] sm:$0xff]
  %v208 = vld [vmem:[%s3 + $0x2f8] sm:$0xff]
  %v209 = vpack.c.bf16 %v114, %v113
  %v210 = vpack.c.bf16 %v116, %v115
  %v211 = vpack.c.bf16 %v118, %v117
  %v212 = vpack.c.bf16 %v120, %v119
  %v213 = vpack.c.bf16 %v122, %v121
  %v214 = vpack.c.bf16 %v124, %v123
  %v215 = vpack.c.bf16 %v126, %v125
  %v216 = vpack.c.bf16 %v128, %v127
  %v217 = vpack.c.bf16 %v130, %v129
  %v218 = vpack.c.bf16 %v132, %v131
  %v219 = vpack.c.bf16 %v134, %v133
  %v220 = vpack.c.bf16 %v136, %v135
  %v221 = vpack.c.bf16 %v138, %v137
  %v222 = vpack.c.bf16 %v140, %v139
  %v223 = vpack.c.bf16 %v142, %v141
  %v224 = vpack.c.bf16 %v144, %v143
  %v225 = vpack.c.bf16 %v146, %v145
  %v226 = vpack.c.bf16 %v148, %v147
  %v227 = vpack.c.bf16 %v150, %v149
  %v228 = vpack.c.bf16 %v152, %v151
  %v229 = vpack.c.bf16 %v154, %v153
  %v230 = vpack.c.bf16 %v156, %v155
  %v231 = vpack.c.bf16 %v158, %v157
  %v232 = vpack.c.bf16 %v160, %v159
  %v233 = vpack.c.bf16 %v162, %v161
  %v234 = vpack.c.bf16 %v164, %v163
  %v235 = vpack.c.bf16 %v166, %v165
  %v236 = vpack.c.bf16 %v168, %v167
  %v237 = vpack.c.bf16 %v170, %v169
  %v238 = vpack.c.bf16 %v172, %v171
  %v239 = vpack.c.bf16 %v174, %v173
  %v240 = vpack.c.bf16 %v176, %v175
  %v241 = vpack.c.bf16 %v178, %v177
  %v242 = vpack.c.bf16 %v180, %v179
  %v243 = vpack.c.bf16 %v182, %v181
  %v244 = vpack.c.bf16 %v184, %v183
  %v245 = vpack.c.bf16 %v186, %v185
  %v246 = vpack.c.bf16 %v188, %v187
  %v247 = vpack.c.bf16 %v190, %v189
  %v248 = vpack.c.bf16 %v192, %v191
  %v249 = vpack.c.bf16 %v194, %v193
  %v250 = vpack.c.bf16 %v196, %v195
  %v251 = vpack.c.bf16 %v198, %v197
  %v252 = vpack.c.bf16 %v200, %v199
  %v253 = vpack.c.bf16 %v202, %v201
  %v254 = vpack.c.bf16 %v204, %v203
  %v255 = vpack.c.bf16 %v206, %v205
  %v256 = vpack.c.bf16 %v208, %v207
  %v257 = vlaneseq
  %v258 = vand.u32 %v257, 127
  %v259 = vadd.s32 %v258, 128
  %v260 = vld [vmem:[%s0] sm:$0xff]
  %v261 = vld [vmem:[%s0 + $0x8] sm:$0xff]
  %v262 = vld [vmem:[%s0 + $0x10] sm:$0xff]
  %v263 = vld [vmem:[%s0 + $0x18] sm:$0xff]
  %v264 = vld [vmem:[%s0 + $0x20] sm:$0xff]
  %v265 = vld [vmem:[%s0 + $0x28] sm:$0xff]
  %v266 = vld [vmem:[%s0 + $0x30] sm:$0xff]
  %v267 = vld [vmem:[%s0 + $0x38] sm:$0xff]
  %v268 = vld [vmem:[%s0 + $0x40] sm:$0xff]
  %v269 = vld [vmem:[%s0 + $0x48] sm:$0xff]
  %v270 = vld [vmem:[%s0 + $0x50] sm:$0xff]
  %v271 = vld [vmem:[%s0 + $0x58] sm:$0xff]
  %v272 = vld [vmem:[%s0 + $0x60] sm:$0xff]
  %v273 = vld [vmem:[%s0 + $0x68] sm:$0xff]
  %v274 = vld [vmem:[%s0 + $0x70] sm:$0xff]
  %v275 = vld [vmem:[%s0 + $0x78] sm:$0xff]
  %v276 = vld [vmem:[%s0 + $0x80] sm:$0xff]
  %v277 = vld [vmem:[%s0 + $0x88] sm:$0xff]
  %v278 = vld [vmem:[%s0 + $0x90] sm:$0xff]
  %v279 = vld [vmem:[%s0 + $0x98] sm:$0xff]
  %v280 = vld [vmem:[%s0 + $0xa0] sm:$0xff]
  %v281 = vld [vmem:[%s0 + $0xa8] sm:$0xff]
  %v282 = vld [vmem:[%s0 + $0xb0] sm:$0xff]
  %v283 = vld [vmem:[%s0 + $0xb8] sm:$0xff]
  %v284 = vld [vmem:[%s0 + $0xc0] sm:$0xff]
  %v285 = vld [vmem:[%s0 + $0xc8] sm:$0xff]
  %v286 = vld [vmem:[%s0 + $0xd0] sm:$0xff]
  %v287 = vld [vmem:[%s0 + $0xd8] sm:$0xff]
  %v288 = vld [vmem:[%s0 + $0xe0] sm:$0xff]
  %v289 = vld [vmem:[%s0 + $0xe8] sm:$0xff]
  %v290 = vld [vmem:[%s0 + $0xf0] sm:$0xff]
  %v291 = vld [vmem:[%s0 + $0xf8] sm:$0xff]
  %v292 = vld [vmem:[%s0 + $0x100] sm:$0xff]
  %v293 = vld [vmem:[%s0 + $0x108] sm:$0xff]
  %v294 = vld [vmem:[%s0 + $0x110] sm:$0xff]
  %v295 = vld [vmem:[%s0 + $0x118] sm:$0xff]
  %v296 = vld [vmem:[%s0 + $0x120] sm:$0xff]
  %v297 = vld [vmem:[%s0 + $0x128] sm:$0xff]
  %v298 = vld [vmem:[%s0 + $0x130] sm:$0xff]
  %v299 = vld [vmem:[%s0 + $0x138] sm:$0xff]
  %v300 = vld [vmem:[%s0 + $0x140] sm:$0xff]
  %v301 = vld [vmem:[%s0 + $0x148] sm:$0xff]
  %v302 = vld [vmem:[%s0 + $0x150] sm:$0xff]
  %v303 = vld [vmem:[%s0 + $0x158] sm:$0xff]
  %v304 = vld [vmem:[%s0 + $0x160] sm:$0xff]
  %v305 = vld [vmem:[%s0 + $0x168] sm:$0xff]
  %v306 = vld [vmem:[%s0 + $0x170] sm:$0xff]
  %v307 = vld [vmem:[%s0 + $0x178] sm:$0xff]
  %v308 = vld [vmem:[%s0 + $0x180] sm:$0xff]
  %v309 = vld [vmem:[%s0 + $0x188] sm:$0xff]
  %v310 = vld [vmem:[%s0 + $0x190] sm:$0xff]
  %v311 = vld [vmem:[%s0 + $0x198] sm:$0xff]
  %v312 = vld [vmem:[%s0 + $0x1a0] sm:$0xff]
  %v313 = vld [vmem:[%s0 + $0x1a8] sm:$0xff]
  %v314 = vld [vmem:[%s0 + $0x1b0] sm:$0xff]
  %v315 = vld [vmem:[%s0 + $0x1b8] sm:$0xff]
  %v316 = vld [vmem:[%s0 + $0x1c0] sm:$0xff]
  %v317 = vld [vmem:[%s0 + $0x1c8] sm:$0xff]
  %v318 = vld [vmem:[%s0 + $0x1d0] sm:$0xff]
  %v319 = vld [vmem:[%s0 + $0x1d8] sm:$0xff]
  %v320 = vld [vmem:[%s0 + $0x1e0] sm:$0xff]
  %v321 = vld [vmem:[%s0 + $0x1e8] sm:$0xff]
  %v322 = vld [vmem:[%s0 + $0x1f0] sm:$0xff]
  %v323 = vld [vmem:[%s0 + $0x1f8] sm:$0xff]
  %v324 = vld [vmem:[%s0 + $0x200] sm:$0xff]
  %v325 = vld [vmem:[%s0 + $0x208] sm:$0xff]
  %v326 = vld [vmem:[%s0 + $0x210] sm:$0xff]
  %v327 = vld [vmem:[%s0 + $0x218] sm:$0xff]
  %v328 = vld [vmem:[%s0 + $0x220] sm:$0xff]
  %v329 = vld [vmem:[%s0 + $0x228] sm:$0xff]
  %v330 = vld [vmem:[%s0 + $0x230] sm:$0xff]
  %v331 = vld [vmem:[%s0 + $0x238] sm:$0xff]
  %v332 = vld [vmem:[%s0 + $0x240] sm:$0xff]
  %v333 = vld [vmem:[%s0 + $0x248] sm:$0xff]
  %v334 = vld [vmem:[%s0 + $0x250] sm:$0xff]
  %v335 = vld [vmem:[%s0 + $0x258] sm:$0xff]
  %v336 = vld [vmem:[%s0 + $0x260] sm:$0xff]
  %v337 = vld [vmem:[%s0 + $0x268] sm:$0xff]
  %v338 = vld [vmem:[%s0 + $0x270] sm:$0xff]
  %v339 = vld [vmem:[%s0 + $0x278] sm:$0xff]
  %v340 = vld [vmem:[%s0 + $0x280] sm:$0xff]
  %v341 = vld [vmem:[%s0 + $0x288] sm:$0xff]
  %v342 = vld [vmem:[%s0 + $0x290] sm:$0xff]
  %v343 = vld [vmem:[%s0 + $0x298] sm:$0xff]
  %v344 = vld [vmem:[%s0 + $0x2a0] sm:$0xff]
  %v345 = vld [vmem:[%s0 + $0x2a8] sm:$0xff]
  %v346 = vld [vmem:[%s0 + $0x2b0] sm:$0xff]
  %v347 = vld [vmem:[%s0 + $0x2b8] sm:$0xff]
  %v348 = vld [vmem:[%s0 + $0x2c0] sm:$0xff]
  %v349 = vld [vmem:[%s0 + $0x2c8] sm:$0xff]
  %v350 = vld [vmem:[%s0 + $0x2d0] sm:$0xff]
  %v351 = vld [vmem:[%s0 + $0x2d8] sm:$0xff]
  %v352 = vld [vmem:[%s0 + $0x2e0] sm:$0xff]
  %v353 = vld [vmem:[%s0 + $0x2e8] sm:$0xff]
  %v354 = vld [vmem:[%s0 + $0x2f0] sm:$0xff]
  %v355 = vld [vmem:[%s0 + $0x2f8] sm:$0xff]
  %356 = vset.pattern.permute.xlu0 0
  %357 = vperm.xlu0 %356, %v260
  %v358 = vpop.permute.xlu0 %357
  %359 = vset.pattern.permute.xlu0 0
  %360 = vperm.xlu0 %359, %v261
  %v361 = vpop.permute.xlu0 %360
  %362 = vset.pattern.permute.xlu0 0
  %363 = vperm.xlu0 %362, %v262
  %v364 = vpop.permute.xlu0 %363
  %365 = vset.pattern.permute.xlu0 0
  %366 = vperm.xlu0 %365, %v263
  %v367 = vpop.permute.xlu0 %366
  %368 = vset.pattern.permute.xlu0 0
  %369 = vperm.xlu0 %368, %v264
  %v370 = vpop.permute.xlu0 %369
  %371 = vset.pattern.permute.xlu0 0
  %372 = vperm.xlu0 %371, %v265
  %v373 = vpop.permute.xlu0 %372
  %374 = vset.pattern.permute.xlu0 0
  %375 = vperm.xlu0 %374, %v266
  %v376 = vpop.permute.xlu0 %375
  %377 = vset.pattern.permute.xlu0 0
  %378 = vperm.xlu0 %377, %v267
  %v379 = vpop.permute.xlu0 %378
  %380 = vset.pattern.permute.xlu0 0
  %381 = vperm.xlu0 %380, %v268
  %v382 = vpop.permute.xlu0 %381
  %383 = vset.pattern.permute.xlu0 0
  %384 = vperm.xlu0 %383, %v269
  %v385 = vpop.permute.xlu0 %384
  %386 = vset.pattern.permute.xlu0 0
  %387 = vperm.xlu0 %386, %v270
  %v388 = vpop.permute.xlu0 %387
  %389 = vset.pattern.permute.xlu0 0
  %390 = vperm.xlu0 %389, %v271
  %v391 = vpop.permute.xlu0 %390
  %392 = vset.pattern.permute.xlu0 0
  %393 = vperm.xlu0 %392, %v272
  %v394 = vpop.permute.xlu0 %393
  %395 = vset.pattern.permute.xlu0 0
  %396 = vperm.xlu0 %395, %v273
  %v397 = vpop.permute.xlu0 %396
  %398 = vset.pattern.permute.xlu0 0
  %399 = vperm.xlu0 %398, %v274
  %v400 = vpop.permute.xlu0 %399
  %401 = vset.pattern.permute.xlu0 0
  %402 = vperm.xlu0 %401, %v275
  %v403 = vpop.permute.xlu0 %402
  %404 = vset.pattern.permute.xlu0 0
  %405 = vperm.xlu0 %404, %v276
  %v406 = vpop.permute.xlu0 %405
  %407 = vset.pattern.permute.xlu0 0
  %408 = vperm.xlu0 %407, %v277
  %v409 = vpop.permute.xlu0 %408
  %410 = vset.pattern.permute.xlu0 0
  %411 = vperm.xlu0 %410, %v278
  %v412 = vpop.permute.xlu0 %411
  %413 = vset.pattern.permute.xlu0 0
  %414 = vperm.xlu0 %413, %v279
  %v415 = vpop.permute.xlu0 %414
  %416 = vset.pattern.permute.xlu0 0
  %417 = vperm.xlu0 %416, %v280
  %v418 = vpop.permute.xlu0 %417
  %419 = vset.pattern.permute.xlu0 0
  %420 = vperm.xlu0 %419, %v281
  %v421 = vpop.permute.xlu0 %420
  %422 = vset.pattern.permute.xlu0 0
  %423 = vperm.xlu0 %422, %v282
  %v424 = vpop.permute.xlu0 %423
  %425 = vset.pattern.permute.xlu0 0
  %426 = vperm.xlu0 %425, %v283
  %v427 = vpop.permute.xlu0 %426
  %428 = vset.pattern.permute.xlu0 0
  %429 = vperm.xlu0 %428, %v284
  %v430 = vpop.permute.xlu0 %429
  %431 = vset.pattern.permute.xlu0 0
  %432 = vperm.xlu0 %431, %v285
  %v433 = vpop.permute.xlu0 %432
  %434 = vset.pattern.permute.xlu0 0
  %435 = vperm.xlu0 %434, %v286
  %v436 = vpop.permute.xlu0 %435
  %437 = vset.pattern.permute.xlu0 0
  %438 = vperm.xlu0 %437, %v287
  %v439 = vpop.permute.xlu0 %438
  %440 = vset.pattern.permute.xlu0 0
  %441 = vperm.xlu0 %440, %v288
  %v442 = vpop.permute.xlu0 %441
  %443 = vset.pattern.permute.xlu0 0
  %444 = vperm.xlu0 %443, %v289
  %v445 = vpop.permute.xlu0 %444
  %446 = vset.pattern.permute.xlu0 0
  %447 = vperm.xlu0 %446, %v290
  %v448 = vpop.permute.xlu0 %447
  %449 = vset.pattern.permute.xlu0 0
  %450 = vperm.xlu0 %449, %v291
  %v451 = vpop.permute.xlu0 %450
  %452 = vset.pattern.permute.xlu0 0
  %453 = vperm.xlu0 %452, %v292
  %v454 = vpop.permute.xlu0 %453
  %455 = vset.pattern.permute.xlu0 0
  %456 = vperm.xlu0 %455, %v293
  %v457 = vpop.permute.xlu0 %456
  %458 = vset.pattern.permute.xlu0 0
  %459 = vperm.xlu0 %458, %v294
  %v460 = vpop.permute.xlu0 %459
  %461 = vset.pattern.permute.xlu0 0
  %462 = vperm.xlu0 %461, %v295
  %v463 = vpop.permute.xlu0 %462
  %464 = vset.pattern.permute.xlu0 0
  %465 = vperm.xlu0 %464, %v296
  %v466 = vpop.permute.xlu0 %465
  %467 = vset.pattern.permute.xlu0 0
  %468 = vperm.xlu0 %467, %v297
  %v469 = vpop.permute.xlu0 %468
  %470 = vset.pattern.permute.xlu0 0
  %471 = vperm.xlu0 %470, %v298
  %v472 = vpop.permute.xlu0 %471
  %473 = vset.pattern.permute.xlu0 0
  %474 = vperm.xlu0 %473, %v299
  %v475 = vpop.permute.xlu0 %474
  %476 = vset.pattern.permute.xlu0 0
  %477 = vperm.xlu0 %476, %v300
  %v478 = vpop.permute.xlu0 %477
  %479 = vset.pattern.permute.xlu0 0
  %480 = vperm.xlu0 %479, %v301
  %v481 = vpop.permute.xlu0 %480
  %482 = vset.pattern.permute.xlu0 0
  %483 = vperm.xlu0 %482, %v302
  %v484 = vpop.permute.xlu0 %483
  %485 = vset.pattern.permute.xlu0 0
  %486 = vperm.xlu0 %485, %v303
  %v487 = vpop.permute.xlu0 %486
  %488 = vset.pattern.permute.xlu0 0
  %489 = vperm.xlu0 %488, %v304
  %v490 = vpop.permute.xlu0 %489
  %491 = vset.pattern.permute.xlu0 0
  %492 = vperm.xlu0 %491, %v305
  %v493 = vpop.permute.xlu0 %492
  %494 = vset.pattern.permute.xlu0 0
  %495 = vperm.xlu0 %494, %v306
  %v496 = vpop.permute.xlu0 %495
  %497 = vset.pattern.permute.xlu0 0
  %498 = vperm.xlu0 %497, %v307
  %v499 = vpop.permute.xlu0 %498
  %500 = vset.pattern.permute.xlu0 0
  %501 = vperm.xlu0 %500, %v308
  %v502 = vpop.permute.xlu0 %501
  %503 = vset.pattern.permute.xlu0 0
  %504 = vperm.xlu0 %503, %v309
  %v505 = vpop.permute.xlu0 %504
  %506 = vset.pattern.permute.xlu0 0
  %507 = vperm.xlu0 %506, %v310
  %v508 = vpop.permute.xlu0 %507
  %509 = vset.pattern.permute.xlu0 0
  %510 = vperm.xlu0 %509, %v311
  %v511 = vpop.permute.xlu0 %510
  %512 = vset.pattern.permute.xlu0 0
  %513 = vperm.xlu0 %512, %v312
  %v514 = vpop.permute.xlu0 %513
  %515 = vset.pattern.permute.xlu0 0
  %516 = vperm.xlu0 %515, %v313
  %v517 = vpop.permute.xlu0 %516
  %518 = vset.pattern.permute.xlu0 0
  %519 = vperm.xlu0 %518, %v314
  %v520 = vpop.permute.xlu0 %519
  %521 = vset.pattern.permute.xlu0 0
  %522 = vperm.xlu0 %521, %v315
  %v523 = vpop.permute.xlu0 %522
  %524 = vset.pattern.permute.xlu0 0
  %525 = vperm.xlu0 %524, %v316
  %v526 = vpop.permute.xlu0 %525
  %527 = vset.pattern.permute.xlu0 0
  %528 = vperm.xlu0 %527, %v317
  %v529 = vpop.permute.xlu0 %528
  %530 = vset.pattern.permute.xlu0 0
  %531 = vperm.xlu0 %530, %v318
  %v532 = vpop.permute.xlu0 %531
  %533 = vset.pattern.permute.xlu0 0
  %534 = vperm.xlu0 %533, %v319
  %v535 = vpop.permute.xlu0 %534
  %536 = vset.pattern.permute.xlu0 0
  %537 = vperm.xlu0 %536, %v320
  %v538 = vpop.permute.xlu0 %537
  %539 = vset.pattern.permute.xlu0 0
  %540 = vperm.xlu0 %539, %v321
  %v541 = vpop.permute.xlu0 %540
  %542 = vset.pattern.permute.xlu0 0
  %543 = vperm.xlu0 %542, %v322
  %v544 = vpop.permute.xlu0 %543
  %545 = vset.pattern.permute.xlu0 0
  %546 = vperm.xlu0 %545, %v323
  %v547 = vpop.permute.xlu0 %546
  %548 = vset.pattern.permute.xlu0 0
  %549 = vperm.xlu0 %548, %v324
  %v550 = vpop.permute.xlu0 %549
  %551 = vset.pattern.permute.xlu0 0
  %552 = vperm.xlu0 %551, %v325
  %v553 = vpop.permute.xlu0 %552
  %554 = vset.pattern.permute.xlu0 0
  %555 = vperm.xlu0 %554, %v326
  %v556 = vpop.permute.xlu0 %555
  %557 = vset.pattern.permute.xlu0 0
  %558 = vperm.xlu0 %557, %v327
  %v559 = vpop.permute.xlu0 %558
  %560 = vset.pattern.permute.xlu0 0
  %561 = vperm.xlu0 %560, %v328
  %v562 = vpop.permute.xlu0 %561
  %563 = vset.pattern.permute.xlu0 0
  %564 = vperm.xlu0 %563, %v329
  %v565 = vpop.permute.xlu0 %564
  %566 = vset.pattern.permute.xlu0 0
  %567 = vperm.xlu0 %566, %v330
  %v568 = vpop.permute.xlu0 %567
  %569 = vset.pattern.permute.xlu0 0
  %570 = vperm.xlu0 %569, %v331
  %v571 = vpop.permute.xlu0 %570
  %572 = vset.pattern.permute.xlu0 0
  %573 = vperm.xlu0 %572, %v332
  %v574 = vpop.permute.xlu0 %573
  %575 = vset.pattern.permute.xlu0 0
  %576 = vperm.xlu0 %575, %v333
  %v577 = vpop.permute.xlu0 %576
  %578 = vset.pattern.permute.xlu0 0
  %579 = vperm.xlu0 %578, %v334
  %v580 = vpop.permute.xlu0 %579
  %581 = vset.pattern.permute.xlu0 0
  %582 = vperm.xlu0 %581, %v335
  %v583 = vpop.permute.xlu0 %582
  %584 = vset.pattern.permute.xlu0 0
  %585 = vperm.xlu0 %584, %v336
  %v586 = vpop.permute.xlu0 %585
  %587 = vset.pattern.permute.xlu0 0
  %588 = vperm.xlu0 %587, %v337
  %v589 = vpop.permute.xlu0 %588
  %590 = vset.pattern.permute.xlu0 0
  %591 = vperm.xlu0 %590, %v338
  %v592 = vpop.permute.xlu0 %591
  %593 = vset.pattern.permute.xlu0 0
  %594 = vperm.xlu0 %593, %v339
  %v595 = vpop.permute.xlu0 %594
  %596 = vset.pattern.permute.xlu0 0
  %597 = vperm.xlu0 %596, %v340
  %v598 = vpop.permute.xlu0 %597
  %599 = vset.pattern.permute.xlu0 0
  %600 = vperm.xlu0 %599, %v341
  %v601 = vpop.permute.xlu0 %600
  %602 = vset.pattern.permute.xlu0 0
  %603 = vperm.xlu0 %602, %v342
  %v604 = vpop.permute.xlu0 %603
  %605 = vset.pattern.permute.xlu0 0
  %606 = vperm.xlu0 %605, %v343
  %v607 = vpop.permute.xlu0 %606
  %608 = vset.pattern.permute.xlu0 0
  %609 = vperm.xlu0 %608, %v344
  %v610 = vpop.permute.xlu0 %609
  %611 = vset.pattern.permute.xlu0 0
  %612 = vperm.xlu0 %611, %v345
  %v613 = vpop.permute.xlu0 %612
  %614 = vset.pattern.permute.xlu0 0
  %615 = vperm.xlu0 %614, %v346
  %v616 = vpop.permute.xlu0 %615
  %617 = vset.pattern.permute.xlu0 0
  %618 = vperm.xlu0 %617, %v347
  %v619 = vpop.permute.xlu0 %618
  %620 = vset.pattern.permute.xlu0 0
  %621 = vperm.xlu0 %620, %v348
  %v622 = vpop.permute.xlu0 %621
  %623 = vset.pattern.permute.xlu0 0
  %624 = vperm.xlu0 %623, %v349
  %v625 = vpop.permute.xlu0 %624
  %626 = vset.pattern.permute.xlu0 0
  %627 = vperm.xlu0 %626, %v350
  %v628 = vpop.permute.xlu0 %627
  %629 = vset.pattern.permute.xlu0 0
  %630 = vperm.xlu0 %629, %v351
  %v631 = vpop.permute.xlu0 %630
  %632 = vset.pattern.permute.xlu0 0
  %633 = vperm.xlu0 %632, %v352
  %v634 = vpop.permute.xlu0 %633
  %635 = vset.pattern.permute.xlu0 0
  %636 = vperm.xlu0 %635, %v353
  %v637 = vpop.permute.xlu0 %636
  %638 = vset.pattern.permute.xlu0 0
  %639 = vperm.xlu0 %638, %v354
  %v640 = vpop.permute.xlu0 %639
  %641 = vset.pattern.permute.xlu0 0
  %642 = vperm.xlu0 %641, %v355
  %v643 = vpop.permute.xlu0 %642
  %vm644 = vcmp.eq.s32.totalorder %v358, %v258
  %vm645 = vcmp.eq.s32.totalorder %v358, %v259
  %vm646 = vcmp.eq.s32.totalorder %v361, %v258
  %vm647 = vcmp.eq.s32.totalorder %v361, %v259
  %vm648 = vcmp.eq.s32.totalorder %v364, %v258
  %vm649 = vcmp.eq.s32.totalorder %v364, %v259
  %vm650 = vcmp.eq.s32.totalorder %v367, %v258
  %vm651 = vcmp.eq.s32.totalorder %v367, %v259
  %vm652 = vcmp.eq.s32.totalorder %v370, %v258
  %vm653 = vcmp.eq.s32.totalorder %v370, %v259
  %vm654 = vcmp.eq.s32.totalorder %v373, %v258
  %vm655 = vcmp.eq.s32.totalorder %v373, %v259
  %vm656 = vcmp.eq.s32.totalorder %v376, %v258
  %vm657 = vcmp.eq.s32.totalorder %v376, %v259
  %vm658 = vcmp.eq.s32.totalorder %v379, %v258
  %vm659 = vcmp.eq.s32.totalorder %v379, %v259
  %vm660 = vcmp.eq.s32.totalorder %v382, %v258
  %vm661 = vcmp.eq.s32.totalorder %v382, %v259
  %vm662 = vcmp.eq.s32.totalorder %v385, %v258
  %vm663 = vcmp.eq.s32.totalorder %v385, %v259
  %vm664 = vcmp.eq.s32.totalorder %v388, %v258
  %vm665 = vcmp.eq.s32.totalorder %v388, %v259
  %vm666 = vcmp.eq.s32.totalorder %v391, %v258
  %vm667 = vcmp.eq.s32.totalorder %v391, %v259
  %vm668 = vcmp.eq.s32.totalorder %v394, %v258
  %vm669 = vcmp.eq.s32.totalorder %v394, %v259
  %vm670 = vcmp.eq.s32.totalorder %v397, %v258
  %vm671 = vcmp.eq.s32.totalorder %v397, %v259
  %vm672 = vcmp.eq.s32.totalorder %v400, %v258
  %vm673 = vcmp.eq.s32.totalorder %v400, %v259
  %vm674 = vcmp.eq.s32.totalorder %v403, %v258
  %vm675 = vcmp.eq.s32.totalorder %v403, %v259
  %vm676 = vcmp.eq.s32.totalorder %v406, %v258
  %vm677 = vcmp.eq.s32.totalorder %v406, %v259
  %vm678 = vcmp.eq.s32.totalorder %v409, %v258
  %vm679 = vcmp.eq.s32.totalorder %v409, %v259
  %vm680 = vcmp.eq.s32.totalorder %v412, %v258
  %vm681 = vcmp.eq.s32.totalorder %v412, %v259
  %vm682 = vcmp.eq.s32.totalorder %v415, %v258
  %vm683 = vcmp.eq.s32.totalorder %v415, %v259
  %vm684 = vcmp.eq.s32.totalorder %v418, %v258
  %vm685 = vcmp.eq.s32.totalorder %v418, %v259
  %vm686 = vcmp.eq.s32.totalorder %v421, %v258
  %vm687 = vcmp.eq.s32.totalorder %v421, %v259
  %vm688 = vcmp.eq.s32.totalorder %v424, %v258
  %vm689 = vcmp.eq.s32.totalorder %v424, %v259
  %vm690 = vcmp.eq.s32.totalorder %v427, %v258
  %vm691 = vcmp.eq.s32.totalorder %v427, %v259
  %vm692 = vcmp.eq.s32.totalorder %v430, %v258
  %vm693 = vcmp.eq.s32.totalorder %v430, %v259
  %vm694 = vcmp.eq.s32.totalorder %v433, %v258
  %vm695 = vcmp.eq.s32.totalorder %v433, %v259
  %vm696 = vcmp.eq.s32.totalorder %v436, %v258
  %vm697 = vcmp.eq.s32.totalorder %v436, %v259
  %vm698 = vcmp.eq.s32.totalorder %v439, %v258
  %vm699 = vcmp.eq.s32.totalorder %v439, %v259
  %vm700 = vcmp.eq.s32.totalorder %v442, %v258
  %vm701 = vcmp.eq.s32.totalorder %v442, %v259
  %vm702 = vcmp.eq.s32.totalorder %v445, %v258
  %vm703 = vcmp.eq.s32.totalorder %v445, %v259
  %vm704 = vcmp.eq.s32.totalorder %v448, %v258
  %vm705 = vcmp.eq.s32.totalorder %v448, %v259
  %vm706 = vcmp.eq.s32.totalorder %v451, %v258
  %vm707 = vcmp.eq.s32.totalorder %v451, %v259
  %vm708 = vcmp.eq.s32.totalorder %v454, %v258
  %vm709 = vcmp.eq.s32.totalorder %v454, %v259
  %vm710 = vcmp.eq.s32.totalorder %v457, %v258
  %vm711 = vcmp.eq.s32.totalorder %v457, %v259
  %vm712 = vcmp.eq.s32.totalorder %v460, %v258
  %vm713 = vcmp.eq.s32.totalorder %v460, %v259
  %vm714 = vcmp.eq.s32.totalorder %v463, %v258
  %vm715 = vcmp.eq.s32.totalorder %v463, %v259
  %vm716 = vcmp.eq.s32.totalorder %v466, %v258
  %vm717 = vcmp.eq.s32.totalorder %v466, %v259
  %vm718 = vcmp.eq.s32.totalorder %v469, %v258
  %vm719 = vcmp.eq.s32.totalorder %v469, %v259
  %vm720 = vcmp.eq.s32.totalorder %v472, %v258
  %vm721 = vcmp.eq.s32.totalorder %v472, %v259
  %vm722 = vcmp.eq.s32.totalorder %v475, %v258
  %vm723 = vcmp.eq.s32.totalorder %v475, %v259
  %vm724 = vcmp.eq.s32.totalorder %v478, %v258
  %vm725 = vcmp.eq.s32.totalorder %v478, %v259
  %vm726 = vcmp.eq.s32.totalorder %v481, %v258
  %vm727 = vcmp.eq.s32.totalorder %v481, %v259
  %vm728 = vcmp.eq.s32.totalorder %v484, %v258
  %vm729 = vcmp.eq.s32.totalorder %v484, %v259
  %vm730 = vcmp.eq.s32.totalorder %v487, %v258
  %vm731 = vcmp.eq.s32.totalorder %v487, %v259
  %vm732 = vcmp.eq.s32.totalorder %v490, %v258
  %vm733 = vcmp.eq.s32.totalorder %v490, %v259
  %vm734 = vcmp.eq.s32.totalorder %v493, %v258
  %vm735 = vcmp.eq.s32.totalorder %v493, %v259
  %vm736 = vcmp.eq.s32.totalorder %v496, %v258
  %vm737 = vcmp.eq.s32.totalorder %v496, %v259
  %vm738 = vcmp.eq.s32.totalorder %v499, %v258
  %vm739 = vcmp.eq.s32.totalorder %v499, %v259
  %vm740 = vcmp.eq.s32.totalorder %v502, %v258
  %vm741 = vcmp.eq.s32.totalorder %v502, %v259
  %vm742 = vcmp.eq.s32.totalorder %v505, %v258
  %vm743 = vcmp.eq.s32.totalorder %v505, %v259
  %vm744 = vcmp.eq.s32.totalorder %v508, %v258
  %vm745 = vcmp.eq.s32.totalorder %v508, %v259
  %vm746 = vcmp.eq.s32.totalorder %v511, %v258
  %vm747 = vcmp.eq.s32.totalorder %v511, %v259
  %vm748 = vcmp.eq.s32.totalorder %v514, %v258
  %vm749 = vcmp.eq.s32.totalorder %v514, %v259
  %vm750 = vcmp.eq.s32.totalorder %v517, %v258
  %vm751 = vcmp.eq.s32.totalorder %v517, %v259
  %vm752 = vcmp.eq.s32.totalorder %v520, %v258
  %vm753 = vcmp.eq.s32.totalorder %v520, %v259
  %vm754 = vcmp.eq.s32.totalorder %v523, %v258
  %vm755 = vcmp.eq.s32.totalorder %v523, %v259
  %vm756 = vcmp.eq.s32.totalorder %v526, %v258
  %vm757 = vcmp.eq.s32.totalorder %v526, %v259
  %vm758 = vcmp.eq.s32.totalorder %v529, %v258
  %vm759 = vcmp.eq.s32.totalorder %v529, %v259
  %vm760 = vcmp.eq.s32.totalorder %v532, %v258
  %vm761 = vcmp.eq.s32.totalorder %v532, %v259
  %vm762 = vcmp.eq.s32.totalorder %v535, %v258
  %vm763 = vcmp.eq.s32.totalorder %v535, %v259
  %vm764 = vcmp.eq.s32.totalorder %v538, %v258
  %vm765 = vcmp.eq.s32.totalorder %v538, %v259
  %vm766 = vcmp.eq.s32.totalorder %v541, %v258
  %vm767 = vcmp.eq.s32.totalorder %v541, %v259
  %vm768 = vcmp.eq.s32.totalorder %v544, %v258
  %vm769 = vcmp.eq.s32.totalorder %v544, %v259
  %vm770 = vcmp.eq.s32.totalorder %v547, %v258
  %vm771 = vcmp.eq.s32.totalorder %v547, %v259
  %vm772 = vcmp.eq.s32.totalorder %v550, %v258
  %vm773 = vcmp.eq.s32.totalorder %v550, %v259
  %vm774 = vcmp.eq.s32.totalorder %v553, %v258
  %vm775 = vcmp.eq.s32.totalorder %v553, %v259
  %vm776 = vcmp.eq.s32.totalorder %v556, %v258
  %vm777 = vcmp.eq.s32.totalorder %v556, %v259
  %vm778 = vcmp.eq.s32.totalorder %v559, %v258
  %vm779 = vcmp.eq.s32.totalorder %v559, %v259
  %vm780 = vcmp.eq.s32.totalorder %v562, %v258
  %vm781 = vcmp.eq.s32.totalorder %v562, %v259
  %vm782 = vcmp.eq.s32.totalorder %v565, %v258
  %vm783 = vcmp.eq.s32.totalorder %v565, %v259
  %vm784 = vcmp.eq.s32.totalorder %v568, %v258
  %vm785 = vcmp.eq.s32.totalorder %v568, %v259
  %vm786 = vcmp.eq.s32.totalorder %v571, %v258
  %vm787 = vcmp.eq.s32.totalorder %v571, %v259
  %vm788 = vcmp.eq.s32.totalorder %v574, %v258
  %vm789 = vcmp.eq.s32.totalorder %v574, %v259
  %vm790 = vcmp.eq.s32.totalorder %v577, %v258
  %vm791 = vcmp.eq.s32.totalorder %v577, %v259
  %vm792 = vcmp.eq.s32.totalorder %v580, %v258
  %vm793 = vcmp.eq.s32.totalorder %v580, %v259
  %vm794 = vcmp.eq.s32.totalorder %v583, %v258
  %vm795 = vcmp.eq.s32.totalorder %v583, %v259
  %vm796 = vcmp.eq.s32.totalorder %v586, %v258
  %vm797 = vcmp.eq.s32.totalorder %v586, %v259
  %vm798 = vcmp.eq.s32.totalorder %v589, %v258
  %vm799 = vcmp.eq.s32.totalorder %v589, %v259
  %vm800 = vcmp.eq.s32.totalorder %v592, %v258
  %vm801 = vcmp.eq.s32.totalorder %v592, %v259
  %vm802 = vcmp.eq.s32.totalorder %v595, %v258
  %vm803 = vcmp.eq.s32.totalorder %v595, %v259
  %vm804 = vcmp.eq.s32.totalorder %v598, %v258
  %vm805 = vcmp.eq.s32.totalorder %v598, %v259
  %vm806 = vcmp.eq.s32.totalorder %v601, %v258
  %vm807 = vcmp.eq.s32.totalorder %v601, %v259
  %vm808 = vcmp.eq.s32.totalorder %v604, %v258
  %vm809 = vcmp.eq.s32.totalorder %v604, %v259
  %vm810 = vcmp.eq.s32.totalorder %v607, %v258
  %vm811 = vcmp.eq.s32.totalorder %v607, %v259
  %vm812 = vcmp.eq.s32.totalorder %v610, %v258
  %vm813 = vcmp.eq.s32.totalorder %v610, %v259
  %vm814 = vcmp.eq.s32.totalorder %v613, %v258
  %vm815 = vcmp.eq.s32.totalorder %v613, %v259
  %vm816 = vcmp.eq.s32.totalorder %v616, %v258
  %vm817 = vcmp.eq.s32.totalorder %v616, %v259
  %vm818 = vcmp.eq.s32.totalorder %v619, %v258
  %vm819 = vcmp.eq.s32.totalorder %v619, %v259
  %vm820 = vcmp.eq.s32.totalorder %v622, %v258
  %vm821 = vcmp.eq.s32.totalorder %v622, %v259
  %vm822 = vcmp.eq.s32.totalorder %v625, %v258
  %vm823 = vcmp.eq.s32.totalorder %v625, %v259
  %vm824 = vcmp.eq.s32.totalorder %v628, %v258
  %vm825 = vcmp.eq.s32.totalorder %v628, %v259
  %vm826 = vcmp.eq.s32.totalorder %v631, %v258
  %vm827 = vcmp.eq.s32.totalorder %v631, %v259
  %vm828 = vcmp.eq.s32.totalorder %v634, %v258
  %vm829 = vcmp.eq.s32.totalorder %v634, %v259
  %vm830 = vcmp.eq.s32.totalorder %v637, %v258
  %vm831 = vcmp.eq.s32.totalorder %v637, %v259
  %vm832 = vcmp.eq.s32.totalorder %v640, %v258
  %vm833 = vcmp.eq.s32.totalorder %v640, %v259
  %vm834 = vcmp.eq.s32.totalorder %v643, %v258
  %vm835 = vcmp.eq.s32.totalorder %v643, %v259
  %v836 = vsel %vm644, 1, 0
  %v837 = vsel %vm645, 1, 0
  %v838 = vsel %vm646, 1, 0
  %v839 = vsel %vm647, 1, 0
  %v840 = vsel %vm648, 1, 0
  %v841 = vsel %vm649, 1, 0
  %v842 = vsel %vm650, 1, 0
  %v843 = vsel %vm651, 1, 0
  %v844 = vsel %vm652, 1, 0
  %v845 = vsel %vm653, 1, 0
  %v846 = vsel %vm654, 1, 0
  %v847 = vsel %vm655, 1, 0
  %v848 = vsel %vm656, 1, 0
  %v849 = vsel %vm657, 1, 0
  %v850 = vsel %vm658, 1, 0
  %v851 = vsel %vm659, 1, 0
  %v852 = vsel %vm660, 1, 0
  %v853 = vsel %vm661, 1, 0
  %v854 = vsel %vm662, 1, 0
  %v855 = vsel %vm663, 1, 0
  %v856 = vsel %vm664, 1, 0
  %v857 = vsel %vm665, 1, 0
  %v858 = vsel %vm666, 1, 0
  %v859 = vsel %vm667, 1, 0
  %v860 = vsel %vm668, 1, 0
  %v861 = vsel %vm669, 1, 0
  %v862 = vsel %vm670, 1, 0
  %v863 = vsel %vm671, 1, 0
  %v864 = vsel %vm672, 1, 0
  %v865 = vsel %vm673, 1, 0
  %v866 = vsel %vm674, 1, 0
  %v867 = vsel %vm675, 1, 0
  %v868 = vsel %vm676, 1, 0
  %v869 = vsel %vm677, 1, 0
  %v870 = vsel %vm678, 1, 0
  %v871 = vsel %vm679, 1, 0
  %v872 = vsel %vm680, 1, 0
  %v873 = vsel %vm681, 1, 0
  %v874 = vsel %vm682, 1, 0
  %v875 = vsel %vm683, 1, 0
  %v876 = vsel %vm684, 1, 0
  %v877 = vsel %vm685, 1, 0
  %v878 = vsel %vm686, 1, 0
  %v879 = vsel %vm687, 1, 0
  %v880 = vsel %vm688, 1, 0
  %v881 = vsel %vm689, 1, 0
  %v882 = vsel %vm690, 1, 0
  %v883 = vsel %vm691, 1, 0
  %v884 = vsel %vm692, 1, 0
  %v885 = vsel %vm693, 1, 0
  %v886 = vsel %vm694, 1, 0
  %v887 = vsel %vm695, 1, 0
  %v888 = vsel %vm696, 1, 0
  %v889 = vsel %vm697, 1, 0
  %v890 = vsel %vm698, 1, 0
  %v891 = vsel %vm699, 1, 0
  %v892 = vsel %vm700, 1, 0
  %v893 = vsel %vm701, 1, 0
  %v894 = vsel %vm702, 1, 0
  %v895 = vsel %vm703, 1, 0
  %v896 = vsel %vm704, 1, 0
  %v897 = vsel %vm705, 1, 0
  %v898 = vsel %vm706, 1, 0
  %v899 = vsel %vm707, 1, 0
  %v900 = vsel %vm708, 1, 0
  %v901 = vsel %vm709, 1, 0
  %v902 = vsel %vm710, 1, 0
  %v903 = vsel %vm711, 1, 0
  %v904 = vsel %vm712, 1, 0
  %v905 = vsel %vm713, 1, 0
  %v906 = vsel %vm714, 1, 0
  %v907 = vsel %vm715, 1, 0
  %v908 = vsel %vm716, 1, 0
  %v909 = vsel %vm717, 1, 0
  %v910 = vsel %vm718, 1, 0
  %v911 = vsel %vm719, 1, 0
  %v912 = vsel %vm720, 1, 0
  %v913 = vsel %vm721, 1, 0
  %v914 = vsel %vm722, 1, 0
  %v915 = vsel %vm723, 1, 0
  %v916 = vsel %vm724, 1, 0
  %v917 = vsel %vm725, 1, 0
  %v918 = vsel %vm726, 1, 0
  %v919 = vsel %vm727, 1, 0
  %v920 = vsel %vm728, 1, 0
  %v921 = vsel %vm729, 1, 0
  %v922 = vsel %vm730, 1, 0
  %v923 = vsel %vm731, 1, 0
  %v924 = vsel %vm732, 1, 0
  %v925 = vsel %vm733, 1, 0
  %v926 = vsel %vm734, 1, 0
  %v927 = vsel %vm735, 1, 0
  %v928 = vsel %vm736, 1, 0
  %v929 = vsel %vm737, 1, 0
  %v930 = vsel %vm738, 1, 0
  %v931 = vsel %vm739, 1, 0
  %v932 = vsel %vm740, 1, 0
  %v933 = vsel %vm741, 1, 0
  %v934 = vsel %vm742, 1, 0
  %v935 = vsel %vm743, 1, 0
  %v936 = vsel %vm744, 1, 0
  %v937 = vsel %vm745, 1, 0
  %v938 = vsel %vm746, 1, 0
  %v939 = vsel %vm747, 1, 0
  %v940 = vsel %vm748, 1, 0
  %v941 = vsel %vm749, 1, 0
  %v942 = vsel %vm750, 1, 0
  %v943 = vsel %vm751, 1, 0
  %v944 = vsel %vm752, 1, 0
  %v945 = vsel %vm753, 1, 0
  %v946 = vsel %vm754, 1, 0
  %v947 = vsel %vm755, 1, 0
  %v948 = vsel %vm756, 1, 0
  %v949 = vsel %vm757, 1, 0
  %v950 = vsel %vm758, 1, 0
  %v951 = vsel %vm759, 1, 0
  %v952 = vsel %vm760, 1, 0
  %v953 = vsel %vm761, 1, 0
  %v954 = vsel %vm762, 1, 0
  %v955 = vsel %vm763, 1, 0
  %v956 = vsel %vm764, 1, 0
  %v957 = vsel %vm765, 1, 0
  %v958 = vsel %vm766, 1, 0
  %v959 = vsel %vm767, 1, 0
  %v960 = vsel %vm768, 1, 0
  %v961 = vsel %vm769, 1, 0
  %v962 = vsel %vm770, 1, 0
  %v963 = vsel %vm771, 1, 0
  %v964 = vsel %vm772, 1, 0
  %v965 = vsel %vm773, 1, 0
  %v966 = vsel %vm774, 1, 0
  %v967 = vsel %vm775, 1, 0
  %v968 = vsel %vm776, 1, 0
  %v969 = vsel %vm777, 1, 0
  %v970 = vsel %vm778, 1, 0
  %v971 = vsel %vm779, 1, 0
  %v972 = vsel %vm780, 1, 0
  %v973 = vsel %vm781, 1, 0
  %v974 = vsel %vm782, 1, 0
  %v975 = vsel %vm783, 1, 0
  %v976 = vsel %vm784, 1, 0
  %v977 = vsel %vm785, 1, 0
  %v978 = vsel %vm786, 1, 0
  %v979 = vsel %vm787, 1, 0
  %v980 = vsel %vm788, 1, 0
  %v981 = vsel %vm789, 1, 0
  %v982 = vsel %vm790, 1, 0
  %v983 = vsel %vm791, 1, 0
  %v984 = vsel %vm792, 1, 0
  %v985 = vsel %vm793, 1, 0
  %v986 = vsel %vm794, 1, 0
  %v987 = vsel %vm795, 1, 0
  %v988 = vsel %vm796, 1, 0
  %v989 = vsel %vm797, 1, 0
  %v990 = vsel %vm798, 1, 0
  %v991 = vsel %vm799, 1, 0
  %v992 = vsel %vm800, 1, 0
  %v993 = vsel %vm801, 1, 0
  %v994 = vsel %vm802, 1, 0
  %v995 = vsel %vm803, 1, 0
  %v996 = vsel %vm804, 1, 0
  %v997 = vsel %vm805, 1, 0
  %v998 = vsel %vm806, 1, 0
  %v999 = vsel %vm807, 1, 0
  %v1000 = vsel %vm808, 1, 0
  %v1001 = vsel %vm809, 1, 0
  %v1002 = vsel %vm810, 1, 0
  %v1003 = vsel %vm811, 1, 0
  %v1004 = vsel %vm812, 1, 0
  %v1005 = vsel %vm813, 1, 0
  %v1006 = vsel %vm814, 1, 0
  %v1007 = vsel %vm815, 1, 0
  %v1008 = vsel %vm816, 1, 0
  %v1009 = vsel %vm817, 1, 0
  %v1010 = vsel %vm818, 1, 0
  %v1011 = vsel %vm819, 1, 0
  %v1012 = vsel %vm820, 1, 0
  %v1013 = vsel %vm821, 1, 0
  %v1014 = vsel %vm822, 1, 0
  %v1015 = vsel %vm823, 1, 0
  %v1016 = vsel %vm824, 1, 0
  %v1017 = vsel %vm825, 1, 0
  %v1018 = vsel %vm826, 1, 0
  %v1019 = vsel %vm827, 1, 0
  %v1020 = vsel %vm828, 1, 0
  %v1021 = vsel %vm829, 1, 0
  %v1022 = vsel %vm830, 1, 0
  %v1023 = vsel %vm831, 1, 0
  %v1024 = vsel %vm832, 1, 0
  %v1025 = vsel %vm833, 1, 0
  %v1026 = vsel %vm834, 1, 0
  %v1027 = vsel %vm835, 1, 0
  %v1028 = vcvt.s32.f32 %v836
  %v1029 = vcvt.s32.f32 %v837
  %v1030 = vcvt.s32.f32 %v838
  %v1031 = vcvt.s32.f32 %v839
  %v1032 = vcvt.s32.f32 %v840
  %v1033 = vcvt.s32.f32 %v841
  %v1034 = vcvt.s32.f32 %v842
  %v1035 = vcvt.s32.f32 %v843
  %v1036 = vcvt.s32.f32 %v844
  %v1037 = vcvt.s32.f32 %v845
  %v1038 = vcvt.s32.f32 %v846
  %v1039 = vcvt.s32.f32 %v847
  %v1040 = vcvt.s32.f32 %v848
  %v1041 = vcvt.s32.f32 %v849
  %v1042 = vcvt.s32.f32 %v850
  %v1043 = vcvt.s32.f32 %v851
  %v1044 = vcvt.s32.f32 %v852
  %v1045 = vcvt.s32.f32 %v853
  %v1046 = vcvt.s32.f32 %v854
  %v1047 = vcvt.s32.f32 %v855
  %v1048 = vcvt.s32.f32 %v856
  %v1049 = vcvt.s32.f32 %v857
  %v1050 = vcvt.s32.f32 %v858
  %v1051 = vcvt.s32.f32 %v859
  %v1052 = vcvt.s32.f32 %v860
  %v1053 = vcvt.s32.f32 %v861
  %v1054 = vcvt.s32.f32 %v862
  %v1055 = vcvt.s32.f32 %v863
  %v1056 = vcvt.s32.f32 %v864
  %v1057 = vcvt.s32.f32 %v865
  %v1058 = vcvt.s32.f32 %v866
  %v1059 = vcvt.s32.f32 %v867
  %v1060 = vcvt.s32.f32 %v868
  %v1061 = vcvt.s32.f32 %v869
  %v1062 = vcvt.s32.f32 %v870
  %v1063 = vcvt.s32.f32 %v871
  %v1064 = vcvt.s32.f32 %v872
  %v1065 = vcvt.s32.f32 %v873
  %v1066 = vcvt.s32.f32 %v874
  %v1067 = vcvt.s32.f32 %v875
  %v1068 = vcvt.s32.f32 %v876
  %v1069 = vcvt.s32.f32 %v877
  %v1070 = vcvt.s32.f32 %v878
  %v1071 = vcvt.s32.f32 %v879
  %v1072 = vcvt.s32.f32 %v880
  %v1073 = vcvt.s32.f32 %v881
  %v1074 = vcvt.s32.f32 %v882
  %v1075 = vcvt.s32.f32 %v883
  %v1076 = vcvt.s32.f32 %v884
  %v1077 = vcvt.s32.f32 %v885
  %v1078 = vcvt.s32.f32 %v886
  %v1079 = vcvt.s32.f32 %v887
  %v1080 = vcvt.s32.f32 %v888
  %v1081 = vcvt.s32.f32 %v889
  %v1082 = vcvt.s32.f32 %v890
  %v1083 = vcvt.s32.f32 %v891
  %v1084 = vcvt.s32.f32 %v892
  %v1085 = vcvt.s32.f32 %v893
  %v1086 = vcvt.s32.f32 %v894
  %v1087 = vcvt.s32.f32 %v895
  %v1088 = vcvt.s32.f32 %v896
  %v1089 = vcvt.s32.f32 %v897
  %v1090 = vcvt.s32.f32 %v898
  %v1091 = vcvt.s32.f32 %v899
  %v1092 = vcvt.s32.f32 %v900
  %v1093 = vcvt.s32.f32 %v901
  %v1094 = vcvt.s32.f32 %v902
  %v1095 = vcvt.s32.f32 %v903
  %v1096 = vcvt.s32.f32 %v904
  %v1097 = vcvt.s32.f32 %v905
  %v1098 = vcvt.s32.f32 %v906
  %v1099 = vcvt.s32.f32 %v907
  %v1100 = vcvt.s32.f32 %v908
  %v1101 = vcvt.s32.f32 %v909
  %v1102 = vcvt.s32.f32 %v910
  %v1103 = vcvt.s32.f32 %v911
  %v1104 = vcvt.s32.f32 %v912
  %v1105 = vcvt.s32.f32 %v913
  %v1106 = vcvt.s32.f32 %v914
  %v1107 = vcvt.s32.f32 %v915
  %v1108 = vcvt.s32.f32 %v916
  %v1109 = vcvt.s32.f32 %v917
  %v1110 = vcvt.s32.f32 %v918
  %v1111 = vcvt.s32.f32 %v919
  %v1112 = vcvt.s32.f32 %v920
  %v1113 = vcvt.s32.f32 %v921
  %v1114 = vcvt.s32.f32 %v922
  %v1115 = vcvt.s32.f32 %v923
  %v1116 = vcvt.s32.f32 %v924
  %v1117 = vcvt.s32.f32 %v925
  %v1118 = vcvt.s32.f32 %v926
  %v1119 = vcvt.s32.f32 %v927
  %v1120 = vcvt.s32.f32 %v928
  %v1121 = vcvt.s32.f32 %v929
  %v1122 = vcvt.s32.f32 %v930
  %v1123 = vcvt.s32.f32 %v931
  %v1124 = vcvt.s32.f32 %v932
  %v1125 = vcvt.s32.f32 %v933
  %v1126 = vcvt.s32.f32 %v934
  %v1127 = vcvt.s32.f32 %v935
  %v1128 = vcvt.s32.f32 %v936
  %v1129 = vcvt.s32.f32 %v937
  %v1130 = vcvt.s32.f32 %v938
  %v1131 = vcvt.s32.f32 %v939
  %v1132 = vcvt.s32.f32 %v940
  %v1133 = vcvt.s32.f32 %v941
  %v1134 = vcvt.s32.f32 %v942
  %v1135 = vcvt.s32.f32 %v943
  %v1136 = vcvt.s32.f32 %v944
  %v1137 = vcvt.s32.f32 %v945
  %v1138 = vcvt.s32.f32 %v946
  %v1139 = vcvt.s32.f32 %v947
  %v1140 = vcvt.s32.f32 %v948
  %v1141 = vcvt.s32.f32 %v949
  %v1142 = vcvt.s32.f32 %v950
  %v1143 = vcvt.s32.f32 %v951
  %v1144 = vcvt.s32.f32 %v952
  %v1145 = vcvt.s32.f32 %v953
  %v1146 = vcvt.s32.f32 %v954
  %v1147 = vcvt.s32.f32 %v955
  %v1148 = vcvt.s32.f32 %v956
  %v1149 = vcvt.s32.f32 %v957
  %v1150 = vcvt.s32.f32 %v958
  %v1151 = vcvt.s32.f32 %v959
  %v1152 = vcvt.s32.f32 %v960
  %v1153 = vcvt.s32.f32 %v961
  %v1154 = vcvt.s32.f32 %v962
  %v1155 = vcvt.s32.f32 %v963
  %v1156 = vcvt.s32.f32 %v964
  %v1157 = vcvt.s32.f32 %v965
  %v1158 = vcvt.s32.f32 %v966
  %v1159 = vcvt.s32.f32 %v967
  %v1160 = vcvt.s32.f32 %v968
  %v1161 = vcvt.s32.f32 %v969
  %v1162 = vcvt.s32.f32 %v970
  %v1163 = vcvt.s32.f32 %v971
  %v1164 = vcvt.s32.f32 %v972
  %v1165 = vcvt.s32.f32 %v973
  %v1166 = vcvt.s32.f32 %v974
  %v1167 = vcvt.s32.f32 %v975
  %v1168 = vcvt.s32.f32 %v976
  %v1169 = vcvt.s32.f32 %v977
  %v1170 = vcvt.s32.f32 %v978
  %v1171 = vcvt.s32.f32 %v979
  %v1172 = vcvt.s32.f32 %v980
  %v1173 = vcvt.s32.f32 %v981
  %v1174 = vcvt.s32.f32 %v982
  %v1175 = vcvt.s32.f32 %v983
  %v1176 = vcvt.s32.f32 %v984
  %v1177 = vcvt.s32.f32 %v985
  %v1178 = vcvt.s32.f32 %v986
  %v1179 = vcvt.s32.f32 %v987
  %v1180 = vcvt.s32.f32 %v988
  %v1181 = vcvt.s32.f32 %v989
  %v1182 = vcvt.s32.f32 %v990
  %v1183 = vcvt.s32.f32 %v991
  %v1184 = vcvt.s32.f32 %v992
  %v1185 = vcvt.s32.f32 %v993
  %v1186 = vcvt.s32.f32 %v994
  %v1187 = vcvt.s32.f32 %v995
  %v1188 = vcvt.s32.f32 %v996
  %v1189 = vcvt.s32.f32 %v997
  %v1190 = vcvt.s32.f32 %v998
  %v1191 = vcvt.s32.f32 %v999
  %v1192 = vcvt.s32.f32 %v1000
  %v1193 = vcvt.s32.f32 %v1001
  %v1194 = vcvt.s32.f32 %v1002
  %v1195 = vcvt.s32.f32 %v1003
  %v1196 = vcvt.s32.f32 %v1004
  %v1197 = vcvt.s32.f32 %v1005
  %v1198 = vcvt.s32.f32 %v1006
  %v1199 = vcvt.s32.f32 %v1007
  %v1200 = vcvt.s32.f32 %v1008
  %v1201 = vcvt.s32.f32 %v1009
  %v1202 = vcvt.s32.f32 %v1010
  %v1203 = vcvt.s32.f32 %v1011
  %v1204 = vcvt.s32.f32 %v1012
  %v1205 = vcvt.s32.f32 %v1013
  %v1206 = vcvt.s32.f32 %v1014
  %v1207 = vcvt.s32.f32 %v1015
  %v1208 = vcvt.s32.f32 %v1016
  %v1209 = vcvt.s32.f32 %v1017
  %v1210 = vcvt.s32.f32 %v1018
  %v1211 = vcvt.s32.f32 %v1019
  %v1212 = vcvt.s32.f32 %v1020
  %v1213 = vcvt.s32.f32 %v1021
  %v1214 = vcvt.s32.f32 %v1022
  %v1215 = vcvt.s32.f32 %v1023
  %v1216 = vcvt.s32.f32 %v1024
  %v1217 = vcvt.s32.f32 %v1025
  %v1218 = vcvt.s32.f32 %v1026
  %v1219 = vcvt.s32.f32 %v1027
  %v1220 = vpack.c.bf16 %v1030, %v1028
  %v1221 = vpack.c.bf16 %v1031, %v1029
  %v1222 = vpack.c.bf16 %v1034, %v1032
  %v1223 = vpack.c.bf16 %v1035, %v1033
  %v1224 = vpack.c.bf16 %v1038, %v1036
  %v1225 = vpack.c.bf16 %v1039, %v1037
  %v1226 = vpack.c.bf16 %v1042, %v1040
  %v1227 = vpack.c.bf16 %v1043, %v1041
  %v1228 = vpack.c.bf16 %v1046, %v1044
  %v1229 = vpack.c.bf16 %v1047, %v1045
  %v1230 = vpack.c.bf16 %v1050, %v1048
  %v1231 = vpack.c.bf16 %v1051, %v1049
  %v1232 = vpack.c.bf16 %v1054, %v1052
  %v1233 = vpack.c.bf16 %v1055, %v1053
  %v1234 = vpack.c.bf16 %v1058, %v1056
  %v1235 = vpack.c.bf16 %v1059, %v1057
  %v1236 = vpack.c.bf16 %v1062, %v1060
  %v1237 = vpack.c.bf16 %v1063, %v1061
  %v1238 = vpack.c.bf16 %v1066, %v1064
  %v1239 = vpack.c.bf16 %v1067, %v1065
  %v1240 = vpack.c.bf16 %v1070, %v1068
  %v1241 = vpack.c.bf16 %v1071, %v1069
  %v1242 = vpack.c.bf16 %v1074, %v1072
  %v1243 = vpack.c.bf16 %v1075, %v1073
  %v1244 = vpack.c.bf16 %v1078, %v1076
  %v1245 = vpack.c.bf16 %v1079, %v1077
  %v1246 = vpack.c.bf16 %v1082, %v1080
  %v1247 = vpack.c.bf16 %v1083, %v1081
  %v1248 = vpack.c.bf16 %v1086, %v1084
  %v1249 = vpack.c.bf16 %v1087, %v1085
  %v1250 = vpack.c.bf16 %v1090, %v1088
  %v1251 = vpack.c.bf16 %v1091, %v1089
  %v1252 = vpack.c.bf16 %v1094, %v1092
  %v1253 = vpack.c.bf16 %v1095, %v1093
  %v1254 = vpack.c.bf16 %v1098, %v1096
  %v1255 = vpack.c.bf16 %v1099, %v1097
  %v1256 = vpack.c.bf16 %v1102, %v1100
  %v1257 = vpack.c.bf16 %v1103, %v1101
  %v1258 = vpack.c.bf16 %v1106, %v1104
  %v1259 = vpack.c.bf16 %v1107, %v1105
  %v1260 = vpack.c.bf16 %v1110, %v1108
  %v1261 = vpack.c.bf16 %v1111, %v1109
  %v1262 = vpack.c.bf16 %v1114, %v1112
  %v1263 = vpack.c.bf16 %v1115, %v1113
  %v1264 = vpack.c.bf16 %v1118, %v1116
  %v1265 = vpack.c.bf16 %v1119, %v1117
  %v1266 = vpack.c.bf16 %v1122, %v1120
  %v1267 = vpack.c.bf16 %v1123, %v1121
  %v1268 = vpack.c.bf16 %v1126, %v1124
  %v1269 = vpack.c.bf16 %v1127, %v1125
  %v1270 = vpack.c.bf16 %v1130, %v1128
  %v1271 = vpack.c.bf16 %v1131, %v1129
  %v1272 = vpack.c.bf16 %v1134, %v1132
  %v1273 = vpack.c.bf16 %v1135, %v1133
  %v1274 = vpack.c.bf16 %v1138, %v1136
  %v1275 = vpack.c.bf16 %v1139, %v1137
  %v1276 = vpack.c.bf16 %v1142, %v1140
  %v1277 = vpack.c.bf16 %v1143, %v1141
  %v1278 = vpack.c.bf16 %v1146, %v1144
  %v1279 = vpack.c.bf16 %v1147, %v1145
  %v1280 = vpack.c.bf16 %v1150, %v1148
  %v1281 = vpack.c.bf16 %v1151, %v1149
  %v1282 = vpack.c.bf16 %v1154, %v1152
  %v1283 = vpack.c.bf16 %v1155, %v1153
  %v1284 = vpack.c.bf16 %v1158, %v1156
  %v1285 = vpack.c.bf16 %v1159, %v1157
  %v1286 = vpack.c.bf16 %v1162, %v1160
  %v1287 = vpack.c.bf16 %v1163, %v1161
  %v1288 = vpack.c.bf16 %v1166, %v1164
  %v1289 = vpack.c.bf16 %v1167, %v1165
  %v1290 = vpack.c.bf16 %v1170, %v1168
  %v1291 = vpack.c.bf16 %v1171, %v1169
  %v1292 = vpack.c.bf16 %v1174, %v1172
  %v1293 = vpack.c.bf16 %v1175, %v1173
  %v1294 = vpack.c.bf16 %v1178, %v1176
  %v1295 = vpack.c.bf16 %v1179, %v1177
  %v1296 = vpack.c.bf16 %v1182, %v1180
  %v1297 = vpack.c.bf16 %v1183, %v1181
  %v1298 = vpack.c.bf16 %v1186, %v1184
  %v1299 = vpack.c.bf16 %v1187, %v1185
  %v1300 = vpack.c.bf16 %v1190, %v1188
  %v1301 = vpack.c.bf16 %v1191, %v1189
  %v1302 = vpack.c.bf16 %v1194, %v1192
  %v1303 = vpack.c.bf16 %v1195, %v1193
  %v1304 = vpack.c.bf16 %v1198, %v1196
  %v1305 = vpack.c.bf16 %v1199, %v1197
  %v1306 = vpack.c.bf16 %v1202, %v1200
  %v1307 = vpack.c.bf16 %v1203, %v1201
  %v1308 = vpack.c.bf16 %v1206, %v1204
  %v1309 = vpack.c.bf16 %v1207, %v1205
  %v1310 = vpack.c.bf16 %v1210, %v1208
  %v1311 = vpack.c.bf16 %v1211, %v1209
  %v1312 = vpack.c.bf16 %v1214, %v1212
  %v1313 = vpack.c.bf16 %v1215, %v1213
  %v1314 = vpack.c.bf16 %v1218, %v1216
  %v1315 = vpack.c.bf16 %v1219, %v1217
  %1316 = vmatpush.bf16.msra.mxu0 %v104
  %1317 = vmatpush.bf16.msra.mxu0 %v103
  %1318 = vmatpush.bf16.msra.mxu0 %v102
  %1319 = vmatpush.bf16.msra.mxu0 %v101
  %1320 = vmatpush.bf16.msra.mxu0 %v100
  %1321 = vmatpush.bf16.msra.mxu0 %v99
  %1322 = vmatpush.bf16.msra.mxu0 %v98
  %1323 = vmatpush.bf16.msra.mxu0 %v97
  %1324 = vmatmul.bf16.gmra.mxu0 %v1220
  %v1325 = vpop.f32.mrf.mxu0
  %v1326 = vadd.f32 0.0, %v1325
  %v1327 = vpop.f32.mrf.mxu0
  %v1328 = vadd.f32 0.0, %v1327
  %1329 = vmatmul.bf16.gmra.mxu0 %v1222
  %v1330 = vpop.f32.mrf.mxu0
  %v1331 = vadd.f32 0.0, %v1330
  %v1332 = vpop.f32.mrf.mxu0
  %v1333 = vadd.f32 0.0, %v1332
  %1334 = vmatmul.bf16.gmra.mxu0 %v1224
  %v1335 = vpop.f32.mrf.mxu0
  %v1336 = vadd.f32 0.0, %v1335
  %v1337 = vpop.f32.mrf.mxu0
  %v1338 = vadd.f32 0.0, %v1337
  %1339 = vmatmul.bf16.gmra.mxu0 %v1226
  %v1340 = vpop.f32.mrf.mxu0
  %v1341 = vadd.f32 0.0, %v1340
  %v1342 = vpop.f32.mrf.mxu0
  %v1343 = vadd.f32 0.0, %v1342
  %1344 = vmatmul.bf16.gmra.mxu0 %v1228
  %v1345 = vpop.f32.mrf.mxu0
  %v1346 = vadd.f32 0.0, %v1345
  %v1347 = vpop.f32.mrf.mxu0
  %v1348 = vadd.f32 0.0, %v1347
  %1349 = vmatmul.bf16.gmra.mxu0 %v1230
  %v1350 = vpop.f32.mrf.mxu0
  %v1351 = vadd.f32 0.0, %v1350
  %v1352 = vpop.f32.mrf.mxu0
  %v1353 = vadd.f32 0.0, %v1352
  %1354 = vmatmul.bf16.gmra.mxu0 %v1232
  %v1355 = vpop.f32.mrf.mxu0
  %v1356 = vadd.f32 0.0, %v1355
  %v1357 = vpop.f32.mrf.mxu0
  %v1358 = vadd.f32 0.0, %v1357
  %1359 = vmatmul.bf16.gmra.mxu0 %v1234
  %v1360 = vpop.f32.mrf.mxu0
  %v1361 = vadd.f32 0.0, %v1360
  %v1362 = vpop.f32.mrf.mxu0
  %v1363 = vadd.f32 0.0, %v1362
  %1364 = vmatmul.bf16.gmra.mxu0 %v1236
  %v1365 = vpop.f32.mrf.mxu0
  %v1366 = vadd.f32 0.0, %v1365
  %v1367 = vpop.f32.mrf.mxu0
  %v1368 = vadd.f32 0.0, %v1367
  %1369 = vmatmul.bf16.gmra.mxu0 %v1238
  %v1370 = vpop.f32.mrf.mxu0
  %v1371 = vadd.f32 0.0, %v1370
  %v1372 = vpop.f32.mrf.mxu0
  %v1373 = vadd.f32 0.0, %v1372
  %1374 = vmatmul.bf16.gmra.mxu0 %v1240
  %v1375 = vpop.f32.mrf.mxu0
  %v1376 = vadd.f32 0.0, %v1375
  %v1377 = vpop.f32.mrf.mxu0
  %v1378 = vadd.f32 0.0, %v1377
  %1379 = vmatmul.bf16.gmra.mxu0 %v1242
  %v1380 = vpop.f32.mrf.mxu0
  %v1381 = vadd.f32 0.0, %v1380
  %v1382 = vpop.f32.mrf.mxu0
  %v1383 = vadd.f32 0.0, %v1382
  %1384 = vmatmul.bf16.gmra.mxu0 %v1244
  %v1385 = vpop.f32.mrf.mxu0
  %v1386 = vadd.f32 0.0, %v1385
  %v1387 = vpop.f32.mrf.mxu0
  %v1388 = vadd.f32 0.0, %v1387
  %1389 = vmatmul.bf16.gmra.mxu0 %v1246
  %v1390 = vpop.f32.mrf.mxu0
  %v1391 = vadd.f32 0.0, %v1390
  %v1392 = vpop.f32.mrf.mxu0
  %v1393 = vadd.f32 0.0, %v1392
  %1394 = vmatmul.bf16.gmra.mxu0 %v1248
  %v1395 = vpop.f32.mrf.mxu0
  %v1396 = vadd.f32 0.0, %v1395
  %v1397 = vpop.f32.mrf.mxu0
  %v1398 = vadd.f32 0.0, %v1397
  %1399 = vmatmul.bf16.gmra.mxu0 %v1250
  %v1400 = vpop.f32.mrf.mxu0
  %v1401 = vadd.f32 0.0, %v1400
  %v1402 = vpop.f32.mrf.mxu0
  %v1403 = vadd.f32 0.0, %v1402
  %1404 = vmatmul.bf16.gmra.mxu0 %v1252
  %v1405 = vpop.f32.mrf.mxu0
  %v1406 = vadd.f32 0.0, %v1405
  %v1407 = vpop.f32.mrf.mxu0
  %v1408 = vadd.f32 0.0, %v1407
  %1409 = vmatmul.bf16.gmra.mxu0 %v1254
  %v1410 = vpop.f32.mrf.mxu0
  %v1411 = vadd.f32 0.0, %v1410
  %v1412 = vpop.f32.mrf.mxu0
  %v1413 = vadd.f32 0.0, %v1412
  %1414 = vmatmul.bf16.gmra.mxu0 %v1256
  %v1415 = vpop.f32.mrf.mxu0
  %v1416 = vadd.f32 0.0, %v1415
  %v1417 = vpop.f32.mrf.mxu0
  %v1418 = vadd.f32 0.0, %v1417
  %1419 = vmatmul.bf16.gmra.mxu0 %v1258
  %v1420 = vpop.f32.mrf.mxu0
  %v1421 = vadd.f32 0.0, %v1420
  %v1422 = vpop.f32.mrf.mxu0
  %v1423 = vadd.f32 0.0, %v1422
  %1424 = vmatmul.bf16.gmra.mxu0 %v1260
  %v1425 = vpop.f32.mrf.mxu0
  %v1426 = vadd.f32 0.0, %v1425
  %v1427 = vpop.f32.mrf.mxu0
  %v1428 = vadd.f32 0.0, %v1427
  %1429 = vmatmul.bf16.gmra.mxu0 %v1262
  %v1430 = vpop.f32.mrf.mxu0
  %v1431 = vadd.f32 0.0, %v1430
  %v1432 = vpop.f32.mrf.mxu0
  %v1433 = vadd.f32 0.0, %v1432
  %1434 = vmatmul.bf16.gmra.mxu0 %v1264
  %v1435 = vpop.f32.mrf.mxu0
  %v1436 = vadd.f32 0.0, %v1435
  %v1437 = vpop.f32.mrf.mxu0
  %v1438 = vadd.f32 0.0, %v1437
  %1439 = vmatmul.bf16.gmra.mxu0 %v1266
  %v1440 = vpop.f32.mrf.mxu0
  %v1441 = vadd.f32 0.0, %v1440
  %v1442 = vpop.f32.mrf.mxu0
  %v1443 = vadd.f32 0.0, %v1442
  %1444 = vmatmul.bf16.gmra.mxu0 %v1268
  %v1445 = vpop.f32.mrf.mxu0
  %v1446 = vadd.f32 0.0, %v1445
  %v1447 = vpop.f32.mrf.mxu0
  %v1448 = vadd.f32 0.0, %v1447
  %1449 = vmatmul.bf16.gmra.mxu0 %v1270
  %v1450 = vpop.f32.mrf.mxu0
  %v1451 = vadd.f32 0.0, %v1450
  %v1452 = vpop.f32.mrf.mxu0
  %v1453 = vadd.f32 0.0, %v1452
  %1454 = vmatmul.bf16.gmra.mxu0 %v1272
  %v1455 = vpop.f32.mrf.mxu0
  %v1456 = vadd.f32 0.0, %v1455
  %v1457 = vpop.f32.mrf.mxu0
  %v1458 = vadd.f32 0.0, %v1457
  %1459 = vmatmul.bf16.gmra.mxu0 %v1274
  %v1460 = vpop.f32.mrf.mxu0
  %v1461 = vadd.f32 0.0, %v1460
  %v1462 = vpop.f32.mrf.mxu0
  %v1463 = vadd.f32 0.0, %v1462
  %1464 = vmatmul.bf16.gmra.mxu0 %v1276
  %v1465 = vpop.f32.mrf.mxu0
  %v1466 = vadd.f32 0.0, %v1465
  %v1467 = vpop.f32.mrf.mxu0
  %v1468 = vadd.f32 0.0, %v1467
  %1469 = vmatmul.bf16.gmra.mxu0 %v1278
  %v1470 = vpop.f32.mrf.mxu0
  %v1471 = vadd.f32 0.0, %v1470
  %v1472 = vpop.f32.mrf.mxu0
  %v1473 = vadd.f32 0.0, %v1472
  %1474 = vmatmul.bf16.gmra.mxu0 %v1280
  %v1475 = vpop.f32.mrf.mxu0
  %v1476 = vadd.f32 0.0, %v1475
  %v1477 = vpop.f32.mrf.mxu0
  %v1478 = vadd.f32 0.0, %v1477
  %1479 = vmatmul.bf16.gmra.mxu0 %v1282
  %v1480 = vpop.f32.mrf.mxu0
  %v1481 = vadd.f32 0.0, %v1480
  %v1482 = vpop.f32.mrf.mxu0
  %v1483 = vadd.f32 0.0, %v1482
  %1484 = vmatmul.bf16.gmra.mxu0 %v1284
  %v1485 = vpop.f32.mrf.mxu0
  %v1486 = vadd.f32 0.0, %v1485
  %v1487 = vpop.f32.mrf.mxu0
  %v1488 = vadd.f32 0.0, %v1487
  %1489 = vmatmul.bf16.gmra.mxu0 %v1286
  %v1490 = vpop.f32.mrf.mxu0
  %v1491 = vadd.f32 0.0, %v1490
  %v1492 = vpop.f32.mrf.mxu0
  %v1493 = vadd.f32 0.0, %v1492
  %1494 = vmatmul.bf16.gmra.mxu0 %v1288
  %v1495 = vpop.f32.mrf.mxu0
  %v1496 = vadd.f32 0.0, %v1495
  %v1497 = vpop.f32.mrf.mxu0
  %v1498 = vadd.f32 0.0, %v1497
  %1499 = vmatmul.bf16.gmra.mxu0 %v1290
  %v1500 = vpop.f32.mrf.mxu0
  %v1501 = vadd.f32 0.0, %v1500
  %v1502 = vpop.f32.mrf.mxu0
  %v1503 = vadd.f32 0.0, %v1502
  %1504 = vmatmul.bf16.gmra.mxu0 %v1292
  %v1505 = vpop.f32.mrf.mxu0
  %v1506 = vadd.f32 0.0, %v1505
  %v1507 = vpop.f32.mrf.mxu0
  %v1508 = vadd.f32 0.0, %v1507
  %1509 = vmatmul.bf16.gmra.mxu0 %v1294
  %v1510 = vpop.f32.mrf.mxu0
  %v1511 = vadd.f32 0.0, %v1510
  %v1512 = vpop.f32.mrf.mxu0
  %v1513 = vadd.f32 0.0, %v1512
  %1514 = vmatmul.bf16.gmra.mxu0 %v1296
  %v1515 = vpop.f32.mrf.mxu0
  %v1516 = vadd.f32 0.0, %v1515
  %v1517 = vpop.f32.mrf.mxu0
  %v1518 = vadd.f32 0.0, %v1517
  %1519 = vmatmul.bf16.gmra.mxu0 %v1298
  %v1520 = vpop.f32.mrf.mxu0
  %v1521 = vadd.f32 0.0, %v1520
  %v1522 = vpop.f32.mrf.mxu0
  %v1523 = vadd.f32 0.0, %v1522
  %1524 = vmatmul.bf16.gmra.mxu0 %v1300
  %v1525 = vpop.f32.mrf.mxu0
  %v1526 = vadd.f32 0.0, %v1525
  %v1527 = vpop.f32.mrf.mxu0
  %v1528 = vadd.f32 0.0, %v1527
  %1529 = vmatmul.bf16.gmra.mxu0 %v1302
  %v1530 = vpop.f32.mrf.mxu0
  %v1531 = vadd.f32 0.0, %v1530
  %v1532 = vpop.f32.mrf.mxu0
  %v1533 = vadd.f32 0.0, %v1532
  %1534 = vmatmul.bf16.gmra.mxu0 %v1304
  %v1535 = vpop.f32.mrf.mxu0
  %v1536 = vadd.f32 0.0, %v1535
  %v1537 = vpop.f32.mrf.mxu0
  %v1538 = vadd.f32 0.0, %v1537
  %1539 = vmatmul.bf16.gmra.mxu0 %v1306
  %v1540 = vpop.f32.mrf.mxu0
  %v1541 = vadd.f32 0.0, %v1540
  %v1542 = vpop.f32.mrf.mxu0
  %v1543 = vadd.f32 0.0, %v1542
  %1544 = vmatmul.bf16.gmra.mxu0 %v1308
  %v1545 = vpop.f32.mrf.mxu0
  %v1546 = vadd.f32 0.0, %v1545
  %v1547 = vpop.f32.mrf.mxu0
  %v1548 = vadd.f32 0.0, %v1547
  %1549 = vmatmul.bf16.gmra.mxu0 %v1310
  %v1550 = vpop.f32.mrf.mxu0
  %v1551 = vadd.f32 0.0, %v1550
  %v1552 = vpop.f32.mrf.mxu0
  %v1553 = vadd.f32 0.0, %v1552
  %1554 = vmatmul.bf16.gmra.mxu0 %v1312
  %v1555 = vpop.f32.mrf.mxu0
  %v1556 = vadd.f32 0.0, %v1555
  %v1557 = vpop.f32.mrf.mxu0
  %v1558 = vadd.f32 0.0, %v1557
  %1559 = vmatmul.bf16.gmra.mxu0 %v1314
  %v1560 = vpop.f32.mrf.mxu0
  %v1561 = vadd.f32 0.0, %v1560
  %v1562 = vpop.f32.mrf.mxu0
  %v1563 = vadd.f32 0.0, %v1562
  %1564 = vdwg.mxu0
  %1565 = vmatpush.bf16.msra.mxu0 %v112
  %1566 = vmatpush.bf16.msra.mxu0 %v111
  %1567 = vmatpush.bf16.msra.mxu0 %v110
  %1568 = vmatpush.bf16.msra.mxu0 %v109
  %1569 = vmatpush.bf16.msra.mxu0 %v108
  %1570 = vmatpush.bf16.msra.mxu0 %v107
  %1571 = vmatpush.bf16.msra.mxu0 %v106
  %1572 = vmatpush.bf16.msra.mxu0 %v105
  %1573 = vmatmul.bf16.gmra.mxu0 %v1221
  %v1574 = vpop.f32.mrf.mxu0
  %v1575 = vadd.f32 %v1326, %v1574
  %v1576 = vpop.f32.mrf.mxu0
  %v1577 = vadd.f32 %v1328, %v1576
  %1578 = vmatmul.bf16.gmra.mxu0 %v1223
  %v1579 = vpop.f32.mrf.mxu0
  %v1580 = vadd.f32 %v1331, %v1579
  %v1581 = vpop.f32.mrf.mxu0
  %v1582 = vadd.f32 %v1333, %v1581
  %1583 = vmatmul.bf16.gmra.mxu0 %v1225
  %v1584 = vpop.f32.mrf.mxu0
  %v1585 = vadd.f32 %v1336, %v1584
  %v1586 = vpop.f32.mrf.mxu0
  %v1587 = vadd.f32 %v1338, %v1586
  %1588 = vmatmul.bf16.gmra.mxu0 %v1227
  %v1589 = vpop.f32.mrf.mxu0
  %v1590 = vadd.f32 %v1341, %v1589
  %v1591 = vpop.f32.mrf.mxu0
  %v1592 = vadd.f32 %v1343, %v1591
  %1593 = vmatmul.bf16.gmra.mxu0 %v1229
  %v1594 = vpop.f32.mrf.mxu0
  %v1595 = vadd.f32 %v1346, %v1594
  %v1596 = vpop.f32.mrf.mxu0
  %v1597 = vadd.f32 %v1348, %v1596
  %1598 = vmatmul.bf16.gmra.mxu0 %v1231
  %v1599 = vpop.f32.mrf.mxu0
  %v1600 = vadd.f32 %v1351, %v1599
  %v1601 = vpop.f32.mrf.mxu0
  %v1602 = vadd.f32 %v1353, %v1601
  %1603 = vmatmul.bf16.gmra.mxu0 %v1233
  %v1604 = vpop.f32.mrf.mxu0
  %v1605 = vadd.f32 %v1356, %v1604
  %v1606 = vpop.f32.mrf.mxu0
  %v1607 = vadd.f32 %v1358, %v1606
  %1608 = vmatmul.bf16.gmra.mxu0 %v1235
  %v1609 = vpop.f32.mrf.mxu0
  %v1610 = vadd.f32 %v1361, %v1609
  %v1611 = vpop.f32.mrf.mxu0
  %v1612 = vadd.f32 %v1363, %v1611
  %1613 = vmatmul.bf16.gmra.mxu0 %v1237
  %v1614 = vpop.f32.mrf.mxu0
  %v1615 = vadd.f32 %v1366, %v1614
  %v1616 = vpop.f32.mrf.mxu0
  %v1617 = vadd.f32 %v1368, %v1616
  %1618 = vmatmul.bf16.gmra.mxu0 %v1239
  %v1619 = vpop.f32.mrf.mxu0
  %v1620 = vadd.f32 %v1371, %v1619
  %v1621 = vpop.f32.mrf.mxu0
  %v1622 = vadd.f32 %v1373, %v1621
  %1623 = vmatmul.bf16.gmra.mxu0 %v1241
  %v1624 = vpop.f32.mrf.mxu0
  %v1625 = vadd.f32 %v1376, %v1624
  %v1626 = vpop.f32.mrf.mxu0
  %v1627 = vadd.f32 %v1378, %v1626
  %1628 = vmatmul.bf16.gmra.mxu0 %v1243
  %v1629 = vpop.f32.mrf.mxu0
  %v1630 = vadd.f32 %v1381, %v1629
  %v1631 = vpop.f32.mrf.mxu0
  %v1632 = vadd.f32 %v1383, %v1631
  %1633 = vmatmul.bf16.gmra.mxu0 %v1245
  %v1634 = vpop.f32.mrf.mxu0
  %v1635 = vadd.f32 %v1386, %v1634
  %v1636 = vpop.f32.mrf.mxu0
  %v1637 = vadd.f32 %v1388, %v1636
  %1638 = vmatmul.bf16.gmra.mxu0 %v1247
  %v1639 = vpop.f32.mrf.mxu0
  %v1640 = vadd.f32 %v1391, %v1639
  %v1641 = vpop.f32.mrf.mxu0
  %v1642 = vadd.f32 %v1393, %v1641
  %1643 = vmatmul.bf16.gmra.mxu0 %v1249
  %v1644 = vpop.f32.mrf.mxu0
  %v1645 = vadd.f32 %v1396, %v1644
  %v1646 = vpop.f32.mrf.mxu0
  %v1647 = vadd.f32 %v1398, %v1646
  %1648 = vmatmul.bf16.gmra.mxu0 %v1251
  %v1649 = vpop.f32.mrf.mxu0
  %v1650 = vadd.f32 %v1401, %v1649
  %v1651 = vpop.f32.mrf.mxu0
  %v1652 = vadd.f32 %v1403, %v1651
  %1653 = vmatmul.bf16.gmra.mxu0 %v1253
  %v1654 = vpop.f32.mrf.mxu0
  %v1655 = vadd.f32 %v1406, %v1654
  %v1656 = vpop.f32.mrf.mxu0
  %v1657 = vadd.f32 %v1408, %v1656
  %1658 = vmatmul.bf16.gmra.mxu0 %v1255
  %v1659 = vpop.f32.mrf.mxu0
  %v1660 = vadd.f32 %v1411, %v1659
  %v1661 = vpop.f32.mrf.mxu0
  %v1662 = vadd.f32 %v1413, %v1661
  %1663 = vmatmul.bf16.gmra.mxu0 %v1257
  %v1664 = vpop.f32.mrf.mxu0
  %v1665 = vadd.f32 %v1416, %v1664
  %v1666 = vpop.f32.mrf.mxu0
  %v1667 = vadd.f32 %v1418, %v1666
  %1668 = vmatmul.bf16.gmra.mxu0 %v1259
  %v1669 = vpop.f32.mrf.mxu0
  %v1670 = vadd.f32 %v1421, %v1669
  %v1671 = vpop.f32.mrf.mxu0
  %v1672 = vadd.f32 %v1423, %v1671
  %1673 = vmatmul.bf16.gmra.mxu0 %v1261
  %v1674 = vpop.f32.mrf.mxu0
  %v1675 = vadd.f32 %v1426, %v1674
  %v1676 = vpop.f32.mrf.mxu0
  %v1677 = vadd.f32 %v1428, %v1676
  %1678 = vmatmul.bf16.gmra.mxu0 %v1263
  %v1679 = vpop.f32.mrf.mxu0
  %v1680 = vadd.f32 %v1431, %v1679
  %v1681 = vpop.f32.mrf.mxu0
  %v1682 = vadd.f32 %v1433, %v1681
  %1683 = vmatmul.bf16.gmra.mxu0 %v1265
  %v1684 = vpop.f32.mrf.mxu0
  %v1685 = vadd.f32 %v1436, %v1684
  %v1686 = vpop.f32.mrf.mxu0
  %v1687 = vadd.f32 %v1438, %v1686
  %1688 = vmatmul.bf16.gmra.mxu0 %v1267
  %v1689 = vpop.f32.mrf.mxu0
  %v1690 = vadd.f32 %v1441, %v1689
  %v1691 = vpop.f32.mrf.mxu0
  %v1692 = vadd.f32 %v1443, %v1691
  %1693 = vmatmul.bf16.gmra.mxu0 %v1269
  %v1694 = vpop.f32.mrf.mxu0
  %v1695 = vadd.f32 %v1446, %v1694
  %v1696 = vpop.f32.mrf.mxu0
  %v1697 = vadd.f32 %v1448, %v1696
  %1698 = vmatmul.bf16.gmra.mxu0 %v1271
  %v1699 = vpop.f32.mrf.mxu0
  %v1700 = vadd.f32 %v1451, %v1699
  %v1701 = vpop.f32.mrf.mxu0
  %v1702 = vadd.f32 %v1453, %v1701
  %1703 = vmatmul.bf16.gmra.mxu0 %v1273
  %v1704 = vpop.f32.mrf.mxu0
  %v1705 = vadd.f32 %v1456, %v1704
  %v1706 = vpop.f32.mrf.mxu0
  %v1707 = vadd.f32 %v1458, %v1706
  %1708 = vmatmul.bf16.gmra.mxu0 %v1275
  %v1709 = vpop.f32.mrf.mxu0
  %v1710 = vadd.f32 %v1461, %v1709
  %v1711 = vpop.f32.mrf.mxu0
  %v1712 = vadd.f32 %v1463, %v1711
  %1713 = vmatmul.bf16.gmra.mxu0 %v1277
  %v1714 = vpop.f32.mrf.mxu0
  %v1715 = vadd.f32 %v1466, %v1714
  %v1716 = vpop.f32.mrf.mxu0
  %v1717 = vadd.f32 %v1468, %v1716
  %1718 = vmatmul.bf16.gmra.mxu0 %v1279
  %v1719 = vpop.f32.mrf.mxu0
  %v1720 = vadd.f32 %v1471, %v1719
  %v1721 = vpop.f32.mrf.mxu0
  %v1722 = vadd.f32 %v1473, %v1721
  %1723 = vmatmul.bf16.gmra.mxu0 %v1281
  %v1724 = vpop.f32.mrf.mxu0
  %v1725 = vadd.f32 %v1476, %v1724
  %v1726 = vpop.f32.mrf.mxu0
  %v1727 = vadd.f32 %v1478, %v1726
  %1728 = vmatmul.bf16.gmra.mxu0 %v1283
  %v1729 = vpop.f32.mrf.mxu0
  %v1730 = vadd.f32 %v1481, %v1729
  %v1731 = vpop.f32.mrf.mxu0
  %v1732 = vadd.f32 %v1483, %v1731
  %1733 = vmatmul.bf16.gmra.mxu0 %v1285
  %v1734 = vpop.f32.mrf.mxu0
  %v1735 = vadd.f32 %v1486, %v1734
  %v1736 = vpop.f32.mrf.mxu0
  %v1737 = vadd.f32 %v1488, %v1736
  %1738 = vmatmul.bf16.gmra.mxu0 %v1287
  %v1739 = vpop.f32.mrf.mxu0
  %v1740 = vadd.f32 %v1491, %v1739
  %v1741 = vpop.f32.mrf.mxu0
  %v1742 = vadd.f32 %v1493, %v1741
  %1743 = vmatmul.bf16.gmra.mxu0 %v1289
  %v1744 = vpop.f32.mrf.mxu0
  %v1745 = vadd.f32 %v1496, %v1744
  %v1746 = vpop.f32.mrf.mxu0
  %v1747 = vadd.f32 %v1498, %v1746
  %1748 = vmatmul.bf16.gmra.mxu0 %v1291
  %v1749 = vpop.f32.mrf.mxu0
  %v1750 = vadd.f32 %v1501, %v1749
  %v1751 = vpop.f32.mrf.mxu0
  %v1752 = vadd.f32 %v1503, %v1751
  %1753 = vmatmul.bf16.gmra.mxu0 %v1293
  %v1754 = vpop.f32.mrf.mxu0
  %v1755 = vadd.f32 %v1506, %v1754
  %v1756 = vpop.f32.mrf.mxu0
  %v1757 = vadd.f32 %v1508, %v1756
  %1758 = vmatmul.bf16.gmra.mxu0 %v1295
  %v1759 = vpop.f32.mrf.mxu0
  %v1760 = vadd.f32 %v1511, %v1759
  %v1761 = vpop.f32.mrf.mxu0
  %v1762 = vadd.f32 %v1513, %v1761
  %1763 = vmatmul.bf16.gmra.mxu0 %v1297
  %v1764 = vpop.f32.mrf.mxu0
  %v1765 = vadd.f32 %v1516, %v1764
  %v1766 = vpop.f32.mrf.mxu0
  %v1767 = vadd.f32 %v1518, %v1766
  %1768 = vmatmul.bf16.gmra.mxu0 %v1299
  %v1769 = vpop.f32.mrf.mxu0
  %v1770 = vadd.f32 %v1521, %v1769
  %v1771 = vpop.f32.mrf.mxu0
  %v1772 = vadd.f32 %v1523, %v1771
  %1773 = vmatmul.bf16.gmra.mxu0 %v1301
  %v1774 = vpop.f32.mrf.mxu0
  %v1775 = vadd.f32 %v1526, %v1774
  %v1776 = vpop.f32.mrf.mxu0
  %v1777 = vadd.f32 %v1528, %v1776
  %1778 = vmatmul.bf16.gmra.mxu0 %v1303
  %v1779 = vpop.f32.mrf.mxu0
  %v1780 = vadd.f32 %v1531, %v1779
  %v1781 = vpop.f32.mrf.mxu0
  %v1782 = vadd.f32 %v1533, %v1781
  %1783 = vmatmul.bf16.gmra.mxu0 %v1305
  %v1784 = vpop.f32.mrf.mxu0
  %v1785 = vadd.f32 %v1536, %v1784
  %v1786 = vpop.f32.mrf.mxu0
  %v1787 = vadd.f32 %v1538, %v1786
  %1788 = vmatmul.bf16.gmra.mxu0 %v1307
  %v1789 = vpop.f32.mrf.mxu0
  %v1790 = vadd.f32 %v1541, %v1789
  %v1791 = vpop.f32.mrf.mxu0
  %v1792 = vadd.f32 %v1543, %v1791
  %1793 = vmatmul.bf16.gmra.mxu0 %v1309
  %v1794 = vpop.f32.mrf.mxu0
  %v1795 = vadd.f32 %v1546, %v1794
  %v1796 = vpop.f32.mrf.mxu0
  %v1797 = vadd.f32 %v1548, %v1796
  %1798 = vmatmul.bf16.gmra.mxu0 %v1311
  %v1799 = vpop.f32.mrf.mxu0
  %v1800 = vadd.f32 %v1551, %v1799
  %v1801 = vpop.f32.mrf.mxu0
  %v1802 = vadd.f32 %v1553, %v1801
  %1803 = vmatmul.bf16.gmra.mxu0 %v1313
  %v1804 = vpop.f32.mrf.mxu0
  %v1805 = vadd.f32 %v1556, %v1804
  %v1806 = vpop.f32.mrf.mxu0
  %v1807 = vadd.f32 %v1558, %v1806
  %1808 = vmatmul.bf16.gmra.mxu0 %v1315
  %v1809 = vpop.f32.mrf.mxu0
  %v1810 = vadd.f32 %v1561, %v1809
  %v1811 = vpop.f32.mrf.mxu0
  %v1812 = vadd.f32 %v1563, %v1811
  %1813 = vdwg.mxu0
  %v1814 = vrot.slane %v1575, 1
  %v1815 = vrot.slane %v1577, 1
  %v1816 = vrot.slane %v1580, 1
  %v1817 = vrot.slane %v1582, 1
  %v1818 = vrot.slane %v1585, 1
  %v1819 = vrot.slane %v1587, 1
  %v1820 = vrot.slane %v1590, 1
  %v1821 = vrot.slane %v1592, 1
  %v1822 = vrot.slane %v1595, 1
  %v1823 = vrot.slane %v1597, 1
  %v1824 = vrot.slane %v1600, 1
  %v1825 = vrot.slane %v1602, 1
  %v1826 = vrot.slane %v1605, 1
  %v1827 = vrot.slane %v1607, 1
  %v1828 = vrot.slane %v1610, 1
  %v1829 = vrot.slane %v1612, 1
  %v1830 = vrot.slane %v1615, 1
  %v1831 = vrot.slane %v1617, 1
  %v1832 = vrot.slane %v1620, 1
  %v1833 = vrot.slane %v1622, 1
  %v1834 = vrot.slane %v1625, 1
  %v1835 = vrot.slane %v1627, 1
  %v1836 = vrot.slane %v1630, 1
  %v1837 = vrot.slane %v1632, 1
  %v1838 = vrot.slane %v1635, 1
  %v1839 = vrot.slane %v1637, 1
  %v1840 = vrot.slane %v1640, 1
  %v1841 = vrot.slane %v1642, 1
  %v1842 = vrot.slane %v1645, 1
  %v1843 = vrot.slane %v1647, 1
  %v1844 = vrot.slane %v1650, 1
  %v1845 = vrot.slane %v1652, 1
  %v1846 = vrot.slane %v1655, 1
  %v1847 = vrot.slane %v1657, 1
  %v1848 = vrot.slane %v1660, 1
  %v1849 = vrot.slane %v1662, 1
  %v1850 = vrot.slane %v1665, 1
  %v1851 = vrot.slane %v1667, 1
  %v1852 = vrot.slane %v1670, 1
  %v1853 = vrot.slane %v1672, 1
  %v1854 = vrot.slane %v1675, 1
  %v1855 = vrot.slane %v1677, 1
  %v1856 = vrot.slane %v1680, 1
  %v1857 = vrot.slane %v1682, 1
  %v1858 = vrot.slane %v1685, 1
  %v1859 = vrot.slane %v1687, 1
  %v1860 = vrot.slane %v1690, 1
  %v1861 = vrot.slane %v1692, 1
  %v1862 = vrot.slane %v1695, 1
  %v1863 = vrot.slane %v1697, 1
  %v1864 = vrot.slane %v1700, 1
  %v1865 = vrot.slane %v1702, 1
  %v1866 = vrot.slane %v1705, 1
  %v1867 = vrot.slane %v1707, 1
  %v1868 = vrot.slane %v1710, 1
  %v1869 = vrot.slane %v1712, 1
  %v1870 = vrot.slane %v1715, 1
  %v1871 = vrot.slane %v1717, 1
  %v1872 = vrot.slane %v1720, 1
  %v1873 = vrot.slane %v1722, 1
  %v1874 = vrot.slane %v1725, 1
  %v1875 = vrot.slane %v1727, 1
  %v1876 = vrot.slane %v1730, 1
  %v1877 = vrot.slane %v1732, 1
  %v1878 = vrot.slane %v1735, 1
  %v1879 = vrot.slane %v1737, 1
  %v1880 = vrot.slane %v1740, 1
  %v1881 = vrot.slane %v1742, 1
  %v1882 = vrot.slane %v1745, 1
  %v1883 = vrot.slane %v1747, 1
  %v1884 = vrot.slane %v1750, 1
  %v1885 = vrot.slane %v1752, 1
  %v1886 = vrot.slane %v1755, 1
  %v1887 = vrot.slane %v1757, 1
  %v1888 = vrot.slane %v1760, 1
  %v1889 = vrot.slane %v1762, 1
  %v1890 = vrot.slane %v1765, 1
  %v1891 = vrot.slane %v1767, 1
  %v1892 = vrot.slane %v1770, 1
  %v1893 = vrot.slane %v1772, 1
  %v1894 = vrot.slane %v1775, 1
  %v1895 = vrot.slane %v1777, 1
  %v1896 = vrot.slane %v1780, 1
  %v1897 = vrot.slane %v1782, 1
  %v1898 = vrot.slane %v1785, 1
  %v1899 = vrot.slane %v1787, 1
  %v1900 = vrot.slane %v1790, 1
  %v1901 = vrot.slane %v1792, 1
  %v1902 = vrot.slane %v1795, 1
  %v1903 = vrot.slane %v1797, 1
  %v1904 = vrot.slane %v1800, 1
  %v1905 = vrot.slane %v1802, 1
  %v1906 = vrot.slane %v1805, 1
  %v1907 = vrot.slane %v1807, 1
  %v1908 = vrot.slane %v1810, 1
  %v1909 = vrot.slane %v1812, 1
  %v1910 = vlaneseq
  %v1911 = vshrl.u32 %v1910, 7
  %vm1912 = vcmp.lt.s32.totalorder %v1911, 7
  %v1913 = vsel %vm1912, %v1908, %v1909
  %v1914 = vsel %vm1912, %v1907, %v1908
  %v1915 = vsel %vm1912, %v1906, %v1907
  %v1916 = vsel %vm1912, %v1905, %v1906
  %v1917 = vsel %vm1912, %v1904, %v1905
  %v1918 = vsel %vm1912, %v1903, %v1904
  %v1919 = vsel %vm1912, %v1902, %v1903
  %v1920 = vsel %vm1912, %v1901, %v1902
  %v1921 = vsel %vm1912, %v1900, %v1901
  %v1922 = vsel %vm1912, %v1899, %v1900
  %v1923 = vsel %vm1912, %v1898, %v1899
  %v1924 = vsel %vm1912, %v1897, %v1898
  %v1925 = vsel %vm1912, %v1896, %v1897
  %v1926 = vsel %vm1912, %v1895, %v1896
  %v1927 = vsel %vm1912, %v1894, %v1895
  %v1928 = vsel %vm1912, %v1893, %v1894
  %v1929 = vsel %vm1912, %v1892, %v1893
  %v1930 = vsel %vm1912, %v1891, %v1892
  %v1931 = vsel %vm1912, %v1890, %v1891
  %v1932 = vsel %vm1912, %v1889, %v1890
  %v1933 = vsel %vm1912, %v1888, %v1889
  %v1934 = vsel %vm1912, %v1887, %v1888
  %v1935 = vsel %vm1912, %v1886, %v1887
  %v1936 = vsel %vm1912, %v1885, %v1886
  %v1937 = vsel %vm1912, %v1884, %v1885
  %v1938 = vsel %vm1912, %v1883, %v1884
  %v1939 = vsel %vm1912, %v1882, %v1883
  %v1940 = vsel %vm1912, %v1881, %v1882
  %v1941 = vsel %vm1912, %v1880, %v1881
  %v1942 = vsel %vm1912, %v1879, %v1880
  %v1943 = vsel %vm1912, %v1878, %v1879
  %v1944 = vsel %vm1912, %v1877, %v1878
  %v1945 = vsel %vm1912, %v1876, %v1877
  %v1946 = vsel %vm1912, %v1875, %v1876
  %v1947 = vsel %vm1912, %v1874, %v1875
  %v1948 = vsel %vm1912, %v1873, %v1874
  %v1949 = vsel %vm1912, %v1872, %v1873
  %v1950 = vsel %vm1912, %v1871, %v1872
  %v1951 = vsel %vm1912, %v1870, %v1871
  %v1952 = vsel %vm1912, %v1869, %v1870
  %v1953 = vsel %vm1912, %v1868, %v1869
  %v1954 = vsel %vm1912, %v1867, %v1868
  %v1955 = vsel %vm1912, %v1866, %v1867
  %v1956 = vsel %vm1912, %v1865, %v1866
  %v1957 = vsel %vm1912, %v1864, %v1865
  %v1958 = vsel %vm1912, %v1863, %v1864
  %v1959 = vsel %vm1912, %v1862, %v1863
  %v1960 = vsel %vm1912, %v1861, %v1862
  %v1961 = vsel %vm1912, %v1860, %v1861
  %v1962 = vsel %vm1912, %v1859, %v1860
  %v1963 = vsel %vm1912, %v1858, %v1859
  %v1964 = vsel %vm1912, %v1857, %v1858
  %v1965 = vsel %vm1912, %v1856, %v1857
  %v1966 = vsel %vm1912, %v1855, %v1856
  %v1967 = vsel %vm1912, %v1854, %v1855
  %v1968 = vsel %vm1912, %v1853, %v1854
  %v1969 = vsel %vm1912, %v1852, %v1853
  %v1970 = vsel %vm1912, %v1851, %v1852
  %v1971 = vsel %vm1912, %v1850, %v1851
  %v1972 = vsel %vm1912, %v1849, %v1850
  %v1973 = vsel %vm1912, %v1848, %v1849
  %v1974 = vsel %vm1912, %v1847, %v1848
  %v1975 = vsel %vm1912, %v1846, %v1847
  %v1976 = vsel %vm1912, %v1845, %v1846
  %v1977 = vsel %vm1912, %v1844, %v1845
  %v1978 = vsel %vm1912, %v1843, %v1844
  %v1979 = vsel %vm1912, %v1842, %v1843
  %v1980 = vsel %vm1912, %v1841, %v1842
  %v1981 = vsel %vm1912, %v1840, %v1841
  %v1982 = vsel %vm1912, %v1839, %v1840
  %v1983 = vsel %vm1912, %v1838, %v1839
  %v1984 = vsel %vm1912, %v1837, %v1838
  %v1985 = vsel %vm1912, %v1836, %v1837
  %v1986 = vsel %vm1912, %v1835, %v1836
  %v1987 = vsel %vm1912, %v1834, %v1835
  %v1988 = vsel %vm1912, %v1833, %v1834
  %v1989 = vsel %vm1912, %v1832, %v1833
  %v1990 = vsel %vm1912, %v1831, %v1832
  %v1991 = vsel %vm1912, %v1830, %v1831
  %v1992 = vsel %vm1912, %v1829, %v1830
  %v1993 = vsel %vm1912, %v1828, %v1829
  %v1994 = vsel %vm1912, %v1827, %v1828
  %v1995 = vsel %vm1912, %v1826, %v1827
  %v1996 = vsel %vm1912, %v1825, %v1826
  %v1997 = vsel %vm1912, %v1824, %v1825
  %v1998 = vsel %vm1912, %v1823, %v1824
  %v1999 = vsel %vm1912, %v1822, %v1823
  %v2000 = vsel %vm1912, %v1821, %v1822
  %v2001 = vsel %vm1912, %v1820, %v1821
  %v2002 = vsel %vm1912, %v1819, %v1820
  %v2003 = vsel %vm1912, %v1818, %v1819
  %v2004 = vsel %vm1912, %v1817, %v1818
  %v2005 = vsel %vm1912, %v1816, %v1817
  %v2006 = vsel %vm1912, %v1815, %v1816
  %v2007 = vsel %vm1912, %v1814, %v1815
  %v2008 = vsel %vm1912, %v1909, %v1814
  %v2009 = vrot.slane %v1575, 7
  %v2010 = vrot.slane %v1577, 7
  %v2011 = vrot.slane %v1580, 7
  %v2012 = vrot.slane %v1582, 7
  %v2013 = vrot.slane %v1585, 7
  %v2014 = vrot.slane %v1587, 7
  %v2015 = vrot.slane %v1590, 7
  %v2016 = vrot.slane %v1592, 7
  %v2017 = vrot.slane %v1595, 7
  %v2018 = vrot.slane %v1597, 7
  %v2019 = vrot.slane %v1600, 7
  %v2020 = vrot.slane %v1602, 7
  %v2021 = vrot.slane %v1605, 7
  %v2022 = vrot.slane %v1607, 7
  %v2023 = vrot.slane %v1610, 7
  %v2024 = vrot.slane %v1612, 7
  %v2025 = vrot.slane %v1615, 7
  %v2026 = vrot.slane %v1617, 7
  %v2027 = vrot.slane %v1620, 7
  %v2028 = vrot.slane %v1622, 7
  %v2029 = vrot.slane %v1625, 7
  %v2030 = vrot.slane %v1627, 7
  %v2031 = vrot.slane %v1630, 7
  %v2032 = vrot.slane %v1632, 7
  %v2033 = vrot.slane %v1635, 7
  %v2034 = vrot.slane %v1637, 7
  %v2035 = vrot.slane %v1640, 7
  %v2036 = vrot.slane %v1642, 7
  %v2037 = vrot.slane %v1645, 7
  %v2038 = vrot.slane %v1647, 7
  %v2039 = vrot.slane %v1650, 7
  %v2040 = vrot.slane %v1652, 7
  %v2041 = vrot.slane %v1655, 7
  %v2042 = vrot.slane %v1657, 7
  %v2043 = vrot.slane %v1660, 7
  %v2044 = vrot.slane %v1662, 7
  %v2045 = vrot.slane %v1665, 7
  %v2046 = vrot.slane %v1667, 7
  %v2047 = vrot.slane %v1670, 7
  %v2048 = vrot.slane %v1672, 7
  %v2049 = vrot.slane %v1675, 7
  %v2050 = vrot.slane %v1677, 7
  %v2051 = vrot.slane %v1680, 7
  %v2052 = vrot.slane %v1682, 7
  %v2053 = vrot.slane %v1685, 7
  %v2054 = vrot.slane %v1687, 7
  %v2055 = vrot.slane %v1690, 7
  %v2056 = vrot.slane %v1692, 7
  %v2057 = vrot.slane %v1695, 7
  %v2058 = vrot.slane %v1697, 7
  %v2059 = vrot.slane %v1700, 7
  %v2060 = vrot.slane %v1702, 7
  %v2061 = vrot.slane %v1705, 7
  %v2062 = vrot.slane %v1707, 7
  %v2063 = vrot.slane %v1710, 7
  %v2064 = vrot.slane %v1712, 7
  %v2065 = vrot.slane %v1715, 7
  %v2066 = vrot.slane %v1717, 7
  %v2067 = vrot.slane %v1720, 7
  %v2068 = vrot.slane %v1722, 7
  %v2069 = vrot.slane %v1725, 7
  %v2070 = vrot.slane %v1727, 7
  %v2071 = vrot.slane %v1730, 7
  %v2072 = vrot.slane %v1732, 7
  %v2073 = vrot.slane %v1735, 7
  %v2074 = vrot.slane %v1737, 7
  %v2075 = vrot.slane %v1740, 7
  %v2076 = vrot.slane %v1742, 7
  %v2077 = vrot.slane %v1745, 7
  %v2078 = vrot.slane %v1747, 7
  %v2079 = vrot.slane %v1750, 7
  %v2080 = vrot.slane %v1752, 7
  %v2081 = vrot.slane %v1755, 7
  %v2082 = vrot.slane %v1757, 7
  %v2083 = vrot.slane %v1760, 7
  %v2084 = vrot.slane %v1762, 7
  %v2085 = vrot.slane %v1765, 7
  %v2086 = vrot.slane %v1767, 7
  %v2087 = vrot.slane %v1770, 7
  %v2088 = vrot.slane %v1772, 7
  %v2089 = vrot.slane %v1775, 7
  %v2090 = vrot.slane %v1777, 7
  %v2091 = vrot.slane %v1780, 7
  %v2092 = vrot.slane %v1782, 7
  %v2093 = vrot.slane %v1785, 7
  %v2094 = vrot.slane %v1787, 7
  %v2095 = vrot.slane %v1790, 7
  %v2096 = vrot.slane %v1792, 7
  %v2097 = vrot.slane %v1795, 7
  %v2098 = vrot.slane %v1797, 7
  %v2099 = vrot.slane %v1800, 7
  %v2100 = vrot.slane %v1802, 7
  %v2101 = vrot.slane %v1805, 7
  %v2102 = vrot.slane %v1807, 7
  %v2103 = vrot.slane %v1810, 7
  %v2104 = vrot.slane %v1812, 7
  %vm2105 = vcmp.lt.s32.totalorder %v1911, 1
  %v2106 = vsel %vm2105, %v2103, %v2104
  %v2107 = vsel %vm2105, %v2102, %v2103
  %v2108 = vsel %vm2105, %v2101, %v2102
  %v2109 = vsel %vm2105, %v2100, %v2101
  %v2110 = vsel %vm2105, %v2099, %v2100
  %v2111 = vsel %vm2105, %v2098, %v2099
  %v2112 = vsel %vm2105, %v2097, %v2098
  %v2113 = vsel %vm2105, %v2096, %v2097
  %v2114 = vsel %vm2105, %v2095, %v2096
  %v2115 = vsel %vm2105, %v2094, %v2095
  %v2116 = vsel %vm2105, %v2093, %v2094
  %v2117 = vsel %vm2105, %v2092, %v2093
  %v2118 = vsel %vm2105, %v2091, %v2092
  %v2119 = vsel %vm2105, %v2090, %v2091
  %v2120 = vsel %vm2105, %v2089, %v2090
  %v2121 = vsel %vm2105, %v2088, %v2089
  %v2122 = vsel %vm2105, %v2087, %v2088
  %v2123 = vsel %vm2105, %v2086, %v2087
  %v2124 = vsel %vm2105, %v2085, %v2086
  %v2125 = vsel %vm2105, %v2084, %v2085
  %v2126 = vsel %vm2105, %v2083, %v2084
  %v2127 = vsel %vm2105, %v2082, %v2083
  %v2128 = vsel %vm2105, %v2081, %v2082
  %v2129 = vsel %vm2105, %v2080, %v2081
  %v2130 = vsel %vm2105, %v2079, %v2080
  %v2131 = vsel %vm2105, %v2078, %v2079
  %v2132 = vsel %vm2105, %v2077, %v2078
  %v2133 = vsel %vm2105, %v2076, %v2077
  %v2134 = vsel %vm2105, %v2075, %v2076
  %v2135 = vsel %vm2105, %v2074, %v2075
  %v2136 = vsel %vm2105, %v2073, %v2074
  %v2137 = vsel %vm2105, %v2072, %v2073
  %v2138 = vsel %vm2105, %v2071, %v2072
  %v2139 = vsel %vm2105, %v2070, %v2071
  %v2140 = vsel %vm2105, %v2069, %v2070
  %v2141 = vsel %vm2105, %v2068, %v2069
  %v2142 = vsel %vm2105, %v2067, %v2068
  %v2143 = vsel %vm2105, %v2066, %v2067
  %v2144 = vsel %vm2105, %v2065, %v2066
  %v2145 = vsel %vm2105, %v2064, %v2065
  %v2146 = vsel %vm2105, %v2063, %v2064
  %v2147 = vsel %vm2105, %v2062, %v2063
  %v2148 = vsel %vm2105, %v2061, %v2062
  %v2149 = vsel %vm2105, %v2060, %v2061
  %v2150 = vsel %vm2105, %v2059, %v2060
  %v2151 = vsel %vm2105, %v2058, %v2059
  %v2152 = vsel %vm2105, %v2057, %v2058
  %v2153 = vsel %vm2105, %v2056, %v2057
  %v2154 = vsel %vm2105, %v2055, %v2056
  %v2155 = vsel %vm2105, %v2054, %v2055
  %v2156 = vsel %vm2105, %v2053, %v2054
  %v2157 = vsel %vm2105, %v2052, %v2053
  %v2158 = vsel %vm2105, %v2051, %v2052
  %v2159 = vsel %vm2105, %v2050, %v2051
  %v2160 = vsel %vm2105, %v2049, %v2050
  %v2161 = vsel %vm2105, %v2048, %v2049
  %v2162 = vsel %vm2105, %v2047, %v2048
  %v2163 = vsel %vm2105, %v2046, %v2047
  %v2164 = vsel %vm2105, %v2045, %v2046
  %v2165 = vsel %vm2105, %v2044, %v2045
  %v2166 = vsel %vm2105, %v2043, %v2044
  %v2167 = vsel %vm2105, %v2042, %v2043
  %v2168 = vsel %vm2105, %v2041, %v2042
  %v2169 = vsel %vm2105, %v2040, %v2041
  %v2170 = vsel %vm2105, %v2039, %v2040
  %v2171 = vsel %vm2105, %v2038, %v2039
  %v2172 = vsel %vm2105, %v2037, %v2038
  %v2173 = vsel %vm2105, %v2036, %v2037
  %v2174 = vsel %vm2105, %v2035, %v2036
  %v2175 = vsel %vm2105, %v2034, %v2035
  %v2176 = vsel %vm2105, %v2033, %v2034
  %v2177 = vsel %vm2105, %v2032, %v2033
  %v2178 = vsel %vm2105, %v2031, %v2032
  %v2179 = vsel %vm2105, %v2030, %v2031
  %v2180 = vsel %vm2105, %v2029, %v2030
  %v2181 = vsel %vm2105, %v2028, %v2029
  %v2182 = vsel %vm2105, %v2027, %v2028
  %v2183 = vsel %vm2105, %v2026, %v2027
  %v2184 = vsel %vm2105, %v2025, %v2026
  %v2185 = vsel %vm2105, %v2024, %v2025
  %v2186 = vsel %vm2105, %v2023, %v2024
  %v2187 = vsel %vm2105, %v2022, %v2023
  %v2188 = vsel %vm2105, %v2021, %v2022
  %v2189 = vsel %vm2105, %v2020, %v2021
  %v2190 = vsel %vm2105, %v2019, %v2020
  %v2191 = vsel %vm2105, %v2018, %v2019
  %v2192 = vsel %vm2105, %v2017, %v2018
  %v2193 = vsel %vm2105, %v2016, %v2017
  %v2194 = vsel %vm2105, %v2015, %v2016
  %v2195 = vsel %vm2105, %v2014, %v2015
  %v2196 = vsel %vm2105, %v2013, %v2014
  %v2197 = vsel %vm2105, %v2012, %v2013
  %v2198 = vsel %vm2105, %v2011, %v2012
  %v2199 = vsel %vm2105, %v2010, %v2011
  %v2200 = vsel %vm2105, %v2009, %v2010
  %v2201 = vsel %vm2105, %v2104, %v2009
  %v2202 = vadd.s32 %v1911, 8
  %v2203 = vadd.s32 %v1911, 16
  %v2204 = vadd.s32 %v1911, 24
  %v2205 = vadd.s32 %v1911, 32
  %v2206 = vadd.s32 %v1911, 40
  %v2207 = vadd.s32 %v1911, 48
  %v2208 = vadd.s32 %v1911, 56
  %v2209 = vadd.s32 %v1911, 64
  %v2210 = vadd.s32 %v1911, 72
  %v2211 = vadd.s32 %v1911, 80
  %v2212 = vadd.s32 %v1911, 88
  %v2213 = vadd.s32 %v1911, 96
  %v2214 = vadd.s32 %v1911, 104
  %v2215 = vadd.s32 %v1911, 112
  %v2216 = vadd.s32 %v1911, 120
  %v2217 = vadd.s32 %v1911, 128
  %v2218 = vadd.s32 %v1911, 136
  %v2219 = vadd.s32 %v1911, 144
  %v2220 = vadd.s32 %v1911, 152
  %v2221 = vadd.s32 %v1911, 160
  %v2222 = vadd.s32 %v1911, 168
  %v2223 = vadd.s32 %v1911, 176
  %v2224 = vadd.s32 %v1911, 184
  %v2225 = vadd.s32 %v1911, 192
  %v2226 = vadd.s32 %v1911, 200
  %v2227 = vadd.s32 %v1911, 208
  %v2228 = vadd.s32 %v1911, 216
  %v2229 = vadd.s32 %v1911, 224
  %v2230 = vadd.s32 %v1911, 232
  %v2231 = vadd.s32 %v1911, 240
  %v2232 = vadd.s32 %v1911, 248
  %v2233 = vadd.s32 %v1911, 256
  %v2234 = vadd.s32 %v1911, 264
  %v2235 = vadd.s32 %v1911, 272
  %v2236 = vadd.s32 %v1911, 280
  %v2237 = vadd.s32 %v1911, 288
  %v2238 = vadd.s32 %v1911, 296
  %v2239 = vadd.s32 %v1911, 304
  %v2240 = vadd.s32 %v1911, 312
  %v2241 = vadd.s32 %v1911, 320
  %v2242 = vadd.s32 %v1911, 328
  %v2243 = vadd.s32 %v1911, 336
  %v2244 = vadd.s32 %v1911, 344
  %v2245 = vadd.s32 %v1911, 352
  %v2246 = vadd.s32 %v1911, 360
  %v2247 = vadd.s32 %v1911, 368
  %v2248 = vadd.s32 %v1911, 376
  %v2249 = vadd.s32 %v1911, 384
  %v2250 = vadd.s32 %v1911, 392
  %v2251 = vadd.s32 %v1911, 400
  %v2252 = vadd.s32 %v1911, 408
  %v2253 = vadd.s32 %v1911, 416
  %v2254 = vadd.s32 %v1911, 424
  %v2255 = vadd.s32 %v1911, 432
  %v2256 = vadd.s32 %v1911, 440
  %v2257 = vadd.s32 %v1911, 448
  %v2258 = vadd.s32 %v1911, 456
  %v2259 = vadd.s32 %v1911, 464
  %v2260 = vadd.s32 %v1911, 472
  %v2261 = vadd.s32 %v1911, 480
  %v2262 = vadd.s32 %v1911, 488
  %v2263 = vadd.s32 %v1911, 496
  %v2264 = vadd.s32 %v1911, 504
  %v2265 = vadd.s32 %v1911, 512
  %v2266 = vadd.s32 %v1911, 520
  %v2267 = vadd.s32 %v1911, 528
  %v2268 = vadd.s32 %v1911, 536
  %v2269 = vadd.s32 %v1911, 544
  %v2270 = vadd.s32 %v1911, 552
  %v2271 = vadd.s32 %v1911, 560
  %v2272 = vadd.s32 %v1911, 568
  %v2273 = vadd.s32 %v1911, 576
  %v2274 = vadd.s32 %v1911, 584
  %v2275 = vadd.s32 %v1911, 592
  %v2276 = vadd.s32 %v1911, 600
  %v2277 = vadd.s32 %v1911, 608
  %v2278 = vadd.s32 %v1911, 616
  %v2279 = vadd.s32 %v1911, 624
  %v2280 = vadd.s32 %v1911, 632
  %v2281 = vadd.s32 %v1911, 640
  %v2282 = vadd.s32 %v1911, 648
  %v2283 = vadd.s32 %v1911, 656
  %v2284 = vadd.s32 %v1911, 664
  %v2285 = vadd.s32 %v1911, 672
  %v2286 = vadd.s32 %v1911, 680
  %v2287 = vadd.s32 %v1911, 688
  %v2288 = vadd.s32 %v1911, 696
  %v2289 = vadd.s32 %v1911, 704
  %v2290 = vadd.s32 %v1911, 712
  %v2291 = vadd.s32 %v1911, 720
  %v2292 = vadd.s32 %v1911, 728
  %v2293 = vadd.s32 %v1911, 736
  %v2294 = vadd.s32 %v1911, 744
  %v2295 = vadd.s32 %v1911, 752
  %v2296 = vadd.s32 %v1911, 760
  %v2297 = vand.u32 %v1911, 1
  %v2298 = vand.u32 %v2202, 1
  %v2299 = vand.u32 %v2203, 1
  %v2300 = vand.u32 %v2204, 1
  %v2301 = vand.u32 %v2205, 1
  %v2302 = vand.u32 %v2206, 1
  %v2303 = vand.u32 %v2207, 1
  %v2304 = vand.u32 %v2208, 1
  %v2305 = vand.u32 %v2209, 1
  %v2306 = vand.u32 %v2210, 1
  %v2307 = vand.u32 %v2211, 1
  %v2308 = vand.u32 %v2212, 1
  %v2309 = vand.u32 %v2213, 1
  %v2310 = vand.u32 %v2214, 1
  %v2311 = vand.u32 %v2215, 1
  %v2312 = vand.u32 %v2216, 1
  %v2313 = vand.u32 %v2217, 1
  %v2314 = vand.u32 %v2218, 1
  %v2315 = vand.u32 %v2219, 1
  %v2316 = vand.u32 %v2220, 1
  %v2317 = vand.u32 %v2221, 1
  %v2318 = vand.u32 %v2222, 1
  %v2319 = vand.u32 %v2223, 1
  %v2320 = vand.u32 %v2224, 1
  %v2321 = vand.u32 %v2225, 1
  %v2322 = vand.u32 %v2226, 1
  %v2323 = vand.u32 %v2227, 1
  %v2324 = vand.u32 %v2228, 1
  %v2325 = vand.u32 %v2229, 1
  %v2326 = vand.u32 %v2230, 1
  %v2327 = vand.u32 %v2231, 1
  %v2328 = vand.u32 %v2232, 1
  %v2329 = vand.u32 %v2233, 1
  %v2330 = vand.u32 %v2234, 1
  %v2331 = vand.u32 %v2235, 1
  %v2332 = vand.u32 %v2236, 1
  %v2333 = vand.u32 %v2237, 1
  %v2334 = vand.u32 %v2238, 1
  %v2335 = vand.u32 %v2239, 1
  %v2336 = vand.u32 %v2240, 1
  %v2337 = vand.u32 %v2241, 1
  %v2338 = vand.u32 %v2242, 1
  %v2339 = vand.u32 %v2243, 1
  %v2340 = vand.u32 %v2244, 1
  %v2341 = vand.u32 %v2245, 1
  %v2342 = vand.u32 %v2246, 1
  %v2343 = vand.u32 %v2247, 1
  %v2344 = vand.u32 %v2248, 1
  %v2345 = vand.u32 %v2249, 1
  %v2346 = vand.u32 %v2250, 1
  %v2347 = vand.u32 %v2251, 1
  %v2348 = vand.u32 %v2252, 1
  %v2349 = vand.u32 %v2253, 1
  %v2350 = vand.u32 %v2254, 1
  %v2351 = vand.u32 %v2255, 1
  %v2352 = vand.u32 %v2256, 1
  %v2353 = vand.u32 %v2257, 1
  %v2354 = vand.u32 %v2258, 1
  %v2355 = vand.u32 %v2259, 1
  %v2356 = vand.u32 %v2260, 1
  %v2357 = vand.u32 %v2261, 1
  %v2358 = vand.u32 %v2262, 1
  %v2359 = vand.u32 %v2263, 1
  %v2360 = vand.u32 %v2264, 1
  %v2361 = vand.u32 %v2265, 1
  %v2362 = vand.u32 %v2266, 1
  %v2363 = vand.u32 %v2267, 1
  %v2364 = vand.u32 %v2268, 1
  %v2365 = vand.u32 %v2269, 1
  %v2366 = vand.u32 %v2270, 1
  %v2367 = vand.u32 %v2271, 1
  %v2368 = vand.u32 %v2272, 1
  %v2369 = vand.u32 %v2273, 1
  %v2370 = vand.u32 %v2274, 1
  %v2371 = vand.u32 %v2275, 1
  %v2372 = vand.u32 %v2276, 1
  %v2373 = vand.u32 %v2277, 1
  %v2374 = vand.u32 %v2278, 1
  %v2375 = vand.u32 %v2279, 1
  %v2376 = vand.u32 %v2280, 1
  %v2377 = vand.u32 %v2281, 1
  %v2378 = vand.u32 %v2282, 1
  %v2379 = vand.u32 %v2283, 1
  %v2380 = vand.u32 %v2284, 1
  %v2381 = vand.u32 %v2285, 1
  %v2382 = vand.u32 %v2286, 1
  %v2383 = vand.u32 %v2287, 1
  %v2384 = vand.u32 %v2288, 1
  %v2385 = vand.u32 %v2289, 1
  %v2386 = vand.u32 %v2290, 1
  %v2387 = vand.u32 %v2291, 1
  %v2388 = vand.u32 %v2292, 1
  %v2389 = vand.u32 %v2293, 1
  %v2390 = vand.u32 %v2294, 1
  %v2391 = vand.u32 %v2295, 1
  %v2392 = vand.u32 %v2296, 1
  %vm2393 = vcmp.eq.s32.totalorder %v2297, 0
  %vm2394 = vcmp.eq.s32.totalorder %v2298, 0
  %vm2395 = vcmp.eq.s32.totalorder %v2299, 0
  %vm2396 = vcmp.eq.s32.totalorder %v2300, 0
  %vm2397 = vcmp.eq.s32.totalorder %v2301, 0
  %vm2398 = vcmp.eq.s32.totalorder %v2302, 0
  %vm2399 = vcmp.eq.s32.totalorder %v2303, 0
  %vm2400 = vcmp.eq.s32.totalorder %v2304, 0
  %vm2401 = vcmp.eq.s32.totalorder %v2305, 0
  %vm2402 = vcmp.eq.s32.totalorder %v2306, 0
  %vm2403 = vcmp.eq.s32.totalorder %v2307, 0
  %vm2404 = vcmp.eq.s32.totalorder %v2308, 0
  %vm2405 = vcmp.eq.s32.totalorder %v2309, 0
  %vm2406 = vcmp.eq.s32.totalorder %v2310, 0
  %vm2407 = vcmp.eq.s32.totalorder %v2311, 0
  %vm2408 = vcmp.eq.s32.totalorder %v2312, 0
  %vm2409 = vcmp.eq.s32.totalorder %v2313, 0
  %vm2410 = vcmp.eq.s32.totalorder %v2314, 0
  %vm2411 = vcmp.eq.s32.totalorder %v2315, 0
  %vm2412 = vcmp.eq.s32.totalorder %v2316, 0
  %vm2413 = vcmp.eq.s32.totalorder %v2317, 0
  %vm2414 = vcmp.eq.s32.totalorder %v2318, 0
  %vm2415 = vcmp.eq.s32.totalorder %v2319, 0
  %vm2416 = vcmp.eq.s32.totalorder %v2320, 0
  %vm2417 = vcmp.eq.s32.totalorder %v2321, 0
  %vm2418 = vcmp.eq.s32.totalorder %v2322, 0
  %vm2419 = vcmp.eq.s32.totalorder %v2323, 0
  %vm2420 = vcmp.eq.s32.totalorder %v2324, 0
  %vm2421 = vcmp.eq.s32.totalorder %v2325, 0
  %vm2422 = vcmp.eq.s32.totalorder %v2326, 0
  %vm2423 = vcmp.eq.s32.totalorder %v2327, 0
  %vm2424 = vcmp.eq.s32.totalorder %v2328, 0
  %vm2425 = vcmp.eq.s32.totalorder %v2329, 0
  %vm2426 = vcmp.eq.s32.totalorder %v2330, 0
  %vm2427 = vcmp.eq.s32.totalorder %v2331, 0
  %vm2428 = vcmp.eq.s32.totalorder %v2332, 0
  %vm2429 = vcmp.eq.s32.totalorder %v2333, 0
  %vm2430 = vcmp.eq.s32.totalorder %v2334, 0
  %vm2431 = vcmp.eq.s32.totalorder %v2335, 0
  %vm2432 = vcmp.eq.s32.totalorder %v2336, 0
  %vm2433 = vcmp.eq.s32.totalorder %v2337, 0
  %vm2434 = vcmp.eq.s32.totalorder %v2338, 0
  %vm2435 = vcmp.eq.s32.totalorder %v2339, 0
  %vm2436 = vcmp.eq.s32.totalorder %v2340, 0
  %vm2437 = vcmp.eq.s32.totalorder %v2341, 0
  %vm2438 = vcmp.eq.s32.totalorder %v2342, 0
  %vm2439 = vcmp.eq.s32.totalorder %v2343, 0
  %vm2440 = vcmp.eq.s32.totalorder %v2344, 0
  %vm2441 = vcmp.eq.s32.totalorder %v2345, 0
  %vm2442 = vcmp.eq.s32.totalorder %v2346, 0
  %vm2443 = vcmp.eq.s32.totalorder %v2347, 0
  %vm2444 = vcmp.eq.s32.totalorder %v2348, 0
  %vm2445 = vcmp.eq.s32.totalorder %v2349, 0
  %vm2446 = vcmp.eq.s32.totalorder %v2350, 0
  %vm2447 = vcmp.eq.s32.totalorder %v2351, 0
  %vm2448 = vcmp.eq.s32.totalorder %v2352, 0
  %vm2449 = vcmp.eq.s32.totalorder %v2353, 0
  %vm2450 = vcmp.eq.s32.totalorder %v2354, 0
  %vm2451 = vcmp.eq.s32.totalorder %v2355, 0
  %vm2452 = vcmp.eq.s32.totalorder %v2356, 0
  %vm2453 = vcmp.eq.s32.totalorder %v2357, 0
  %vm2454 = vcmp.eq.s32.totalorder %v2358, 0
  %vm2455 = vcmp.eq.s32.totalorder %v2359, 0
  %vm2456 = vcmp.eq.s32.totalorder %v2360, 0
  %vm2457 = vcmp.eq.s32.totalorder %v2361, 0
  %vm2458 = vcmp.eq.s32.totalorder %v2362, 0
  %vm2459 = vcmp.eq.s32.totalorder %v2363, 0
  %vm2460 = vcmp.eq.s32.totalorder %v2364, 0
  %vm2461 = vcmp.eq.s32.totalorder %v2365, 0
  %vm2462 = vcmp.eq.s32.totalorder %v2366, 0
  %vm2463 = vcmp.eq.s32.totalorder %v2367, 0
  %vm2464 = vcmp.eq.s32.totalorder %v2368, 0
  %vm2465 = vcmp.eq.s32.totalorder %v2369, 0
  %vm2466 = vcmp.eq.s32.totalorder %v2370, 0
  %vm2467 = vcmp.eq.s32.totalorder %v2371, 0
  %vm2468 = vcmp.eq.s32.totalorder %v2372, 0
  %vm2469 = vcmp.eq.s32.totalorder %v2373, 0
  %vm2470 = vcmp.eq.s32.totalorder %v2374, 0
  %vm2471 = vcmp.eq.s32.totalorder %v2375, 0
  %vm2472 = vcmp.eq.s32.totalorder %v2376, 0
  %vm2473 = vcmp.eq.s32.totalorder %v2377, 0
  %vm2474 = vcmp.eq.s32.totalorder %v2378, 0
  %vm2475 = vcmp.eq.s32.totalorder %v2379, 0
  %vm2476 = vcmp.eq.s32.totalorder %v2380, 0
  %vm2477 = vcmp.eq.s32.totalorder %v2381, 0
  %vm2478 = vcmp.eq.s32.totalorder %v2382, 0
  %vm2479 = vcmp.eq.s32.totalorder %v2383, 0
  %vm2480 = vcmp.eq.s32.totalorder %v2384, 0
  %vm2481 = vcmp.eq.s32.totalorder %v2385, 0
  %vm2482 = vcmp.eq.s32.totalorder %v2386, 0
  %vm2483 = vcmp.eq.s32.totalorder %v2387, 0
  %vm2484 = vcmp.eq.s32.totalorder %v2388, 0
  %vm2485 = vcmp.eq.s32.totalorder %v2389, 0
  %vm2486 = vcmp.eq.s32.totalorder %v2390, 0
  %vm2487 = vcmp.eq.s32.totalorder %v2391, 0
  %vm2488 = vcmp.eq.s32.totalorder %v2392, 0
  %v2489 = vsel %vm2393, %v2007, %v2201
  %v2490 = vsel %vm2394, %v2006, %v2200
  %v2491 = vsel %vm2395, %v2005, %v2199
  %v2492 = vsel %vm2396, %v2004, %v2198
  %v2493 = vsel %vm2397, %v2003, %v2197
  %v2494 = vsel %vm2398, %v2002, %v2196
  %v2495 = vsel %vm2399, %v2001, %v2195
  %v2496 = vsel %vm2400, %v2000, %v2194
  %v2497 = vsel %vm2401, %v1999, %v2193
  %v2498 = vsel %vm2402, %v1998, %v2192
  %v2499 = vsel %vm2403, %v1997, %v2191
  %v2500 = vsel %vm2404, %v1996, %v2190
  %v2501 = vsel %vm2405, %v1995, %v2189
  %v2502 = vsel %vm2406, %v1994, %v2188
  %v2503 = vsel %vm2407, %v1993, %v2187
  %v2504 = vsel %vm2408, %v1992, %v2186
  %v2505 = vsel %vm2409, %v1991, %v2185
  %v2506 = vsel %vm2410, %v1990, %v2184
  %v2507 = vsel %vm2411, %v1989, %v2183
  %v2508 = vsel %vm2412, %v1988, %v2182
  %v2509 = vsel %vm2413, %v1987, %v2181
  %v2510 = vsel %vm2414, %v1986, %v2180
  %v2511 = vsel %vm2415, %v1985, %v2179
  %v2512 = vsel %vm2416, %v1984, %v2178
  %v2513 = vsel %vm2417, %v1983, %v2177
  %v2514 = vsel %vm2418, %v1982, %v2176
  %v2515 = vsel %vm2419, %v1981, %v2175
  %v2516 = vsel %vm2420, %v1980, %v2174
  %v2517 = vsel %vm2421, %v1979, %v2173
  %v2518 = vsel %vm2422, %v1978, %v2172
  %v2519 = vsel %vm2423, %v1977, %v2171
  %v2520 = vsel %vm2424, %v1976, %v2170
  %v2521 = vsel %vm2425, %v1975, %v2169
  %v2522 = vsel %vm2426, %v1974, %v2168
  %v2523 = vsel %vm2427, %v1973, %v2167
  %v2524 = vsel %vm2428, %v1972, %v2166
  %v2525 = vsel %vm2429, %v1971, %v2165
  %v2526 = vsel %vm2430, %v1970, %v2164
  %v2527 = vsel %vm2431, %v1969, %v2163
  %v2528 = vsel %vm2432, %v1968, %v2162
  %v2529 = vsel %vm2433, %v1967, %v2161
  %v2530 = vsel %vm2434, %v1966, %v2160
  %v2531 = vsel %vm2435, %v1965, %v2159
  %v2532 = vsel %vm2436, %v1964, %v2158
  %v2533 = vsel %vm2437, %v1963, %v2157
  %v2534 = vsel %vm2438, %v1962, %v2156
  %v2535 = vsel %vm2439, %v1961, %v2155
  %v2536 = vsel %vm2440, %v1960, %v2154
  %v2537 = vsel %vm2441, %v1959, %v2153
  %v2538 = vsel %vm2442, %v1958, %v2152
  %v2539 = vsel %vm2443, %v1957, %v2151
  %v2540 = vsel %vm2444, %v1956, %v2150
  %v2541 = vsel %vm2445, %v1955, %v2149
  %v2542 = vsel %vm2446, %v1954, %v2148
  %v2543 = vsel %vm2447, %v1953, %v2147
  %v2544 = vsel %vm2448, %v1952, %v2146
  %v2545 = vsel %vm2449, %v1951, %v2145
  %v2546 = vsel %vm2450, %v1950, %v2144
  %v2547 = vsel %vm2451, %v1949, %v2143
  %v2548 = vsel %vm2452, %v1948, %v2142
  %v2549 = vsel %vm2453, %v1947, %v2141
  %v2550 = vsel %vm2454, %v1946, %v2140
  %v2551 = vsel %vm2455, %v1945, %v2139
  %v2552 = vsel %vm2456, %v1944, %v2138
  %v2553 = vsel %vm2457, %v1943, %v2137
  %v2554 = vsel %vm2458, %v1942, %v2136
  %v2555 = vsel %vm2459, %v1941, %v2135
  %v2556 = vsel %vm2460, %v1940, %v2134
  %v2557 = vsel %vm2461, %v1939, %v2133
  %v2558 = vsel %vm2462, %v1938, %v2132
  %v2559 = vsel %vm2463, %v1937, %v2131
  %v2560 = vsel %vm2464, %v1936, %v2130
  %v2561 = vsel %vm2465, %v1935, %v2129
  %v2562 = vsel %vm2466, %v1934, %v2128
  %v2563 = vsel %vm2467, %v1933, %v2127
  %v2564 = vsel %vm2468, %v1932, %v2126
  %v2565 = vsel %vm2469, %v1931, %v2125
  %v2566 = vsel %vm2470, %v1930, %v2124
  %v2567 = vsel %vm2471, %v1929, %v2123
  %v2568 = vsel %vm2472, %v1928, %v2122
  %v2569 = vsel %vm2473, %v1927, %v2121
  %v2570 = vsel %vm2474, %v1926, %v2120
  %v2571 = vsel %vm2475, %v1925, %v2119
  %v2572 = vsel %vm2476, %v1924, %v2118
  %v2573 = vsel %vm2477, %v1923, %v2117
  %v2574 = vsel %vm2478, %v1922, %v2116
  %v2575 = vsel %vm2479, %v1921, %v2115
  %v2576 = vsel %vm2480, %v1920, %v2114
  %v2577 = vsel %vm2481, %v1919, %v2113
  %v2578 = vsel %vm2482, %v1918, %v2112
  %v2579 = vsel %vm2483, %v1917, %v2111
  %v2580 = vsel %vm2484, %v1916, %v2110
  %v2581 = vsel %vm2485, %v1915, %v2109
  %v2582 = vsel %vm2486, %v1914, %v2108
  %v2583 = vsel %vm2487, %v1913, %v2107
  %v2584 = vsel %vm2488, %v2008, %v2106
  %v2585 = vpack.c.bf16 %v2490, %v2489
  %v2586 = vpack.c.bf16 %v2492, %v2491
  %v2587 = vpack.c.bf16 %v2494, %v2493
  %v2588 = vpack.c.bf16 %v2496, %v2495
  %v2589 = vpack.c.bf16 %v2498, %v2497
  %v2590 = vpack.c.bf16 %v2500, %v2499
  %v2591 = vpack.c.bf16 %v2502, %v2501
  %v2592 = vpack.c.bf16 %v2504, %v2503
  %v2593 = vpack.c.bf16 %v2506, %v2505
  %v2594 = vpack.c.bf16 %v2508, %v2507
  %v2595 = vpack.c.bf16 %v2510, %v2509
  %v2596 = vpack.c.bf16 %v2512, %v2511
  %v2597 = vpack.c.bf16 %v2514, %v2513
  %v2598 = vpack.c.bf16 %v2516, %v2515
  %v2599 = vpack.c.bf16 %v2518, %v2517
  %v2600 = vpack.c.bf16 %v2520, %v2519
  %v2601 = vpack.c.bf16 %v2522, %v2521
  %v2602 = vpack.c.bf16 %v2524, %v2523
  %v2603 = vpack.c.bf16 %v2526, %v2525
  %v2604 = vpack.c.bf16 %v2528, %v2527
  %v2605 = vpack.c.bf16 %v2530, %v2529
  %v2606 = vpack.c.bf16 %v2532, %v2531
  %v2607 = vpack.c.bf16 %v2534, %v2533
  %v2608 = vpack.c.bf16 %v2536, %v2535
  %v2609 = vpack.c.bf16 %v2538, %v2537
  %v2610 = vpack.c.bf16 %v2540, %v2539
  %v2611 = vpack.c.bf16 %v2542, %v2541
  %v2612 = vpack.c.bf16 %v2544, %v2543
  %v2613 = vpack.c.bf16 %v2546, %v2545
  %v2614 = vpack.c.bf16 %v2548, %v2547
  %v2615 = vpack.c.bf16 %v2550, %v2549
  %v2616 = vpack.c.bf16 %v2552, %v2551
  %v2617 = vpack.c.bf16 %v2554, %v2553
  %v2618 = vpack.c.bf16 %v2556, %v2555
  %v2619 = vpack.c.bf16 %v2558, %v2557
  %v2620 = vpack.c.bf16 %v2560, %v2559
  %v2621 = vpack.c.bf16 %v2562, %v2561
  %v2622 = vpack.c.bf16 %v2564, %v2563
  %v2623 = vpack.c.bf16 %v2566, %v2565
  %v2624 = vpack.c.bf16 %v2568, %v2567
  %v2625 = vpack.c.bf16 %v2570, %v2569
  %v2626 = vpack.c.bf16 %v2572, %v2571
  %v2627 = vpack.c.bf16 %v2574, %v2573
  %v2628 = vpack.c.bf16 %v2576, %v2575
  %v2629 = vpack.c.bf16 %v2578, %v2577
  %v2630 = vpack.c.bf16 %v2580, %v2579
  %v2631 = vpack.c.bf16 %v2582, %v2581
  %v2632 = vpack.c.bf16 %v2584, %v2583
  %v2633 = vpack.c.bf16 %v1577, %v1575
  %v2634 = vpack.c.bf16 %v1582, %v1580
  %v2635 = vpack.c.bf16 %v1587, %v1585
  %v2636 = vpack.c.bf16 %v1592, %v1590
  %v2637 = vpack.c.bf16 %v1597, %v1595
  %v2638 = vpack.c.bf16 %v1602, %v1600
  %v2639 = vpack.c.bf16 %v1607, %v1605
  %v2640 = vpack.c.bf16 %v1612, %v1610
  %v2641 = vpack.c.bf16 %v1617, %v1615
  %v2642 = vpack.c.bf16 %v1622, %v1620
  %v2643 = vpack.c.bf16 %v1627, %v1625
  %v2644 = vpack.c.bf16 %v1632, %v1630
  %v2645 = vpack.c.bf16 %v1637, %v1635
  %v2646 = vpack.c.bf16 %v1642, %v1640
  %v2647 = vpack.c.bf16 %v1647, %v1645
  %v2648 = vpack.c.bf16 %v1652, %v1650
  %v2649 = vpack.c.bf16 %v1657, %v1655
  %v2650 = vpack.c.bf16 %v1662, %v1660
  %v2651 = vpack.c.bf16 %v1667, %v1665
  %v2652 = vpack.c.bf16 %v1672, %v1670
  %v2653 = vpack.c.bf16 %v1677, %v1675
  %v2654 = vpack.c.bf16 %v1682, %v1680
  %v2655 = vpack.c.bf16 %v1687, %v1685
  %v2656 = vpack.c.bf16 %v1692, %v1690
  %v2657 = vpack.c.bf16 %v1697, %v1695
  %v2658 = vpack.c.bf16 %v1702, %v1700
  %v2659 = vpack.c.bf16 %v1707, %v1705
  %v2660 = vpack.c.bf16 %v1712, %v1710
  %v2661 = vpack.c.bf16 %v1717, %v1715
  %v2662 = vpack.c.bf16 %v1722, %v1720
  %v2663 = vpack.c.bf16 %v1727, %v1725
  %v2664 = vpack.c.bf16 %v1732, %v1730
  %v2665 = vpack.c.bf16 %v1737, %v1735
  %v2666 = vpack.c.bf16 %v1742, %v1740
  %v2667 = vpack.c.bf16 %v1747, %v1745
  %v2668 = vpack.c.bf16 %v1752, %v1750
  %v2669 = vpack.c.bf16 %v1757, %v1755
  %v2670 = vpack.c.bf16 %v1762, %v1760
  %v2671 = vpack.c.bf16 %v1767, %v1765
  %v2672 = vpack.c.bf16 %v1772, %v1770
  %v2673 = vpack.c.bf16 %v1777, %v1775
  %v2674 = vpack.c.bf16 %v1782, %v1780
  %v2675 = vpack.c.bf16 %v1787, %v1785
  %v2676 = vpack.c.bf16 %v1792, %v1790
  %v2677 = vpack.c.bf16 %v1797, %v1795
  %v2678 = vpack.c.bf16 %v1802, %v1800
  %v2679 = vpack.c.bf16 %v1807, %v1805
  %v2680 = vpack.c.bf16 %v1812, %v1810
  %v2681 = vld [vmem:[%s4] sm:$0xf]
  %v2682 = vld [vmem:[%s4 + $0x4] sm:$0xf]
  %v2683 = vld [vmem:[%s4 + $0x8] sm:$0xf]
  %v2684 = vld [vmem:[%s4 + $0xc] sm:$0xf]
  %v2685 = vld [vmem:[%s5] sm:$0xf]
  %v2686 = vld [vmem:[%s5 + $0x4] sm:$0xf]
  %v2687 = vld [vmem:[%s5 + $0x8] sm:$0xf]
  %v2688 = vld [vmem:[%s5 + $0xc] sm:$0xf]
  %v2693 = vunpack.c.l.b16 %v2685
  %v2694 = vunpack.c.l.b16 %v2686
  %v2695 = vunpack.c.l.b16 %v2687
  %v2696 = vunpack.c.l.b16 %v2688
  %v2697 = vpack.c.b16 %v2694, %v2693
  %v2698 = vpack.c.b16 %v2696, %v2695
  %vm2701 = vcmask 261120
  %v2703 = vsel %vm2701, %v2633, 0
  %v2706 = vsel %vm2701, %v2634, 0
  %v2709 = vsel %vm2701, %v2635, 0
  %v2712 = vsel %vm2701, %v2636, 0
  %v2715 = vsel %vm2701, %v2637, 0
  %v2718 = vsel %vm2701, %v2638, 0
  %v2721 = vsel %vm2701, %v2639, 0
  %v2724 = vsel %vm2701, %v2640, 0
  %v2727 = vsel %vm2701, %v2641, 0
  %v2730 = vsel %vm2701, %v2642, 0
  %v2733 = vsel %vm2701, %v2643, 0
  %v2736 = vsel %vm2701, %v2644, 0
  %v2739 = vsel %vm2701, %v2645, 0
  %v2742 = vsel %vm2701, %v2646, 0
  %v2745 = vsel %vm2701, %v2647, 0
  %v2748 = vsel %vm2701, %v2648, 0
  %v2751 = vsel %vm2701, %v2649, 0
  %v2754 = vsel %vm2701, %v2650, 0
  %v2757 = vsel %vm2701, %v2651, 0
  %v2760 = vsel %vm2701, %v2652, 0
  %v2763 = vsel %vm2701, %v2653, 0
  %v2766 = vsel %vm2701, %v2654, 0
  %v2769 = vsel %vm2701, %v2655, 0
  %v2772 = vsel %vm2701, %v2656, 0
  %v2775 = vsel %vm2701, %v2657, 0
  %v2778 = vsel %vm2701, %v2658, 0
  %v2781 = vsel %vm2701, %v2659, 0
  %v2784 = vsel %vm2701, %v2660, 0
  %v2787 = vsel %vm2701, %v2661, 0
  %v2790 = vsel %vm2701, %v2662, 0
  %v2793 = vsel %vm2701, %v2663, 0
  %v2796 = vsel %vm2701, %v2664, 0
  %v2799 = vsel %vm2701, %v2665, 0
  %v2802 = vsel %vm2701, %v2666, 0
  %v2805 = vsel %vm2701, %v2667, 0
  %v2808 = vsel %vm2701, %v2668, 0
  %v2811 = vsel %vm2701, %v2669, 0
  %v2814 = vsel %vm2701, %v2670, 0
  %v2817 = vsel %vm2701, %v2671, 0
  %v2820 = vsel %vm2701, %v2672, 0
  %v2823 = vsel %vm2701, %v2673, 0
  %v2826 = vsel %vm2701, %v2674, 0
  %v2829 = vsel %vm2701, %v2675, 0
  %v2832 = vsel %vm2701, %v2676, 0
  %v2835 = vsel %vm2701, %v2677, 0
  %v2838 = vsel %vm2701, %v2678, 0
  %v2841 = vsel %vm2701, %v2679, 0
  %v2844 = vsel %vm2701, %v2680, 0
  %2846 = vmatpush.bf16.msra.mxu0 0
  %2847 = vmatpush.bf16.msra.mxu0 0
  %2848 = vmatpush.bf16.msra.mxu0 0
  %2849 = vmatpush.bf16.msra.mxu0 0
  %2850 = vmatpush.bf16.msra.mxu0 0
  %2851 = vmatpush.bf16.msra.mxu0 0
  %2852 = vmatpush.bf16.msra.mxu0 %v2698
  %2853 = vmatpush.bf16.msra.mxu0 %v2697
  %2854 = vmatmul.bf16.gmra.mxu0 %v2703
  %v2855 = vpop.f32.mrf.mxu0
  %v2856 = vadd.f32 0.0, %v2855
  %v2857 = vpop.f32.mrf.mxu0
  %v2858 = vadd.f32 0.0, %v2857
  %2859 = vmatmul.bf16.gmra.mxu0 %v2706
  %v2860 = vpop.f32.mrf.mxu0
  %v2861 = vadd.f32 0.0, %v2860
  %v2862 = vpop.f32.mrf.mxu0
  %v2863 = vadd.f32 0.0, %v2862
  %2864 = vmatmul.bf16.gmra.mxu0 %v2709
  %v2865 = vpop.f32.mrf.mxu0
  %v2866 = vadd.f32 0.0, %v2865
  %v2867 = vpop.f32.mrf.mxu0
  %v2868 = vadd.f32 0.0, %v2867
  %2869 = vmatmul.bf16.gmra.mxu0 %v2712
  %v2870 = vpop.f32.mrf.mxu0
  %v2871 = vadd.f32 0.0, %v2870
  %v2872 = vpop.f32.mrf.mxu0
  %v2873 = vadd.f32 0.0, %v2872
  %2874 = vmatmul.bf16.gmra.mxu0 %v2715
  %v2875 = vpop.f32.mrf.mxu0
  %v2876 = vadd.f32 0.0, %v2875
  %v2877 = vpop.f32.mrf.mxu0
  %v2878 = vadd.f32 0.0, %v2877
  %2879 = vmatmul.bf16.gmra.mxu0 %v2718
  %v2880 = vpop.f32.mrf.mxu0
  %v2881 = vadd.f32 0.0, %v2880
  %v2882 = vpop.f32.mrf.mxu0
  %v2883 = vadd.f32 0.0, %v2882
  %2884 = vmatmul.bf16.gmra.mxu0 %v2721
  %v2885 = vpop.f32.mrf.mxu0
  %v2886 = vadd.f32 0.0, %v2885
  %v2887 = vpop.f32.mrf.mxu0
  %v2888 = vadd.f32 0.0, %v2887
  %2889 = vmatmul.bf16.gmra.mxu0 %v2724
  %v2890 = vpop.f32.mrf.mxu0
  %v2891 = vadd.f32 0.0, %v2890
  %v2892 = vpop.f32.mrf.mxu0
  %v2893 = vadd.f32 0.0, %v2892
  %2894 = vmatmul.bf16.gmra.mxu0 %v2727
  %v2895 = vpop.f32.mrf.mxu0
  %v2896 = vadd.f32 0.0, %v2895
  %v2897 = vpop.f32.mrf.mxu0
  %v2898 = vadd.f32 0.0, %v2897
  %2899 = vmatmul.bf16.gmra.mxu0 %v2730
  %v2900 = vpop.f32.mrf.mxu0
  %v2901 = vadd.f32 0.0, %v2900
  %v2902 = vpop.f32.mrf.mxu0
  %v2903 = vadd.f32 0.0, %v2902
  %2904 = vmatmul.bf16.gmra.mxu0 %v2733
  %v2905 = vpop.f32.mrf.mxu0
  %v2906 = vadd.f32 0.0, %v2905
  %v2907 = vpop.f32.mrf.mxu0
  %v2908 = vadd.f32 0.0, %v2907
  %2909 = vmatmul.bf16.gmra.mxu0 %v2736
  %v2910 = vpop.f32.mrf.mxu0
  %v2911 = vadd.f32 0.0, %v2910
  %v2912 = vpop.f32.mrf.mxu0
  %v2913 = vadd.f32 0.0, %v2912
  %2914 = vmatmul.bf16.gmra.mxu0 %v2739
  %v2915 = vpop.f32.mrf.mxu0
  %v2916 = vadd.f32 0.0, %v2915
  %v2917 = vpop.f32.mrf.mxu0
  %v2918 = vadd.f32 0.0, %v2917
  %2919 = vmatmul.bf16.gmra.mxu0 %v2742
  %v2920 = vpop.f32.mrf.mxu0
  %v2921 = vadd.f32 0.0, %v2920
  %v2922 = vpop.f32.mrf.mxu0
  %v2923 = vadd.f32 0.0, %v2922
  %2924 = vmatmul.bf16.gmra.mxu0 %v2745
  %v2925 = vpop.f32.mrf.mxu0
  %v2926 = vadd.f32 0.0, %v2925
  %v2927 = vpop.f32.mrf.mxu0
  %v2928 = vadd.f32 0.0, %v2927
  %2929 = vmatmul.bf16.gmra.mxu0 %v2748
  %v2930 = vpop.f32.mrf.mxu0
  %v2931 = vadd.f32 0.0, %v2930
  %v2932 = vpop.f32.mrf.mxu0
  %v2933 = vadd.f32 0.0, %v2932
  %2934 = vmatmul.bf16.gmra.mxu0 %v2751
  %v2935 = vpop.f32.mrf.mxu0
  %v2936 = vadd.f32 0.0, %v2935
  %v2937 = vpop.f32.mrf.mxu0
  %v2938 = vadd.f32 0.0, %v2937
  %2939 = vmatmul.bf16.gmra.mxu0 %v2754
  %v2940 = vpop.f32.mrf.mxu0
  %v2941 = vadd.f32 0.0, %v2940
  %v2942 = vpop.f32.mrf.mxu0
  %v2943 = vadd.f32 0.0, %v2942
  %2944 = vmatmul.bf16.gmra.mxu0 %v2757
  %v2945 = vpop.f32.mrf.mxu0
  %v2946 = vadd.f32 0.0, %v2945
  %v2947 = vpop.f32.mrf.mxu0
  %v2948 = vadd.f32 0.0, %v2947
  %2949 = vmatmul.bf16.gmra.mxu0 %v2760
  %v2950 = vpop.f32.mrf.mxu0
  %v2951 = vadd.f32 0.0, %v2950
  %v2952 = vpop.f32.mrf.mxu0
  %v2953 = vadd.f32 0.0, %v2952
  %2954 = vmatmul.bf16.gmra.mxu0 %v2763
  %v2955 = vpop.f32.mrf.mxu0
  %v2956 = vadd.f32 0.0, %v2955
  %v2957 = vpop.f32.mrf.mxu0
  %v2958 = vadd.f32 0.0, %v2957
  %2959 = vmatmul.bf16.gmra.mxu0 %v2766
  %v2960 = vpop.f32.mrf.mxu0
  %v2961 = vadd.f32 0.0, %v2960
  %v2962 = vpop.f32.mrf.mxu0
  %v2963 = vadd.f32 0.0, %v2962
  %2964 = vmatmul.bf16.gmra.mxu0 %v2769
  %v2965 = vpop.f32.mrf.mxu0
  %v2966 = vadd.f32 0.0, %v2965
  %v2967 = vpop.f32.mrf.mxu0
  %v2968 = vadd.f32 0.0, %v2967
  %2969 = vmatmul.bf16.gmra.mxu0 %v2772
  %v2970 = vpop.f32.mrf.mxu0
  %v2971 = vadd.f32 0.0, %v2970
  %v2972 = vpop.f32.mrf.mxu0
  %v2973 = vadd.f32 0.0, %v2972
  %2974 = vmatmul.bf16.gmra.mxu0 %v2775
  %v2975 = vpop.f32.mrf.mxu0
  %v2976 = vadd.f32 0.0, %v2975
  %v2977 = vpop.f32.mrf.mxu0
  %v2978 = vadd.f32 0.0, %v2977
  %2979 = vmatmul.bf16.gmra.mxu0 %v2778
  %v2980 = vpop.f32.mrf.mxu0
  %v2981 = vadd.f32 0.0, %v2980
  %v2982 = vpop.f32.mrf.mxu0
  %v2983 = vadd.f32 0.0, %v2982
  %2984 = vmatmul.bf16.gmra.mxu0 %v2781
  %v2985 = vpop.f32.mrf.mxu0
  %v2986 = vadd.f32 0.0, %v2985
  %v2987 = vpop.f32.mrf.mxu0
  %v2988 = vadd.f32 0.0, %v2987
  %2989 = vmatmul.bf16.gmra.mxu0 %v2784
  %v2990 = vpop.f32.mrf.mxu0
  %v2991 = vadd.f32 0.0, %v2990
  %v2992 = vpop.f32.mrf.mxu0
  %v2993 = vadd.f32 0.0, %v2992
  %2994 = vmatmul.bf16.gmra.mxu0 %v2787
  %v2995 = vpop.f32.mrf.mxu0
  %v2996 = vadd.f32 0.0, %v2995
  %v2997 = vpop.f32.mrf.mxu0
  %v2998 = vadd.f32 0.0, %v2997
  %2999 = vmatmul.bf16.gmra.mxu0 %v2790
  %v3000 = vpop.f32.mrf.mxu0
  %v3001 = vadd.f32 0.0, %v3000
  %v3002 = vpop.f32.mrf.mxu0
  %v3003 = vadd.f32 0.0, %v3002
  %3004 = vmatmul.bf16.gmra.mxu0 %v2793
  %v3005 = vpop.f32.mrf.mxu0
  %v3006 = vadd.f32 0.0, %v3005
  %v3007 = vpop.f32.mrf.mxu0
  %v3008 = vadd.f32 0.0, %v3007
  %3009 = vmatmul.bf16.gmra.mxu0 %v2796
  %v3010 = vpop.f32.mrf.mxu0
  %v3011 = vadd.f32 0.0, %v3010
  %v3012 = vpop.f32.mrf.mxu0
  %v3013 = vadd.f32 0.0, %v3012
  %3014 = vmatmul.bf16.gmra.mxu0 %v2799
  %v3015 = vpop.f32.mrf.mxu0
  %v3016 = vadd.f32 0.0, %v3015
  %v3017 = vpop.f32.mrf.mxu0
  %v3018 = vadd.f32 0.0, %v3017
  %3019 = vmatmul.bf16.gmra.mxu0 %v2802
  %v3020 = vpop.f32.mrf.mxu0
  %v3021 = vadd.f32 0.0, %v3020
  %v3022 = vpop.f32.mrf.mxu0
  %v3023 = vadd.f32 0.0, %v3022
  %3024 = vmatmul.bf16.gmra.mxu0 %v2805
  %v3025 = vpop.f32.mrf.mxu0
  %v3026 = vadd.f32 0.0, %v3025
  %v3027 = vpop.f32.mrf.mxu0
  %v3028 = vadd.f32 0.0, %v3027
  %3029 = vmatmul.bf16.gmra.mxu0 %v2808
  %v3030 = vpop.f32.mrf.mxu0
  %v3031 = vadd.f32 0.0, %v3030
  %v3032 = vpop.f32.mrf.mxu0
  %v3033 = vadd.f32 0.0, %v3032
  %3034 = vmatmul.bf16.gmra.mxu0 %v2811
  %v3035 = vpop.f32.mrf.mxu0
  %v3036 = vadd.f32 0.0, %v3035
  %v3037 = vpop.f32.mrf.mxu0
  %v3038 = vadd.f32 0.0, %v3037
  %3039 = vmatmul.bf16.gmra.mxu0 %v2814
  %v3040 = vpop.f32.mrf.mxu0
  %v3041 = vadd.f32 0.0, %v3040
  %v3042 = vpop.f32.mrf.mxu0
  %v3043 = vadd.f32 0.0, %v3042
  %3044 = vmatmul.bf16.gmra.mxu0 %v2817
  %v3045 = vpop.f32.mrf.mxu0
  %v3046 = vadd.f32 0.0, %v3045
  %v3047 = vpop.f32.mrf.mxu0
  %v3048 = vadd.f32 0.0, %v3047
  %3049 = vmatmul.bf16.gmra.mxu0 %v2820
  %v3050 = vpop.f32.mrf.mxu0
  %v3051 = vadd.f32 0.0, %v3050
  %v3052 = vpop.f32.mrf.mxu0
  %v3053 = vadd.f32 0.0, %v3052
  %3054 = vmatmul.bf16.gmra.mxu0 %v2823
  %v3055 = vpop.f32.mrf.mxu0
  %v3056 = vadd.f32 0.0, %v3055
  %v3057 = vpop.f32.mrf.mxu0
  %v3058 = vadd.f32 0.0, %v3057
  %3059 = vmatmul.bf16.gmra.mxu0 %v2826
  %v3060 = vpop.f32.mrf.mxu0
  %v3061 = vadd.f32 0.0, %v3060
  %v3062 = vpop.f32.mrf.mxu0
  %v3063 = vadd.f32 0.0, %v3062
  %3064 = vmatmul.bf16.gmra.mxu0 %v2829
  %v3065 = vpop.f32.mrf.mxu0
  %v3066 = vadd.f32 0.0, %v3065
  %v3067 = vpop.f32.mrf.mxu0
  %v3068 = vadd.f32 0.0, %v3067
  %3069 = vmatmul.bf16.gmra.mxu0 %v2832
  %v3070 = vpop.f32.mrf.mxu0
  %v3071 = vadd.f32 0.0, %v3070
  %v3072 = vpop.f32.mrf.mxu0
  %v3073 = vadd.f32 0.0, %v3072
  %3074 = vmatmul.bf16.gmra.mxu0 %v2835
  %v3075 = vpop.f32.mrf.mxu0
  %v3076 = vadd.f32 0.0, %v3075
  %v3077 = vpop.f32.mrf.mxu0
  %v3078 = vadd.f32 0.0, %v3077
  %3079 = vmatmul.bf16.gmra.mxu0 %v2838
  %v3080 = vpop.f32.mrf.mxu0
  %v3081 = vadd.f32 0.0, %v3080
  %v3082 = vpop.f32.mrf.mxu0
  %v3083 = vadd.f32 0.0, %v3082
  %3084 = vmatmul.bf16.gmra.mxu0 %v2841
  %v3085 = vpop.f32.mrf.mxu0
  %v3086 = vadd.f32 0.0, %v3085
  %v3087 = vpop.f32.mrf.mxu0
  %v3088 = vadd.f32 0.0, %v3087
  %3089 = vmatmul.bf16.gmra.mxu0 %v2844
  %v3090 = vpop.f32.mrf.mxu0
  %v3091 = vadd.f32 0.0, %v3090
  %v3092 = vpop.f32.mrf.mxu0
  %v3093 = vadd.f32 0.0, %v3092
  %3094 = vdwg.mxu0
  %v3099 = vunpack.c.l.b16 %v2681
  %v3100 = vunpack.c.l.b16 %v2682
  %v3101 = vunpack.c.l.b16 %v2683
  %v3102 = vunpack.c.l.b16 %v2684
  %v3103 = vpack.c.b16 %v3100, %v3099
  %v3104 = vpack.c.b16 %v3102, %v3101
  %v3108 = vsel %vm2701, %v209, 0
  %v3111 = vsel %vm2701, %v210, 0
  %v3114 = vsel %vm2701, %v211, 0
  %v3117 = vsel %vm2701, %v212, 0
  %v3120 = vsel %vm2701, %v213, 0
  %v3123 = vsel %vm2701, %v214, 0
  %v3126 = vsel %vm2701, %v215, 0
  %v3129 = vsel %vm2701, %v216, 0
  %v3132 = vsel %vm2701, %v217, 0
  %v3135 = vsel %vm2701, %v218, 0
  %v3138 = vsel %vm2701, %v219, 0
  %v3141 = vsel %vm2701, %v220, 0
  %v3144 = vsel %vm2701, %v221, 0
  %v3147 = vsel %vm2701, %v222, 0
  %v3150 = vsel %vm2701, %v223, 0
  %v3153 = vsel %vm2701, %v224, 0
  %v3156 = vsel %vm2701, %v225, 0
  %v3159 = vsel %vm2701, %v226, 0
  %v3162 = vsel %vm2701, %v227, 0
  %v3165 = vsel %vm2701, %v228, 0
  %v3168 = vsel %vm2701, %v229, 0
  %v3171 = vsel %vm2701, %v230, 0
  %v3174 = vsel %vm2701, %v231, 0
  %v3177 = vsel %vm2701, %v232, 0
  %v3180 = vsel %vm2701, %v233, 0
  %v3183 = vsel %vm2701, %v234, 0
  %v3186 = vsel %vm2701, %v235, 0
  %v3189 = vsel %vm2701, %v236, 0
  %v3192 = vsel %vm2701, %v237, 0
  %v3195 = vsel %vm2701, %v238, 0
  %v3198 = vsel %vm2701, %v239, 0
  %v3201 = vsel %vm2701, %v240, 0
  %v3204 = vsel %vm2701, %v241, 0
  %v3207 = vsel %vm2701, %v242, 0
  %v3210 = vsel %vm2701, %v243, 0
  %v3213 = vsel %vm2701, %v244, 0
  %v3216 = vsel %vm2701, %v245, 0
  %v3219 = vsel %vm2701, %v246, 0
  %v3222 = vsel %vm2701, %v247, 0
  %v3225 = vsel %vm2701, %v248, 0
  %v3228 = vsel %vm2701, %v249, 0
  %v3231 = vsel %vm2701, %v250, 0
  %v3234 = vsel %vm2701, %v251, 0
  %v3237 = vsel %vm2701, %v252, 0
  %v3240 = vsel %vm2701, %v253, 0
  %v3243 = vsel %vm2701, %v254, 0
  %v3246 = vsel %vm2701, %v255, 0
  %v3249 = vsel %vm2701, %v256, 0
  %3251 = vmatpush.bf16.msra.mxu0 0
  %3252 = vmatpush.bf16.msra.mxu0 0
  %3253 = vmatpush.bf16.msra.mxu0 0
  %3254 = vmatpush.bf16.msra.mxu0 0
  %3255 = vmatpush.bf16.msra.mxu0 0
  %3256 = vmatpush.bf16.msra.mxu0 0
  %3257 = vmatpush.bf16.msra.mxu0 %v3104
  %3258 = vmatpush.bf16.msra.mxu0 %v3103
  %3259 = vmatmul.bf16.gmra.mxu0 %v3108
  %v3260 = vpop.f32.mrf.mxu0
  %v3261 = vadd.f32 %v2856, %v3260
  %v3262 = vpop.f32.mrf.mxu0
  %v3263 = vadd.f32 %v2858, %v3262
  %3264 = vmatmul.bf16.gmra.mxu0 %v3111
  %v3265 = vpop.f32.mrf.mxu0
  %v3266 = vadd.f32 %v2861, %v3265
  %v3267 = vpop.f32.mrf.mxu0
  %v3268 = vadd.f32 %v2863, %v3267
  %3269 = vmatmul.bf16.gmra.mxu0 %v3114
  %v3270 = vpop.f32.mrf.mxu0
  %v3271 = vadd.f32 %v2866, %v3270
  %v3272 = vpop.f32.mrf.mxu0
  %v3273 = vadd.f32 %v2868, %v3272
  %3274 = vmatmul.bf16.gmra.mxu0 %v3117
  %v3275 = vpop.f32.mrf.mxu0
  %v3276 = vadd.f32 %v2871, %v3275
  %v3277 = vpop.f32.mrf.mxu0
  %v3278 = vadd.f32 %v2873, %v3277
  %3279 = vmatmul.bf16.gmra.mxu0 %v3120
  %v3280 = vpop.f32.mrf.mxu0
  %v3281 = vadd.f32 %v2876, %v3280
  %v3282 = vpop.f32.mrf.mxu0
  %v3283 = vadd.f32 %v2878, %v3282
  %3284 = vmatmul.bf16.gmra.mxu0 %v3123
  %v3285 = vpop.f32.mrf.mxu0
  %v3286 = vadd.f32 %v2881, %v3285
  %v3287 = vpop.f32.mrf.mxu0
  %v3288 = vadd.f32 %v2883, %v3287
  %3289 = vmatmul.bf16.gmra.mxu0 %v3126
  %v3290 = vpop.f32.mrf.mxu0
  %v3291 = vadd.f32 %v2886, %v3290
  %v3292 = vpop.f32.mrf.mxu0
  %v3293 = vadd.f32 %v2888, %v3292
  %3294 = vmatmul.bf16.gmra.mxu0 %v3129
  %v3295 = vpop.f32.mrf.mxu0
  %v3296 = vadd.f32 %v2891, %v3295
  %v3297 = vpop.f32.mrf.mxu0
  %v3298 = vadd.f32 %v2893, %v3297
  %3299 = vmatmul.bf16.gmra.mxu0 %v3132
  %v3300 = vpop.f32.mrf.mxu0
  %v3301 = vadd.f32 %v2896, %v3300
  %v3302 = vpop.f32.mrf.mxu0
  %v3303 = vadd.f32 %v2898, %v3302
  %3304 = vmatmul.bf16.gmra.mxu0 %v3135
  %v3305 = vpop.f32.mrf.mxu0
  %v3306 = vadd.f32 %v2901, %v3305
  %v3307 = vpop.f32.mrf.mxu0
  %v3308 = vadd.f32 %v2903, %v3307
  %3309 = vmatmul.bf16.gmra.mxu0 %v3138
  %v3310 = vpop.f32.mrf.mxu0
  %v3311 = vadd.f32 %v2906, %v3310
  %v3312 = vpop.f32.mrf.mxu0
  %v3313 = vadd.f32 %v2908, %v3312
  %3314 = vmatmul.bf16.gmra.mxu0 %v3141
  %v3315 = vpop.f32.mrf.mxu0
  %v3316 = vadd.f32 %v2911, %v3315
  %v3317 = vpop.f32.mrf.mxu0
  %v3318 = vadd.f32 %v2913, %v3317
  %3319 = vmatmul.bf16.gmra.mxu0 %v3144
  %v3320 = vpop.f32.mrf.mxu0
  %v3321 = vadd.f32 %v2916, %v3320
  %v3322 = vpop.f32.mrf.mxu0
  %v3323 = vadd.f32 %v2918, %v3322
  %3324 = vmatmul.bf16.gmra.mxu0 %v3147
  %v3325 = vpop.f32.mrf.mxu0
  %v3326 = vadd.f32 %v2921, %v3325
  %v3327 = vpop.f32.mrf.mxu0
  %v3328 = vadd.f32 %v2923, %v3327
  %3329 = vmatmul.bf16.gmra.mxu0 %v3150
  %v3330 = vpop.f32.mrf.mxu0
  %v3331 = vadd.f32 %v2926, %v3330
  %v3332 = vpop.f32.mrf.mxu0
  %v3333 = vadd.f32 %v2928, %v3332
  %3334 = vmatmul.bf16.gmra.mxu0 %v3153
  %v3335 = vpop.f32.mrf.mxu0
  %v3336 = vadd.f32 %v2931, %v3335
  %v3337 = vpop.f32.mrf.mxu0
  %v3338 = vadd.f32 %v2933, %v3337
  %3339 = vmatmul.bf16.gmra.mxu0 %v3156
  %v3340 = vpop.f32.mrf.mxu0
  %v3341 = vadd.f32 %v2936, %v3340
  %v3342 = vpop.f32.mrf.mxu0
  %v3343 = vadd.f32 %v2938, %v3342
  %3344 = vmatmul.bf16.gmra.mxu0 %v3159
  %v3345 = vpop.f32.mrf.mxu0
  %v3346 = vadd.f32 %v2941, %v3345
  %v3347 = vpop.f32.mrf.mxu0
  %v3348 = vadd.f32 %v2943, %v3347
  %3349 = vmatmul.bf16.gmra.mxu0 %v3162
  %v3350 = vpop.f32.mrf.mxu0
  %v3351 = vadd.f32 %v2946, %v3350
  %v3352 = vpop.f32.mrf.mxu0
  %v3353 = vadd.f32 %v2948, %v3352
  %3354 = vmatmul.bf16.gmra.mxu0 %v3165
  %v3355 = vpop.f32.mrf.mxu0
  %v3356 = vadd.f32 %v2951, %v3355
  %v3357 = vpop.f32.mrf.mxu0
  %v3358 = vadd.f32 %v2953, %v3357
  %3359 = vmatmul.bf16.gmra.mxu0 %v3168
  %v3360 = vpop.f32.mrf.mxu0
  %v3361 = vadd.f32 %v2956, %v3360
  %v3362 = vpop.f32.mrf.mxu0
  %v3363 = vadd.f32 %v2958, %v3362
  %3364 = vmatmul.bf16.gmra.mxu0 %v3171
  %v3365 = vpop.f32.mrf.mxu0
  %v3366 = vadd.f32 %v2961, %v3365
  %v3367 = vpop.f32.mrf.mxu0
  %v3368 = vadd.f32 %v2963, %v3367
  %3369 = vmatmul.bf16.gmra.mxu0 %v3174
  %v3370 = vpop.f32.mrf.mxu0
  %v3371 = vadd.f32 %v2966, %v3370
  %v3372 = vpop.f32.mrf.mxu0
  %v3373 = vadd.f32 %v2968, %v3372
  %3374 = vmatmul.bf16.gmra.mxu0 %v3177
  %v3375 = vpop.f32.mrf.mxu0
  %v3376 = vadd.f32 %v2971, %v3375
  %v3377 = vpop.f32.mrf.mxu0
  %v3378 = vadd.f32 %v2973, %v3377
  %3379 = vmatmul.bf16.gmra.mxu0 %v3180
  %v3380 = vpop.f32.mrf.mxu0
  %v3381 = vadd.f32 %v2976, %v3380
  %v3382 = vpop.f32.mrf.mxu0
  %v3383 = vadd.f32 %v2978, %v3382
  %3384 = vmatmul.bf16.gmra.mxu0 %v3183
  %v3385 = vpop.f32.mrf.mxu0
  %v3386 = vadd.f32 %v2981, %v3385
  %v3387 = vpop.f32.mrf.mxu0
  %v3388 = vadd.f32 %v2983, %v3387
  %3389 = vmatmul.bf16.gmra.mxu0 %v3186
  %v3390 = vpop.f32.mrf.mxu0
  %v3391 = vadd.f32 %v2986, %v3390
  %v3392 = vpop.f32.mrf.mxu0
  %v3393 = vadd.f32 %v2988, %v3392
  %3394 = vmatmul.bf16.gmra.mxu0 %v3189
  %v3395 = vpop.f32.mrf.mxu0
  %v3396 = vadd.f32 %v2991, %v3395
  %v3397 = vpop.f32.mrf.mxu0
  %v3398 = vadd.f32 %v2993, %v3397
  %3399 = vmatmul.bf16.gmra.mxu0 %v3192
  %v3400 = vpop.f32.mrf.mxu0
  %v3401 = vadd.f32 %v2996, %v3400
  %v3402 = vpop.f32.mrf.mxu0
  %v3403 = vadd.f32 %v2998, %v3402
  %3404 = vmatmul.bf16.gmra.mxu0 %v3195
  %v3405 = vpop.f32.mrf.mxu0
  %v3406 = vadd.f32 %v3001, %v3405
  %v3407 = vpop.f32.mrf.mxu0
  %v3408 = vadd.f32 %v3003, %v3407
  %3409 = vmatmul.bf16.gmra.mxu0 %v3198
  %v3410 = vpop.f32.mrf.mxu0
  %v3411 = vadd.f32 %v3006, %v3410
  %v3412 = vpop.f32.mrf.mxu0
  %v3413 = vadd.f32 %v3008, %v3412
  %3414 = vmatmul.bf16.gmra.mxu0 %v3201
  %v3415 = vpop.f32.mrf.mxu0
  %v3416 = vadd.f32 %v3011, %v3415
  %v3417 = vpop.f32.mrf.mxu0
  %v3418 = vadd.f32 %v3013, %v3417
  %3419 = vmatmul.bf16.gmra.mxu0 %v3204
  %v3420 = vpop.f32.mrf.mxu0
  %v3421 = vadd.f32 %v3016, %v3420
  %v3422 = vpop.f32.mrf.mxu0
  %v3423 = vadd.f32 %v3018, %v3422
  %3424 = vmatmul.bf16.gmra.mxu0 %v3207
  %v3425 = vpop.f32.mrf.mxu0
  %v3426 = vadd.f32 %v3021, %v3425
  %v3427 = vpop.f32.mrf.mxu0
  %v3428 = vadd.f32 %v3023, %v3427
  %3429 = vmatmul.bf16.gmra.mxu0 %v3210
  %v3430 = vpop.f32.mrf.mxu0
  %v3431 = vadd.f32 %v3026, %v3430
  %v3432 = vpop.f32.mrf.mxu0
  %v3433 = vadd.f32 %v3028, %v3432
  %3434 = vmatmul.bf16.gmra.mxu0 %v3213
  %v3435 = vpop.f32.mrf.mxu0
  %v3436 = vadd.f32 %v3031, %v3435
  %v3437 = vpop.f32.mrf.mxu0
  %v3438 = vadd.f32 %v3033, %v3437
  %3439 = vmatmul.bf16.gmra.mxu0 %v3216
  %v3440 = vpop.f32.mrf.mxu0
  %v3441 = vadd.f32 %v3036, %v3440
  %v3442 = vpop.f32.mrf.mxu0
  %v3443 = vadd.f32 %v3038, %v3442
  %3444 = vmatmul.bf16.gmra.mxu0 %v3219
  %v3445 = vpop.f32.mrf.mxu0
  %v3446 = vadd.f32 %v3041, %v3445
  %v3447 = vpop.f32.mrf.mxu0
  %v3448 = vadd.f32 %v3043, %v3447
  %3449 = vmatmul.bf16.gmra.mxu0 %v3222
  %v3450 = vpop.f32.mrf.mxu0
  %v3451 = vadd.f32 %v3046, %v3450
  %v3452 = vpop.f32.mrf.mxu0
  %v3453 = vadd.f32 %v3048, %v3452
  %3454 = vmatmul.bf16.gmra.mxu0 %v3225
  %v3455 = vpop.f32.mrf.mxu0
  %v3456 = vadd.f32 %v3051, %v3455
  %v3457 = vpop.f32.mrf.mxu0
  %v3458 = vadd.f32 %v3053, %v3457
  %3459 = vmatmul.bf16.gmra.mxu0 %v3228
  %v3460 = vpop.f32.mrf.mxu0
  %v3461 = vadd.f32 %v3056, %v3460
  %v3462 = vpop.f32.mrf.mxu0
  %v3463 = vadd.f32 %v3058, %v3462
  %3464 = vmatmul.bf16.gmra.mxu0 %v3231
  %v3465 = vpop.f32.mrf.mxu0
  %v3466 = vadd.f32 %v3061, %v3465
  %v3467 = vpop.f32.mrf.mxu0
  %v3468 = vadd.f32 %v3063, %v3467
  %3469 = vmatmul.bf16.gmra.mxu0 %v3234
  %v3470 = vpop.f32.mrf.mxu0
  %v3471 = vadd.f32 %v3066, %v3470
  %v3472 = vpop.f32.mrf.mxu0
  %v3473 = vadd.f32 %v3068, %v3472
  %3474 = vmatmul.bf16.gmra.mxu0 %v3237
  %v3475 = vpop.f32.mrf.mxu0
  %v3476 = vadd.f32 %v3071, %v3475
  %v3477 = vpop.f32.mrf.mxu0
  %v3478 = vadd.f32 %v3073, %v3477
  %3479 = vmatmul.bf16.gmra.mxu0 %v3240
  %v3480 = vpop.f32.mrf.mxu0
  %v3481 = vadd.f32 %v3076, %v3480
  %v3482 = vpop.f32.mrf.mxu0
  %v3483 = vadd.f32 %v3078, %v3482
  %3484 = vmatmul.bf16.gmra.mxu0 %v3243
  %v3485 = vpop.f32.mrf.mxu0
  %v3486 = vadd.f32 %v3081, %v3485
  %v3487 = vpop.f32.mrf.mxu0
  %v3488 = vadd.f32 %v3083, %v3487
  %3489 = vmatmul.bf16.gmra.mxu0 %v3246
  %v3490 = vpop.f32.mrf.mxu0
  %v3491 = vadd.f32 %v3086, %v3490
  %v3492 = vpop.f32.mrf.mxu0
  %v3493 = vadd.f32 %v3088, %v3492
  %3494 = vmatmul.bf16.gmra.mxu0 %v3249
  %v3495 = vpop.f32.mrf.mxu0
  %v3496 = vadd.f32 %v3091, %v3495
  %v3497 = vpop.f32.mrf.mxu0
  %v3498 = vadd.f32 %v3093, %v3497
  %3499 = vdwg.mxu0
  %v3500 = vld [vmem:[%s6] sm:$0xf]
  %v3501 = vld [vmem:[%s6 + $0x4] sm:$0xf]
  %v3502 = vld [vmem:[%s6 + $0x8] sm:$0xf]
  %v3503 = vld [vmem:[%s6 + $0xc] sm:$0xf]
  %v3508 = vunpack.c.l.b16 %v3500
  %v3509 = vunpack.c.l.b16 %v3501
  %v3510 = vunpack.c.l.b16 %v3502
  %v3511 = vunpack.c.l.b16 %v3503
  %v3512 = vpack.c.b16 %v3509, %v3508
  %v3513 = vpack.c.b16 %v3511, %v3510
  %v3517 = vsel %vm2701, %v2585, 0
  %v3520 = vsel %vm2701, %v2586, 0
  %v3523 = vsel %vm2701, %v2587, 0
  %v3526 = vsel %vm2701, %v2588, 0
  %v3529 = vsel %vm2701, %v2589, 0
  %v3532 = vsel %vm2701, %v2590, 0
  %v3535 = vsel %vm2701, %v2591, 0
  %v3538 = vsel %vm2701, %v2592, 0
  %v3541 = vsel %vm2701, %v2593, 0
  %v3544 = vsel %vm2701, %v2594, 0
  %v3547 = vsel %vm2701, %v2595, 0
  %v3550 = vsel %vm2701, %v2596, 0
  %v3553 = vsel %vm2701, %v2597, 0
  %v3556 = vsel %vm2701, %v2598, 0
  %v3559 = vsel %vm2701, %v2599, 0
  %v3562 = vsel %vm2701, %v2600, 0
  %v3565 = vsel %vm2701, %v2601, 0
  %v3568 = vsel %vm2701, %v2602, 0
  %v3571 = vsel %vm2701, %v2603, 0
  %v3574 = vsel %vm2701, %v2604, 0
  %v3577 = vsel %vm2701, %v2605, 0
  %v3580 = vsel %vm2701, %v2606, 0
  %v3583 = vsel %vm2701, %v2607, 0
  %v3586 = vsel %vm2701, %v2608, 0
  %v3589 = vsel %vm2701, %v2609, 0
  %v3592 = vsel %vm2701, %v2610, 0
  %v3595 = vsel %vm2701, %v2611, 0
  %v3598 = vsel %vm2701, %v2612, 0
  %v3601 = vsel %vm2701, %v2613, 0
  %v3604 = vsel %vm2701, %v2614, 0
  %v3607 = vsel %vm2701, %v2615, 0
  %v3610 = vsel %vm2701, %v2616, 0
  %v3613 = vsel %vm2701, %v2617, 0
  %v3616 = vsel %vm2701, %v2618, 0
  %v3619 = vsel %vm2701, %v2619, 0
  %v3622 = vsel %vm2701, %v2620, 0
  %v3625 = vsel %vm2701, %v2621, 0
  %v3628 = vsel %vm2701, %v2622, 0
  %v3631 = vsel %vm2701, %v2623, 0
  %v3634 = vsel %vm2701, %v2624, 0
  %v3637 = vsel %vm2701, %v2625, 0
  %v3640 = vsel %vm2701, %v2626, 0
  %v3643 = vsel %vm2701, %v2627, 0
  %v3646 = vsel %vm2701, %v2628, 0
  %v3649 = vsel %vm2701, %v2629, 0
  %v3652 = vsel %vm2701, %v2630, 0
  %v3655 = vsel %vm2701, %v2631, 0
  %v3658 = vsel %vm2701, %v2632, 0
  %3660 = vmatpush.bf16.msra.mxu0 0
  %3661 = vmatpush.bf16.msra.mxu0 0
  %3662 = vmatpush.bf16.msra.mxu0 0
  %3663 = vmatpush.bf16.msra.mxu0 0
  %3664 = vmatpush.bf16.msra.mxu0 0
  %3665 = vmatpush.bf16.msra.mxu0 0
  %3666 = vmatpush.bf16.msra.mxu0 %v3513
  %3667 = vmatpush.bf16.msra.mxu0 %v3512
  %3668 = vmatmul.bf16.gmra.mxu0 %v3517
  %v3669 = vpop.f32.mrf.mxu0
  %v3670 = vadd.f32 0.0, %v3669
  %v3671 = vpop.f32.mrf.mxu0
  %v3672 = vadd.f32 0.0, %v3671
  %3673 = vmatmul.bf16.gmra.mxu0 %v3520
  %v3674 = vpop.f32.mrf.mxu0
  %v3675 = vadd.f32 0.0, %v3674
  %v3676 = vpop.f32.mrf.mxu0
  %v3677 = vadd.f32 0.0, %v3676
  %3678 = vmatmul.bf16.gmra.mxu0 %v3523
  %v3679 = vpop.f32.mrf.mxu0
  %v3680 = vadd.f32 0.0, %v3679
  %v3681 = vpop.f32.mrf.mxu0
  %v3682 = vadd.f32 0.0, %v3681
  %3683 = vmatmul.bf16.gmra.mxu0 %v3526
  %v3684 = vpop.f32.mrf.mxu0
  %v3685 = vadd.f32 0.0, %v3684
  %v3686 = vpop.f32.mrf.mxu0
  %v3687 = vadd.f32 0.0, %v3686
  %3688 = vmatmul.bf16.gmra.mxu0 %v3529
  %v3689 = vpop.f32.mrf.mxu0
  %v3690 = vadd.f32 0.0, %v3689
  %v3691 = vpop.f32.mrf.mxu0
  %v3692 = vadd.f32 0.0, %v3691
  %3693 = vmatmul.bf16.gmra.mxu0 %v3532
  %v3694 = vpop.f32.mrf.mxu0
  %v3695 = vadd.f32 0.0, %v3694
  %v3696 = vpop.f32.mrf.mxu0
  %v3697 = vadd.f32 0.0, %v3696
  %3698 = vmatmul.bf16.gmra.mxu0 %v3535
  %v3699 = vpop.f32.mrf.mxu0
  %v3700 = vadd.f32 0.0, %v3699
  %v3701 = vpop.f32.mrf.mxu0
  %v3702 = vadd.f32 0.0, %v3701
  %3703 = vmatmul.bf16.gmra.mxu0 %v3538
  %v3704 = vpop.f32.mrf.mxu0
  %v3705 = vadd.f32 0.0, %v3704
  %v3706 = vpop.f32.mrf.mxu0
  %v3707 = vadd.f32 0.0, %v3706
  %3708 = vmatmul.bf16.gmra.mxu0 %v3541
  %v3709 = vpop.f32.mrf.mxu0
  %v3710 = vadd.f32 0.0, %v3709
  %v3711 = vpop.f32.mrf.mxu0
  %v3712 = vadd.f32 0.0, %v3711
  %3713 = vmatmul.bf16.gmra.mxu0 %v3544
  %v3714 = vpop.f32.mrf.mxu0
  %v3715 = vadd.f32 0.0, %v3714
  %v3716 = vpop.f32.mrf.mxu0
  %v3717 = vadd.f32 0.0, %v3716
  %3718 = vmatmul.bf16.gmra.mxu0 %v3547
  %v3719 = vpop.f32.mrf.mxu0
  %v3720 = vadd.f32 0.0, %v3719
  %v3721 = vpop.f32.mrf.mxu0
  %v3722 = vadd.f32 0.0, %v3721
  %3723 = vmatmul.bf16.gmra.mxu0 %v3550
  %v3724 = vpop.f32.mrf.mxu0
  %v3725 = vadd.f32 0.0, %v3724
  %v3726 = vpop.f32.mrf.mxu0
  %v3727 = vadd.f32 0.0, %v3726
  %3728 = vmatmul.bf16.gmra.mxu0 %v3553
  %v3729 = vpop.f32.mrf.mxu0
  %v3730 = vadd.f32 0.0, %v3729
  %v3731 = vpop.f32.mrf.mxu0
  %v3732 = vadd.f32 0.0, %v3731
  %3733 = vmatmul.bf16.gmra.mxu0 %v3556
  %v3734 = vpop.f32.mrf.mxu0
  %v3735 = vadd.f32 0.0, %v3734
  %v3736 = vpop.f32.mrf.mxu0
  %v3737 = vadd.f32 0.0, %v3736
  %3738 = vmatmul.bf16.gmra.mxu0 %v3559
  %v3739 = vpop.f32.mrf.mxu0
  %v3740 = vadd.f32 0.0, %v3739
  %v3741 = vpop.f32.mrf.mxu0
  %v3742 = vadd.f32 0.0, %v3741
  %3743 = vmatmul.bf16.gmra.mxu0 %v3562
  %v3744 = vpop.f32.mrf.mxu0
  %v3745 = vadd.f32 0.0, %v3744
  %v3746 = vpop.f32.mrf.mxu0
  %v3747 = vadd.f32 0.0, %v3746
  %3748 = vmatmul.bf16.gmra.mxu0 %v3565
  %v3749 = vpop.f32.mrf.mxu0
  %v3750 = vadd.f32 0.0, %v3749
  %v3751 = vpop.f32.mrf.mxu0
  %v3752 = vadd.f32 0.0, %v3751
  %3753 = vmatmul.bf16.gmra.mxu0 %v3568
  %v3754 = vpop.f32.mrf.mxu0
  %v3755 = vadd.f32 0.0, %v3754
  %v3756 = vpop.f32.mrf.mxu0
  %v3757 = vadd.f32 0.0, %v3756
  %3758 = vmatmul.bf16.gmra.mxu0 %v3571
  %v3759 = vpop.f32.mrf.mxu0
  %v3760 = vadd.f32 0.0, %v3759
  %v3761 = vpop.f32.mrf.mxu0
  %v3762 = vadd.f32 0.0, %v3761
  %3763 = vmatmul.bf16.gmra.mxu0 %v3574
  %v3764 = vpop.f32.mrf.mxu0
  %v3765 = vadd.f32 0.0, %v3764
  %v3766 = vpop.f32.mrf.mxu0
  %v3767 = vadd.f32 0.0, %v3766
  %3768 = vmatmul.bf16.gmra.mxu0 %v3577
  %v3769 = vpop.f32.mrf.mxu0
  %v3770 = vadd.f32 0.0, %v3769
  %v3771 = vpop.f32.mrf.mxu0
  %v3772 = vadd.f32 0.0, %v3771
  %3773 = vmatmul.bf16.gmra.mxu0 %v3580
  %v3774 = vpop.f32.mrf.mxu0
  %v3775 = vadd.f32 0.0, %v3774
  %v3776 = vpop.f32.mrf.mxu0
  %v3777 = vadd.f32 0.0, %v3776
  %3778 = vmatmul.bf16.gmra.mxu0 %v3583
  %v3779 = vpop.f32.mrf.mxu0
  %v3780 = vadd.f32 0.0, %v3779
  %v3781 = vpop.f32.mrf.mxu0
  %v3782 = vadd.f32 0.0, %v3781
  %3783 = vmatmul.bf16.gmra.mxu0 %v3586
  %v3784 = vpop.f32.mrf.mxu0
  %v3785 = vadd.f32 0.0, %v3784
  %v3786 = vpop.f32.mrf.mxu0
  %v3787 = vadd.f32 0.0, %v3786
  %3788 = vmatmul.bf16.gmra.mxu0 %v3589
  %v3789 = vpop.f32.mrf.mxu0
  %v3790 = vadd.f32 0.0, %v3789
  %v3791 = vpop.f32.mrf.mxu0
  %v3792 = vadd.f32 0.0, %v3791
  %3793 = vmatmul.bf16.gmra.mxu0 %v3592
  %v3794 = vpop.f32.mrf.mxu0
  %v3795 = vadd.f32 0.0, %v3794
  %v3796 = vpop.f32.mrf.mxu0
  %v3797 = vadd.f32 0.0, %v3796
  %3798 = vmatmul.bf16.gmra.mxu0 %v3595
  %v3799 = vpop.f32.mrf.mxu0
  %v3800 = vadd.f32 0.0, %v3799
  %v3801 = vpop.f32.mrf.mxu0
  %v3802 = vadd.f32 0.0, %v3801
  %3803 = vmatmul.bf16.gmra.mxu0 %v3598
  %v3804 = vpop.f32.mrf.mxu0
  %v3805 = vadd.f32 0.0, %v3804
  %v3806 = vpop.f32.mrf.mxu0
  %v3807 = vadd.f32 0.0, %v3806
  %3808 = vmatmul.bf16.gmra.mxu0 %v3601
  %v3809 = vpop.f32.mrf.mxu0
  %v3810 = vadd.f32 0.0, %v3809
  %v3811 = vpop.f32.mrf.mxu0
  %v3812 = vadd.f32 0.0, %v3811
  %3813 = vmatmul.bf16.gmra.mxu0 %v3604
  %v3814 = vpop.f32.mrf.mxu0
  %v3815 = vadd.f32 0.0, %v3814
  %v3816 = vpop.f32.mrf.mxu0
  %v3817 = vadd.f32 0.0, %v3816
  %3818 = vmatmul.bf16.gmra.mxu0 %v3607
  %v3819 = vpop.f32.mrf.mxu0
  %v3820 = vadd.f32 0.0, %v3819
  %v3821 = vpop.f32.mrf.mxu0
  %v3822 = vadd.f32 0.0, %v3821
  %3823 = vmatmul.bf16.gmra.mxu0 %v3610
  %v3824 = vpop.f32.mrf.mxu0
  %v3825 = vadd.f32 0.0, %v3824
  %v3826 = vpop.f32.mrf.mxu0
  %v3827 = vadd.f32 0.0, %v3826
  %3828 = vmatmul.bf16.gmra.mxu0 %v3613
  %v3829 = vpop.f32.mrf.mxu0
  %v3830 = vadd.f32 0.0, %v3829
  %v3831 = vpop.f32.mrf.mxu0
  %v3832 = vadd.f32 0.0, %v3831
  %3833 = vmatmul.bf16.gmra.mxu0 %v3616
  %v3834 = vpop.f32.mrf.mxu0
  %v3835 = vadd.f32 0.0, %v3834
  %v3836 = vpop.f32.mrf.mxu0
  %v3837 = vadd.f32 0.0, %v3836
  %3838 = vmatmul.bf16.gmra.mxu0 %v3619
  %v3839 = vpop.f32.mrf.mxu0
  %v3840 = vadd.f32 0.0, %v3839
  %v3841 = vpop.f32.mrf.mxu0
  %v3842 = vadd.f32 0.0, %v3841
  %3843 = vmatmul.bf16.gmra.mxu0 %v3622
  %v3844 = vpop.f32.mrf.mxu0
  %v3845 = vadd.f32 0.0, %v3844
  %v3846 = vpop.f32.mrf.mxu0
  %v3847 = vadd.f32 0.0, %v3846
  %3848 = vmatmul.bf16.gmra.mxu0 %v3625
  %v3849 = vpop.f32.mrf.mxu0
  %v3850 = vadd.f32 0.0, %v3849
  %v3851 = vpop.f32.mrf.mxu0
  %v3852 = vadd.f32 0.0, %v3851
  %3853 = vmatmul.bf16.gmra.mxu0 %v3628
  %v3854 = vpop.f32.mrf.mxu0
  %v3855 = vadd.f32 0.0, %v3854
  %v3856 = vpop.f32.mrf.mxu0
  %v3857 = vadd.f32 0.0, %v3856
  %3858 = vmatmul.bf16.gmra.mxu0 %v3631
  %v3859 = vpop.f32.mrf.mxu0
  %v3860 = vadd.f32 0.0, %v3859
  %v3861 = vpop.f32.mrf.mxu0
  %v3862 = vadd.f32 0.0, %v3861
  %3863 = vmatmul.bf16.gmra.mxu0 %v3634
  %v3864 = vpop.f32.mrf.mxu0
  %v3865 = vadd.f32 0.0, %v3864
  %v3866 = vpop.f32.mrf.mxu0
  %v3867 = vadd.f32 0.0, %v3866
  %3868 = vmatmul.bf16.gmra.mxu0 %v3637
  %v3869 = vpop.f32.mrf.mxu0
  %v3870 = vadd.f32 0.0, %v3869
  %v3871 = vpop.f32.mrf.mxu0
  %v3872 = vadd.f32 0.0, %v3871
  %3873 = vmatmul.bf16.gmra.mxu0 %v3640
  %v3874 = vpop.f32.mrf.mxu0
  %v3875 = vadd.f32 0.0, %v3874
  %v3876 = vpop.f32.mrf.mxu0
  %v3877 = vadd.f32 0.0, %v3876
  %3878 = vmatmul.bf16.gmra.mxu0 %v3643
  %v3879 = vpop.f32.mrf.mxu0
  %v3880 = vadd.f32 0.0, %v3879
  %v3881 = vpop.f32.mrf.mxu0
  %v3882 = vadd.f32 0.0, %v3881
  %3883 = vmatmul.bf16.gmra.mxu0 %v3646
  %v3884 = vpop.f32.mrf.mxu0
  %v3885 = vadd.f32 0.0, %v3884
  %v3886 = vpop.f32.mrf.mxu0
  %v3887 = vadd.f32 0.0, %v3886
  %3888 = vmatmul.bf16.gmra.mxu0 %v3649
  %v3889 = vpop.f32.mrf.mxu0
  %v3890 = vadd.f32 0.0, %v3889
  %v3891 = vpop.f32.mrf.mxu0
  %v3892 = vadd.f32 0.0, %v3891
  %3893 = vmatmul.bf16.gmra.mxu0 %v3652
  %v3894 = vpop.f32.mrf.mxu0
  %v3895 = vadd.f32 0.0, %v3894
  %v3896 = vpop.f32.mrf.mxu0
  %v3897 = vadd.f32 0.0, %v3896
  %3898 = vmatmul.bf16.gmra.mxu0 %v3655
  %v3899 = vpop.f32.mrf.mxu0
  %v3900 = vadd.f32 0.0, %v3899
  %v3901 = vpop.f32.mrf.mxu0
  %v3902 = vadd.f32 0.0, %v3901
  %3903 = vmatmul.bf16.gmra.mxu0 %v3658
  %v3904 = vpop.f32.mrf.mxu0
  %v3905 = vadd.f32 0.0, %v3904
  %v3906 = vpop.f32.mrf.mxu0
  %v3907 = vadd.f32 0.0, %v3906
  %3908 = vdwg.mxu0
  %v3909 = vadd.f32 %v3261, %v3670
  %v3910 = vadd.f32 %v3263, %v3672
  %v3911 = vadd.f32 %v3266, %v3675
  %v3912 = vadd.f32 %v3268, %v3677
  %v3913 = vadd.f32 %v3271, %v3680
  %v3914 = vadd.f32 %v3273, %v3682
  %v3915 = vadd.f32 %v3276, %v3685
  %v3916 = vadd.f32 %v3278, %v3687
  %v3917 = vadd.f32 %v3281, %v3690
  %v3918 = vadd.f32 %v3283, %v3692
  %v3919 = vadd.f32 %v3286, %v3695
  %v3920 = vadd.f32 %v3288, %v3697
  %v3921 = vadd.f32 %v3291, %v3700
  %v3922 = vadd.f32 %v3293, %v3702
  %v3923 = vadd.f32 %v3296, %v3705
  %v3924 = vadd.f32 %v3298, %v3707
  %v3925 = vadd.f32 %v3301, %v3710
  %v3926 = vadd.f32 %v3303, %v3712
  %v3927 = vadd.f32 %v3306, %v3715
  %v3928 = vadd.f32 %v3308, %v3717
  %v3929 = vadd.f32 %v3311, %v3720
  %v3930 = vadd.f32 %v3313, %v3722
  %v3931 = vadd.f32 %v3316, %v3725
  %v3932 = vadd.f32 %v3318, %v3727
  %v3933 = vadd.f32 %v3321, %v3730
  %v3934 = vadd.f32 %v3323, %v3732
  %v3935 = vadd.f32 %v3326, %v3735
  %v3936 = vadd.f32 %v3328, %v3737
  %v3937 = vadd.f32 %v3331, %v3740
  %v3938 = vadd.f32 %v3333, %v3742
  %v3939 = vadd.f32 %v3336, %v3745
  %v3940 = vadd.f32 %v3338, %v3747
  %v3941 = vadd.f32 %v3341, %v3750
  %v3942 = vadd.f32 %v3343, %v3752
  %v3943 = vadd.f32 %v3346, %v3755
  %v3944 = vadd.f32 %v3348, %v3757
  %v3945 = vadd.f32 %v3351, %v3760
  %v3946 = vadd.f32 %v3353, %v3762
  %v3947 = vadd.f32 %v3356, %v3765
  %v3948 = vadd.f32 %v3358, %v3767
  %v3949 = vadd.f32 %v3361, %v3770
  %v3950 = vadd.f32 %v3363, %v3772
  %v3951 = vadd.f32 %v3366, %v3775
  %v3952 = vadd.f32 %v3368, %v3777
  %v3953 = vadd.f32 %v3371, %v3780
  %v3954 = vadd.f32 %v3373, %v3782
  %v3955 = vadd.f32 %v3376, %v3785
  %v3956 = vadd.f32 %v3378, %v3787
  %v3957 = vadd.f32 %v3381, %v3790
  %v3958 = vadd.f32 %v3383, %v3792
  %v3959 = vadd.f32 %v3386, %v3795
  %v3960 = vadd.f32 %v3388, %v3797
  %v3961 = vadd.f32 %v3391, %v3800
  %v3962 = vadd.f32 %v3393, %v3802
  %v3963 = vadd.f32 %v3396, %v3805
  %v3964 = vadd.f32 %v3398, %v3807
  %v3965 = vadd.f32 %v3401, %v3810
  %v3966 = vadd.f32 %v3403, %v3812
  %v3967 = vadd.f32 %v3406, %v3815
  %v3968 = vadd.f32 %v3408, %v3817
  %v3969 = vadd.f32 %v3411, %v3820
  %v3970 = vadd.f32 %v3413, %v3822
  %v3971 = vadd.f32 %v3416, %v3825
  %v3972 = vadd.f32 %v3418, %v3827
  %v3973 = vadd.f32 %v3421, %v3830
  %v3974 = vadd.f32 %v3423, %v3832
  %v3975 = vadd.f32 %v3426, %v3835
  %v3976 = vadd.f32 %v3428, %v3837
  %v3977 = vadd.f32 %v3431, %v3840
  %v3978 = vadd.f32 %v3433, %v3842
  %v3979 = vadd.f32 %v3436, %v3845
  %v3980 = vadd.f32 %v3438, %v3847
  %v3981 = vadd.f32 %v3441, %v3850
  %v3982 = vadd.f32 %v3443, %v3852
  %v3983 = vadd.f32 %v3446, %v3855
  %v3984 = vadd.f32 %v3448, %v3857
  %v3985 = vadd.f32 %v3451, %v3860
  %v3986 = vadd.f32 %v3453, %v3862
  %v3987 = vadd.f32 %v3456, %v3865
  %v3988 = vadd.f32 %v3458, %v3867
  %v3989 = vadd.f32 %v3461, %v3870
  %v3990 = vadd.f32 %v3463, %v3872
  %v3991 = vadd.f32 %v3466, %v3875
  %v3992 = vadd.f32 %v3468, %v3877
  %v3993 = vadd.f32 %v3471, %v3880
  %v3994 = vadd.f32 %v3473, %v3882
  %v3995 = vadd.f32 %v3476, %v3885
  %v3996 = vadd.f32 %v3478, %v3887
  %v3997 = vadd.f32 %v3481, %v3890
  %v3998 = vadd.f32 %v3483, %v3892
  %v3999 = vadd.f32 %v3486, %v3895
  %v4000 = vadd.f32 %v3488, %v3897
  %v4001 = vadd.f32 %v3491, %v3900
  %v4002 = vadd.f32 %v3493, %v3902
  %v4003 = vadd.f32 %v3496, %v3905
  %v4004 = vadd.f32 %v3498, %v3907
  %v4005 = vld [vmem:[%s7] sm:$0x1]
  %v4006 = vld [vmem:[%s8] sm:$0x1]
  %v4007 = vadd.f32 %v3909, %v3910
  %v4008 = vadd.f32 %v4007, %v3911
  %v4009 = vadd.f32 %v4008, %v3912
  %v4010 = vadd.f32 %v4009, %v3913
  %v4011 = vadd.f32 %v4010, %v3914
  %v4012 = vadd.f32 %v4011, %v3915
  %v4013 = vadd.f32 %v4012, %v3916
  %v4014 = vadd.f32 %v4013, %v3917
  %v4015 = vadd.f32 %v4014, %v3918
  %v4016 = vadd.f32 %v4015, %v3919
  %v4017 = vadd.f32 %v4016, %v3920
  %v4018 = vadd.f32 %v4017, %v3921
  %v4019 = vadd.f32 %v4018, %v3922
  %v4020 = vadd.f32 %v4019, %v3923
  %v4021 = vadd.f32 %v4020, %v3924
  %v4022 = vadd.f32 %v4021, %v3925
  %v4023 = vadd.f32 %v4022, %v3926
  %v4024 = vadd.f32 %v4023, %v3927
  %v4025 = vadd.f32 %v4024, %v3928
  %v4026 = vadd.f32 %v4025, %v3929
  %v4027 = vadd.f32 %v4026, %v3930
  %v4028 = vadd.f32 %v4027, %v3931
  %v4029 = vadd.f32 %v4028, %v3932
  %v4030 = vadd.f32 %v4029, %v3933
  %v4031 = vadd.f32 %v4030, %v3934
  %v4032 = vadd.f32 %v4031, %v3935
  %v4033 = vadd.f32 %v4032, %v3936
  %v4034 = vadd.f32 %v4033, %v3937
  %v4035 = vadd.f32 %v4034, %v3938
  %v4036 = vadd.f32 %v4035, %v3939
  %v4037 = vadd.f32 %v4036, %v3940
  %v4038 = vadd.f32 %v4037, %v3941
  %v4039 = vadd.f32 %v4038, %v3942
  %v4040 = vadd.f32 %v4039, %v3943
  %v4041 = vadd.f32 %v4040, %v3944
  %v4042 = vadd.f32 %v4041, %v3945
  %v4043 = vadd.f32 %v4042, %v3946
  %v4044 = vadd.f32 %v4043, %v3947
  %v4045 = vadd.f32 %v4044, %v3948
  %v4046 = vadd.f32 %v4045, %v3949
  %v4047 = vadd.f32 %v4046, %v3950
  %v4048 = vadd.f32 %v4047, %v3951
  %v4049 = vadd.f32 %v4048, %v3952
  %v4050 = vadd.f32 %v4049, %v3953
  %v4051 = vadd.f32 %v4050, %v3954
  %v4052 = vadd.f32 %v4051, %v3955
  %v4053 = vadd.f32 %v4052, %v3956
  %v4054 = vadd.f32 %v4053, %v3957
  %v4055 = vadd.f32 %v4054, %v3958
  %v4056 = vadd.f32 %v4055, %v3959
  %v4057 = vadd.f32 %v4056, %v3960
  %v4058 = vadd.f32 %v4057, %v3961
  %v4059 = vadd.f32 %v4058, %v3962
  %v4060 = vadd.f32 %v4059, %v3963
  %v4061 = vadd.f32 %v4060, %v3964
  %v4062 = vadd.f32 %v4061, %v3965
  %v4063 = vadd.f32 %v4062, %v3966
  %v4064 = vadd.f32 %v4063, %v3967
  %v4065 = vadd.f32 %v4064, %v3968
  %v4066 = vadd.f32 %v4065, %v3969
  %v4067 = vadd.f32 %v4066, %v3970
  %v4068 = vadd.f32 %v4067, %v3971
  %v4069 = vadd.f32 %v4068, %v3972
  %v4070 = vadd.f32 %v4069, %v3973
  %v4071 = vadd.f32 %v4070, %v3974
  %v4072 = vadd.f32 %v4071, %v3975
  %v4073 = vadd.f32 %v4072, %v3976
  %v4074 = vadd.f32 %v4073, %v3977
  %v4075 = vadd.f32 %v4074, %v3978
  %v4076 = vadd.f32 %v4075, %v3979
  %v4077 = vadd.f32 %v4076, %v3980
  %v4078 = vadd.f32 %v4077, %v3981
  %v4079 = vadd.f32 %v4078, %v3982
  %v4080 = vadd.f32 %v4079, %v3983
  %v4081 = vadd.f32 %v4080, %v3984
  %v4082 = vadd.f32 %v4081, %v3985
  %v4083 = vadd.f32 %v4082, %v3986
  %v4084 = vadd.f32 %v4083, %v3987
  %v4085 = vadd.f32 %v4084, %v3988
  %v4086 = vadd.f32 %v4085, %v3989
  %v4087 = vadd.f32 %v4086, %v3990
  %v4088 = vadd.f32 %v4087, %v3991
  %v4089 = vadd.f32 %v4088, %v3992
  %v4090 = vadd.f32 %v4089, %v3993
  %v4091 = vadd.f32 %v4090, %v3994
  %v4092 = vadd.f32 %v4091, %v3995
  %v4093 = vadd.f32 %v4092, %v3996
  %v4094 = vadd.f32 %v4093, %v3997
  %v4095 = vadd.f32 %v4094, %v3998
  %v4096 = vadd.f32 %v4095, %v3999
  %v4097 = vadd.f32 %v4096, %v4000
  %v4098 = vadd.f32 %v4097, %v4001
  %v4099 = vadd.f32 %v4098, %v4002
  %v4100 = vadd.f32 %v4099, %v4003
  %v4101 = vadd.f32 %v4100, %v4004
  %v4102 = vrot.slane %v4101, 4
  %v4103 = vadd.f32 %v4101, %v4102
  %v4104 = vrot.slane %v4103, 2
  %v4105 = vadd.f32 %v4103, %v4104
  %v4106 = vrot.slane %v4105, 1
  %v4107 = vadd.f32 %v4105, %v4106
  %v4108 = vmul.f32 %v4107, 0.0013020834
  %v4109 = vsub.f32 %v3909, %v4108
  %v4110 = vsub.f32 %v3910, %v4108
  %v4111 = vsub.f32 %v3911, %v4108
  %v4112 = vsub.f32 %v3912, %v4108
  %v4113 = vsub.f32 %v3913, %v4108
  %v4114 = vsub.f32 %v3914, %v4108
  %v4115 = vsub.f32 %v3915, %v4108
  %v4116 = vsub.f32 %v3916, %v4108
  %v4117 = vsub.f32 %v3917, %v4108
  %v4118 = vsub.f32 %v3918, %v4108
  %v4119 = vsub.f32 %v3919, %v4108
  %v4120 = vsub.f32 %v3920, %v4108
  %v4121 = vsub.f32 %v3921, %v4108
  %v4122 = vsub.f32 %v3922, %v4108
  %v4123 = vsub.f32 %v3923, %v4108
  %v4124 = vsub.f32 %v3924, %v4108
  %v4125 = vsub.f32 %v3925, %v4108
  %v4126 = vsub.f32 %v3926, %v4108
  %v4127 = vsub.f32 %v3927, %v4108
  %v4128 = vsub.f32 %v3928, %v4108
  %v4129 = vsub.f32 %v3929, %v4108
  %v4130 = vsub.f32 %v3930, %v4108
  %v4131 = vsub.f32 %v3931, %v4108
  %v4132 = vsub.f32 %v3932, %v4108
  %v4133 = vsub.f32 %v3933, %v4108
  %v4134 = vsub.f32 %v3934, %v4108
  %v4135 = vsub.f32 %v3935, %v4108
  %v4136 = vsub.f32 %v3936, %v4108
  %v4137 = vsub.f32 %v3937, %v4108
  %v4138 = vsub.f32 %v3938, %v4108
  %v4139 = vsub.f32 %v3939, %v4108
  %v4140 = vsub.f32 %v3940, %v4108
  %v4141 = vsub.f32 %v3941, %v4108
  %v4142 = vsub.f32 %v3942, %v4108
  %v4143 = vsub.f32 %v3943, %v4108
  %v4144 = vsub.f32 %v3944, %v4108
  %v4145 = vsub.f32 %v3945, %v4108
  %v4146 = vsub.f32 %v3946, %v4108
  %v4147 = vsub.f32 %v3947, %v4108
  %v4148 = vsub.f32 %v3948, %v4108
  %v4149 = vsub.f32 %v3949, %v4108
  %v4150 = vsub.f32 %v3950, %v4108
  %v4151 = vsub.f32 %v3951, %v4108
  %v4152 = vsub.f32 %v3952, %v4108
  %v4153 = vsub.f32 %v3953, %v4108
  %v4154 = vsub.f32 %v3954, %v4108
  %v4155 = vsub.f32 %v3955, %v4108
  %v4156 = vsub.f32 %v3956, %v4108
  %v4157 = vsub.f32 %v3957, %v4108
  %v4158 = vsub.f32 %v3958, %v4108
  %v4159 = vsub.f32 %v3959, %v4108
  %v4160 = vsub.f32 %v3960, %v4108
  %v4161 = vsub.f32 %v3961, %v4108
  %v4162 = vsub.f32 %v3962, %v4108
  %v4163 = vsub.f32 %v3963, %v4108
  %v4164 = vsub.f32 %v3964, %v4108
  %v4165 = vsub.f32 %v3965, %v4108
  %v4166 = vsub.f32 %v3966, %v4108
  %v4167 = vsub.f32 %v3967, %v4108
  %v4168 = vsub.f32 %v3968, %v4108
  %v4169 = vsub.f32 %v3969, %v4108
  %v4170 = vsub.f32 %v3970, %v4108
  %v4171 = vsub.f32 %v3971, %v4108
  %v4172 = vsub.f32 %v3972, %v4108
  %v4173 = vsub.f32 %v3973, %v4108
  %v4174 = vsub.f32 %v3974, %v4108
  %v4175 = vsub.f32 %v3975, %v4108
  %v4176 = vsub.f32 %v3976, %v4108
  %v4177 = vsub.f32 %v3977, %v4108
  %v4178 = vsub.f32 %v3978, %v4108
  %v4179 = vsub.f32 %v3979, %v4108
  %v4180 = vsub.f32 %v3980, %v4108
  %v4181 = vsub.f32 %v3981, %v4108
  %v4182 = vsub.f32 %v3982, %v4108
  %v4183 = vsub.f32 %v3983, %v4108
  %v4184 = vsub.f32 %v3984, %v4108
  %v4185 = vsub.f32 %v3985, %v4108
  %v4186 = vsub.f32 %v3986, %v4108
  %v4187 = vsub.f32 %v3987, %v4108
  %v4188 = vsub.f32 %v3988, %v4108
  %v4189 = vsub.f32 %v3989, %v4108
  %v4190 = vsub.f32 %v3990, %v4108
  %v4191 = vsub.f32 %v3991, %v4108
  %v4192 = vsub.f32 %v3992, %v4108
  %v4193 = vsub.f32 %v3993, %v4108
  %v4194 = vsub.f32 %v3994, %v4108
  %v4195 = vsub.f32 %v3995, %v4108
  %v4196 = vsub.f32 %v3996, %v4108
  %v4197 = vsub.f32 %v3997, %v4108
  %v4198 = vsub.f32 %v3998, %v4108
  %v4199 = vsub.f32 %v3999, %v4108
  %v4200 = vsub.f32 %v4000, %v4108
  %v4201 = vsub.f32 %v4001, %v4108
  %v4202 = vsub.f32 %v4002, %v4108
  %v4203 = vsub.f32 %v4003, %v4108
  %v4204 = vsub.f32 %v4004, %v4108
  %v4205 = vmul.f32 %v4109, %v4109
  %v4206 = vmul.f32 %v4110, %v4110
  %v4207 = vmul.f32 %v4111, %v4111
  %v4208 = vmul.f32 %v4112, %v4112
  %v4209 = vmul.f32 %v4113, %v4113
  %v4210 = vmul.f32 %v4114, %v4114
  %v4211 = vmul.f32 %v4115, %v4115
  %v4212 = vmul.f32 %v4116, %v4116
  %v4213 = vmul.f32 %v4117, %v4117
  %v4214 = vmul.f32 %v4118, %v4118
  %v4215 = vmul.f32 %v4119, %v4119
  %v4216 = vmul.f32 %v4120, %v4120
  %v4217 = vmul.f32 %v4121, %v4121
  %v4218 = vmul.f32 %v4122, %v4122
  %v4219 = vmul.f32 %v4123, %v4123
  %v4220 = vmul.f32 %v4124, %v4124
  %v4221 = vmul.f32 %v4125, %v4125
  %v4222 = vmul.f32 %v4126, %v4126
  %v4223 = vmul.f32 %v4127, %v4127
  %v4224 = vmul.f32 %v4128, %v4128
  %v4225 = vmul.f32 %v4129, %v4129
  %v4226 = vmul.f32 %v4130, %v4130
  %v4227 = vmul.f32 %v4131, %v4131
  %v4228 = vmul.f32 %v4132, %v4132
  %v4229 = vmul.f32 %v4133, %v4133
  %v4230 = vmul.f32 %v4134, %v4134
  %v4231 = vmul.f32 %v4135, %v4135
  %v4232 = vmul.f32 %v4136, %v4136
  %v4233 = vmul.f32 %v4137, %v4137
  %v4234 = vmul.f32 %v4138, %v4138
  %v4235 = vmul.f32 %v4139, %v4139
  %v4236 = vmul.f32 %v4140, %v4140
  %v4237 = vmul.f32 %v4141, %v4141
  %v4238 = vmul.f32 %v4142, %v4142
  %v4239 = vmul.f32 %v4143, %v4143
  %v4240 = vmul.f32 %v4144, %v4144
  %v4241 = vmul.f32 %v4145, %v4145
  %v4242 = vmul.f32 %v4146, %v4146
  %v4243 = vmul.f32 %v4147, %v4147
  %v4244 = vmul.f32 %v4148, %v4148
  %v4245 = vmul.f32 %v4149, %v4149
  %v4246 = vmul.f32 %v4150, %v4150
  %v4247 = vmul.f32 %v4151, %v4151
  %v4248 = vmul.f32 %v4152, %v4152
  %v4249 = vmul.f32 %v4153, %v4153
  %v4250 = vmul.f32 %v4154, %v4154
  %v4251 = vmul.f32 %v4155, %v4155
  %v4252 = vmul.f32 %v4156, %v4156
  %v4253 = vmul.f32 %v4157, %v4157
  %v4254 = vmul.f32 %v4158, %v4158
  %v4255 = vmul.f32 %v4159, %v4159
  %v4256 = vmul.f32 %v4160, %v4160
  %v4257 = vmul.f32 %v4161, %v4161
  %v4258 = vmul.f32 %v4162, %v4162
  %v4259 = vmul.f32 %v4163, %v4163
  %v4260 = vmul.f32 %v4164, %v4164
  %v4261 = vmul.f32 %v4165, %v4165
  %v4262 = vmul.f32 %v4166, %v4166
  %v4263 = vmul.f32 %v4167, %v4167
  %v4264 = vmul.f32 %v4168, %v4168
  %v4265 = vmul.f32 %v4169, %v4169
  %v4266 = vmul.f32 %v4170, %v4170
  %v4267 = vmul.f32 %v4171, %v4171
  %v4268 = vmul.f32 %v4172, %v4172
  %v4269 = vmul.f32 %v4173, %v4173
  %v4270 = vmul.f32 %v4174, %v4174
  %v4271 = vmul.f32 %v4175, %v4175
  %v4272 = vmul.f32 %v4176, %v4176
  %v4273 = vmul.f32 %v4177, %v4177
  %v4274 = vmul.f32 %v4178, %v4178
  %v4275 = vmul.f32 %v4179, %v4179
  %v4276 = vmul.f32 %v4180, %v4180
  %v4277 = vmul.f32 %v4181, %v4181
  %v4278 = vmul.f32 %v4182, %v4182
  %v4279 = vmul.f32 %v4183, %v4183
  %v4280 = vmul.f32 %v4184, %v4184
  %v4281 = vmul.f32 %v4185, %v4185
  %v4282 = vmul.f32 %v4186, %v4186
  %v4283 = vmul.f32 %v4187, %v4187
  %v4284 = vmul.f32 %v4188, %v4188
  %v4285 = vmul.f32 %v4189, %v4189
  %v4286 = vmul.f32 %v4190, %v4190
  %v4287 = vmul.f32 %v4191, %v4191
  %v4288 = vmul.f32 %v4192, %v4192
  %v4289 = vmul.f32 %v4193, %v4193
  %v4290 = vmul.f32 %v4194, %v4194
  %v4291 = vmul.f32 %v4195, %v4195
  %v4292 = vmul.f32 %v4196, %v4196
  %v4293 = vmul.f32 %v4197, %v4197
  %v4294 = vmul.f32 %v4198, %v4198
  %v4295 = vmul.f32 %v4199, %v4199
  %v4296 = vmul.f32 %v4200, %v4200
  %v4297 = vmul.f32 %v4201, %v4201
  %v4298 = vmul.f32 %v4202, %v4202
  %v4299 = vmul.f32 %v4203, %v4203
  %v4300 = vmul.f32 %v4204, %v4204
  %v4301 = vadd.f32 %v4205, %v4206
  %v4302 = vadd.f32 %v4301, %v4207
  %v4303 = vadd.f32 %v4302, %v4208
  %v4304 = vadd.f32 %v4303, %v4209
  %v4305 = vadd.f32 %v4304, %v4210
  %v4306 = vadd.f32 %v4305, %v4211
  %v4307 = vadd.f32 %v4306, %v4212
  %v4308 = vadd.f32 %v4307, %v4213
  %v4309 = vadd.f32 %v4308, %v4214
  %v4310 = vadd.f32 %v4309, %v4215
  %v4311 = vadd.f32 %v4310, %v4216
  %v4312 = vadd.f32 %v4311, %v4217
  %v4313 = vadd.f32 %v4312, %v4218
  %v4314 = vadd.f32 %v4313, %v4219
  %v4315 = vadd.f32 %v4314, %v4220
  %v4316 = vadd.f32 %v4315, %v4221
  %v4317 = vadd.f32 %v4316, %v4222
  %v4318 = vadd.f32 %v4317, %v4223
  %v4319 = vadd.f32 %v4318, %v4224
  %v4320 = vadd.f32 %v4319, %v4225
  %v4321 = vadd.f32 %v4320, %v4226
  %v4322 = vadd.f32 %v4321, %v4227
  %v4323 = vadd.f32 %v4322, %v4228
  %v4324 = vadd.f32 %v4323, %v4229
  %v4325 = vadd.f32 %v4324, %v4230
  %v4326 = vadd.f32 %v4325, %v4231
  %v4327 = vadd.f32 %v4326, %v4232
  %v4328 = vadd.f32 %v4327, %v4233
  %v4329 = vadd.f32 %v4328, %v4234
  %v4330 = vadd.f32 %v4329, %v4235
  %v4331 = vadd.f32 %v4330, %v4236
  %v4332 = vadd.f32 %v4331, %v4237
  %v4333 = vadd.f32 %v4332, %v4238
  %v4334 = vadd.f32 %v4333, %v4239
  %v4335 = vadd.f32 %v4334, %v4240
  %v4336 = vadd.f32 %v4335, %v4241
  %v4337 = vadd.f32 %v4336, %v4242
  %v4338 = vadd.f32 %v4337, %v4243
  %v4339 = vadd.f32 %v4338, %v4244
  %v4340 = vadd.f32 %v4339, %v4245
  %v4341 = vadd.f32 %v4340, %v4246
  %v4342 = vadd.f32 %v4341, %v4247
  %v4343 = vadd.f32 %v4342, %v4248
  %v4344 = vadd.f32 %v4343, %v4249
  %v4345 = vadd.f32 %v4344, %v4250
  %v4346 = vadd.f32 %v4345, %v4251
  %v4347 = vadd.f32 %v4346, %v4252
  %v4348 = vadd.f32 %v4347, %v4253
  %v4349 = vadd.f32 %v4348, %v4254
  %v4350 = vadd.f32 %v4349, %v4255
  %v4351 = vadd.f32 %v4350, %v4256
  %v4352 = vadd.f32 %v4351, %v4257
  %v4353 = vadd.f32 %v4352, %v4258
  %v4354 = vadd.f32 %v4353, %v4259
  %v4355 = vadd.f32 %v4354, %v4260
  %v4356 = vadd.f32 %v4355, %v4261
  %v4357 = vadd.f32 %v4356, %v4262
  %v4358 = vadd.f32 %v4357, %v4263
  %v4359 = vadd.f32 %v4358, %v4264
  %v4360 = vadd.f32 %v4359, %v4265
  %v4361 = vadd.f32 %v4360, %v4266
  %v4362 = vadd.f32 %v4361, %v4267
  %v4363 = vadd.f32 %v4362, %v4268
  %v4364 = vadd.f32 %v4363, %v4269
  %v4365 = vadd.f32 %v4364, %v4270
  %v4366 = vadd.f32 %v4365, %v4271
  %v4367 = vadd.f32 %v4366, %v4272
  %v4368 = vadd.f32 %v4367, %v4273
  %v4369 = vadd.f32 %v4368, %v4274
  %v4370 = vadd.f32 %v4369, %v4275
  %v4371 = vadd.f32 %v4370, %v4276
  %v4372 = vadd.f32 %v4371, %v4277
  %v4373 = vadd.f32 %v4372, %v4278
  %v4374 = vadd.f32 %v4373, %v4279
  %v4375 = vadd.f32 %v4374, %v4280
  %v4376 = vadd.f32 %v4375, %v4281
  %v4377 = vadd.f32 %v4376, %v4282
  %v4378 = vadd.f32 %v4377, %v4283
  %v4379 = vadd.f32 %v4378, %v4284
  %v4380 = vadd.f32 %v4379, %v4285
  %v4381 = vadd.f32 %v4380, %v4286
  %v4382 = vadd.f32 %v4381, %v4287
  %v4383 = vadd.f32 %v4382, %v4288
  %v4384 = vadd.f32 %v4383, %v4289
  %v4385 = vadd.f32 %v4384, %v4290
  %v4386 = vadd.f32 %v4385, %v4291
  %v4387 = vadd.f32 %v4386, %v4292
  %v4388 = vadd.f32 %v4387, %v4293
  %v4389 = vadd.f32 %v4388, %v4294
  %v4390 = vadd.f32 %v4389, %v4295
  %v4391 = vadd.f32 %v4390, %v4296
  %v4392 = vadd.f32 %v4391, %v4297
  %v4393 = vadd.f32 %v4392, %v4298
  %v4394 = vadd.f32 %v4393, %v4299
  %v4395 = vadd.f32 %v4394, %v4300
  %v4396 = vrot.slane %v4395, 4
  %v4397 = vadd.f32 %v4395, %v4396
  %v4398 = vrot.slane %v4397, 2
  %v4399 = vadd.f32 %v4397, %v4398
  %v4400 = vrot.slane %v4399, 1
  %v4401 = vadd.f32 %v4399, %v4400
  %v4402 = vmul.f32 %v4401, 0.0013020834
  %v4403 = vadd.f32 %v4402, 1e-05
  %v4404 = vrsqrt.pop %v4403
  %v4405 = vmul.f32 %v4404, %v4403
  %v4406 = vmul.f32 %v4405, %v4404
  %v4407 = vmul.f32 0.5, %v4406
  %v4408 = vsub.f32 1.5, %v4407
  %v4409 = vmul.f32 %v4404, %v4408
  %vm4410 = vweird.f32 %v4403
  %vm4411 = vweird.f32 %v4404
  %vm4412 = vmor %vm4410, %vm4411
  %v4413 = vsel %vm4412, %v4404, %v4409
  %v4414 = vmul.f32 %v4005, %v4413
  %v4416 = vperm.slane %v4414, 0
  %v4418 = vmul.f32 %v4109, %v4416
  %v4419 = vmul.f32 %v4110, %v4416
  %v4420 = vmul.f32 %v4111, %v4416
  %v4421 = vmul.f32 %v4112, %v4416
  %v4422 = vmul.f32 %v4113, %v4416
  %v4423 = vmul.f32 %v4114, %v4416
  %v4424 = vmul.f32 %v4115, %v4416
  %v4425 = vmul.f32 %v4116, %v4416
  %v4426 = vmul.f32 %v4117, %v4416
  %v4427 = vmul.f32 %v4118, %v4416
  %v4428 = vmul.f32 %v4119, %v4416
  %v4429 = vmul.f32 %v4120, %v4416
  %v4430 = vmul.f32 %v4121, %v4416
  %v4431 = vmul.f32 %v4122, %v4416
  %v4432 = vmul.f32 %v4123, %v4416
  %v4433 = vmul.f32 %v4124, %v4416
  %v4434 = vmul.f32 %v4125, %v4416
  %v4435 = vmul.f32 %v4126, %v4416
  %v4436 = vmul.f32 %v4127, %v4416
  %v4437 = vmul.f32 %v4128, %v4416
  %v4438 = vmul.f32 %v4129, %v4416
  %v4439 = vmul.f32 %v4130, %v4416
  %v4440 = vmul.f32 %v4131, %v4416
  %v4441 = vmul.f32 %v4132, %v4416
  %v4442 = vmul.f32 %v4133, %v4416
  %v4443 = vmul.f32 %v4134, %v4416
  %v4444 = vmul.f32 %v4135, %v4416
  %v4445 = vmul.f32 %v4136, %v4416
  %v4446 = vmul.f32 %v4137, %v4416
  %v4447 = vmul.f32 %v4138, %v4416
  %v4448 = vmul.f32 %v4139, %v4416
  %v4449 = vmul.f32 %v4140, %v4416
  %v4450 = vmul.f32 %v4141, %v4416
  %v4451 = vmul.f32 %v4142, %v4416
  %v4452 = vmul.f32 %v4143, %v4416
  %v4453 = vmul.f32 %v4144, %v4416
  %v4454 = vmul.f32 %v4145, %v4416
  %v4455 = vmul.f32 %v4146, %v4416
  %v4456 = vmul.f32 %v4147, %v4416
  %v4457 = vmul.f32 %v4148, %v4416
  %v4458 = vmul.f32 %v4149, %v4416
  %v4459 = vmul.f32 %v4150, %v4416
  %v4460 = vmul.f32 %v4151, %v4416
  %v4461 = vmul.f32 %v4152, %v4416
  %v4462 = vmul.f32 %v4153, %v4416
  %v4463 = vmul.f32 %v4154, %v4416
  %v4464 = vmul.f32 %v4155, %v4416
  %v4465 = vmul.f32 %v4156, %v4416
  %v4466 = vmul.f32 %v4157, %v4416
  %v4467 = vmul.f32 %v4158, %v4416
  %v4468 = vmul.f32 %v4159, %v4416
  %v4469 = vmul.f32 %v4160, %v4416
  %v4470 = vmul.f32 %v4161, %v4416
  %v4471 = vmul.f32 %v4162, %v4416
  %v4472 = vmul.f32 %v4163, %v4416
  %v4473 = vmul.f32 %v4164, %v4416
  %v4474 = vmul.f32 %v4165, %v4416
  %v4475 = vmul.f32 %v4166, %v4416
  %v4476 = vmul.f32 %v4167, %v4416
  %v4477 = vmul.f32 %v4168, %v4416
  %v4478 = vmul.f32 %v4169, %v4416
  %v4479 = vmul.f32 %v4170, %v4416
  %v4480 = vmul.f32 %v4171, %v4416
  %v4481 = vmul.f32 %v4172, %v4416
  %v4482 = vmul.f32 %v4173, %v4416
  %v4483 = vmul.f32 %v4174, %v4416
  %v4484 = vmul.f32 %v4175, %v4416
  %v4485 = vmul.f32 %v4176, %v4416
  %v4486 = vmul.f32 %v4177, %v4416
  %v4487 = vmul.f32 %v4178, %v4416
  %v4488 = vmul.f32 %v4179, %v4416
  %v4489 = vmul.f32 %v4180, %v4416
  %v4490 = vmul.f32 %v4181, %v4416
  %v4491 = vmul.f32 %v4182, %v4416
  %v4492 = vmul.f32 %v4183, %v4416
  %v4493 = vmul.f32 %v4184, %v4416
  %v4494 = vmul.f32 %v4185, %v4416
  %v4495 = vmul.f32 %v4186, %v4416
  %v4496 = vmul.f32 %v4187, %v4416
  %v4497 = vmul.f32 %v4188, %v4416
  %v4498 = vmul.f32 %v4189, %v4416
  %v4499 = vmul.f32 %v4190, %v4416
  %v4500 = vmul.f32 %v4191, %v4416
  %v4501 = vmul.f32 %v4192, %v4416
  %v4502 = vmul.f32 %v4193, %v4416
  %v4503 = vmul.f32 %v4194, %v4416
  %v4504 = vmul.f32 %v4195, %v4416
  %v4505 = vmul.f32 %v4196, %v4416
  %v4506 = vmul.f32 %v4197, %v4416
  %v4507 = vmul.f32 %v4198, %v4416
  %v4508 = vmul.f32 %v4199, %v4416
  %v4509 = vmul.f32 %v4200, %v4416
  %v4510 = vmul.f32 %v4201, %v4416
  %v4511 = vmul.f32 %v4202, %v4416
  %v4512 = vmul.f32 %v4203, %v4416
  %v4513 = vmul.f32 %v4204, %v4416
  %v4515 = vperm.slane %v4006, 0
  %v4517 = vadd.f32 %v4418, %v4515
  %v4518 = vadd.f32 %v4419, %v4515
  %v4519 = vadd.f32 %v4420, %v4515
  %v4520 = vadd.f32 %v4421, %v4515
  %v4521 = vadd.f32 %v4422, %v4515
  %v4522 = vadd.f32 %v4423, %v4515
  %v4523 = vadd.f32 %v4424, %v4515
  %v4524 = vadd.f32 %v4425, %v4515
  %v4525 = vadd.f32 %v4426, %v4515
  %v4526 = vadd.f32 %v4427, %v4515
  %v4527 = vadd.f32 %v4428, %v4515
  %v4528 = vadd.f32 %v4429, %v4515
  %v4529 = vadd.f32 %v4430, %v4515
  %v4530 = vadd.f32 %v4431, %v4515
  %v4531 = vadd.f32 %v4432, %v4515
  %v4532 = vadd.f32 %v4433, %v4515
  %v4533 = vadd.f32 %v4434, %v4515
  %v4534 = vadd.f32 %v4435, %v4515
  %v4535 = vadd.f32 %v4436, %v4515
  %v4536 = vadd.f32 %v4437, %v4515
  %v4537 = vadd.f32 %v4438, %v4515
  %v4538 = vadd.f32 %v4439, %v4515
  %v4539 = vadd.f32 %v4440, %v4515
  %v4540 = vadd.f32 %v4441, %v4515
  %v4541 = vadd.f32 %v4442, %v4515
  %v4542 = vadd.f32 %v4443, %v4515
  %v4543 = vadd.f32 %v4444, %v4515
  %v4544 = vadd.f32 %v4445, %v4515
  %v4545 = vadd.f32 %v4446, %v4515
  %v4546 = vadd.f32 %v4447, %v4515
  %v4547 = vadd.f32 %v4448, %v4515
  %v4548 = vadd.f32 %v4449, %v4515
  %v4549 = vadd.f32 %v4450, %v4515
  %v4550 = vadd.f32 %v4451, %v4515
  %v4551 = vadd.f32 %v4452, %v4515
  %v4552 = vadd.f32 %v4453, %v4515
  %v4553 = vadd.f32 %v4454, %v4515
  %v4554 = vadd.f32 %v4455, %v4515
  %v4555 = vadd.f32 %v4456, %v4515
  %v4556 = vadd.f32 %v4457, %v4515
  %v4557 = vadd.f32 %v4458, %v4515
  %v4558 = vadd.f32 %v4459, %v4515
  %v4559 = vadd.f32 %v4460, %v4515
  %v4560 = vadd.f32 %v4461, %v4515
  %v4561 = vadd.f32 %v4462, %v4515
  %v4562 = vadd.f32 %v4463, %v4515
  %v4563 = vadd.f32 %v4464, %v4515
  %v4564 = vadd.f32 %v4465, %v4515
  %v4565 = vadd.f32 %v4466, %v4515
  %v4566 = vadd.f32 %v4467, %v4515
  %v4567 = vadd.f32 %v4468, %v4515
  %v4568 = vadd.f32 %v4469, %v4515
  %v4569 = vadd.f32 %v4470, %v4515
  %v4570 = vadd.f32 %v4471, %v4515
  %v4571 = vadd.f32 %v4472, %v4515
  %v4572 = vadd.f32 %v4473, %v4515
  %v4573 = vadd.f32 %v4474, %v4515
  %v4574 = vadd.f32 %v4475, %v4515
  %v4575 = vadd.f32 %v4476, %v4515
  %v4576 = vadd.f32 %v4477, %v4515
  %v4577 = vadd.f32 %v4478, %v4515
  %v4578 = vadd.f32 %v4479, %v4515
  %v4579 = vadd.f32 %v4480, %v4515
  %v4580 = vadd.f32 %v4481, %v4515
  %v4581 = vadd.f32 %v4482, %v4515
  %v4582 = vadd.f32 %v4483, %v4515
  %v4583 = vadd.f32 %v4484, %v4515
  %v4584 = vadd.f32 %v4485, %v4515
  %v4585 = vadd.f32 %v4486, %v4515
  %v4586 = vadd.f32 %v4487, %v4515
  %v4587 = vadd.f32 %v4488, %v4515
  %v4588 = vadd.f32 %v4489, %v4515
  %v4589 = vadd.f32 %v4490, %v4515
  %v4590 = vadd.f32 %v4491, %v4515
  %v4591 = vadd.f32 %v4492, %v4515
  %v4592 = vadd.f32 %v4493, %v4515
  %v4593 = vadd.f32 %v4494, %v4515
  %v4594 = vadd.f32 %v4495, %v4515
  %v4595 = vadd.f32 %v4496, %v4515
  %v4596 = vadd.f32 %v4497, %v4515
  %v4597 = vadd.f32 %v4498, %v4515
  %v4598 = vadd.f32 %v4499, %v4515
  %v4599 = vadd.f32 %v4500, %v4515
  %v4600 = vadd.f32 %v4501, %v4515
  %v4601 = vadd.f32 %v4502, %v4515
  %v4602 = vadd.f32 %v4503, %v4515
  %v4603 = vadd.f32 %v4504, %v4515
  %v4604 = vadd.f32 %v4505, %v4515
  %v4605 = vadd.f32 %v4506, %v4515
  %v4606 = vadd.f32 %v4507, %v4515
  %v4607 = vadd.f32 %v4508, %v4515
  %v4608 = vadd.f32 %v4509, %v4515
  %v4609 = vadd.f32 %v4510, %v4515
  %v4610 = vadd.f32 %v4511, %v4515
  %v4611 = vadd.f32 %v4512, %v4515
  %v4612 = vadd.f32 %v4513, %v4515
  %v4613 = vmax.f32 %v4517, 0.0
  %v4614 = vmax.f32 %v4518, 0.0
  %v4615 = vmax.f32 %v4519, 0.0
  %v4616 = vmax.f32 %v4520, 0.0
  %v4617 = vmax.f32 %v4521, 0.0
  %v4618 = vmax.f32 %v4522, 0.0
  %v4619 = vmax.f32 %v4523, 0.0
  %v4620 = vmax.f32 %v4524, 0.0
  %v4621 = vmax.f32 %v4525, 0.0
  %v4622 = vmax.f32 %v4526, 0.0
  %v4623 = vmax.f32 %v4527, 0.0
  %v4624 = vmax.f32 %v4528, 0.0
  %v4625 = vmax.f32 %v4529, 0.0
  %v4626 = vmax.f32 %v4530, 0.0
  %v4627 = vmax.f32 %v4531, 0.0
  %v4628 = vmax.f32 %v4532, 0.0
  %v4629 = vmax.f32 %v4533, 0.0
  %v4630 = vmax.f32 %v4534, 0.0
  %v4631 = vmax.f32 %v4535, 0.0
  %v4632 = vmax.f32 %v4536, 0.0
  %v4633 = vmax.f32 %v4537, 0.0
  %v4634 = vmax.f32 %v4538, 0.0
  %v4635 = vmax.f32 %v4539, 0.0
  %v4636 = vmax.f32 %v4540, 0.0
  %v4637 = vmax.f32 %v4541, 0.0
  %v4638 = vmax.f32 %v4542, 0.0
  %v4639 = vmax.f32 %v4543, 0.0
  %v4640 = vmax.f32 %v4544, 0.0
  %v4641 = vmax.f32 %v4545, 0.0
  %v4642 = vmax.f32 %v4546, 0.0
  %v4643 = vmax.f32 %v4547, 0.0
  %v4644 = vmax.f32 %v4548, 0.0
  %v4645 = vmax.f32 %v4549, 0.0
  %v4646 = vmax.f32 %v4550, 0.0
  %v4647 = vmax.f32 %v4551, 0.0
  %v4648 = vmax.f32 %v4552, 0.0
  %v4649 = vmax.f32 %v4553, 0.0
  %v4650 = vmax.f32 %v4554, 0.0
  %v4651 = vmax.f32 %v4555, 0.0
  %v4652 = vmax.f32 %v4556, 0.0
  %v4653 = vmax.f32 %v4557, 0.0
  %v4654 = vmax.f32 %v4558, 0.0
  %v4655 = vmax.f32 %v4559, 0.0
  %v4656 = vmax.f32 %v4560, 0.0
  %v4657 = vmax.f32 %v4561, 0.0
  %v4658 = vmax.f32 %v4562, 0.0
  %v4659 = vmax.f32 %v4563, 0.0
  %v4660 = vmax.f32 %v4564, 0.0
  %v4661 = vmax.f32 %v4565, 0.0
  %v4662 = vmax.f32 %v4566, 0.0
  %v4663 = vmax.f32 %v4567, 0.0
  %v4664 = vmax.f32 %v4568, 0.0
  %v4665 = vmax.f32 %v4569, 0.0
  %v4666 = vmax.f32 %v4570, 0.0
  %v4667 = vmax.f32 %v4571, 0.0
  %v4668 = vmax.f32 %v4572, 0.0
  %v4669 = vmax.f32 %v4573, 0.0
  %v4670 = vmax.f32 %v4574, 0.0
  %v4671 = vmax.f32 %v4575, 0.0
  %v4672 = vmax.f32 %v4576, 0.0
  %v4673 = vmax.f32 %v4577, 0.0
  %v4674 = vmax.f32 %v4578, 0.0
  %v4675 = vmax.f32 %v4579, 0.0
  %v4676 = vmax.f32 %v4580, 0.0
  %v4677 = vmax.f32 %v4581, 0.0
  %v4678 = vmax.f32 %v4582, 0.0
  %v4679 = vmax.f32 %v4583, 0.0
  %v4680 = vmax.f32 %v4584, 0.0
  %v4681 = vmax.f32 %v4585, 0.0
  %v4682 = vmax.f32 %v4586, 0.0
  %v4683 = vmax.f32 %v4587, 0.0
  %v4684 = vmax.f32 %v4588, 0.0
  %v4685 = vmax.f32 %v4589, 0.0
  %v4686 = vmax.f32 %v4590, 0.0
  %v4687 = vmax.f32 %v4591, 0.0
  %v4688 = vmax.f32 %v4592, 0.0
  %v4689 = vmax.f32 %v4593, 0.0
  %v4690 = vmax.f32 %v4594, 0.0
  %v4691 = vmax.f32 %v4595, 0.0
  %v4692 = vmax.f32 %v4596, 0.0
  %v4693 = vmax.f32 %v4597, 0.0
  %v4694 = vmax.f32 %v4598, 0.0
  %v4695 = vmax.f32 %v4599, 0.0
  %v4696 = vmax.f32 %v4600, 0.0
  %v4697 = vmax.f32 %v4601, 0.0
  %v4698 = vmax.f32 %v4602, 0.0
  %v4699 = vmax.f32 %v4603, 0.0
  %v4700 = vmax.f32 %v4604, 0.0
  %v4701 = vmax.f32 %v4605, 0.0
  %v4702 = vmax.f32 %v4606, 0.0
  %v4703 = vmax.f32 %v4607, 0.0
  %v4704 = vmax.f32 %v4608, 0.0
  %v4705 = vmax.f32 %v4609, 0.0
  %v4706 = vmax.f32 %v4610, 0.0
  %v4707 = vmax.f32 %v4611, 0.0
  %v4708 = vmax.f32 %v4612, 0.0
  %v4709 = vpack.c.bf16 %v4614, %v4613
  %v4710 = vpack.c.bf16 %v4616, %v4615
  %v4711 = vpack.c.bf16 %v4618, %v4617
  %v4712 = vpack.c.bf16 %v4620, %v4619
  %v4713 = vpack.c.bf16 %v4622, %v4621
  %v4714 = vpack.c.bf16 %v4624, %v4623
  %v4715 = vpack.c.bf16 %v4626, %v4625
  %v4716 = vpack.c.bf16 %v4628, %v4627
  %v4717 = vpack.c.bf16 %v4630, %v4629
  %v4718 = vpack.c.bf16 %v4632, %v4631
  %v4719 = vpack.c.bf16 %v4634, %v4633
  %v4720 = vpack.c.bf16 %v4636, %v4635
  %v4721 = vpack.c.bf16 %v4638, %v4637
  %v4722 = vpack.c.bf16 %v4640, %v4639
  %v4723 = vpack.c.bf16 %v4642, %v4641
  %v4724 = vpack.c.bf16 %v4644, %v4643
  %v4725 = vpack.c.bf16 %v4646, %v4645
  %v4726 = vpack.c.bf16 %v4648, %v4647
  %v4727 = vpack.c.bf16 %v4650, %v4649
  %v4728 = vpack.c.bf16 %v4652, %v4651
  %v4729 = vpack.c.bf16 %v4654, %v4653
  %v4730 = vpack.c.bf16 %v4656, %v4655
  %v4731 = vpack.c.bf16 %v4658, %v4657
  %v4732 = vpack.c.bf16 %v4660, %v4659
  %v4733 = vpack.c.bf16 %v4662, %v4661
  %v4734 = vpack.c.bf16 %v4664, %v4663
  %v4735 = vpack.c.bf16 %v4666, %v4665
  %v4736 = vpack.c.bf16 %v4668, %v4667
  %v4737 = vpack.c.bf16 %v4670, %v4669
  %v4738 = vpack.c.bf16 %v4672, %v4671
  %v4739 = vpack.c.bf16 %v4674, %v4673
  %v4740 = vpack.c.bf16 %v4676, %v4675
  %v4741 = vpack.c.bf16 %v4678, %v4677
  %v4742 = vpack.c.bf16 %v4680, %v4679
  %v4743 = vpack.c.bf16 %v4682, %v4681
  %v4744 = vpack.c.bf16 %v4684, %v4683
  %v4745 = vpack.c.bf16 %v4686, %v4685
  %v4746 = vpack.c.bf16 %v4688, %v4687
  %v4747 = vpack.c.bf16 %v4690, %v4689
  %v4748 = vpack.c.bf16 %v4692, %v4691
  %v4749 = vpack.c.bf16 %v4694, %v4693
  %v4750 = vpack.c.bf16 %v4696, %v4695
  %v4751 = vpack.c.bf16 %v4698, %v4697
  %v4752 = vpack.c.bf16 %v4700, %v4699
  %v4753 = vpack.c.bf16 %v4702, %v4701
  %v4754 = vpack.c.bf16 %v4704, %v4703
  %v4755 = vpack.c.bf16 %v4706, %v4705
  %v4756 = vpack.c.bf16 %v4708, %v4707
  %v4757 = vld [vmem:[%s9] sm:$0xf]
  %v4758 = vld [vmem:[%s9 + $0x4] sm:$0xf]
  %v4759 = vld [vmem:[%s9 + $0x8] sm:$0xf]
  %v4760 = vld [vmem:[%s9 + $0xc] sm:$0xf]
  %v4761 = vld [vmem:[%s9 + $0x10] sm:$0xf]
  %v4762 = vld [vmem:[%s9 + $0x14] sm:$0xf]
  %v4763 = vld [vmem:[%s9 + $0x18] sm:$0xf]
  %v4764 = vld [vmem:[%s9 + $0x1c] sm:$0xf]
  %v4765 = vld [vmem:[%s9 + $0x20] sm:$0xf]
  %v4766 = vld [vmem:[%s9 + $0x24] sm:$0xf]
  %v4767 = vld [vmem:[%s9 + $0x28] sm:$0xf]
  %v4768 = vld [vmem:[%s9 + $0x2c] sm:$0xf]
  %v4769 = vld [vmem:[%s9 + $0x30] sm:$0xf]
  %v4770 = vld [vmem:[%s9 + $0x34] sm:$0xf]
  %v4771 = vld [vmem:[%s9 + $0x38] sm:$0xf]
  %v4772 = vld [vmem:[%s9 + $0x3c] sm:$0xf]
  %v4789 = vunpack.c.l.b16 %v4757
  %v4790 = vunpack.c.l.b16 %v4758
  %v4791 = vunpack.c.l.b16 %v4759
  %v4792 = vunpack.c.l.b16 %v4760
  %v4793 = vunpack.c.l.b16 %v4761
  %v4794 = vunpack.c.l.b16 %v4762
  %v4795 = vunpack.c.l.b16 %v4763
  %v4796 = vunpack.c.l.b16 %v4764
  %v4797 = vunpack.c.l.b16 %v4765
  %v4798 = vunpack.c.l.b16 %v4766
  %v4799 = vunpack.c.l.b16 %v4767
  %v4800 = vunpack.c.l.b16 %v4768
  %v4801 = vunpack.c.l.b16 %v4769
  %v4802 = vunpack.c.l.b16 %v4770
  %v4803 = vunpack.c.l.b16 %v4771
  %v4804 = vunpack.c.l.b16 %v4772
  %v4805 = vpack.c.b16 %v4790, %v4789
  %v4806 = vpack.c.b16 %v4792, %v4791
  %v4807 = vpack.c.b16 %v4794, %v4793
  %v4808 = vpack.c.b16 %v4796, %v4795
  %v4809 = vpack.c.b16 %v4798, %v4797
  %v4810 = vpack.c.b16 %v4800, %v4799
  %v4811 = vpack.c.b16 %v4802, %v4801
  %v4812 = vpack.c.b16 %v4804, %v4803
  %4821 = vmatpush.bf16.msra.mxu0 %v4812
  %4822 = vmatpush.bf16.msra.mxu0 %v4811
  %4823 = vmatpush.bf16.msra.mxu0 %v4810
  %4824 = vmatpush.bf16.msra.mxu0 %v4809
  %4825 = vmatpush.bf16.msra.mxu0 %v4808
  %4826 = vmatpush.bf16.msra.mxu0 %v4807
  %4827 = vmatpush.bf16.msra.mxu0 %v4806
  %4828 = vmatpush.bf16.msra.mxu0 %v4805
  %4829 = vmatmul.bf16.gmra.mxu0 %v4709
  %v4830 = vpop.f32.mrf.mxu0
  %v4831 = vadd.f32 0.0, %v4830
  %v4832 = vpop.f32.mrf.mxu0
  %v4833 = vadd.f32 0.0, %v4832
  %4834 = vmatmul.bf16.gmra.mxu0 %v4710
  %v4835 = vpop.f32.mrf.mxu0
  %v4836 = vadd.f32 0.0, %v4835
  %v4837 = vpop.f32.mrf.mxu0
  %v4838 = vadd.f32 0.0, %v4837
  %4839 = vmatmul.bf16.gmra.mxu0 %v4711
  %v4840 = vpop.f32.mrf.mxu0
  %v4841 = vadd.f32 0.0, %v4840
  %v4842 = vpop.f32.mrf.mxu0
  %v4843 = vadd.f32 0.0, %v4842
  %4844 = vmatmul.bf16.gmra.mxu0 %v4712
  %v4845 = vpop.f32.mrf.mxu0
  %v4846 = vadd.f32 0.0, %v4845
  %v4847 = vpop.f32.mrf.mxu0
  %v4848 = vadd.f32 0.0, %v4847
  %4849 = vmatmul.bf16.gmra.mxu0 %v4713
  %v4850 = vpop.f32.mrf.mxu0
  %v4851 = vadd.f32 0.0, %v4850
  %v4852 = vpop.f32.mrf.mxu0
  %v4853 = vadd.f32 0.0, %v4852
  %4854 = vmatmul.bf16.gmra.mxu0 %v4714
  %v4855 = vpop.f32.mrf.mxu0
  %v4856 = vadd.f32 0.0, %v4855
  %v4857 = vpop.f32.mrf.mxu0
  %v4858 = vadd.f32 0.0, %v4857
  %4859 = vmatmul.bf16.gmra.mxu0 %v4715
  %v4860 = vpop.f32.mrf.mxu0
  %v4861 = vadd.f32 0.0, %v4860
  %v4862 = vpop.f32.mrf.mxu0
  %v4863 = vadd.f32 0.0, %v4862
  %4864 = vmatmul.bf16.gmra.mxu0 %v4716
  %v4865 = vpop.f32.mrf.mxu0
  %v4866 = vadd.f32 0.0, %v4865
  %v4867 = vpop.f32.mrf.mxu0
  %v4868 = vadd.f32 0.0, %v4867
  %4869 = vmatmul.bf16.gmra.mxu0 %v4717
  %v4870 = vpop.f32.mrf.mxu0
  %v4871 = vadd.f32 0.0, %v4870
  %v4872 = vpop.f32.mrf.mxu0
  %v4873 = vadd.f32 0.0, %v4872
  %4874 = vmatmul.bf16.gmra.mxu0 %v4718
  %v4875 = vpop.f32.mrf.mxu0
  %v4876 = vadd.f32 0.0, %v4875
  %v4877 = vpop.f32.mrf.mxu0
  %v4878 = vadd.f32 0.0, %v4877
  %4879 = vmatmul.bf16.gmra.mxu0 %v4719
  %v4880 = vpop.f32.mrf.mxu0
  %v4881 = vadd.f32 0.0, %v4880
  %v4882 = vpop.f32.mrf.mxu0
  %v4883 = vadd.f32 0.0, %v4882
  %4884 = vmatmul.bf16.gmra.mxu0 %v4720
  %v4885 = vpop.f32.mrf.mxu0
  %v4886 = vadd.f32 0.0, %v4885
  %v4887 = vpop.f32.mrf.mxu0
  %v4888 = vadd.f32 0.0, %v4887
  %4889 = vmatmul.bf16.gmra.mxu0 %v4721
  %v4890 = vpop.f32.mrf.mxu0
  %v4891 = vadd.f32 0.0, %v4890
  %v4892 = vpop.f32.mrf.mxu0
  %v4893 = vadd.f32 0.0, %v4892
  %4894 = vmatmul.bf16.gmra.mxu0 %v4722
  %v4895 = vpop.f32.mrf.mxu0
  %v4896 = vadd.f32 0.0, %v4895
  %v4897 = vpop.f32.mrf.mxu0
  %v4898 = vadd.f32 0.0, %v4897
  %4899 = vmatmul.bf16.gmra.mxu0 %v4723
  %v4900 = vpop.f32.mrf.mxu0
  %v4901 = vadd.f32 0.0, %v4900
  %v4902 = vpop.f32.mrf.mxu0
  %v4903 = vadd.f32 0.0, %v4902
  %4904 = vmatmul.bf16.gmra.mxu0 %v4724
  %v4905 = vpop.f32.mrf.mxu0
  %v4906 = vadd.f32 0.0, %v4905
  %v4907 = vpop.f32.mrf.mxu0
  %v4908 = vadd.f32 0.0, %v4907
  %4909 = vmatmul.bf16.gmra.mxu0 %v4725
  %v4910 = vpop.f32.mrf.mxu0
  %v4911 = vadd.f32 0.0, %v4910
  %v4912 = vpop.f32.mrf.mxu0
  %v4913 = vadd.f32 0.0, %v4912
  %4914 = vmatmul.bf16.gmra.mxu0 %v4726
  %v4915 = vpop.f32.mrf.mxu0
  %v4916 = vadd.f32 0.0, %v4915
  %v4917 = vpop.f32.mrf.mxu0
  %v4918 = vadd.f32 0.0, %v4917
  %4919 = vmatmul.bf16.gmra.mxu0 %v4727
  %v4920 = vpop.f32.mrf.mxu0
  %v4921 = vadd.f32 0.0, %v4920
  %v4922 = vpop.f32.mrf.mxu0
  %v4923 = vadd.f32 0.0, %v4922
  %4924 = vmatmul.bf16.gmra.mxu0 %v4728
  %v4925 = vpop.f32.mrf.mxu0
  %v4926 = vadd.f32 0.0, %v4925
  %v4927 = vpop.f32.mrf.mxu0
  %v4928 = vadd.f32 0.0, %v4927
  %4929 = vmatmul.bf16.gmra.mxu0 %v4729
  %v4930 = vpop.f32.mrf.mxu0
  %v4931 = vadd.f32 0.0, %v4930
  %v4932 = vpop.f32.mrf.mxu0
  %v4933 = vadd.f32 0.0, %v4932
  %4934 = vmatmul.bf16.gmra.mxu0 %v4730
  %v4935 = vpop.f32.mrf.mxu0
  %v4936 = vadd.f32 0.0, %v4935
  %v4937 = vpop.f32.mrf.mxu0
  %v4938 = vadd.f32 0.0, %v4937
  %4939 = vmatmul.bf16.gmra.mxu0 %v4731
  %v4940 = vpop.f32.mrf.mxu0
  %v4941 = vadd.f32 0.0, %v4940
  %v4942 = vpop.f32.mrf.mxu0
  %v4943 = vadd.f32 0.0, %v4942
  %4944 = vmatmul.bf16.gmra.mxu0 %v4732
  %v4945 = vpop.f32.mrf.mxu0
  %v4946 = vadd.f32 0.0, %v4945
  %v4947 = vpop.f32.mrf.mxu0
  %v4948 = vadd.f32 0.0, %v4947
  %4949 = vmatmul.bf16.gmra.mxu0 %v4733
  %v4950 = vpop.f32.mrf.mxu0
  %v4951 = vadd.f32 0.0, %v4950
  %v4952 = vpop.f32.mrf.mxu0
  %v4953 = vadd.f32 0.0, %v4952
  %4954 = vmatmul.bf16.gmra.mxu0 %v4734
  %v4955 = vpop.f32.mrf.mxu0
  %v4956 = vadd.f32 0.0, %v4955
  %v4957 = vpop.f32.mrf.mxu0
  %v4958 = vadd.f32 0.0, %v4957
  %4959 = vmatmul.bf16.gmra.mxu0 %v4735
  %v4960 = vpop.f32.mrf.mxu0
  %v4961 = vadd.f32 0.0, %v4960
  %v4962 = vpop.f32.mrf.mxu0
  %v4963 = vadd.f32 0.0, %v4962
  %4964 = vmatmul.bf16.gmra.mxu0 %v4736
  %v4965 = vpop.f32.mrf.mxu0
  %v4966 = vadd.f32 0.0, %v4965
  %v4967 = vpop.f32.mrf.mxu0
  %v4968 = vadd.f32 0.0, %v4967
  %4969 = vmatmul.bf16.gmra.mxu0 %v4737
  %v4970 = vpop.f32.mrf.mxu0
  %v4971 = vadd.f32 0.0, %v4970
  %v4972 = vpop.f32.mrf.mxu0
  %v4973 = vadd.f32 0.0, %v4972
  %4974 = vmatmul.bf16.gmra.mxu0 %v4738
  %v4975 = vpop.f32.mrf.mxu0
  %v4976 = vadd.f32 0.0, %v4975
  %v4977 = vpop.f32.mrf.mxu0
  %v4978 = vadd.f32 0.0, %v4977
  %4979 = vmatmul.bf16.gmra.mxu0 %v4739
  %v4980 = vpop.f32.mrf.mxu0
  %v4981 = vadd.f32 0.0, %v4980
  %v4982 = vpop.f32.mrf.mxu0
  %v4983 = vadd.f32 0.0, %v4982
  %4984 = vmatmul.bf16.gmra.mxu0 %v4740
  %v4985 = vpop.f32.mrf.mxu0
  %v4986 = vadd.f32 0.0, %v4985
  %v4987 = vpop.f32.mrf.mxu0
  %v4988 = vadd.f32 0.0, %v4987
  %4989 = vmatmul.bf16.gmra.mxu0 %v4741
  %v4990 = vpop.f32.mrf.mxu0
  %v4991 = vadd.f32 0.0, %v4990
  %v4992 = vpop.f32.mrf.mxu0
  %v4993 = vadd.f32 0.0, %v4992
  %4994 = vmatmul.bf16.gmra.mxu0 %v4742
  %v4995 = vpop.f32.mrf.mxu0
  %v4996 = vadd.f32 0.0, %v4995
  %v4997 = vpop.f32.mrf.mxu0
  %v4998 = vadd.f32 0.0, %v4997
  %4999 = vmatmul.bf16.gmra.mxu0 %v4743
  %v5000 = vpop.f32.mrf.mxu0
  %v5001 = vadd.f32 0.0, %v5000
  %v5002 = vpop.f32.mrf.mxu0
  %v5003 = vadd.f32 0.0, %v5002
  %5004 = vmatmul.bf16.gmra.mxu0 %v4744
  %v5005 = vpop.f32.mrf.mxu0
  %v5006 = vadd.f32 0.0, %v5005
  %v5007 = vpop.f32.mrf.mxu0
  %v5008 = vadd.f32 0.0, %v5007
  %5009 = vmatmul.bf16.gmra.mxu0 %v4745
  %v5010 = vpop.f32.mrf.mxu0
  %v5011 = vadd.f32 0.0, %v5010
  %v5012 = vpop.f32.mrf.mxu0
  %v5013 = vadd.f32 0.0, %v5012
  %5014 = vmatmul.bf16.gmra.mxu0 %v4746
  %v5015 = vpop.f32.mrf.mxu0
  %v5016 = vadd.f32 0.0, %v5015
  %v5017 = vpop.f32.mrf.mxu0
  %v5018 = vadd.f32 0.0, %v5017
  %5019 = vmatmul.bf16.gmra.mxu0 %v4747
  %v5020 = vpop.f32.mrf.mxu0
  %v5021 = vadd.f32 0.0, %v5020
  %v5022 = vpop.f32.mrf.mxu0
  %v5023 = vadd.f32 0.0, %v5022
  %5024 = vmatmul.bf16.gmra.mxu0 %v4748
  %v5025 = vpop.f32.mrf.mxu0
  %v5026 = vadd.f32 0.0, %v5025
  %v5027 = vpop.f32.mrf.mxu0
  %v5028 = vadd.f32 0.0, %v5027
  %5029 = vmatmul.bf16.gmra.mxu0 %v4749
  %v5030 = vpop.f32.mrf.mxu0
  %v5031 = vadd.f32 0.0, %v5030
  %v5032 = vpop.f32.mrf.mxu0
  %v5033 = vadd.f32 0.0, %v5032
  %5034 = vmatmul.bf16.gmra.mxu0 %v4750
  %v5035 = vpop.f32.mrf.mxu0
  %v5036 = vadd.f32 0.0, %v5035
  %v5037 = vpop.f32.mrf.mxu0
  %v5038 = vadd.f32 0.0, %v5037
  %5039 = vmatmul.bf16.gmra.mxu0 %v4751
  %v5040 = vpop.f32.mrf.mxu0
  %v5041 = vadd.f32 0.0, %v5040
  %v5042 = vpop.f32.mrf.mxu0
  %v5043 = vadd.f32 0.0, %v5042
  %5044 = vmatmul.bf16.gmra.mxu0 %v4752
  %v5045 = vpop.f32.mrf.mxu0
  %v5046 = vadd.f32 0.0, %v5045
  %v5047 = vpop.f32.mrf.mxu0
  %v5048 = vadd.f32 0.0, %v5047
  %5049 = vmatmul.bf16.gmra.mxu0 %v4753
  %v5050 = vpop.f32.mrf.mxu0
  %v5051 = vadd.f32 0.0, %v5050
  %v5052 = vpop.f32.mrf.mxu0
  %v5053 = vadd.f32 0.0, %v5052
  %5054 = vmatmul.bf16.gmra.mxu0 %v4754
  %v5055 = vpop.f32.mrf.mxu0
  %v5056 = vadd.f32 0.0, %v5055
  %v5057 = vpop.f32.mrf.mxu0
  %v5058 = vadd.f32 0.0, %v5057
  %5059 = vmatmul.bf16.gmra.mxu0 %v4755
  %v5060 = vpop.f32.mrf.mxu0
  %v5061 = vadd.f32 0.0, %v5060
  %v5062 = vpop.f32.mrf.mxu0
  %v5063 = vadd.f32 0.0, %v5062
  %5064 = vmatmul.bf16.gmra.mxu0 %v4756
  %v5065 = vpop.f32.mrf.mxu0
  %v5066 = vadd.f32 0.0, %v5065
  %v5067 = vpop.f32.mrf.mxu0
  %v5068 = vadd.f32 0.0, %v5067
  %5069 = vdwg.mxu0
  %v5070 = vld [vmem:[%s10] sm:$0x1]
  %v5071 = vld [vmem:[%s11] sm:$0x1]
  %v5072 = vsel %vm2701, %v4831, 0.0
  %v5073 = vsel %vm2701, %v4833, 0.0
  %v5074 = vadd.f32 %v5072, %v5073
  %v5075 = vsel %vm2701, %v4836, 0.0
  %v5076 = vadd.f32 %v5074, %v5075
  %v5077 = vsel %vm2701, %v4838, 0.0
  %v5078 = vadd.f32 %v5076, %v5077
  %v5079 = vsel %vm2701, %v4841, 0.0
  %v5080 = vadd.f32 %v5078, %v5079
  %v5081 = vsel %vm2701, %v4843, 0.0
  %v5082 = vadd.f32 %v5080, %v5081
  %v5083 = vsel %vm2701, %v4846, 0.0
  %v5084 = vadd.f32 %v5082, %v5083
  %v5085 = vsel %vm2701, %v4848, 0.0
  %v5086 = vadd.f32 %v5084, %v5085
  %v5087 = vsel %vm2701, %v4851, 0.0
  %v5088 = vadd.f32 %v5086, %v5087
  %v5089 = vsel %vm2701, %v4853, 0.0
  %v5090 = vadd.f32 %v5088, %v5089
  %v5091 = vsel %vm2701, %v4856, 0.0
  %v5092 = vadd.f32 %v5090, %v5091
  %v5093 = vsel %vm2701, %v4858, 0.0
  %v5094 = vadd.f32 %v5092, %v5093
  %v5095 = vsel %vm2701, %v4861, 0.0
  %v5096 = vadd.f32 %v5094, %v5095
  %v5097 = vsel %vm2701, %v4863, 0.0
  %v5098 = vadd.f32 %v5096, %v5097
  %v5099 = vsel %vm2701, %v4866, 0.0
  %v5100 = vadd.f32 %v5098, %v5099
  %v5101 = vsel %vm2701, %v4868, 0.0
  %v5102 = vadd.f32 %v5100, %v5101
  %v5103 = vsel %vm2701, %v4871, 0.0
  %v5104 = vadd.f32 %v5102, %v5103
  %v5105 = vsel %vm2701, %v4873, 0.0
  %v5106 = vadd.f32 %v5104, %v5105
  %v5107 = vsel %vm2701, %v4876, 0.0
  %v5108 = vadd.f32 %v5106, %v5107
  %v5109 = vsel %vm2701, %v4878, 0.0
  %v5110 = vadd.f32 %v5108, %v5109
  %v5111 = vsel %vm2701, %v4881, 0.0
  %v5112 = vadd.f32 %v5110, %v5111
  %v5113 = vsel %vm2701, %v4883, 0.0
  %v5114 = vadd.f32 %v5112, %v5113
  %v5115 = vsel %vm2701, %v4886, 0.0
  %v5116 = vadd.f32 %v5114, %v5115
  %v5117 = vsel %vm2701, %v4888, 0.0
  %v5118 = vadd.f32 %v5116, %v5117
  %v5119 = vsel %vm2701, %v4891, 0.0
  %v5120 = vadd.f32 %v5118, %v5119
  %v5121 = vsel %vm2701, %v4893, 0.0
  %v5122 = vadd.f32 %v5120, %v5121
  %v5123 = vsel %vm2701, %v4896, 0.0
  %v5124 = vadd.f32 %v5122, %v5123
  %v5125 = vsel %vm2701, %v4898, 0.0
  %v5126 = vadd.f32 %v5124, %v5125
  %v5127 = vsel %vm2701, %v4901, 0.0
  %v5128 = vadd.f32 %v5126, %v5127
  %v5129 = vsel %vm2701, %v4903, 0.0
  %v5130 = vadd.f32 %v5128, %v5129
  %v5131 = vsel %vm2701, %v4906, 0.0
  %v5132 = vadd.f32 %v5130, %v5131
  %v5133 = vsel %vm2701, %v4908, 0.0
  %v5134 = vadd.f32 %v5132, %v5133
  %v5135 = vsel %vm2701, %v4911, 0.0
  %v5136 = vadd.f32 %v5134, %v5135
  %v5137 = vsel %vm2701, %v4913, 0.0
  %v5138 = vadd.f32 %v5136, %v5137
  %v5139 = vsel %vm2701, %v4916, 0.0
  %v5140 = vadd.f32 %v5138, %v5139
  %v5141 = vsel %vm2701, %v4918, 0.0
  %v5142 = vadd.f32 %v5140, %v5141
  %v5143 = vsel %vm2701, %v4921, 0.0
  %v5144 = vadd.f32 %v5142, %v5143
  %v5145 = vsel %vm2701, %v4923, 0.0
  %v5146 = vadd.f32 %v5144, %v5145
  %v5147 = vsel %vm2701, %v4926, 0.0
  %v5148 = vadd.f32 %v5146, %v5147
  %v5149 = vsel %vm2701, %v4928, 0.0
  %v5150 = vadd.f32 %v5148, %v5149
  %v5151 = vsel %vm2701, %v4931, 0.0
  %v5152 = vadd.f32 %v5150, %v5151
  %v5153 = vsel %vm2701, %v4933, 0.0
  %v5154 = vadd.f32 %v5152, %v5153
  %v5155 = vsel %vm2701, %v4936, 0.0
  %v5156 = vadd.f32 %v5154, %v5155
  %v5157 = vsel %vm2701, %v4938, 0.0
  %v5158 = vadd.f32 %v5156, %v5157
  %v5159 = vsel %vm2701, %v4941, 0.0
  %v5160 = vadd.f32 %v5158, %v5159
  %v5161 = vsel %vm2701, %v4943, 0.0
  %v5162 = vadd.f32 %v5160, %v5161
  %v5163 = vsel %vm2701, %v4946, 0.0
  %v5164 = vadd.f32 %v5162, %v5163
  %v5165 = vsel %vm2701, %v4948, 0.0
  %v5166 = vadd.f32 %v5164, %v5165
  %v5167 = vsel %vm2701, %v4951, 0.0
  %v5168 = vadd.f32 %v5166, %v5167
  %v5169 = vsel %vm2701, %v4953, 0.0
  %v5170 = vadd.f32 %v5168, %v5169
  %v5171 = vsel %vm2701, %v4956, 0.0
  %v5172 = vadd.f32 %v5170, %v5171
  %v5173 = vsel %vm2701, %v4958, 0.0
  %v5174 = vadd.f32 %v5172, %v5173
  %v5175 = vsel %vm2701, %v4961, 0.0
  %v5176 = vadd.f32 %v5174, %v5175
  %v5177 = vsel %vm2701, %v4963, 0.0
  %v5178 = vadd.f32 %v5176, %v5177
  %v5179 = vsel %vm2701, %v4966, 0.0
  %v5180 = vadd.f32 %v5178, %v5179
  %v5181 = vsel %vm2701, %v4968, 0.0
  %v5182 = vadd.f32 %v5180, %v5181
  %v5183 = vsel %vm2701, %v4971, 0.0
  %v5184 = vadd.f32 %v5182, %v5183
  %v5185 = vsel %vm2701, %v4973, 0.0
  %v5186 = vadd.f32 %v5184, %v5185
  %v5187 = vsel %vm2701, %v4976, 0.0
  %v5188 = vadd.f32 %v5186, %v5187
  %v5189 = vsel %vm2701, %v4978, 0.0
  %v5190 = vadd.f32 %v5188, %v5189
  %v5191 = vsel %vm2701, %v4981, 0.0
  %v5192 = vadd.f32 %v5190, %v5191
  %v5193 = vsel %vm2701, %v4983, 0.0
  %v5194 = vadd.f32 %v5192, %v5193
  %v5195 = vsel %vm2701, %v4986, 0.0
  %v5196 = vadd.f32 %v5194, %v5195
  %v5197 = vsel %vm2701, %v4988, 0.0
  %v5198 = vadd.f32 %v5196, %v5197
  %v5199 = vsel %vm2701, %v4991, 0.0
  %v5200 = vadd.f32 %v5198, %v5199
  %v5201 = vsel %vm2701, %v4993, 0.0
  %v5202 = vadd.f32 %v5200, %v5201
  %v5203 = vsel %vm2701, %v4996, 0.0
  %v5204 = vadd.f32 %v5202, %v5203
  %v5205 = vsel %vm2701, %v4998, 0.0
  %v5206 = vadd.f32 %v5204, %v5205
  %v5207 = vsel %vm2701, %v5001, 0.0
  %v5208 = vadd.f32 %v5206, %v5207
  %v5209 = vsel %vm2701, %v5003, 0.0
  %v5210 = vadd.f32 %v5208, %v5209
  %v5211 = vsel %vm2701, %v5006, 0.0
  %v5212 = vadd.f32 %v5210, %v5211
  %v5213 = vsel %vm2701, %v5008, 0.0
  %v5214 = vadd.f32 %v5212, %v5213
  %v5215 = vsel %vm2701, %v5011, 0.0
  %v5216 = vadd.f32 %v5214, %v5215
  %v5217 = vsel %vm2701, %v5013, 0.0
  %v5218 = vadd.f32 %v5216, %v5217
  %v5219 = vsel %vm2701, %v5016, 0.0
  %v5220 = vadd.f32 %v5218, %v5219
  %v5221 = vsel %vm2701, %v5018, 0.0
  %v5222 = vadd.f32 %v5220, %v5221
  %v5223 = vsel %vm2701, %v5021, 0.0
  %v5224 = vadd.f32 %v5222, %v5223
  %v5225 = vsel %vm2701, %v5023, 0.0
  %v5226 = vadd.f32 %v5224, %v5225
  %v5227 = vsel %vm2701, %v5026, 0.0
  %v5228 = vadd.f32 %v5226, %v5227
  %v5229 = vsel %vm2701, %v5028, 0.0
  %v5230 = vadd.f32 %v5228, %v5229
  %v5231 = vsel %vm2701, %v5031, 0.0
  %v5232 = vadd.f32 %v5230, %v5231
  %v5233 = vsel %vm2701, %v5033, 0.0
  %v5234 = vadd.f32 %v5232, %v5233
  %v5235 = vsel %vm2701, %v5036, 0.0
  %v5236 = vadd.f32 %v5234, %v5235
  %v5237 = vsel %vm2701, %v5038, 0.0
  %v5238 = vadd.f32 %v5236, %v5237
  %v5239 = vsel %vm2701, %v5041, 0.0
  %v5240 = vadd.f32 %v5238, %v5239
  %v5241 = vsel %vm2701, %v5043, 0.0
  %v5242 = vadd.f32 %v5240, %v5241
  %v5243 = vsel %vm2701, %v5046, 0.0
  %v5244 = vadd.f32 %v5242, %v5243
  %v5245 = vsel %vm2701, %v5048, 0.0
  %v5246 = vadd.f32 %v5244, %v5245
  %v5247 = vsel %vm2701, %v5051, 0.0
  %v5248 = vadd.f32 %v5246, %v5247
  %v5249 = vsel %vm2701, %v5053, 0.0
  %v5250 = vadd.f32 %v5248, %v5249
  %v5251 = vsel %vm2701, %v5056, 0.0
  %v5252 = vadd.f32 %v5250, %v5251
  %v5253 = vsel %vm2701, %v5058, 0.0
  %v5254 = vadd.f32 %v5252, %v5253
  %v5255 = vsel %vm2701, %v5061, 0.0
  %v5256 = vadd.f32 %v5254, %v5255
  %v5257 = vsel %vm2701, %v5063, 0.0
  %v5258 = vadd.f32 %v5256, %v5257
  %v5259 = vsel %vm2701, %v5066, 0.0
  %v5260 = vadd.f32 %v5258, %v5259
  %v5261 = vsel %vm2701, %v5068, 0.0
  %v5262 = vadd.f32 %v5260, %v5261
  %v5263 = vrot.slane %v5262, 4
  %v5264 = vadd.f32 %v5262, %v5263
  %v5265 = vrot.slane %v5264, 2
  %v5266 = vadd.f32 %v5264, %v5265
  %v5267 = vrot.slane %v5266, 1
  %v5268 = vadd.f32 %v5266, %v5267
  %v5269 = vmul.f32 %v5268, 0.0013020834
  %v5270 = vsub.f32 %v4831, %v5269
  %v5271 = vsub.f32 %v4833, %v5269
  %v5272 = vsub.f32 %v4836, %v5269
  %v5273 = vsub.f32 %v4838, %v5269
  %v5274 = vsub.f32 %v4841, %v5269
  %v5275 = vsub.f32 %v4843, %v5269
  %v5276 = vsub.f32 %v4846, %v5269
  %v5277 = vsub.f32 %v4848, %v5269
  %v5278 = vsub.f32 %v4851, %v5269
  %v5279 = vsub.f32 %v4853, %v5269
  %v5280 = vsub.f32 %v4856, %v5269
  %v5281 = vsub.f32 %v4858, %v5269
  %v5282 = vsub.f32 %v4861, %v5269
  %v5283 = vsub.f32 %v4863, %v5269
  %v5284 = vsub.f32 %v4866, %v5269
  %v5285 = vsub.f32 %v4868, %v5269
  %v5286 = vsub.f32 %v4871, %v5269
  %v5287 = vsub.f32 %v4873, %v5269
  %v5288 = vsub.f32 %v4876, %v5269
  %v5289 = vsub.f32 %v4878, %v5269
  %v5290 = vsub.f32 %v4881, %v5269
  %v5291 = vsub.f32 %v4883, %v5269
  %v5292 = vsub.f32 %v4886, %v5269
  %v5293 = vsub.f32 %v4888, %v5269
  %v5294 = vsub.f32 %v4891, %v5269
  %v5295 = vsub.f32 %v4893, %v5269
  %v5296 = vsub.f32 %v4896, %v5269
  %v5297 = vsub.f32 %v4898, %v5269
  %v5298 = vsub.f32 %v4901, %v5269
  %v5299 = vsub.f32 %v4903, %v5269
  %v5300 = vsub.f32 %v4906, %v5269
  %v5301 = vsub.f32 %v4908, %v5269
  %v5302 = vsub.f32 %v4911, %v5269
  %v5303 = vsub.f32 %v4913, %v5269
  %v5304 = vsub.f32 %v4916, %v5269
  %v5305 = vsub.f32 %v4918, %v5269
  %v5306 = vsub.f32 %v4921, %v5269
  %v5307 = vsub.f32 %v4923, %v5269
  %v5308 = vsub.f32 %v4926, %v5269
  %v5309 = vsub.f32 %v4928, %v5269
  %v5310 = vsub.f32 %v4931, %v5269
  %v5311 = vsub.f32 %v4933, %v5269
  %v5312 = vsub.f32 %v4936, %v5269
  %v5313 = vsub.f32 %v4938, %v5269
  %v5314 = vsub.f32 %v4941, %v5269
  %v5315 = vsub.f32 %v4943, %v5269
  %v5316 = vsub.f32 %v4946, %v5269
  %v5317 = vsub.f32 %v4948, %v5269
  %v5318 = vsub.f32 %v4951, %v5269
  %v5319 = vsub.f32 %v4953, %v5269
  %v5320 = vsub.f32 %v4956, %v5269
  %v5321 = vsub.f32 %v4958, %v5269
  %v5322 = vsub.f32 %v4961, %v5269
  %v5323 = vsub.f32 %v4963, %v5269
  %v5324 = vsub.f32 %v4966, %v5269
  %v5325 = vsub.f32 %v4968, %v5269
  %v5326 = vsub.f32 %v4971, %v5269
  %v5327 = vsub.f32 %v4973, %v5269
  %v5328 = vsub.f32 %v4976, %v5269
  %v5329 = vsub.f32 %v4978, %v5269
  %v5330 = vsub.f32 %v4981, %v5269
  %v5331 = vsub.f32 %v4983, %v5269
  %v5332 = vsub.f32 %v4986, %v5269
  %v5333 = vsub.f32 %v4988, %v5269
  %v5334 = vsub.f32 %v4991, %v5269
  %v5335 = vsub.f32 %v4993, %v5269
  %v5336 = vsub.f32 %v4996, %v5269
  %v5337 = vsub.f32 %v4998, %v5269
  %v5338 = vsub.f32 %v5001, %v5269
  %v5339 = vsub.f32 %v5003, %v5269
  %v5340 = vsub.f32 %v5006, %v5269
  %v5341 = vsub.f32 %v5008, %v5269
  %v5342 = vsub.f32 %v5011, %v5269
  %v5343 = vsub.f32 %v5013, %v5269
  %v5344 = vsub.f32 %v5016, %v5269
  %v5345 = vsub.f32 %v5018, %v5269
  %v5346 = vsub.f32 %v5021, %v5269
  %v5347 = vsub.f32 %v5023, %v5269
  %v5348 = vsub.f32 %v5026, %v5269
  %v5349 = vsub.f32 %v5028, %v5269
  %v5350 = vsub.f32 %v5031, %v5269
  %v5351 = vsub.f32 %v5033, %v5269
  %v5352 = vsub.f32 %v5036, %v5269
  %v5353 = vsub.f32 %v5038, %v5269
  %v5354 = vsub.f32 %v5041, %v5269
  %v5355 = vsub.f32 %v5043, %v5269
  %v5356 = vsub.f32 %v5046, %v5269
  %v5357 = vsub.f32 %v5048, %v5269
  %v5358 = vsub.f32 %v5051, %v5269
  %v5359 = vsub.f32 %v5053, %v5269
  %v5360 = vsub.f32 %v5056, %v5269
  %v5361 = vsub.f32 %v5058, %v5269
  %v5362 = vsub.f32 %v5061, %v5269
  %v5363 = vsub.f32 %v5063, %v5269
  %v5364 = vsub.f32 %v5066, %v5269
  %v5365 = vsub.f32 %v5068, %v5269
  %v5366 = vmul.f32 %v5270, %v5270
  %v5367 = vmul.f32 %v5271, %v5271
  %v5368 = vmul.f32 %v5272, %v5272
  %v5369 = vmul.f32 %v5273, %v5273
  %v5370 = vmul.f32 %v5274, %v5274
  %v5371 = vmul.f32 %v5275, %v5275
  %v5372 = vmul.f32 %v5276, %v5276
  %v5373 = vmul.f32 %v5277, %v5277
  %v5374 = vmul.f32 %v5278, %v5278
  %v5375 = vmul.f32 %v5279, %v5279
  %v5376 = vmul.f32 %v5280, %v5280
  %v5377 = vmul.f32 %v5281, %v5281
  %v5378 = vmul.f32 %v5282, %v5282
  %v5379 = vmul.f32 %v5283, %v5283
  %v5380 = vmul.f32 %v5284, %v5284
  %v5381 = vmul.f32 %v5285, %v5285
  %v5382 = vmul.f32 %v5286, %v5286
  %v5383 = vmul.f32 %v5287, %v5287
  %v5384 = vmul.f32 %v5288, %v5288
  %v5385 = vmul.f32 %v5289, %v5289
  %v5386 = vmul.f32 %v5290, %v5290
  %v5387 = vmul.f32 %v5291, %v5291
  %v5388 = vmul.f32 %v5292, %v5292
  %v5389 = vmul.f32 %v5293, %v5293
  %v5390 = vmul.f32 %v5294, %v5294
  %v5391 = vmul.f32 %v5295, %v5295
  %v5392 = vmul.f32 %v5296, %v5296
  %v5393 = vmul.f32 %v5297, %v5297
  %v5394 = vmul.f32 %v5298, %v5298
  %v5395 = vmul.f32 %v5299, %v5299
  %v5396 = vmul.f32 %v5300, %v5300
  %v5397 = vmul.f32 %v5301, %v5301
  %v5398 = vmul.f32 %v5302, %v5302
  %v5399 = vmul.f32 %v5303, %v5303
  %v5400 = vmul.f32 %v5304, %v5304
  %v5401 = vmul.f32 %v5305, %v5305
  %v5402 = vmul.f32 %v5306, %v5306
  %v5403 = vmul.f32 %v5307, %v5307
  %v5404 = vmul.f32 %v5308, %v5308
  %v5405 = vmul.f32 %v5309, %v5309
  %v5406 = vmul.f32 %v5310, %v5310
  %v5407 = vmul.f32 %v5311, %v5311
  %v5408 = vmul.f32 %v5312, %v5312
  %v5409 = vmul.f32 %v5313, %v5313
  %v5410 = vmul.f32 %v5314, %v5314
  %v5411 = vmul.f32 %v5315, %v5315
  %v5412 = vmul.f32 %v5316, %v5316
  %v5413 = vmul.f32 %v5317, %v5317
  %v5414 = vmul.f32 %v5318, %v5318
  %v5415 = vmul.f32 %v5319, %v5319
  %v5416 = vmul.f32 %v5320, %v5320
  %v5417 = vmul.f32 %v5321, %v5321
  %v5418 = vmul.f32 %v5322, %v5322
  %v5419 = vmul.f32 %v5323, %v5323
  %v5420 = vmul.f32 %v5324, %v5324
  %v5421 = vmul.f32 %v5325, %v5325
  %v5422 = vmul.f32 %v5326, %v5326
  %v5423 = vmul.f32 %v5327, %v5327
  %v5424 = vmul.f32 %v5328, %v5328
  %v5425 = vmul.f32 %v5329, %v5329
  %v5426 = vmul.f32 %v5330, %v5330
  %v5427 = vmul.f32 %v5331, %v5331
  %v5428 = vmul.f32 %v5332, %v5332
  %v5429 = vmul.f32 %v5333, %v5333
  %v5430 = vmul.f32 %v5334, %v5334
  %v5431 = vmul.f32 %v5335, %v5335
  %v5432 = vmul.f32 %v5336, %v5336
  %v5433 = vmul.f32 %v5337, %v5337
  %v5434 = vmul.f32 %v5338, %v5338
  %v5435 = vmul.f32 %v5339, %v5339
  %v5436 = vmul.f32 %v5340, %v5340
  %v5437 = vmul.f32 %v5341, %v5341
  %v5438 = vmul.f32 %v5342, %v5342
  %v5439 = vmul.f32 %v5343, %v5343
  %v5440 = vmul.f32 %v5344, %v5344
  %v5441 = vmul.f32 %v5345, %v5345
  %v5442 = vmul.f32 %v5346, %v5346
  %v5443 = vmul.f32 %v5347, %v5347
  %v5444 = vmul.f32 %v5348, %v5348
  %v5445 = vmul.f32 %v5349, %v5349
  %v5446 = vmul.f32 %v5350, %v5350
  %v5447 = vmul.f32 %v5351, %v5351
  %v5448 = vmul.f32 %v5352, %v5352
  %v5449 = vmul.f32 %v5353, %v5353
  %v5450 = vmul.f32 %v5354, %v5354
  %v5451 = vmul.f32 %v5355, %v5355
  %v5452 = vmul.f32 %v5356, %v5356
  %v5453 = vmul.f32 %v5357, %v5357
  %v5454 = vmul.f32 %v5358, %v5358
  %v5455 = vmul.f32 %v5359, %v5359
  %v5456 = vmul.f32 %v5360, %v5360
  %v5457 = vmul.f32 %v5361, %v5361
  %v5458 = vmul.f32 %v5362, %v5362
  %v5459 = vmul.f32 %v5363, %v5363
  %v5460 = vmul.f32 %v5364, %v5364
  %v5461 = vmul.f32 %v5365, %v5365
  %v5462 = vsel %vm2701, %v5366, 0.0
  %v5463 = vsel %vm2701, %v5367, 0.0
  %v5464 = vadd.f32 %v5462, %v5463
  %v5465 = vsel %vm2701, %v5368, 0.0
  %v5466 = vadd.f32 %v5464, %v5465
  %v5467 = vsel %vm2701, %v5369, 0.0
  %v5468 = vadd.f32 %v5466, %v5467
  %v5469 = vsel %vm2701, %v5370, 0.0
  %v5470 = vadd.f32 %v5468, %v5469
  %v5471 = vsel %vm2701, %v5371, 0.0
  %v5472 = vadd.f32 %v5470, %v5471
  %v5473 = vsel %vm2701, %v5372, 0.0
  %v5474 = vadd.f32 %v5472, %v5473
  %v5475 = vsel %vm2701, %v5373, 0.0
  %v5476 = vadd.f32 %v5474, %v5475
  %v5477 = vsel %vm2701, %v5374, 0.0
  %v5478 = vadd.f32 %v5476, %v5477
  %v5479 = vsel %vm2701, %v5375, 0.0
  %v5480 = vadd.f32 %v5478, %v5479
  %v5481 = vsel %vm2701, %v5376, 0.0
  %v5482 = vadd.f32 %v5480, %v5481
  %v5483 = vsel %vm2701, %v5377, 0.0
  %v5484 = vadd.f32 %v5482, %v5483
  %v5485 = vsel %vm2701, %v5378, 0.0
  %v5486 = vadd.f32 %v5484, %v5485
  %v5487 = vsel %vm2701, %v5379, 0.0
  %v5488 = vadd.f32 %v5486, %v5487
  %v5489 = vsel %vm2701, %v5380, 0.0
  %v5490 = vadd.f32 %v5488, %v5489
  %v5491 = vsel %vm2701, %v5381, 0.0
  %v5492 = vadd.f32 %v5490, %v5491
  %v5493 = vsel %vm2701, %v5382, 0.0
  %v5494 = vadd.f32 %v5492, %v5493
  %v5495 = vsel %vm2701, %v5383, 0.0
  %v5496 = vadd.f32 %v5494, %v5495
  %v5497 = vsel %vm2701, %v5384, 0.0
  %v5498 = vadd.f32 %v5496, %v5497
  %v5499 = vsel %vm2701, %v5385, 0.0
  %v5500 = vadd.f32 %v5498, %v5499
  %v5501 = vsel %vm2701, %v5386, 0.0
  %v5502 = vadd.f32 %v5500, %v5501
  %v5503 = vsel %vm2701, %v5387, 0.0
  %v5504 = vadd.f32 %v5502, %v5503
  %v5505 = vsel %vm2701, %v5388, 0.0
  %v5506 = vadd.f32 %v5504, %v5505
  %v5507 = vsel %vm2701, %v5389, 0.0
  %v5508 = vadd.f32 %v5506, %v5507
  %v5509 = vsel %vm2701, %v5390, 0.0
  %v5510 = vadd.f32 %v5508, %v5509
  %v5511 = vsel %vm2701, %v5391, 0.0
  %v5512 = vadd.f32 %v5510, %v5511
  %v5513 = vsel %vm2701, %v5392, 0.0
  %v5514 = vadd.f32 %v5512, %v5513
  %v5515 = vsel %vm2701, %v5393, 0.0
  %v5516 = vadd.f32 %v5514, %v5515
  %v5517 = vsel %vm2701, %v5394, 0.0
  %v5518 = vadd.f32 %v5516, %v5517
  %v5519 = vsel %vm2701, %v5395, 0.0
  %v5520 = vadd.f32 %v5518, %v5519
  %v5521 = vsel %vm2701, %v5396, 0.0
  %v5522 = vadd.f32 %v5520, %v5521
  %v5523 = vsel %vm2701, %v5397, 0.0
  %v5524 = vadd.f32 %v5522, %v5523
  %v5525 = vsel %vm2701, %v5398, 0.0
  %v5526 = vadd.f32 %v5524, %v5525
  %v5527 = vsel %vm2701, %v5399, 0.0
  %v5528 = vadd.f32 %v5526, %v5527
  %v5529 = vsel %vm2701, %v5400, 0.0
  %v5530 = vadd.f32 %v5528, %v5529
  %v5531 = vsel %vm2701, %v5401, 0.0
  %v5532 = vadd.f32 %v5530, %v5531
  %v5533 = vsel %vm2701, %v5402, 0.0
  %v5534 = vadd.f32 %v5532, %v5533
  %v5535 = vsel %vm2701, %v5403, 0.0
  %v5536 = vadd.f32 %v5534, %v5535
  %v5537 = vsel %vm2701, %v5404, 0.0
  %v5538 = vadd.f32 %v5536, %v5537
  %v5539 = vsel %vm2701, %v5405, 0.0
  %v5540 = vadd.f32 %v5538, %v5539
  %v5541 = vsel %vm2701, %v5406, 0.0
  %v5542 = vadd.f32 %v5540, %v5541
  %v5543 = vsel %vm2701, %v5407, 0.0
  %v5544 = vadd.f32 %v5542, %v5543
  %v5545 = vsel %vm2701, %v5408, 0.0
  %v5546 = vadd.f32 %v5544, %v5545
  %v5547 = vsel %vm2701, %v5409, 0.0
  %v5548 = vadd.f32 %v5546, %v5547
  %v5549 = vsel %vm2701, %v5410, 0.0
  %v5550 = vadd.f32 %v5548, %v5549
  %v5551 = vsel %vm2701, %v5411, 0.0
  %v5552 = vadd.f32 %v5550, %v5551
  %v5553 = vsel %vm2701, %v5412, 0.0
  %v5554 = vadd.f32 %v5552, %v5553
  %v5555 = vsel %vm2701, %v5413, 0.0
  %v5556 = vadd.f32 %v5554, %v5555
  %v5557 = vsel %vm2701, %v5414, 0.0
  %v5558 = vadd.f32 %v5556, %v5557
  %v5559 = vsel %vm2701, %v5415, 0.0
  %v5560 = vadd.f32 %v5558, %v5559
  %v5561 = vsel %vm2701, %v5416, 0.0
  %v5562 = vadd.f32 %v5560, %v5561
  %v5563 = vsel %vm2701, %v5417, 0.0
  %v5564 = vadd.f32 %v5562, %v5563
  %v5565 = vsel %vm2701, %v5418, 0.0
  %v5566 = vadd.f32 %v5564, %v5565
  %v5567 = vsel %vm2701, %v5419, 0.0
  %v5568 = vadd.f32 %v5566, %v5567
  %v5569 = vsel %vm2701, %v5420, 0.0
  %v5570 = vadd.f32 %v5568, %v5569
  %v5571 = vsel %vm2701, %v5421, 0.0
  %v5572 = vadd.f32 %v5570, %v5571
  %v5573 = vsel %vm2701, %v5422, 0.0
  %v5574 = vadd.f32 %v5572, %v5573
  %v5575 = vsel %vm2701, %v5423, 0.0
  %v5576 = vadd.f32 %v5574, %v5575
  %v5577 = vsel %vm2701, %v5424, 0.0
  %v5578 = vadd.f32 %v5576, %v5577
  %v5579 = vsel %vm2701, %v5425, 0.0
  %v5580 = vadd.f32 %v5578, %v5579
  %v5581 = vsel %vm2701, %v5426, 0.0
  %v5582 = vadd.f32 %v5580, %v5581
  %v5583 = vsel %vm2701, %v5427, 0.0
  %v5584 = vadd.f32 %v5582, %v5583
  %v5585 = vsel %vm2701, %v5428, 0.0
  %v5586 = vadd.f32 %v5584, %v5585
  %v5587 = vsel %vm2701, %v5429, 0.0
  %v5588 = vadd.f32 %v5586, %v5587
  %v5589 = vsel %vm2701, %v5430, 0.0
  %v5590 = vadd.f32 %v5588, %v5589
  %v5591 = vsel %vm2701, %v5431, 0.0
  %v5592 = vadd.f32 %v5590, %v5591
  %v5593 = vsel %vm2701, %v5432, 0.0
  %v5594 = vadd.f32 %v5592, %v5593
  %v5595 = vsel %vm2701, %v5433, 0.0
  %v5596 = vadd.f32 %v5594, %v5595
  %v5597 = vsel %vm2701, %v5434, 0.0
  %v5598 = vadd.f32 %v5596, %v5597
  %v5599 = vsel %vm2701, %v5435, 0.0
  %v5600 = vadd.f32 %v5598, %v5599
  %v5601 = vsel %vm2701, %v5436, 0.0
  %v5602 = vadd.f32 %v5600, %v5601
  %v5603 = vsel %vm2701, %v5437, 0.0
  %v5604 = vadd.f32 %v5602, %v5603
  %v5605 = vsel %vm2701, %v5438, 0.0
  %v5606 = vadd.f32 %v5604, %v5605
  %v5607 = vsel %vm2701, %v5439, 0.0
  %v5608 = vadd.f32 %v5606, %v5607
  %v5609 = vsel %vm2701, %v5440, 0.0
  %v5610 = vadd.f32 %v5608, %v5609
  %v5611 = vsel %vm2701, %v5441, 0.0
  %v5612 = vadd.f32 %v5610, %v5611
  %v5613 = vsel %vm2701, %v5442, 0.0
  %v5614 = vadd.f32 %v5612, %v5613
  %v5615 = vsel %vm2701, %v5443, 0.0
  %v5616 = vadd.f32 %v5614, %v5615
  %v5617 = vsel %vm2701, %v5444, 0.0
  %v5618 = vadd.f32 %v5616, %v5617
  %v5619 = vsel %vm2701, %v5445, 0.0
  %v5620 = vadd.f32 %v5618, %v5619
  %v5621 = vsel %vm2701, %v5446, 0.0
  %v5622 = vadd.f32 %v5620, %v5621
  %v5623 = vsel %vm2701, %v5447, 0.0
  %v5624 = vadd.f32 %v5622, %v5623
  %v5625 = vsel %vm2701, %v5448, 0.0
  %v5626 = vadd.f32 %v5624, %v5625
  %v5627 = vsel %vm2701, %v5449, 0.0
  %v5628 = vadd.f32 %v5626, %v5627
  %v5629 = vsel %vm2701, %v5450, 0.0
  %v5630 = vadd.f32 %v5628, %v5629
  %v5631 = vsel %vm2701, %v5451, 0.0
  %v5632 = vadd.f32 %v5630, %v5631
  %v5633 = vsel %vm2701, %v5452, 0.0
  %v5634 = vadd.f32 %v5632, %v5633
  %v5635 = vsel %vm2701, %v5453, 0.0
  %v5636 = vadd.f32 %v5634, %v5635
  %v5637 = vsel %vm2701, %v5454, 0.0
  %v5638 = vadd.f32 %v5636, %v5637
  %v5639 = vsel %vm2701, %v5455, 0.0
  %v5640 = vadd.f32 %v5638, %v5639
  %v5641 = vsel %vm2701, %v5456, 0.0
  %v5642 = vadd.f32 %v5640, %v5641
  %v5643 = vsel %vm2701, %v5457, 0.0
  %v5644 = vadd.f32 %v5642, %v5643
  %v5645 = vsel %vm2701, %v5458, 0.0
  %v5646 = vadd.f32 %v5644, %v5645
  %v5647 = vsel %vm2701, %v5459, 0.0
  %v5648 = vadd.f32 %v5646, %v5647
  %v5649 = vsel %vm2701, %v5460, 0.0
  %v5650 = vadd.f32 %v5648, %v5649
  %v5651 = vsel %vm2701, %v5461, 0.0
  %v5652 = vadd.f32 %v5650, %v5651
  %v5653 = vrot.slane %v5652, 4
  %v5654 = vadd.f32 %v5652, %v5653
  %v5655 = vrot.slane %v5654, 2
  %v5656 = vadd.f32 %v5654, %v5655
  %v5657 = vrot.slane %v5656, 1
  %v5658 = vadd.f32 %v5656, %v5657
  %v5659 = vmul.f32 %v5658, 0.0013020834
  %v5660 = vadd.f32 %v5659, 1e-05
  %v5661 = vrsqrt.pop %v5660
  %v5662 = vmul.f32 %v5661, %v5660
  %v5663 = vmul.f32 %v5662, %v5661
  %v5664 = vmul.f32 0.5, %v5663
  %v5665 = vsub.f32 1.5, %v5664
  %v5666 = vmul.f32 %v5661, %v5665
  %vm5667 = vweird.f32 %v5660
  %vm5668 = vweird.f32 %v5661
  %vm5669 = vmor %vm5667, %vm5668
  %v5670 = vsel %vm5669, %v5661, %v5666
  %v5671 = vmul.f32 %v5070, %v5670
  %v5673 = vperm.slane %v5671, 0
  %v5675 = vmul.f32 %v5270, %v5673
  %v5676 = vmul.f32 %v5271, %v5673
  %v5677 = vmul.f32 %v5272, %v5673
  %v5678 = vmul.f32 %v5273, %v5673
  %v5679 = vmul.f32 %v5274, %v5673
  %v5680 = vmul.f32 %v5275, %v5673
  %v5681 = vmul.f32 %v5276, %v5673
  %v5682 = vmul.f32 %v5277, %v5673
  %v5683 = vmul.f32 %v5278, %v5673
  %v5684 = vmul.f32 %v5279, %v5673
  %v5685 = vmul.f32 %v5280, %v5673
  %v5686 = vmul.f32 %v5281, %v5673
  %v5687 = vmul.f32 %v5282, %v5673
  %v5688 = vmul.f32 %v5283, %v5673
  %v5689 = vmul.f32 %v5284, %v5673
  %v5690 = vmul.f32 %v5285, %v5673
  %v5691 = vmul.f32 %v5286, %v5673
  %v5692 = vmul.f32 %v5287, %v5673
  %v5693 = vmul.f32 %v5288, %v5673
  %v5694 = vmul.f32 %v5289, %v5673
  %v5695 = vmul.f32 %v5290, %v5673
  %v5696 = vmul.f32 %v5291, %v5673
  %v5697 = vmul.f32 %v5292, %v5673
  %v5698 = vmul.f32 %v5293, %v5673
  %v5699 = vmul.f32 %v5294, %v5673
  %v5700 = vmul.f32 %v5295, %v5673
  %v5701 = vmul.f32 %v5296, %v5673
  %v5702 = vmul.f32 %v5297, %v5673
  %v5703 = vmul.f32 %v5298, %v5673
  %v5704 = vmul.f32 %v5299, %v5673
  %v5705 = vmul.f32 %v5300, %v5673
  %v5706 = vmul.f32 %v5301, %v5673
  %v5707 = vmul.f32 %v5302, %v5673
  %v5708 = vmul.f32 %v5303, %v5673
  %v5709 = vmul.f32 %v5304, %v5673
  %v5710 = vmul.f32 %v5305, %v5673
  %v5711 = vmul.f32 %v5306, %v5673
  %v5712 = vmul.f32 %v5307, %v5673
  %v5713 = vmul.f32 %v5308, %v5673
  %v5714 = vmul.f32 %v5309, %v5673
  %v5715 = vmul.f32 %v5310, %v5673
  %v5716 = vmul.f32 %v5311, %v5673
  %v5717 = vmul.f32 %v5312, %v5673
  %v5718 = vmul.f32 %v5313, %v5673
  %v5719 = vmul.f32 %v5314, %v5673
  %v5720 = vmul.f32 %v5315, %v5673
  %v5721 = vmul.f32 %v5316, %v5673
  %v5722 = vmul.f32 %v5317, %v5673
  %v5723 = vmul.f32 %v5318, %v5673
  %v5724 = vmul.f32 %v5319, %v5673
  %v5725 = vmul.f32 %v5320, %v5673
  %v5726 = vmul.f32 %v5321, %v5673
  %v5727 = vmul.f32 %v5322, %v5673
  %v5728 = vmul.f32 %v5323, %v5673
  %v5729 = vmul.f32 %v5324, %v5673
  %v5730 = vmul.f32 %v5325, %v5673
  %v5731 = vmul.f32 %v5326, %v5673
  %v5732 = vmul.f32 %v5327, %v5673
  %v5733 = vmul.f32 %v5328, %v5673
  %v5734 = vmul.f32 %v5329, %v5673
  %v5735 = vmul.f32 %v5330, %v5673
  %v5736 = vmul.f32 %v5331, %v5673
  %v5737 = vmul.f32 %v5332, %v5673
  %v5738 = vmul.f32 %v5333, %v5673
  %v5739 = vmul.f32 %v5334, %v5673
  %v5740 = vmul.f32 %v5335, %v5673
  %v5741 = vmul.f32 %v5336, %v5673
  %v5742 = vmul.f32 %v5337, %v5673
  %v5743 = vmul.f32 %v5338, %v5673
  %v5744 = vmul.f32 %v5339, %v5673
  %v5745 = vmul.f32 %v5340, %v5673
  %v5746 = vmul.f32 %v5341, %v5673
  %v5747 = vmul.f32 %v5342, %v5673
  %v5748 = vmul.f32 %v5343, %v5673
  %v5749 = vmul.f32 %v5344, %v5673
  %v5750 = vmul.f32 %v5345, %v5673
  %v5751 = vmul.f32 %v5346, %v5673
  %v5752 = vmul.f32 %v5347, %v5673
  %v5753 = vmul.f32 %v5348, %v5673
  %v5754 = vmul.f32 %v5349, %v5673
  %v5755 = vmul.f32 %v5350, %v5673
  %v5756 = vmul.f32 %v5351, %v5673
  %v5757 = vmul.f32 %v5352, %v5673
  %v5758 = vmul.f32 %v5353, %v5673
  %v5759 = vmul.f32 %v5354, %v5673
  %v5760 = vmul.f32 %v5355, %v5673
  %v5761 = vmul.f32 %v5356, %v5673
  %v5762 = vmul.f32 %v5357, %v5673
  %v5763 = vmul.f32 %v5358, %v5673
  %v5764 = vmul.f32 %v5359, %v5673
  %v5765 = vmul.f32 %v5360, %v5673
  %v5766 = vmul.f32 %v5361, %v5673
  %v5767 = vmul.f32 %v5362, %v5673
  %v5768 = vmul.f32 %v5363, %v5673
  %v5769 = vmul.f32 %v5364, %v5673
  %v5770 = vmul.f32 %v5365, %v5673
  %v5772 = vperm.slane %v5071, 0
  %v5774 = vadd.f32 %v5675, %v5772
  %v5775 = vadd.f32 %v5676, %v5772
  %v5776 = vadd.f32 %v5677, %v5772
  %v5777 = vadd.f32 %v5678, %v5772
  %v5778 = vadd.f32 %v5679, %v5772
  %v5779 = vadd.f32 %v5680, %v5772
  %v5780 = vadd.f32 %v5681, %v5772
  %v5781 = vadd.f32 %v5682, %v5772
  %v5782 = vadd.f32 %v5683, %v5772
  %v5783 = vadd.f32 %v5684, %v5772
  %v5784 = vadd.f32 %v5685, %v5772
  %v5785 = vadd.f32 %v5686, %v5772
  %v5786 = vadd.f32 %v5687, %v5772
  %v5787 = vadd.f32 %v5688, %v5772
  %v5788 = vadd.f32 %v5689, %v5772
  %v5789 = vadd.f32 %v5690, %v5772
  %v5790 = vadd.f32 %v5691, %v5772
  %v5791 = vadd.f32 %v5692, %v5772
  %v5792 = vadd.f32 %v5693, %v5772
  %v5793 = vadd.f32 %v5694, %v5772
  %v5794 = vadd.f32 %v5695, %v5772
  %v5795 = vadd.f32 %v5696, %v5772
  %v5796 = vadd.f32 %v5697, %v5772
  %v5797 = vadd.f32 %v5698, %v5772
  %v5798 = vadd.f32 %v5699, %v5772
  %v5799 = vadd.f32 %v5700, %v5772
  %v5800 = vadd.f32 %v5701, %v5772
  %v5801 = vadd.f32 %v5702, %v5772
  %v5802 = vadd.f32 %v5703, %v5772
  %v5803 = vadd.f32 %v5704, %v5772
  %v5804 = vadd.f32 %v5705, %v5772
  %v5805 = vadd.f32 %v5706, %v5772
  %v5806 = vadd.f32 %v5707, %v5772
  %v5807 = vadd.f32 %v5708, %v5772
  %v5808 = vadd.f32 %v5709, %v5772
  %v5809 = vadd.f32 %v5710, %v5772
  %v5810 = vadd.f32 %v5711, %v5772
  %v5811 = vadd.f32 %v5712, %v5772
  %v5812 = vadd.f32 %v5713, %v5772
  %v5813 = vadd.f32 %v5714, %v5772
  %v5814 = vadd.f32 %v5715, %v5772
  %v5815 = vadd.f32 %v5716, %v5772
  %v5816 = vadd.f32 %v5717, %v5772
  %v5817 = vadd.f32 %v5718, %v5772
  %v5818 = vadd.f32 %v5719, %v5772
  %v5819 = vadd.f32 %v5720, %v5772
  %v5820 = vadd.f32 %v5721, %v5772
  %v5821 = vadd.f32 %v5722, %v5772
  %v5822 = vadd.f32 %v5723, %v5772
  %v5823 = vadd.f32 %v5724, %v5772
  %v5824 = vadd.f32 %v5725, %v5772
  %v5825 = vadd.f32 %v5726, %v5772
  %v5826 = vadd.f32 %v5727, %v5772
  %v5827 = vadd.f32 %v5728, %v5772
  %v5828 = vadd.f32 %v5729, %v5772
  %v5829 = vadd.f32 %v5730, %v5772
  %v5830 = vadd.f32 %v5731, %v5772
  %v5831 = vadd.f32 %v5732, %v5772
  %v5832 = vadd.f32 %v5733, %v5772
  %v5833 = vadd.f32 %v5734, %v5772
  %v5834 = vadd.f32 %v5735, %v5772
  %v5835 = vadd.f32 %v5736, %v5772
  %v5836 = vadd.f32 %v5737, %v5772
  %v5837 = vadd.f32 %v5738, %v5772
  %v5838 = vadd.f32 %v5739, %v5772
  %v5839 = vadd.f32 %v5740, %v5772
  %v5840 = vadd.f32 %v5741, %v5772
  %v5841 = vadd.f32 %v5742, %v5772
  %v5842 = vadd.f32 %v5743, %v5772
  %v5843 = vadd.f32 %v5744, %v5772
  %v5844 = vadd.f32 %v5745, %v5772
  %v5845 = vadd.f32 %v5746, %v5772
  %v5846 = vadd.f32 %v5747, %v5772
  %v5847 = vadd.f32 %v5748, %v5772
  %v5848 = vadd.f32 %v5749, %v5772
  %v5849 = vadd.f32 %v5750, %v5772
  %v5850 = vadd.f32 %v5751, %v5772
  %v5851 = vadd.f32 %v5752, %v5772
  %v5852 = vadd.f32 %v5753, %v5772
  %v5853 = vadd.f32 %v5754, %v5772
  %v5854 = vadd.f32 %v5755, %v5772
  %v5855 = vadd.f32 %v5756, %v5772
  %v5856 = vadd.f32 %v5757, %v5772
  %v5857 = vadd.f32 %v5758, %v5772
  %v5858 = vadd.f32 %v5759, %v5772
  %v5859 = vadd.f32 %v5760, %v5772
  %v5860 = vadd.f32 %v5761, %v5772
  %v5861 = vadd.f32 %v5762, %v5772
  %v5862 = vadd.f32 %v5763, %v5772
  %v5863 = vadd.f32 %v5764, %v5772
  %v5864 = vadd.f32 %v5765, %v5772
  %v5865 = vadd.f32 %v5766, %v5772
  %v5866 = vadd.f32 %v5767, %v5772
  %v5867 = vadd.f32 %v5768, %v5772
  %v5868 = vadd.f32 %v5769, %v5772
  %v5869 = vadd.f32 %v5770, %v5772
  %v5870 = vmax.f32 %v5774, 0.0
  %v5871 = vmax.f32 %v5775, 0.0
  %v5872 = vmax.f32 %v5776, 0.0
  %v5873 = vmax.f32 %v5777, 0.0
  %v5874 = vmax.f32 %v5778, 0.0
  %v5875 = vmax.f32 %v5779, 0.0
  %v5876 = vmax.f32 %v5780, 0.0
  %v5877 = vmax.f32 %v5781, 0.0
  %v5878 = vmax.f32 %v5782, 0.0
  %v5879 = vmax.f32 %v5783, 0.0
  %v5880 = vmax.f32 %v5784, 0.0
  %v5881 = vmax.f32 %v5785, 0.0
  %v5882 = vmax.f32 %v5786, 0.0
  %v5883 = vmax.f32 %v5787, 0.0
  %v5884 = vmax.f32 %v5788, 0.0
  %v5885 = vmax.f32 %v5789, 0.0
  %v5886 = vmax.f32 %v5790, 0.0
  %v5887 = vmax.f32 %v5791, 0.0
  %v5888 = vmax.f32 %v5792, 0.0
  %v5889 = vmax.f32 %v5793, 0.0
  %v5890 = vmax.f32 %v5794, 0.0
  %v5891 = vmax.f32 %v5795, 0.0
  %v5892 = vmax.f32 %v5796, 0.0
  %v5893 = vmax.f32 %v5797, 0.0
  %v5894 = vmax.f32 %v5798, 0.0
  %v5895 = vmax.f32 %v5799, 0.0
  %v5896 = vmax.f32 %v5800, 0.0
  %v5897 = vmax.f32 %v5801, 0.0
  %v5898 = vmax.f32 %v5802, 0.0
  %v5899 = vmax.f32 %v5803, 0.0
  %v5900 = vmax.f32 %v5804, 0.0
  %v5901 = vmax.f32 %v5805, 0.0
  %v5902 = vmax.f32 %v5806, 0.0
  %v5903 = vmax.f32 %v5807, 0.0
  %v5904 = vmax.f32 %v5808, 0.0
  %v5905 = vmax.f32 %v5809, 0.0
  %v5906 = vmax.f32 %v5810, 0.0
  %v5907 = vmax.f32 %v5811, 0.0
  %v5908 = vmax.f32 %v5812, 0.0
  %v5909 = vmax.f32 %v5813, 0.0
  %v5910 = vmax.f32 %v5814, 0.0
  %v5911 = vmax.f32 %v5815, 0.0
  %v5912 = vmax.f32 %v5816, 0.0
  %v5913 = vmax.f32 %v5817, 0.0
  %v5914 = vmax.f32 %v5818, 0.0
  %v5915 = vmax.f32 %v5819, 0.0
  %v5916 = vmax.f32 %v5820, 0.0
  %v5917 = vmax.f32 %v5821, 0.0
  %v5918 = vmax.f32 %v5822, 0.0
  %v5919 = vmax.f32 %v5823, 0.0
  %v5920 = vmax.f32 %v5824, 0.0
  %v5921 = vmax.f32 %v5825, 0.0
  %v5922 = vmax.f32 %v5826, 0.0
  %v5923 = vmax.f32 %v5827, 0.0
  %v5924 = vmax.f32 %v5828, 0.0
  %v5925 = vmax.f32 %v5829, 0.0
  %v5926 = vmax.f32 %v5830, 0.0
  %v5927 = vmax.f32 %v5831, 0.0
  %v5928 = vmax.f32 %v5832, 0.0
  %v5929 = vmax.f32 %v5833, 0.0
  %v5930 = vmax.f32 %v5834, 0.0
  %v5931 = vmax.f32 %v5835, 0.0
  %v5932 = vmax.f32 %v5836, 0.0
  %v5933 = vmax.f32 %v5837, 0.0
  %v5934 = vmax.f32 %v5838, 0.0
  %v5935 = vmax.f32 %v5839, 0.0
  %v5936 = vmax.f32 %v5840, 0.0
  %v5937 = vmax.f32 %v5841, 0.0
  %v5938 = vmax.f32 %v5842, 0.0
  %v5939 = vmax.f32 %v5843, 0.0
  %v5940 = vmax.f32 %v5844, 0.0
  %v5941 = vmax.f32 %v5845, 0.0
  %v5942 = vmax.f32 %v5846, 0.0
  %v5943 = vmax.f32 %v5847, 0.0
  %v5944 = vmax.f32 %v5848, 0.0
  %v5945 = vmax.f32 %v5849, 0.0
  %v5946 = vmax.f32 %v5850, 0.0
  %v5947 = vmax.f32 %v5851, 0.0
  %v5948 = vmax.f32 %v5852, 0.0
  %v5949 = vmax.f32 %v5853, 0.0
  %v5950 = vmax.f32 %v5854, 0.0
  %v5951 = vmax.f32 %v5855, 0.0
  %v5952 = vmax.f32 %v5856, 0.0
  %v5953 = vmax.f32 %v5857, 0.0
  %v5954 = vmax.f32 %v5858, 0.0
  %v5955 = vmax.f32 %v5859, 0.0
  %v5956 = vmax.f32 %v5860, 0.0
  %v5957 = vmax.f32 %v5861, 0.0
  %v5958 = vmax.f32 %v5862, 0.0
  %v5959 = vmax.f32 %v5863, 0.0
  %v5960 = vmax.f32 %v5864, 0.0
  %v5961 = vmax.f32 %v5865, 0.0
  %v5962 = vmax.f32 %v5866, 0.0
  %v5963 = vmax.f32 %v5867, 0.0
  %v5964 = vmax.f32 %v5868, 0.0
  %v5965 = vmax.f32 %v5869, 0.0
  %5966 = vst.msk [vmem:[%s20] sm:$0xff] %vm2701, %v5870
  %5967 = vst.msk [vmem:[%s20 + $0x8] sm:$0xff] %vm2701, %v5871
  %5968 = vst.msk [vmem:[%s20 + $0x10] sm:$0xff] %vm2701, %v5872
  %5969 = vst.msk [vmem:[%s20 + $0x18] sm:$0xff] %vm2701, %v5873
  %5970 = vst.msk [vmem:[%s20 + $0x20] sm:$0xff] %vm2701, %v5874
  %5971 = vst.msk [vmem:[%s20 + $0x28] sm:$0xff] %vm2701, %v5875
  %5972 = vst.msk [vmem:[%s20 + $0x30] sm:$0xff] %vm2701, %v5876
  %5973 = vst.msk [vmem:[%s20 + $0x38] sm:$0xff] %vm2701, %v5877
  %5974 = vst.msk [vmem:[%s20 + $0x40] sm:$0xff] %vm2701, %v5878
  %5975 = vst.msk [vmem:[%s20 + $0x48] sm:$0xff] %vm2701, %v5879
  %5976 = vst.msk [vmem:[%s20 + $0x50] sm:$0xff] %vm2701, %v5880
  %5977 = vst.msk [vmem:[%s20 + $0x58] sm:$0xff] %vm2701, %v5881
  %5978 = vst.msk [vmem:[%s20 + $0x60] sm:$0xff] %vm2701, %v5882
  %5979 = vst.msk [vmem:[%s20 + $0x68] sm:$0xff] %vm2701, %v5883
  %5980 = vst.msk [vmem:[%s20 + $0x70] sm:$0xff] %vm2701, %v5884
  %5981 = vst.msk [vmem:[%s20 + $0x78] sm:$0xff] %vm2701, %v5885
  %5982 = vst.msk [vmem:[%s20 + $0x80] sm:$0xff] %vm2701, %v5886
  %5983 = vst.msk [vmem:[%s20 + $0x88] sm:$0xff] %vm2701, %v5887
  %5984 = vst.msk [vmem:[%s20 + $0x90] sm:$0xff] %vm2701, %v5888
  %5985 = vst.msk [vmem:[%s20 + $0x98] sm:$0xff] %vm2701, %v5889
  %5986 = vst.msk [vmem:[%s20 + $0xa0] sm:$0xff] %vm2701, %v5890
  %5987 = vst.msk [vmem:[%s20 + $0xa8] sm:$0xff] %vm2701, %v5891
  %5988 = vst.msk [vmem:[%s20 + $0xb0] sm:$0xff] %vm2701, %v5892
  %5989 = vst.msk [vmem:[%s20 + $0xb8] sm:$0xff] %vm2701, %v5893
  %5990 = vst.msk [vmem:[%s20 + $0xc0] sm:$0xff] %vm2701, %v5894
  %5991 = vst.msk [vmem:[%s20 + $0xc8] sm:$0xff] %vm2701, %v5895
  %5992 = vst.msk [vmem:[%s20 + $0xd0] sm:$0xff] %vm2701, %v5896
  %5993 = vst.msk [vmem:[%s20 + $0xd8] sm:$0xff] %vm2701, %v5897
  %5994 = vst.msk [vmem:[%s20 + $0xe0] sm:$0xff] %vm2701, %v5898
  %5995 = vst.msk [vmem:[%s20 + $0xe8] sm:$0xff] %vm2701, %v5899
  %5996 = vst.msk [vmem:[%s20 + $0xf0] sm:$0xff] %vm2701, %v5900
  %5997 = vst.msk [vmem:[%s20 + $0xf8] sm:$0xff] %vm2701, %v5901
  %5998 = vst.msk [vmem:[%s20 + $0x100] sm:$0xff] %vm2701, %v5902
  %5999 = vst.msk [vmem:[%s20 + $0x108] sm:$0xff] %vm2701, %v5903
  %6000 = vst.msk [vmem:[%s20 + $0x110] sm:$0xff] %vm2701, %v5904
  %6001 = vst.msk [vmem:[%s20 + $0x118] sm:$0xff] %vm2701, %v5905
  %6002 = vst.msk [vmem:[%s20 + $0x120] sm:$0xff] %vm2701, %v5906
  %6003 = vst.msk [vmem:[%s20 + $0x128] sm:$0xff] %vm2701, %v5907
  %6004 = vst.msk [vmem:[%s20 + $0x130] sm:$0xff] %vm2701, %v5908
  %6005 = vst.msk [vmem:[%s20 + $0x138] sm:$0xff] %vm2701, %v5909
  %6006 = vst.msk [vmem:[%s20 + $0x140] sm:$0xff] %vm2701, %v5910
  %6007 = vst.msk [vmem:[%s20 + $0x148] sm:$0xff] %vm2701, %v5911
  %6008 = vst.msk [vmem:[%s20 + $0x150] sm:$0xff] %vm2701, %v5912
  %6009 = vst.msk [vmem:[%s20 + $0x158] sm:$0xff] %vm2701, %v5913
  %6010 = vst.msk [vmem:[%s20 + $0x160] sm:$0xff] %vm2701, %v5914
  %6011 = vst.msk [vmem:[%s20 + $0x168] sm:$0xff] %vm2701, %v5915
  %6012 = vst.msk [vmem:[%s20 + $0x170] sm:$0xff] %vm2701, %v5916
  %6013 = vst.msk [vmem:[%s20 + $0x178] sm:$0xff] %vm2701, %v5917
  %6014 = vst.msk [vmem:[%s20 + $0x180] sm:$0xff] %vm2701, %v5918
  %6015 = vst.msk [vmem:[%s20 + $0x188] sm:$0xff] %vm2701, %v5919
  %6016 = vst.msk [vmem:[%s20 + $0x190] sm:$0xff] %vm2701, %v5920
  %6017 = vst.msk [vmem:[%s20 + $0x198] sm:$0xff] %vm2701, %v5921
  %6018 = vst.msk [vmem:[%s20 + $0x1a0] sm:$0xff] %vm2701, %v5922
  %6019 = vst.msk [vmem:[%s20 + $0x1a8] sm:$0xff] %vm2701, %v5923
  %6020 = vst.msk [vmem:[%s20 + $0x1b0] sm:$0xff] %vm2701, %v5924
  %6021 = vst.msk [vmem:[%s20 + $0x1b8] sm:$0xff] %vm2701, %v5925
  %6022 = vst.msk [vmem:[%s20 + $0x1c0] sm:$0xff] %vm2701, %v5926
  %6023 = vst.msk [vmem:[%s20 + $0x1c8] sm:$0xff] %vm2701, %v5927
  %6024 = vst.msk [vmem:[%s20 + $0x1d0] sm:$0xff] %vm2701, %v5928
  %6025 = vst.msk [vmem:[%s20 + $0x1d8] sm:$0xff] %vm2701, %v5929
  %6026 = vst.msk [vmem:[%s20 + $0x1e0] sm:$0xff] %vm2701, %v5930
  %6027 = vst.msk [vmem:[%s20 + $0x1e8] sm:$0xff] %vm2701, %v5931
  %6028 = vst.msk [vmem:[%s20 + $0x1f0] sm:$0xff] %vm2701, %v5932
  %6029 = vst.msk [vmem:[%s20 + $0x1f8] sm:$0xff] %vm2701, %v5933
  %6030 = vst.msk [vmem:[%s20 + $0x200] sm:$0xff] %vm2701, %v5934
  %6031 = vst.msk [vmem:[%s20 + $0x208] sm:$0xff] %vm2701, %v5935
  %6032 = vst.msk [vmem:[%s20 + $0x210] sm:$0xff] %vm2701, %v5936
  %6033 = vst.msk [vmem:[%s20 + $0x218] sm:$0xff] %vm2701, %v5937
  %6034 = vst.msk [vmem:[%s20 + $0x220] sm:$0xff] %vm2701, %v5938
  %6035 = vst.msk [vmem:[%s20 + $0x228] sm:$0xff] %vm2701, %v5939
  %6036 = vst.msk [vmem:[%s20 + $0x230] sm:$0xff] %vm2701, %v5940
  %6037 = vst.msk [vmem:[%s20 + $0x238] sm:$0xff] %vm2701, %v5941
  %6038 = vst.msk [vmem:[%s20 + $0x240] sm:$0xff] %vm2701, %v5942
  %6039 = vst.msk [vmem:[%s20 + $0x248] sm:$0xff] %vm2701, %v5943
  %6040 = vst.msk [vmem:[%s20 + $0x250] sm:$0xff] %vm2701, %v5944
  %6041 = vst.msk [vmem:[%s20 + $0x258] sm:$0xff] %vm2701, %v5945
  %6042 = vst.msk [vmem:[%s20 + $0x260] sm:$0xff] %vm2701, %v5946
  %6043 = vst.msk [vmem:[%s20 + $0x268] sm:$0xff] %vm2701, %v5947
  %6044 = vst.msk [vmem:[%s20 + $0x270] sm:$0xff] %vm2701, %v5948
  %6045 = vst.msk [vmem:[%s20 + $0x278] sm:$0xff] %vm2701, %v5949
  %6046 = vst.msk [vmem:[%s20 + $0x280] sm:$0xff] %vm2701, %v5950
  %6047 = vst.msk [vmem:[%s20 + $0x288] sm:$0xff] %vm2701, %v5951
  %6048 = vst.msk [vmem:[%s20 + $0x290] sm:$0xff] %vm2701, %v5952
  %6049 = vst.msk [vmem:[%s20 + $0x298] sm:$0xff] %vm2701, %v5953
  %6050 = vst.msk [vmem:[%s20 + $0x2a0] sm:$0xff] %vm2701, %v5954
  %6051 = vst.msk [vmem:[%s20 + $0x2a8] sm:$0xff] %vm2701, %v5955
  %6052 = vst.msk [vmem:[%s20 + $0x2b0] sm:$0xff] %vm2701, %v5956
  %6053 = vst.msk [vmem:[%s20 + $0x2b8] sm:$0xff] %vm2701, %v5957
  %6054 = vst.msk [vmem:[%s20 + $0x2c0] sm:$0xff] %vm2701, %v5958
  %6055 = vst.msk [vmem:[%s20 + $0x2c8] sm:$0xff] %vm2701, %v5959
  %6056 = vst.msk [vmem:[%s20 + $0x2d0] sm:$0xff] %vm2701, %v5960
  %6057 = vst.msk [vmem:[%s20 + $0x2d8] sm:$0xff] %vm2701, %v5961
  %6058 = vst.msk [vmem:[%s20 + $0x2e0] sm:$0xff] %vm2701, %v5962
  %6059 = vst.msk [vmem:[%s20 + $0x2e8] sm:$0xff] %vm2701, %v5963
  %6060 = vst.msk [vmem:[%s20 + $0x2f0] sm:$0xff] %vm2701, %v5964
  %6061 = vst.msk [vmem:[%s20 + $0x2f8] sm:$0xff] %vm2701, %v5965
  %v6062 = vld [vmem:[%s1] sm:$0x3f]
  %v6063 = vperm.slane %v6062, 0
  %v6064 = vperm.slane %v6062, 1
  %v6065 = vperm.slane %v6062, 2
  %v6066 = vperm.slane %v6062, 3
  %v6067 = vperm.slane %v6062, 4
  %v6068 = vperm.slane %v6062, 5
  %vm6069 = vcmp.eq.s32.totalorder %v6063, %v1911
  %vm6070 = vcmp.eq.s32.totalorder %v6064, %v1911
  %vm6071 = vcmp.eq.s32.totalorder %v6065, %v1911
  %vm6072 = vcmp.eq.s32.totalorder %v6066, %v1911
  %vm6073 = vcmp.eq.s32.totalorder %v6067, %v1911
  %vm6074 = vcmp.eq.s32.totalorder %v6068, %v1911
  %vm6075 = vcmp.eq.s32.totalorder %v6063, %v2202
  %vm6076 = vcmp.eq.s32.totalorder %v6064, %v2202
  %vm6077 = vcmp.eq.s32.totalorder %v6065, %v2202
  %vm6078 = vcmp.eq.s32.totalorder %v6066, %v2202
  %vm6079 = vcmp.eq.s32.totalorder %v6067, %v2202
  %vm6080 = vcmp.eq.s32.totalorder %v6068, %v2202
  %vm6081 = vcmp.eq.s32.totalorder %v6063, %v2203
  %vm6082 = vcmp.eq.s32.totalorder %v6064, %v2203
  %vm6083 = vcmp.eq.s32.totalorder %v6065, %v2203
  %vm6084 = vcmp.eq.s32.totalorder %v6066, %v2203
  %vm6085 = vcmp.eq.s32.totalorder %v6067, %v2203
  %vm6086 = vcmp.eq.s32.totalorder %v6068, %v2203
  %vm6087 = vcmp.eq.s32.totalorder %v6063, %v2204
  %vm6088 = vcmp.eq.s32.totalorder %v6064, %v2204
  %vm6089 = vcmp.eq.s32.totalorder %v6065, %v2204
  %vm6090 = vcmp.eq.s32.totalorder %v6066, %v2204
  %vm6091 = vcmp.eq.s32.totalorder %v6067, %v2204
  %vm6092 = vcmp.eq.s32.totalorder %v6068, %v2204
  %vm6093 = vcmp.eq.s32.totalorder %v6063, %v2205
  %vm6094 = vcmp.eq.s32.totalorder %v6064, %v2205
  %vm6095 = vcmp.eq.s32.totalorder %v6065, %v2205
  %vm6096 = vcmp.eq.s32.totalorder %v6066, %v2205
  %vm6097 = vcmp.eq.s32.totalorder %v6067, %v2205
  %vm6098 = vcmp.eq.s32.totalorder %v6068, %v2205
  %vm6099 = vcmp.eq.s32.totalorder %v6063, %v2206
  %vm6100 = vcmp.eq.s32.totalorder %v6064, %v2206
  %vm6101 = vcmp.eq.s32.totalorder %v6065, %v2206
  %vm6102 = vcmp.eq.s32.totalorder %v6066, %v2206
  %vm6103 = vcmp.eq.s32.totalorder %v6067, %v2206
  %vm6104 = vcmp.eq.s32.totalorder %v6068, %v2206
  %vm6105 = vcmp.eq.s32.totalorder %v6063, %v2207
  %vm6106 = vcmp.eq.s32.totalorder %v6064, %v2207
  %vm6107 = vcmp.eq.s32.totalorder %v6065, %v2207
  %vm6108 = vcmp.eq.s32.totalorder %v6066, %v2207
  %vm6109 = vcmp.eq.s32.totalorder %v6067, %v2207
  %vm6110 = vcmp.eq.s32.totalorder %v6068, %v2207
  %vm6111 = vcmp.eq.s32.totalorder %v6063, %v2208
  %vm6112 = vcmp.eq.s32.totalorder %v6064, %v2208
  %vm6113 = vcmp.eq.s32.totalorder %v6065, %v2208
  %vm6114 = vcmp.eq.s32.totalorder %v6066, %v2208
  %vm6115 = vcmp.eq.s32.totalorder %v6067, %v2208
  %vm6116 = vcmp.eq.s32.totalorder %v6068, %v2208
  %vm6117 = vcmp.eq.s32.totalorder %v6063, %v2209
  %vm6118 = vcmp.eq.s32.totalorder %v6064, %v2209
  %vm6119 = vcmp.eq.s32.totalorder %v6065, %v2209
  %vm6120 = vcmp.eq.s32.totalorder %v6066, %v2209
  %vm6121 = vcmp.eq.s32.totalorder %v6067, %v2209
  %vm6122 = vcmp.eq.s32.totalorder %v6068, %v2209
  %vm6123 = vcmp.eq.s32.totalorder %v6063, %v2210
  %vm6124 = vcmp.eq.s32.totalorder %v6064, %v2210
  %vm6125 = vcmp.eq.s32.totalorder %v6065, %v2210
  %vm6126 = vcmp.eq.s32.totalorder %v6066, %v2210
  %vm6127 = vcmp.eq.s32.totalorder %v6067, %v2210
  %vm6128 = vcmp.eq.s32.totalorder %v6068, %v2210
  %vm6129 = vcmp.eq.s32.totalorder %v6063, %v2211
  %vm6130 = vcmp.eq.s32.totalorder %v6064, %v2211
  %vm6131 = vcmp.eq.s32.totalorder %v6065, %v2211
  %vm6132 = vcmp.eq.s32.totalorder %v6066, %v2211
  %vm6133 = vcmp.eq.s32.totalorder %v6067, %v2211
  %vm6134 = vcmp.eq.s32.totalorder %v6068, %v2211
  %vm6135 = vcmp.eq.s32.totalorder %v6063, %v2212
  %vm6136 = vcmp.eq.s32.totalorder %v6064, %v2212
  %vm6137 = vcmp.eq.s32.totalorder %v6065, %v2212
  %vm6138 = vcmp.eq.s32.totalorder %v6066, %v2212
  %vm6139 = vcmp.eq.s32.totalorder %v6067, %v2212
  %vm6140 = vcmp.eq.s32.totalorder %v6068, %v2212
  %vm6141 = vcmp.eq.s32.totalorder %v6063, %v2213
  %vm6142 = vcmp.eq.s32.totalorder %v6064, %v2213
  %vm6143 = vcmp.eq.s32.totalorder %v6065, %v2213
  %vm6144 = vcmp.eq.s32.totalorder %v6066, %v2213
  %vm6145 = vcmp.eq.s32.totalorder %v6067, %v2213
  %vm6146 = vcmp.eq.s32.totalorder %v6068, %v2213
  %vm6147 = vcmp.eq.s32.totalorder %v6063, %v2214
  %vm6148 = vcmp.eq.s32.totalorder %v6064, %v2214
  %vm6149 = vcmp.eq.s32.totalorder %v6065, %v2214
  %vm6150 = vcmp.eq.s32.totalorder %v6066, %v2214
  %vm6151 = vcmp.eq.s32.totalorder %v6067, %v2214
  %vm6152 = vcmp.eq.s32.totalorder %v6068, %v2214
  %vm6153 = vcmp.eq.s32.totalorder %v6063, %v2215
  %vm6154 = vcmp.eq.s32.totalorder %v6064, %v2215
  %vm6155 = vcmp.eq.s32.totalorder %v6065, %v2215
  %vm6156 = vcmp.eq.s32.totalorder %v6066, %v2215
  %vm6157 = vcmp.eq.s32.totalorder %v6067, %v2215
  %vm6158 = vcmp.eq.s32.totalorder %v6068, %v2215
  %vm6159 = vcmp.eq.s32.totalorder %v6063, %v2216
  %vm6160 = vcmp.eq.s32.totalorder %v6064, %v2216
  %vm6161 = vcmp.eq.s32.totalorder %v6065, %v2216
  %vm6162 = vcmp.eq.s32.totalorder %v6066, %v2216
  %vm6163 = vcmp.eq.s32.totalorder %v6067, %v2216
  %vm6164 = vcmp.eq.s32.totalorder %v6068, %v2216
  %vm6165 = vcmp.eq.s32.totalorder %v6063, %v2217
  %vm6166 = vcmp.eq.s32.totalorder %v6064, %v2217
  %vm6167 = vcmp.eq.s32.totalorder %v6065, %v2217
  %vm6168 = vcmp.eq.s32.totalorder %v6066, %v2217
  %vm6169 = vcmp.eq.s32.totalorder %v6067, %v2217
  %vm6170 = vcmp.eq.s32.totalorder %v6068, %v2217
  %vm6171 = vcmp.eq.s32.totalorder %v6063, %v2218
  %vm6172 = vcmp.eq.s32.totalorder %v6064, %v2218
  %vm6173 = vcmp.eq.s32.totalorder %v6065, %v2218
  %vm6174 = vcmp.eq.s32.totalorder %v6066, %v2218
  %vm6175 = vcmp.eq.s32.totalorder %v6067, %v2218
  %vm6176 = vcmp.eq.s32.totalorder %v6068, %v2218
  %vm6177 = vcmp.eq.s32.totalorder %v6063, %v2219
  %vm6178 = vcmp.eq.s32.totalorder %v6064, %v2219
  %vm6179 = vcmp.eq.s32.totalorder %v6065, %v2219
  %vm6180 = vcmp.eq.s32.totalorder %v6066, %v2219
  %vm6181 = vcmp.eq.s32.totalorder %v6067, %v2219
  %vm6182 = vcmp.eq.s32.totalorder %v6068, %v2219
  %vm6183 = vcmp.eq.s32.totalorder %v6063, %v2220
  %vm6184 = vcmp.eq.s32.totalorder %v6064, %v2220
  %vm6185 = vcmp.eq.s32.totalorder %v6065, %v2220
  %vm6186 = vcmp.eq.s32.totalorder %v6066, %v2220
  %vm6187 = vcmp.eq.s32.totalorder %v6067, %v2220
  %vm6188 = vcmp.eq.s32.totalorder %v6068, %v2220
  %vm6189 = vcmp.eq.s32.totalorder %v6063, %v2221
  %vm6190 = vcmp.eq.s32.totalorder %v6064, %v2221
  %vm6191 = vcmp.eq.s32.totalorder %v6065, %v2221
  %vm6192 = vcmp.eq.s32.totalorder %v6066, %v2221
  %vm6193 = vcmp.eq.s32.totalorder %v6067, %v2221
  %vm6194 = vcmp.eq.s32.totalorder %v6068, %v2221
  %vm6195 = vcmp.eq.s32.totalorder %v6063, %v2222
  %vm6196 = vcmp.eq.s32.totalorder %v6064, %v2222
  %vm6197 = vcmp.eq.s32.totalorder %v6065, %v2222
  %vm6198 = vcmp.eq.s32.totalorder %v6066, %v2222
  %vm6199 = vcmp.eq.s32.totalorder %v6067, %v2222
  %vm6200 = vcmp.eq.s32.totalorder %v6068, %v2222
  %vm6201 = vcmp.eq.s32.totalorder %v6063, %v2223
  %vm6202 = vcmp.eq.s32.totalorder %v6064, %v2223
  %vm6203 = vcmp.eq.s32.totalorder %v6065, %v2223
  %vm6204 = vcmp.eq.s32.totalorder %v6066, %v2223
  %vm6205 = vcmp.eq.s32.totalorder %v6067, %v2223
  %vm6206 = vcmp.eq.s32.totalorder %v6068, %v2223
  %vm6207 = vcmp.eq.s32.totalorder %v6063, %v2224
  %vm6208 = vcmp.eq.s32.totalorder %v6064, %v2224
  %vm6209 = vcmp.eq.s32.totalorder %v6065, %v2224
  %vm6210 = vcmp.eq.s32.totalorder %v6066, %v2224
  %vm6211 = vcmp.eq.s32.totalorder %v6067, %v2224
  %vm6212 = vcmp.eq.s32.totalorder %v6068, %v2224
  %vm6213 = vcmp.eq.s32.totalorder %v6063, %v2225
  %vm6214 = vcmp.eq.s32.totalorder %v6064, %v2225
  %vm6215 = vcmp.eq.s32.totalorder %v6065, %v2225
  %vm6216 = vcmp.eq.s32.totalorder %v6066, %v2225
  %vm6217 = vcmp.eq.s32.totalorder %v6067, %v2225
  %vm6218 = vcmp.eq.s32.totalorder %v6068, %v2225
  %vm6219 = vcmp.eq.s32.totalorder %v6063, %v2226
  %vm6220 = vcmp.eq.s32.totalorder %v6064, %v2226
  %vm6221 = vcmp.eq.s32.totalorder %v6065, %v2226
  %vm6222 = vcmp.eq.s32.totalorder %v6066, %v2226
  %vm6223 = vcmp.eq.s32.totalorder %v6067, %v2226
  %vm6224 = vcmp.eq.s32.totalorder %v6068, %v2226
  %vm6225 = vcmp.eq.s32.totalorder %v6063, %v2227
  %vm6226 = vcmp.eq.s32.totalorder %v6064, %v2227
  %vm6227 = vcmp.eq.s32.totalorder %v6065, %v2227
  %vm6228 = vcmp.eq.s32.totalorder %v6066, %v2227
  %vm6229 = vcmp.eq.s32.totalorder %v6067, %v2227
  %vm6230 = vcmp.eq.s32.totalorder %v6068, %v2227
  %vm6231 = vcmp.eq.s32.totalorder %v6063, %v2228
  %vm6232 = vcmp.eq.s32.totalorder %v6064, %v2228
  %vm6233 = vcmp.eq.s32.totalorder %v6065, %v2228
  %vm6234 = vcmp.eq.s32.totalorder %v6066, %v2228
  %vm6235 = vcmp.eq.s32.totalorder %v6067, %v2228
  %vm6236 = vcmp.eq.s32.totalorder %v6068, %v2228
  %vm6237 = vcmp.eq.s32.totalorder %v6063, %v2229
  %vm6238 = vcmp.eq.s32.totalorder %v6064, %v2229
  %vm6239 = vcmp.eq.s32.totalorder %v6065, %v2229
  %vm6240 = vcmp.eq.s32.totalorder %v6066, %v2229
  %vm6241 = vcmp.eq.s32.totalorder %v6067, %v2229
  %vm6242 = vcmp.eq.s32.totalorder %v6068, %v2229
  %vm6243 = vcmp.eq.s32.totalorder %v6063, %v2230
  %vm6244 = vcmp.eq.s32.totalorder %v6064, %v2230
  %vm6245 = vcmp.eq.s32.totalorder %v6065, %v2230
  %vm6246 = vcmp.eq.s32.totalorder %v6066, %v2230
  %vm6247 = vcmp.eq.s32.totalorder %v6067, %v2230
  %vm6248 = vcmp.eq.s32.totalorder %v6068, %v2230
  %vm6249 = vcmp.eq.s32.totalorder %v6063, %v2231
  %vm6250 = vcmp.eq.s32.totalorder %v6064, %v2231
  %vm6251 = vcmp.eq.s32.totalorder %v6065, %v2231
  %vm6252 = vcmp.eq.s32.totalorder %v6066, %v2231
  %vm6253 = vcmp.eq.s32.totalorder %v6067, %v2231
  %vm6254 = vcmp.eq.s32.totalorder %v6068, %v2231
  %vm6255 = vcmp.eq.s32.totalorder %v6063, %v2232
  %vm6256 = vcmp.eq.s32.totalorder %v6064, %v2232
  %vm6257 = vcmp.eq.s32.totalorder %v6065, %v2232
  %vm6258 = vcmp.eq.s32.totalorder %v6066, %v2232
  %vm6259 = vcmp.eq.s32.totalorder %v6067, %v2232
  %vm6260 = vcmp.eq.s32.totalorder %v6068, %v2232
  %v6261 = vsel %vm6069, 1, 0
  %v6262 = vsel %vm6070, 1, 0
  %v6263 = vsel %vm6071, 1, 0
  %v6264 = vsel %vm6072, 1, 0
  %v6265 = vsel %vm6073, 1, 0
  %v6266 = vsel %vm6074, 1, 0
  %v6267 = vsel %vm6075, 1, 0
  %v6268 = vsel %vm6076, 1, 0
  %v6269 = vsel %vm6077, 1, 0
  %v6270 = vsel %vm6078, 1, 0
  %v6271 = vsel %vm6079, 1, 0
  %v6272 = vsel %vm6080, 1, 0
  %v6273 = vsel %vm6081, 1, 0
  %v6274 = vsel %vm6082, 1, 0
  %v6275 = vsel %vm6083, 1, 0
  %v6276 = vsel %vm6084, 1, 0
  %v6277 = vsel %vm6085, 1, 0
  %v6278 = vsel %vm6086, 1, 0
  %v6279 = vsel %vm6087, 1, 0
  %v6280 = vsel %vm6088, 1, 0
  %v6281 = vsel %vm6089, 1, 0
  %v6282 = vsel %vm6090, 1, 0
  %v6283 = vsel %vm6091, 1, 0
  %v6284 = vsel %vm6092, 1, 0
  %v6285 = vsel %vm6093, 1, 0
  %v6286 = vsel %vm6094, 1, 0
  %v6287 = vsel %vm6095, 1, 0
  %v6288 = vsel %vm6096, 1, 0
  %v6289 = vsel %vm6097, 1, 0
  %v6290 = vsel %vm6098, 1, 0
  %v6291 = vsel %vm6099, 1, 0
  %v6292 = vsel %vm6100, 1, 0
  %v6293 = vsel %vm6101, 1, 0
  %v6294 = vsel %vm6102, 1, 0
  %v6295 = vsel %vm6103, 1, 0
  %v6296 = vsel %vm6104, 1, 0
  %v6297 = vsel %vm6105, 1, 0
  %v6298 = vsel %vm6106, 1, 0
  %v6299 = vsel %vm6107, 1, 0
  %v6300 = vsel %vm6108, 1, 0
  %v6301 = vsel %vm6109, 1, 0
  %v6302 = vsel %vm6110, 1, 0
  %v6303 = vsel %vm6111, 1, 0
  %v6304 = vsel %vm6112, 1, 0
  %v6305 = vsel %vm6113, 1, 0
  %v6306 = vsel %vm6114, 1, 0
  %v6307 = vsel %vm6115, 1, 0
  %v6308 = vsel %vm6116, 1, 0
  %v6309 = vsel %vm6117, 1, 0
  %v6310 = vsel %vm6118, 1, 0
  %v6311 = vsel %vm6119, 1, 0
  %v6312 = vsel %vm6120, 1, 0
  %v6313 = vsel %vm6121, 1, 0
  %v6314 = vsel %vm6122, 1, 0
  %v6315 = vsel %vm6123, 1, 0
  %v6316 = vsel %vm6124, 1, 0
  %v6317 = vsel %vm6125, 1, 0
  %v6318 = vsel %vm6126, 1, 0
  %v6319 = vsel %vm6127, 1, 0
  %v6320 = vsel %vm6128, 1, 0
  %v6321 = vsel %vm6129, 1, 0
  %v6322 = vsel %vm6130, 1, 0
  %v6323 = vsel %vm6131, 1, 0
  %v6324 = vsel %vm6132, 1, 0
  %v6325 = vsel %vm6133, 1, 0
  %v6326 = vsel %vm6134, 1, 0
  %v6327 = vsel %vm6135, 1, 0
  %v6328 = vsel %vm6136, 1, 0
  %v6329 = vsel %vm6137, 1, 0
  %v6330 = vsel %vm6138, 1, 0
  %v6331 = vsel %vm6139, 1, 0
  %v6332 = vsel %vm6140, 1, 0
  %v6333 = vsel %vm6141, 1, 0
  %v6334 = vsel %vm6142, 1, 0
  %v6335 = vsel %vm6143, 1, 0
  %v6336 = vsel %vm6144, 1, 0
  %v6337 = vsel %vm6145, 1, 0
  %v6338 = vsel %vm6146, 1, 0
  %v6339 = vsel %vm6147, 1, 0
  %v6340 = vsel %vm6148, 1, 0
  %v6341 = vsel %vm6149, 1, 0
  %v6342 = vsel %vm6150, 1, 0
  %v6343 = vsel %vm6151, 1, 0
  %v6344 = vsel %vm6152, 1, 0
  %v6345 = vsel %vm6153, 1, 0
  %v6346 = vsel %vm6154, 1, 0
  %v6347 = vsel %vm6155, 1, 0
  %v6348 = vsel %vm6156, 1, 0
  %v6349 = vsel %vm6157, 1, 0
  %v6350 = vsel %vm6158, 1, 0
  %v6351 = vsel %vm6159, 1, 0
  %v6352 = vsel %vm6160, 1, 0
  %v6353 = vsel %vm6161, 1, 0
  %v6354 = vsel %vm6162, 1, 0
  %v6355 = vsel %vm6163, 1, 0
  %v6356 = vsel %vm6164, 1, 0
  %v6357 = vsel %vm6165, 1, 0
  %v6358 = vsel %vm6166, 1, 0
  %v6359 = vsel %vm6167, 1, 0
  %v6360 = vsel %vm6168, 1, 0
  %v6361 = vsel %vm6169, 1, 0
  %v6362 = vsel %vm6170, 1, 0
  %v6363 = vsel %vm6171, 1, 0
  %v6364 = vsel %vm6172, 1, 0
  %v6365 = vsel %vm6173, 1, 0
  %v6366 = vsel %vm6174, 1, 0
  %v6367 = vsel %vm6175, 1, 0
  %v6368 = vsel %vm6176, 1, 0
  %v6369 = vsel %vm6177, 1, 0
  %v6370 = vsel %vm6178, 1, 0
  %v6371 = vsel %vm6179, 1, 0
  %v6372 = vsel %vm6180, 1, 0
  %v6373 = vsel %vm6181, 1, 0
  %v6374 = vsel %vm6182, 1, 0
  %v6375 = vsel %vm6183, 1, 0
  %v6376 = vsel %vm6184, 1, 0
  %v6377 = vsel %vm6185, 1, 0
  %v6378 = vsel %vm6186, 1, 0
  %v6379 = vsel %vm6187, 1, 0
  %v6380 = vsel %vm6188, 1, 0
  %v6381 = vsel %vm6189, 1, 0
  %v6382 = vsel %vm6190, 1, 0
  %v6383 = vsel %vm6191, 1, 0
  %v6384 = vsel %vm6192, 1, 0
  %v6385 = vsel %vm6193, 1, 0
  %v6386 = vsel %vm6194, 1, 0
  %v6387 = vsel %vm6195, 1, 0
  %v6388 = vsel %vm6196, 1, 0
  %v6389 = vsel %vm6197, 1, 0
  %v6390 = vsel %vm6198, 1, 0
  %v6391 = vsel %vm6199, 1, 0
  %v6392 = vsel %vm6200, 1, 0
  %v6393 = vsel %vm6201, 1, 0
  %v6394 = vsel %vm6202, 1, 0
  %v6395 = vsel %vm6203, 1, 0
  %v6396 = vsel %vm6204, 1, 0
  %v6397 = vsel %vm6205, 1, 0
  %v6398 = vsel %vm6206, 1, 0
  %v6399 = vsel %vm6207, 1, 0
  %v6400 = vsel %vm6208, 1, 0
  %v6401 = vsel %vm6209, 1, 0
  %v6402 = vsel %vm6210, 1, 0
  %v6403 = vsel %vm6211, 1, 0
  %v6404 = vsel %vm6212, 1, 0
  %v6405 = vsel %vm6213, 1, 0
  %v6406 = vsel %vm6214, 1, 0
  %v6407 = vsel %vm6215, 1, 0
  %v6408 = vsel %vm6216, 1, 0
  %v6409 = vsel %vm6217, 1, 0
  %v6410 = vsel %vm6218, 1, 0
  %v6411 = vsel %vm6219, 1, 0
  %v6412 = vsel %vm6220, 1, 0
  %v6413 = vsel %vm6221, 1, 0
  %v6414 = vsel %vm6222, 1, 0
  %v6415 = vsel %vm6223, 1, 0
  %v6416 = vsel %vm6224, 1, 0
  %v6417 = vsel %vm6225, 1, 0
  %v6418 = vsel %vm6226, 1, 0
  %v6419 = vsel %vm6227, 1, 0
  %v6420 = vsel %vm6228, 1, 0
  %v6421 = vsel %vm6229, 1, 0
  %v6422 = vsel %vm6230, 1, 0
  %v6423 = vsel %vm6231, 1, 0
  %v6424 = vsel %vm6232, 1, 0
  %v6425 = vsel %vm6233, 1, 0
  %v6426 = vsel %vm6234, 1, 0
  %v6427 = vsel %vm6235, 1, 0
  %v6428 = vsel %vm6236, 1, 0
  %v6429 = vsel %vm6237, 1, 0
  %v6430 = vsel %vm6238, 1, 0
  %v6431 = vsel %vm6239, 1, 0
  %v6432 = vsel %vm6240, 1, 0
  %v6433 = vsel %vm6241, 1, 0
  %v6434 = vsel %vm6242, 1, 0
  %v6435 = vsel %vm6243, 1, 0
  %v6436 = vsel %vm6244, 1, 0
  %v6437 = vsel %vm6245, 1, 0
  %v6438 = vsel %vm6246, 1, 0
  %v6439 = vsel %vm6247, 1, 0
  %v6440 = vsel %vm6248, 1, 0
  %v6441 = vsel %vm6249, 1, 0
  %v6442 = vsel %vm6250, 1, 0
  %v6443 = vsel %vm6251, 1, 0
  %v6444 = vsel %vm6252, 1, 0
  %v6445 = vsel %vm6253, 1, 0
  %v6446 = vsel %vm6254, 1, 0
  %v6447 = vsel %vm6255, 1, 0
  %v6448 = vsel %vm6256, 1, 0
  %v6449 = vsel %vm6257, 1, 0
  %v6450 = vsel %vm6258, 1, 0
  %v6451 = vsel %vm6259, 1, 0
  %v6452 = vsel %vm6260, 1, 0
  %v6453 = vcvt.s32.f32 %v6261
  %v6454 = vcvt.s32.f32 %v6262
  %v6455 = vcvt.s32.f32 %v6263
  %v6456 = vcvt.s32.f32 %v6264
  %v6457 = vcvt.s32.f32 %v6265
  %v6458 = vcvt.s32.f32 %v6266
  %v6459 = vcvt.s32.f32 %v6267
  %v6460 = vcvt.s32.f32 %v6268
  %v6461 = vcvt.s32.f32 %v6269
  %v6462 = vcvt.s32.f32 %v6270
  %v6463 = vcvt.s32.f32 %v6271
  %v6464 = vcvt.s32.f32 %v6272
  %v6465 = vcvt.s32.f32 %v6273
  %v6466 = vcvt.s32.f32 %v6274
  %v6467 = vcvt.s32.f32 %v6275
  %v6468 = vcvt.s32.f32 %v6276
  %v6469 = vcvt.s32.f32 %v6277
  %v6470 = vcvt.s32.f32 %v6278
  %v6471 = vcvt.s32.f32 %v6279
  %v6472 = vcvt.s32.f32 %v6280
  %v6473 = vcvt.s32.f32 %v6281
  %v6474 = vcvt.s32.f32 %v6282
  %v6475 = vcvt.s32.f32 %v6283
  %v6476 = vcvt.s32.f32 %v6284
  %v6477 = vcvt.s32.f32 %v6285
  %v6478 = vcvt.s32.f32 %v6286
  %v6479 = vcvt.s32.f32 %v6287
  %v6480 = vcvt.s32.f32 %v6288
  %v6481 = vcvt.s32.f32 %v6289
  %v6482 = vcvt.s32.f32 %v6290
  %v6483 = vcvt.s32.f32 %v6291
  %v6484 = vcvt.s32.f32 %v6292
  %v6485 = vcvt.s32.f32 %v6293
  %v6486 = vcvt.s32.f32 %v6294
  %v6487 = vcvt.s32.f32 %v6295
  %v6488 = vcvt.s32.f32 %v6296
  %v6489 = vcvt.s32.f32 %v6297
  %v6490 = vcvt.s32.f32 %v6298
  %v6491 = vcvt.s32.f32 %v6299
  %v6492 = vcvt.s32.f32 %v6300
  %v6493 = vcvt.s32.f32 %v6301
  %v6494 = vcvt.s32.f32 %v6302
  %v6495 = vcvt.s32.f32 %v6303
  %v6496 = vcvt.s32.f32 %v6304
  %v6497 = vcvt.s32.f32 %v6305
  %v6498 = vcvt.s32.f32 %v6306
  %v6499 = vcvt.s32.f32 %v6307
  %v6500 = vcvt.s32.f32 %v6308
  %v6501 = vcvt.s32.f32 %v6309
  %v6502 = vcvt.s32.f32 %v6310
  %v6503 = vcvt.s32.f32 %v6311
  %v6504 = vcvt.s32.f32 %v6312
  %v6505 = vcvt.s32.f32 %v6313
  %v6506 = vcvt.s32.f32 %v6314
  %v6507 = vcvt.s32.f32 %v6315
  %v6508 = vcvt.s32.f32 %v6316
  %v6509 = vcvt.s32.f32 %v6317
  %v6510 = vcvt.s32.f32 %v6318
  %v6511 = vcvt.s32.f32 %v6319
  %v6512 = vcvt.s32.f32 %v6320
  %v6513 = vcvt.s32.f32 %v6321
  %v6514 = vcvt.s32.f32 %v6322
  %v6515 = vcvt.s32.f32 %v6323
  %v6516 = vcvt.s32.f32 %v6324
  %v6517 = vcvt.s32.f32 %v6325
  %v6518 = vcvt.s32.f32 %v6326
  %v6519 = vcvt.s32.f32 %v6327
  %v6520 = vcvt.s32.f32 %v6328
  %v6521 = vcvt.s32.f32 %v6329
  %v6522 = vcvt.s32.f32 %v6330
  %v6523 = vcvt.s32.f32 %v6331
  %v6524 = vcvt.s32.f32 %v6332
  %v6525 = vcvt.s32.f32 %v6333
  %v6526 = vcvt.s32.f32 %v6334
  %v6527 = vcvt.s32.f32 %v6335
  %v6528 = vcvt.s32.f32 %v6336
  %v6529 = vcvt.s32.f32 %v6337
  %v6530 = vcvt.s32.f32 %v6338
  %v6531 = vcvt.s32.f32 %v6339
  %v6532 = vcvt.s32.f32 %v6340
  %v6533 = vcvt.s32.f32 %v6341
  %v6534 = vcvt.s32.f32 %v6342
  %v6535 = vcvt.s32.f32 %v6343
  %v6536 = vcvt.s32.f32 %v6344
  %v6537 = vcvt.s32.f32 %v6345
  %v6538 = vcvt.s32.f32 %v6346
  %v6539 = vcvt.s32.f32 %v6347
  %v6540 = vcvt.s32.f32 %v6348
  %v6541 = vcvt.s32.f32 %v6349
  %v6542 = vcvt.s32.f32 %v6350
  %v6543 = vcvt.s32.f32 %v6351
  %v6544 = vcvt.s32.f32 %v6352
  %v6545 = vcvt.s32.f32 %v6353
  %v6546 = vcvt.s32.f32 %v6354
  %v6547 = vcvt.s32.f32 %v6355
  %v6548 = vcvt.s32.f32 %v6356
  %v6549 = vcvt.s32.f32 %v6357
  %v6550 = vcvt.s32.f32 %v6358
  %v6551 = vcvt.s32.f32 %v6359
  %v6552 = vcvt.s32.f32 %v6360
  %v6553 = vcvt.s32.f32 %v6361
  %v6554 = vcvt.s32.f32 %v6362
  %v6555 = vcvt.s32.f32 %v6363
  %v6556 = vcvt.s32.f32 %v6364
  %v6557 = vcvt.s32.f32 %v6365
  %v6558 = vcvt.s32.f32 %v6366
  %v6559 = vcvt.s32.f32 %v6367
  %v6560 = vcvt.s32.f32 %v6368
  %v6561 = vcvt.s32.f32 %v6369
  %v6562 = vcvt.s32.f32 %v6370
  %v6563 = vcvt.s32.f32 %v6371
  %v6564 = vcvt.s32.f32 %v6372
  %v6565 = vcvt.s32.f32 %v6373
  %v6566 = vcvt.s32.f32 %v6374
  %v6567 = vcvt.s32.f32 %v6375
  %v6568 = vcvt.s32.f32 %v6376
  %v6569 = vcvt.s32.f32 %v6377
  %v6570 = vcvt.s32.f32 %v6378
  %v6571 = vcvt.s32.f32 %v6379
  %v6572 = vcvt.s32.f32 %v6380
  %v6573 = vcvt.s32.f32 %v6381
  %v6574 = vcvt.s32.f32 %v6382
  %v6575 = vcvt.s32.f32 %v6383
  %v6576 = vcvt.s32.f32 %v6384
  %v6577 = vcvt.s32.f32 %v6385
  %v6578 = vcvt.s32.f32 %v6386
  %v6579 = vcvt.s32.f32 %v6387
  %v6580 = vcvt.s32.f32 %v6388
  %v6581 = vcvt.s32.f32 %v6389
  %v6582 = vcvt.s32.f32 %v6390
  %v6583 = vcvt.s32.f32 %v6391
  %v6584 = vcvt.s32.f32 %v6392
  %v6585 = vcvt.s32.f32 %v6393
  %v6586 = vcvt.s32.f32 %v6394
  %v6587 = vcvt.s32.f32 %v6395
  %v6588 = vcvt.s32.f32 %v6396
  %v6589 = vcvt.s32.f32 %v6397
  %v6590 = vcvt.s32.f32 %v6398
  %v6591 = vcvt.s32.f32 %v6399
  %v6592 = vcvt.s32.f32 %v6400
  %v6593 = vcvt.s32.f32 %v6401
  %v6594 = vcvt.s32.f32 %v6402
  %v6595 = vcvt.s32.f32 %v6403
  %v6596 = vcvt.s32.f32 %v6404
  %v6597 = vcvt.s32.f32 %v6405
  %v6598 = vcvt.s32.f32 %v6406
  %v6599 = vcvt.s32.f32 %v6407
  %v6600 = vcvt.s32.f32 %v6408
  %v6601 = vcvt.s32.f32 %v6409
  %v6602 = vcvt.s32.f32 %v6410
  %v6603 = vcvt.s32.f32 %v6411
  %v6604 = vcvt.s32.f32 %v6412
  %v6605 = vcvt.s32.f32 %v6413
  %v6606 = vcvt.s32.f32 %v6414
  %v6607 = vcvt.s32.f32 %v6415
  %v6608 = vcvt.s32.f32 %v6416
  %v6609 = vcvt.s32.f32 %v6417
  %v6610 = vcvt.s32.f32 %v6418
  %v6611 = vcvt.s32.f32 %v6419
  %v6612 = vcvt.s32.f32 %v6420
  %v6613 = vcvt.s32.f32 %v6421
  %v6614 = vcvt.s32.f32 %v6422
  %v6615 = vcvt.s32.f32 %v6423
  %v6616 = vcvt.s32.f32 %v6424
  %v6617 = vcvt.s32.f32 %v6425
  %v6618 = vcvt.s32.f32 %v6426
  %v6619 = vcvt.s32.f32 %v6427
  %v6620 = vcvt.s32.f32 %v6428
  %v6621 = vcvt.s32.f32 %v6429
  %v6622 = vcvt.s32.f32 %v6430
  %v6623 = vcvt.s32.f32 %v6431
  %v6624 = vcvt.s32.f32 %v6432
  %v6625 = vcvt.s32.f32 %v6433
  %v6626 = vcvt.s32.f32 %v6434
  %v6627 = vcvt.s32.f32 %v6435
  %v6628 = vcvt.s32.f32 %v6436
  %v6629 = vcvt.s32.f32 %v6437
  %v6630 = vcvt.s32.f32 %v6438
  %v6631 = vcvt.s32.f32 %v6439
  %v6632 = vcvt.s32.f32 %v6440
  %v6633 = vcvt.s32.f32 %v6441
  %v6634 = vcvt.s32.f32 %v6442
  %v6635 = vcvt.s32.f32 %v6443
  %v6636 = vcvt.s32.f32 %v6444
  %v6637 = vcvt.s32.f32 %v6445
  %v6638 = vcvt.s32.f32 %v6446
  %v6639 = vcvt.s32.f32 %v6447
  %v6640 = vcvt.s32.f32 %v6448
  %v6641 = vcvt.s32.f32 %v6449
  %v6642 = vcvt.s32.f32 %v6450
  %v6643 = vcvt.s32.f32 %v6451
  %v6644 = vcvt.s32.f32 %v6452
  %v6645 = vpack.c.bf16 %v6459, %v6453
  %v6646 = vpack.c.bf16 %v6460, %v6454
  %v6647 = vpack.c.bf16 %v6461, %v6455
  %v6648 = vpack.c.bf16 %v6462, %v6456
  %v6649 = vpack.c.bf16 %v6463, %v6457
  %v6650 = vpack.c.bf16 %v6464, %v6458
  %v6651 = vpack.c.bf16 %v6471, %v6465
  %v6652 = vpack.c.bf16 %v6472, %v6466
  %v6653 = vpack.c.bf16 %v6473, %v6467
  %v6654 = vpack.c.bf16 %v6474, %v6468
  %v6655 = vpack.c.bf16 %v6475, %v6469
  %v6656 = vpack.c.bf16 %v6476, %v6470
  %v6657 = vpack.c.bf16 %v6483, %v6477
  %v6658 = vpack.c.bf16 %v6484, %v6478
  %v6659 = vpack.c.bf16 %v6485, %v6479
  %v6660 = vpack.c.bf16 %v6486, %v6480
  %v6661 = vpack.c.bf16 %v6487, %v6481
  %v6662 = vpack.c.bf16 %v6488, %v6482
  %v6663 = vpack.c.bf16 %v6495, %v6489
  %v6664 = vpack.c.bf16 %v6496, %v6490
  %v6665 = vpack.c.bf16 %v6497, %v6491
  %v6666 = vpack.c.bf16 %v6498, %v6492
  %v6667 = vpack.c.bf16 %v6499, %v6493
  %v6668 = vpack.c.bf16 %v6500, %v6494
  %v6669 = vpack.c.bf16 %v6507, %v6501
  %v6670 = vpack.c.bf16 %v6508, %v6502
  %v6671 = vpack.c.bf16 %v6509, %v6503
  %v6672 = vpack.c.bf16 %v6510, %v6504
  %v6673 = vpack.c.bf16 %v6511, %v6505
  %v6674 = vpack.c.bf16 %v6512, %v6506
  %v6675 = vpack.c.bf16 %v6519, %v6513
  %v6676 = vpack.c.bf16 %v6520, %v6514
  %v6677 = vpack.c.bf16 %v6521, %v6515
  %v6678 = vpack.c.bf16 %v6522, %v6516
  %v6679 = vpack.c.bf16 %v6523, %v6517
  %v6680 = vpack.c.bf16 %v6524, %v6518
  %v6681 = vpack.c.bf16 %v6531, %v6525
  %v6682 = vpack.c.bf16 %v6532, %v6526
  %v6683 = vpack.c.bf16 %v6533, %v6527
  %v6684 = vpack.c.bf16 %v6534, %v6528
  %v6685 = vpack.c.bf16 %v6535, %v6529
  %v6686 = vpack.c.bf16 %v6536, %v6530
  %v6687 = vpack.c.bf16 %v6543, %v6537
  %v6688 = vpack.c.bf16 %v6544, %v6538
  %v6689 = vpack.c.bf16 %v6545, %v6539
  %v6690 = vpack.c.bf16 %v6546, %v6540
  %v6691 = vpack.c.bf16 %v6547, %v6541
  %v6692 = vpack.c.bf16 %v6548, %v6542
  %v6693 = vpack.c.bf16 %v6555, %v6549
  %v6694 = vpack.c.bf16 %v6556, %v6550
  %v6695 = vpack.c.bf16 %v6557, %v6551
  %v6696 = vpack.c.bf16 %v6558, %v6552
  %v6697 = vpack.c.bf16 %v6559, %v6553
  %v6698 = vpack.c.bf16 %v6560, %v6554
  %v6699 = vpack.c.bf16 %v6567, %v6561
  %v6700 = vpack.c.bf16 %v6568, %v6562
  %v6701 = vpack.c.bf16 %v6569, %v6563
  %v6702 = vpack.c.bf16 %v6570, %v6564
  %v6703 = vpack.c.bf16 %v6571, %v6565
  %v6704 = vpack.c.bf16 %v6572, %v6566
  %v6705 = vpack.c.bf16 %v6579, %v6573
  %v6706 = vpack.c.bf16 %v6580, %v6574
  %v6707 = vpack.c.bf16 %v6581, %v6575
  %v6708 = vpack.c.bf16 %v6582, %v6576
  %v6709 = vpack.c.bf16 %v6583, %v6577
  %v6710 = vpack.c.bf16 %v6584, %v6578
  %v6711 = vpack.c.bf16 %v6591, %v6585
  %v6712 = vpack.c.bf16 %v6592, %v6586
  %v6713 = vpack.c.bf16 %v6593, %v6587
  %v6714 = vpack.c.bf16 %v6594, %v6588
  %v6715 = vpack.c.bf16 %v6595, %v6589
  %v6716 = vpack.c.bf16 %v6596, %v6590
  %v6717 = vpack.c.bf16 %v6603, %v6597
  %v6718 = vpack.c.bf16 %v6604, %v6598
  %v6719 = vpack.c.bf16 %v6605, %v6599
  %v6720 = vpack.c.bf16 %v6606, %v6600
  %v6721 = vpack.c.bf16 %v6607, %v6601
  %v6722 = vpack.c.bf16 %v6608, %v6602
  %v6723 = vpack.c.bf16 %v6615, %v6609
  %v6724 = vpack.c.bf16 %v6616, %v6610
  %v6725 = vpack.c.bf16 %v6617, %v6611
  %v6726 = vpack.c.bf16 %v6618, %v6612
  %v6727 = vpack.c.bf16 %v6619, %v6613
  %v6728 = vpack.c.bf16 %v6620, %v6614
  %v6729 = vpack.c.bf16 %v6627, %v6621
  %v6730 = vpack.c.bf16 %v6628, %v6622
  %v6731 = vpack.c.bf16 %v6629, %v6623
  %v6732 = vpack.c.bf16 %v6630, %v6624
  %v6733 = vpack.c.bf16 %v6631, %v6625
  %v6734 = vpack.c.bf16 %v6632, %v6626
  %v6735 = vpack.c.bf16 %v6639, %v6633
  %v6736 = vpack.c.bf16 %v6640, %v6634
  %v6737 = vpack.c.bf16 %v6641, %v6635
  %v6738 = vpack.c.bf16 %v6642, %v6636
  %v6739 = vpack.c.bf16 %v6643, %v6637
  %v6740 = vpack.c.bf16 %v6644, %v6638
  %v6741 = vpack.c.bf16 %v5871, %v5870
  %v6742 = vpack.c.bf16 %v5873, %v5872
  %v6743 = vpack.c.bf16 %v5875, %v5874
  %v6744 = vpack.c.bf16 %v5877, %v5876
  %v6745 = vpack.c.bf16 %v5879, %v5878
  %v6746 = vpack.c.bf16 %v5881, %v5880
  %v6747 = vpack.c.bf16 %v5883, %v5882
  %v6748 = vpack.c.bf16 %v5885, %v5884
  %v6749 = vpack.c.bf16 %v5887, %v5886
  %v6750 = vpack.c.bf16 %v5889, %v5888
  %v6751 = vpack.c.bf16 %v5891, %v5890
  %v6752 = vpack.c.bf16 %v5893, %v5892
  %v6753 = vpack.c.bf16 %v5895, %v5894
  %v6754 = vpack.c.bf16 %v5897, %v5896
  %v6755 = vpack.c.bf16 %v5899, %v5898
  %v6756 = vpack.c.bf16 %v5901, %v5900
  %v6757 = vpack.c.bf16 %v5903, %v5902
  %v6758 = vpack.c.bf16 %v5905, %v5904
  %v6759 = vpack.c.bf16 %v5907, %v5906
  %v6760 = vpack.c.bf16 %v5909, %v5908
  %v6761 = vpack.c.bf16 %v5911, %v5910
  %v6762 = vpack.c.bf16 %v5913, %v5912
  %v6763 = vpack.c.bf16 %v5915, %v5914
  %v6764 = vpack.c.bf16 %v5917, %v5916
  %v6765 = vpack.c.bf16 %v5919, %v5918
  %v6766 = vpack.c.bf16 %v5921, %v5920
  %v6767 = vpack.c.bf16 %v5923, %v5922
  %v6768 = vpack.c.bf16 %v5925, %v5924
  %v6769 = vpack.c.bf16 %v5927, %v5926
  %v6770 = vpack.c.bf16 %v5929, %v5928
  %v6771 = vpack.c.bf16 %v5931, %v5930
  %v6772 = vpack.c.bf16 %v5933, %v5932
  %v6773 = vpack.c.bf16 %v5935, %v5934
  %v6774 = vpack.c.bf16 %v5937, %v5936
  %v6775 = vpack.c.bf16 %v5939, %v5938
  %v6776 = vpack.c.bf16 %v5941, %v5940
  %v6777 = vpack.c.bf16 %v5943, %v5942
  %v6778 = vpack.c.bf16 %v5945, %v5944
  %v6779 = vpack.c.bf16 %v5947, %v5946
  %v6780 = vpack.c.bf16 %v5949, %v5948
  %v6781 = vpack.c.bf16 %v5951, %v5950
  %v6782 = vpack.c.bf16 %v5953, %v5952
  %v6783 = vpack.c.bf16 %v5955, %v5954
  %v6784 = vpack.c.bf16 %v5957, %v5956
  %v6785 = vpack.c.bf16 %v5959, %v5958
  %v6786 = vpack.c.bf16 %v5961, %v5960
  %v6787 = vpack.c.bf16 %v5963, %v5962
  %v6788 = vpack.c.bf16 %v5965, %v5964
  %6789 = vmatpush.bf16.msra.mxu0 %v6748
  %6790 = vmatpush.bf16.msra.mxu0 %v6747
  %6791 = vmatpush.bf16.msra.mxu0 %v6746
  %6792 = vmatpush.bf16.msra.mxu0 %v6745
  %6793 = vmatpush.bf16.msra.mxu0 %v6744
  %6794 = vmatpush.bf16.msra.mxu0 %v6743
  %6795 = vmatpush.bf16.msra.mxu0 %v6742
  %6796 = vmatpush.bf16.msra.mxu0 %v6741
  %6797 = vmatmul.bf16.gmra.mxu0 %v6645
  %v6798 = vpop.f32.mrf.mxu0
  %v6799 = vadd.f32 0.0, %v6798
  %v6800 = vpop.f32.mrf.mxu0
  %v6801 = vadd.f32 0.0, %v6800
  %6802 = vmatmul.bf16.gmra.mxu0 %v6651
  %v6803 = vpop.f32.mrf.mxu0
  %v6804 = vadd.f32 0.0, %v6803
  %v6805 = vpop.f32.mrf.mxu0
  %v6806 = vadd.f32 0.0, %v6805
  %6807 = vmatmul.bf16.gmra.mxu0 %v6657
  %v6808 = vpop.f32.mrf.mxu0
  %v6809 = vadd.f32 0.0, %v6808
  %v6810 = vpop.f32.mrf.mxu0
  %v6811 = vadd.f32 0.0, %v6810
  %6812 = vmatmul.bf16.gmra.mxu0 %v6663
  %v6813 = vpop.f32.mrf.mxu0
  %v6814 = vadd.f32 0.0, %v6813
  %v6815 = vpop.f32.mrf.mxu0
  %v6816 = vadd.f32 0.0, %v6815
  %6817 = vmatmul.bf16.gmra.mxu0 %v6669
  %v6818 = vpop.f32.mrf.mxu0
  %v6819 = vadd.f32 0.0, %v6818
  %v6820 = vpop.f32.mrf.mxu0
  %v6821 = vadd.f32 0.0, %v6820
  %6822 = vmatmul.bf16.gmra.mxu0 %v6675
  %v6823 = vpop.f32.mrf.mxu0
  %v6824 = vadd.f32 0.0, %v6823
  %v6825 = vpop.f32.mrf.mxu0
  %v6826 = vadd.f32 0.0, %v6825
  %6827 = vmatmul.bf16.gmra.mxu0 %v6681
  %v6828 = vpop.f32.mrf.mxu0
  %v6829 = vadd.f32 0.0, %v6828
  %v6830 = vpop.f32.mrf.mxu0
  %v6831 = vadd.f32 0.0, %v6830
  %6832 = vmatmul.bf16.gmra.mxu0 %v6687
  %v6833 = vpop.f32.mrf.mxu0
  %v6834 = vadd.f32 0.0, %v6833
  %v6835 = vpop.f32.mrf.mxu0
  %v6836 = vadd.f32 0.0, %v6835
  %6837 = vmatmul.bf16.gmra.mxu0 %v6693
  %v6838 = vpop.f32.mrf.mxu0
  %v6839 = vadd.f32 0.0, %v6838
  %v6840 = vpop.f32.mrf.mxu0
  %v6841 = vadd.f32 0.0, %v6840
  %6842 = vmatmul.bf16.gmra.mxu0 %v6699
  %v6843 = vpop.f32.mrf.mxu0
  %v6844 = vadd.f32 0.0, %v6843
  %v6845 = vpop.f32.mrf.mxu0
  %v6846 = vadd.f32 0.0, %v6845
  %6847 = vmatmul.bf16.gmra.mxu0 %v6705
  %v6848 = vpop.f32.mrf.mxu0
  %v6849 = vadd.f32 0.0, %v6848
  %v6850 = vpop.f32.mrf.mxu0
  %v6851 = vadd.f32 0.0, %v6850
  %6852 = vmatmul.bf16.gmra.mxu0 %v6711
  %v6853 = vpop.f32.mrf.mxu0
  %v6854 = vadd.f32 0.0, %v6853
  %v6855 = vpop.f32.mrf.mxu0
  %v6856 = vadd.f32 0.0, %v6855
  %6857 = vmatmul.bf16.gmra.mxu0 %v6717
  %v6858 = vpop.f32.mrf.mxu0
  %v6859 = vadd.f32 0.0, %v6858
  %v6860 = vpop.f32.mrf.mxu0
  %v6861 = vadd.f32 0.0, %v6860
  %6862 = vmatmul.bf16.gmra.mxu0 %v6723
  %v6863 = vpop.f32.mrf.mxu0
  %v6864 = vadd.f32 0.0, %v6863
  %v6865 = vpop.f32.mrf.mxu0
  %v6866 = vadd.f32 0.0, %v6865
  %6867 = vmatmul.bf16.gmra.mxu0 %v6729
  %v6868 = vpop.f32.mrf.mxu0
  %v6869 = vadd.f32 0.0, %v6868
  %v6870 = vpop.f32.mrf.mxu0
  %v6871 = vadd.f32 0.0, %v6870
  %6872 = vmatmul.bf16.gmra.mxu0 %v6735
  %v6873 = vpop.f32.mrf.mxu0
  %v6874 = vadd.f32 0.0, %v6873
  %v6875 = vpop.f32.mrf.mxu0
  %v6876 = vadd.f32 0.0, %v6875
  %6877 = vdwg.mxu0
  %6878 = vmatpush.bf16.msra.mxu0 %v6756
  %6879 = vmatpush.bf16.msra.mxu0 %v6755
  %6880 = vmatpush.bf16.msra.mxu0 %v6754
  %6881 = vmatpush.bf16.msra.mxu0 %v6753
  %6882 = vmatpush.bf16.msra.mxu0 %v6752
  %6883 = vmatpush.bf16.msra.mxu0 %v6751
  %6884 = vmatpush.bf16.msra.mxu0 %v6750
  %6885 = vmatpush.bf16.msra.mxu0 %v6749
  %6886 = vmatmul.bf16.gmra.mxu0 %v6646
  %v6887 = vpop.f32.mrf.mxu0
  %v6888 = vadd.f32 %v6799, %v6887
  %v6889 = vpop.f32.mrf.mxu0
  %v6890 = vadd.f32 %v6801, %v6889
  %6891 = vmatmul.bf16.gmra.mxu0 %v6652
  %v6892 = vpop.f32.mrf.mxu0
  %v6893 = vadd.f32 %v6804, %v6892
  %v6894 = vpop.f32.mrf.mxu0
  %v6895 = vadd.f32 %v6806, %v6894
  %6896 = vmatmul.bf16.gmra.mxu0 %v6658
  %v6897 = vpop.f32.mrf.mxu0
  %v6898 = vadd.f32 %v6809, %v6897
  %v6899 = vpop.f32.mrf.mxu0
  %v6900 = vadd.f32 %v6811, %v6899
  %6901 = vmatmul.bf16.gmra.mxu0 %v6664
  %v6902 = vpop.f32.mrf.mxu0
  %v6903 = vadd.f32 %v6814, %v6902
  %v6904 = vpop.f32.mrf.mxu0
  %v6905 = vadd.f32 %v6816, %v6904
  %6906 = vmatmul.bf16.gmra.mxu0 %v6670
  %v6907 = vpop.f32.mrf.mxu0
  %v6908 = vadd.f32 %v6819, %v6907
  %v6909 = vpop.f32.mrf.mxu0
  %v6910 = vadd.f32 %v6821, %v6909
  %6911 = vmatmul.bf16.gmra.mxu0 %v6676
  %v6912 = vpop.f32.mrf.mxu0
  %v6913 = vadd.f32 %v6824, %v6912
  %v6914 = vpop.f32.mrf.mxu0
  %v6915 = vadd.f32 %v6826, %v6914
  %6916 = vmatmul.bf16.gmra.mxu0 %v6682
  %v6917 = vpop.f32.mrf.mxu0
  %v6918 = vadd.f32 %v6829, %v6917
  %v6919 = vpop.f32.mrf.mxu0
  %v6920 = vadd.f32 %v6831, %v6919
  %6921 = vmatmul.bf16.gmra.mxu0 %v6688
  %v6922 = vpop.f32.mrf.mxu0
  %v6923 = vadd.f32 %v6834, %v6922
  %v6924 = vpop.f32.mrf.mxu0
  %v6925 = vadd.f32 %v6836, %v6924
  %6926 = vmatmul.bf16.gmra.mxu0 %v6694
  %v6927 = vpop.f32.mrf.mxu0
  %v6928 = vadd.f32 %v6839, %v6927
  %v6929 = vpop.f32.mrf.mxu0
  %v6930 = vadd.f32 %v6841, %v6929
  %6931 = vmatmul.bf16.gmra.mxu0 %v6700
  %v6932 = vpop.f32.mrf.mxu0
  %v6933 = vadd.f32 %v6844, %v6932
  %v6934 = vpop.f32.mrf.mxu0
  %v6935 = vadd.f32 %v6846, %v6934
  %6936 = vmatmul.bf16.gmra.mxu0 %v6706
  %v6937 = vpop.f32.mrf.mxu0
  %v6938 = vadd.f32 %v6849, %v6937
  %v6939 = vpop.f32.mrf.mxu0
  %v6940 = vadd.f32 %v6851, %v6939
  %6941 = vmatmul.bf16.gmra.mxu0 %v6712
  %v6942 = vpop.f32.mrf.mxu0
  %v6943 = vadd.f32 %v6854, %v6942
  %v6944 = vpop.f32.mrf.mxu0
  %v6945 = vadd.f32 %v6856, %v6944
  %6946 = vmatmul.bf16.gmra.mxu0 %v6718
  %v6947 = vpop.f32.mrf.mxu0
  %v6948 = vadd.f32 %v6859, %v6947
  %v6949 = vpop.f32.mrf.mxu0
  %v6950 = vadd.f32 %v6861, %v6949
  %6951 = vmatmul.bf16.gmra.mxu0 %v6724
  %v6952 = vpop.f32.mrf.mxu0
  %v6953 = vadd.f32 %v6864, %v6952
  %v6954 = vpop.f32.mrf.mxu0
  %v6955 = vadd.f32 %v6866, %v6954
  %6956 = vmatmul.bf16.gmra.mxu0 %v6730
  %v6957 = vpop.f32.mrf.mxu0
  %v6958 = vadd.f32 %v6869, %v6957
  %v6959 = vpop.f32.mrf.mxu0
  %v6960 = vadd.f32 %v6871, %v6959
  %6961 = vmatmul.bf16.gmra.mxu0 %v6736
  %v6962 = vpop.f32.mrf.mxu0
  %v6963 = vadd.f32 %v6874, %v6962
  %v6964 = vpop.f32.mrf.mxu0
  %v6965 = vadd.f32 %v6876, %v6964
  %6966 = vdwg.mxu0
  %6967 = vmatpush.bf16.msra.mxu0 %v6764
  %6968 = vmatpush.bf16.msra.mxu0 %v6763
  %6969 = vmatpush.bf16.msra.mxu0 %v6762
  %6970 = vmatpush.bf16.msra.mxu0 %v6761
  %6971 = vmatpush.bf16.msra.mxu0 %v6760
  %6972 = vmatpush.bf16.msra.mxu0 %v6759
  %6973 = vmatpush.bf16.msra.mxu0 %v6758
  %6974 = vmatpush.bf16.msra.mxu0 %v6757
  %6975 = vmatmul.bf16.gmra.mxu0 %v6647
  %v6976 = vpop.f32.mrf.mxu0
  %v6977 = vadd.f32 %v6888, %v6976
  %v6978 = vpop.f32.mrf.mxu0
  %v6979 = vadd.f32 %v6890, %v6978
  %6980 = vmatmul.bf16.gmra.mxu0 %v6653
  %v6981 = vpop.f32.mrf.mxu0
  %v6982 = vadd.f32 %v6893, %v6981
  %v6983 = vpop.f32.mrf.mxu0
  %v6984 = vadd.f32 %v6895, %v6983
  %6985 = vmatmul.bf16.gmra.mxu0 %v6659
  %v6986 = vpop.f32.mrf.mxu0
  %v6987 = vadd.f32 %v6898, %v6986
  %v6988 = vpop.f32.mrf.mxu0
  %v6989 = vadd.f32 %v6900, %v6988
  %6990 = vmatmul.bf16.gmra.mxu0 %v6665
  %v6991 = vpop.f32.mrf.mxu0
  %v6992 = vadd.f32 %v6903, %v6991
  %v6993 = vpop.f32.mrf.mxu0
  %v6994 = vadd.f32 %v6905, %v6993
  %6995 = vmatmul.bf16.gmra.mxu0 %v6671
  %v6996 = vpop.f32.mrf.mxu0
  %v6997 = vadd.f32 %v6908, %v6996
  %v6998 = vpop.f32.mrf.mxu0
  %v6999 = vadd.f32 %v6910, %v6998
  %7000 = vmatmul.bf16.gmra.mxu0 %v6677
  %v7001 = vpop.f32.mrf.mxu0
  %v7002 = vadd.f32 %v6913, %v7001
  %v7003 = vpop.f32.mrf.mxu0
  %v7004 = vadd.f32 %v6915, %v7003
  %7005 = vmatmul.bf16.gmra.mxu0 %v6683
  %v7006 = vpop.f32.mrf.mxu0
  %v7007 = vadd.f32 %v6918, %v7006
  %v7008 = vpop.f32.mrf.mxu0
  %v7009 = vadd.f32 %v6920, %v7008
  %7010 = vmatmul.bf16.gmra.mxu0 %v6689
  %v7011 = vpop.f32.mrf.mxu0
  %v7012 = vadd.f32 %v6923, %v7011
  %v7013 = vpop.f32.mrf.mxu0
  %v7014 = vadd.f32 %v6925, %v7013
  %7015 = vmatmul.bf16.gmra.mxu0 %v6695
  %v7016 = vpop.f32.mrf.mxu0
  %v7017 = vadd.f32 %v6928, %v7016
  %v7018 = vpop.f32.mrf.mxu0
  %v7019 = vadd.f32 %v6930, %v7018
  %7020 = vmatmul.bf16.gmra.mxu0 %v6701
  %v7021 = vpop.f32.mrf.mxu0
  %v7022 = vadd.f32 %v6933, %v7021
  %v7023 = vpop.f32.mrf.mxu0
  %v7024 = vadd.f32 %v6935, %v7023
  %7025 = vmatmul.bf16.gmra.mxu0 %v6707
  %v7026 = vpop.f32.mrf.mxu0
  %v7027 = vadd.f32 %v6938, %v7026
  %v7028 = vpop.f32.mrf.mxu0
  %v7029 = vadd.f32 %v6940, %v7028
  %7030 = vmatmul.bf16.gmra.mxu0 %v6713
  %v7031 = vpop.f32.mrf.mxu0
  %v7032 = vadd.f32 %v6943, %v7031
  %v7033 = vpop.f32.mrf.mxu0
  %v7034 = vadd.f32 %v6945, %v7033
  %7035 = vmatmul.bf16.gmra.mxu0 %v6719
  %v7036 = vpop.f32.mrf.mxu0
  %v7037 = vadd.f32 %v6948, %v7036
  %v7038 = vpop.f32.mrf.mxu0
  %v7039 = vadd.f32 %v6950, %v7038
  %7040 = vmatmul.bf16.gmra.mxu0 %v6725
  %v7041 = vpop.f32.mrf.mxu0
  %v7042 = vadd.f32 %v6953, %v7041
  %v7043 = vpop.f32.mrf.mxu0
  %v7044 = vadd.f32 %v6955, %v7043
  %7045 = vmatmul.bf16.gmra.mxu0 %v6731
  %v7046 = vpop.f32.mrf.mxu0
  %v7047 = vadd.f32 %v6958, %v7046
  %v7048 = vpop.f32.mrf.mxu0
  %v7049 = vadd.f32 %v6960, %v7048
  %7050 = vmatmul.bf16.gmra.mxu0 %v6737
  %v7051 = vpop.f32.mrf.mxu0
  %v7052 = vadd.f32 %v6963, %v7051
  %v7053 = vpop.f32.mrf.mxu0
  %v7054 = vadd.f32 %v6965, %v7053
  %7055 = vdwg.mxu0
  %7056 = vmatpush.bf16.msra.mxu0 %v6772
  %7057 = vmatpush.bf16.msra.mxu0 %v6771
  %7058 = vmatpush.bf16.msra.mxu0 %v6770
  %7059 = vmatpush.bf16.msra.mxu0 %v6769
  %7060 = vmatpush.bf16.msra.mxu0 %v6768
  %7061 = vmatpush.bf16.msra.mxu0 %v6767
  %7062 = vmatpush.bf16.msra.mxu0 %v6766
  %7063 = vmatpush.bf16.msra.mxu0 %v6765
  %7064 = vmatmul.bf16.gmra.mxu0 %v6648
  %v7065 = vpop.f32.mrf.mxu0
  %v7066 = vadd.f32 %v6977, %v7065
  %v7067 = vpop.f32.mrf.mxu0
  %v7068 = vadd.f32 %v6979, %v7067
  %7069 = vmatmul.bf16.gmra.mxu0 %v6654
  %v7070 = vpop.f32.mrf.mxu0
  %v7071 = vadd.f32 %v6982, %v7070
  %v7072 = vpop.f32.mrf.mxu0
  %v7073 = vadd.f32 %v6984, %v7072
  %7074 = vmatmul.bf16.gmra.mxu0 %v6660
  %v7075 = vpop.f32.mrf.mxu0
  %v7076 = vadd.f32 %v6987, %v7075
  %v7077 = vpop.f32.mrf.mxu0
  %v7078 = vadd.f32 %v6989, %v7077
  %7079 = vmatmul.bf16.gmra.mxu0 %v6666
  %v7080 = vpop.f32.mrf.mxu0
  %v7081 = vadd.f32 %v6992, %v7080
  %v7082 = vpop.f32.mrf.mxu0
  %v7083 = vadd.f32 %v6994, %v7082
  %7084 = vmatmul.bf16.gmra.mxu0 %v6672
  %v7085 = vpop.f32.mrf.mxu0
  %v7086 = vadd.f32 %v6997, %v7085
  %v7087 = vpop.f32.mrf.mxu0
  %v7088 = vadd.f32 %v6999, %v7087
  %7089 = vmatmul.bf16.gmra.mxu0 %v6678
  %v7090 = vpop.f32.mrf.mxu0
  %v7091 = vadd.f32 %v7002, %v7090
  %v7092 = vpop.f32.mrf.mxu0
  %v7093 = vadd.f32 %v7004, %v7092
  %7094 = vmatmul.bf16.gmra.mxu0 %v6684
  %v7095 = vpop.f32.mrf.mxu0
  %v7096 = vadd.f32 %v7007, %v7095
  %v7097 = vpop.f32.mrf.mxu0
  %v7098 = vadd.f32 %v7009, %v7097
  %7099 = vmatmul.bf16.gmra.mxu0 %v6690
  %v7100 = vpop.f32.mrf.mxu0
  %v7101 = vadd.f32 %v7012, %v7100
  %v7102 = vpop.f32.mrf.mxu0
  %v7103 = vadd.f32 %v7014, %v7102
  %7104 = vmatmul.bf16.gmra.mxu0 %v6696
  %v7105 = vpop.f32.mrf.mxu0
  %v7106 = vadd.f32 %v7017, %v7105
  %v7107 = vpop.f32.mrf.mxu0
  %v7108 = vadd.f32 %v7019, %v7107
  %7109 = vmatmul.bf16.gmra.mxu0 %v6702
  %v7110 = vpop.f32.mrf.mxu0
  %v7111 = vadd.f32 %v7022, %v7110
  %v7112 = vpop.f32.mrf.mxu0
  %v7113 = vadd.f32 %v7024, %v7112
  %7114 = vmatmul.bf16.gmra.mxu0 %v6708
  %v7115 = vpop.f32.mrf.mxu0
  %v7116 = vadd.f32 %v7027, %v7115
  %v7117 = vpop.f32.mrf.mxu0
  %v7118 = vadd.f32 %v7029, %v7117
  %7119 = vmatmul.bf16.gmra.mxu0 %v6714
  %v7120 = vpop.f32.mrf.mxu0
  %v7121 = vadd.f32 %v7032, %v7120
  %v7122 = vpop.f32.mrf.mxu0
  %v7123 = vadd.f32 %v7034, %v7122
  %7124 = vmatmul.bf16.gmra.mxu0 %v6720
  %v7125 = vpop.f32.mrf.mxu0
  %v7126 = vadd.f32 %v7037, %v7125
  %v7127 = vpop.f32.mrf.mxu0
  %v7128 = vadd.f32 %v7039, %v7127
  %7129 = vmatmul.bf16.gmra.mxu0 %v6726
  %v7130 = vpop.f32.mrf.mxu0
  %v7131 = vadd.f32 %v7042, %v7130
  %v7132 = vpop.f32.mrf.mxu0
  %v7133 = vadd.f32 %v7044, %v7132
  %7134 = vmatmul.bf16.gmra.mxu0 %v6732
  %v7135 = vpop.f32.mrf.mxu0
  %v7136 = vadd.f32 %v7047, %v7135
  %v7137 = vpop.f32.mrf.mxu0
  %v7138 = vadd.f32 %v7049, %v7137
  %7139 = vmatmul.bf16.gmra.mxu0 %v6738
  %v7140 = vpop.f32.mrf.mxu0
  %v7141 = vadd.f32 %v7052, %v7140
  %v7142 = vpop.f32.mrf.mxu0
  %v7143 = vadd.f32 %v7054, %v7142
  %7144 = vdwg.mxu0
  %7145 = vmatpush.bf16.msra.mxu0 %v6780
  %7146 = vmatpush.bf16.msra.mxu0 %v6779
  %7147 = vmatpush.bf16.msra.mxu0 %v6778
  %7148 = vmatpush.bf16.msra.mxu0 %v6777
  %7149 = vmatpush.bf16.msra.mxu0 %v6776
  %7150 = vmatpush.bf16.msra.mxu0 %v6775
  %7151 = vmatpush.bf16.msra.mxu0 %v6774
  %7152 = vmatpush.bf16.msra.mxu0 %v6773
  %7153 = vmatmul.bf16.gmra.mxu0 %v6649
  %v7154 = vpop.f32.mrf.mxu0
  %v7155 = vadd.f32 %v7066, %v7154
  %v7156 = vpop.f32.mrf.mxu0
  %v7157 = vadd.f32 %v7068, %v7156
  %7158 = vmatmul.bf16.gmra.mxu0 %v6655
  %v7159 = vpop.f32.mrf.mxu0
  %v7160 = vadd.f32 %v7071, %v7159
  %v7161 = vpop.f32.mrf.mxu0
  %v7162 = vadd.f32 %v7073, %v7161
  %7163 = vmatmul.bf16.gmra.mxu0 %v6661
  %v7164 = vpop.f32.mrf.mxu0
  %v7165 = vadd.f32 %v7076, %v7164
  %v7166 = vpop.f32.mrf.mxu0
  %v7167 = vadd.f32 %v7078, %v7166
  %7168 = vmatmul.bf16.gmra.mxu0 %v6667
  %v7169 = vpop.f32.mrf.mxu0
  %v7170 = vadd.f32 %v7081, %v7169
  %v7171 = vpop.f32.mrf.mxu0
  %v7172 = vadd.f32 %v7083, %v7171
  %7173 = vmatmul.bf16.gmra.mxu0 %v6673
  %v7174 = vpop.f32.mrf.mxu0
  %v7175 = vadd.f32 %v7086, %v7174
  %v7176 = vpop.f32.mrf.mxu0
  %v7177 = vadd.f32 %v7088, %v7176
  %7178 = vmatmul.bf16.gmra.mxu0 %v6679
  %v7179 = vpop.f32.mrf.mxu0
  %v7180 = vadd.f32 %v7091, %v7179
  %v7181 = vpop.f32.mrf.mxu0
  %v7182 = vadd.f32 %v7093, %v7181
  %7183 = vmatmul.bf16.gmra.mxu0 %v6685
  %v7184 = vpop.f32.mrf.mxu0
  %v7185 = vadd.f32 %v7096, %v7184
  %v7186 = vpop.f32.mrf.mxu0
  %v7187 = vadd.f32 %v7098, %v7186
  %7188 = vmatmul.bf16.gmra.mxu0 %v6691
  %v7189 = vpop.f32.mrf.mxu0
  %v7190 = vadd.f32 %v7101, %v7189
  %v7191 = vpop.f32.mrf.mxu0
  %v7192 = vadd.f32 %v7103, %v7191
  %7193 = vmatmul.bf16.gmra.mxu0 %v6697
  %v7194 = vpop.f32.mrf.mxu0
  %v7195 = vadd.f32 %v7106, %v7194
  %v7196 = vpop.f32.mrf.mxu0
  %v7197 = vadd.f32 %v7108, %v7196
  %7198 = vmatmul.bf16.gmra.mxu0 %v6703
  %v7199 = vpop.f32.mrf.mxu0
  %v7200 = vadd.f32 %v7111, %v7199
  %v7201 = vpop.f32.mrf.mxu0
  %v7202 = vadd.f32 %v7113, %v7201
  %7203 = vmatmul.bf16.gmra.mxu0 %v6709
  %v7204 = vpop.f32.mrf.mxu0
  %v7205 = vadd.f32 %v7116, %v7204
  %v7206 = vpop.f32.mrf.mxu0
  %v7207 = vadd.f32 %v7118, %v7206
  %7208 = vmatmul.bf16.gmra.mxu0 %v6715
  %v7209 = vpop.f32.mrf.mxu0
  %v7210 = vadd.f32 %v7121, %v7209
  %v7211 = vpop.f32.mrf.mxu0
  %v7212 = vadd.f32 %v7123, %v7211
  %7213 = vmatmul.bf16.gmra.mxu0 %v6721
  %v7214 = vpop.f32.mrf.mxu0
  %v7215 = vadd.f32 %v7126, %v7214
  %v7216 = vpop.f32.mrf.mxu0
  %v7217 = vadd.f32 %v7128, %v7216
  %7218 = vmatmul.bf16.gmra.mxu0 %v6727
  %v7219 = vpop.f32.mrf.mxu0
  %v7220 = vadd.f32 %v7131, %v7219
  %v7221 = vpop.f32.mrf.mxu0
  %v7222 = vadd.f32 %v7133, %v7221
  %7223 = vmatmul.bf16.gmra.mxu0 %v6733
  %v7224 = vpop.f32.mrf.mxu0
  %v7225 = vadd.f32 %v7136, %v7224
  %v7226 = vpop.f32.mrf.mxu0
  %v7227 = vadd.f32 %v7138, %v7226
  %7228 = vmatmul.bf16.gmra.mxu0 %v6739
  %v7229 = vpop.f32.mrf.mxu0
  %v7230 = vadd.f32 %v7141, %v7229
  %v7231 = vpop.f32.mrf.mxu0
  %v7232 = vadd.f32 %v7143, %v7231
  %7233 = vdwg.mxu0
  %7234 = vmatpush.bf16.msra.mxu0 %v6788
  %7235 = vmatpush.bf16.msra.mxu0 %v6787
  %7236 = vmatpush.bf16.msra.mxu0 %v6786
  %7237 = vmatpush.bf16.msra.mxu0 %v6785
  %7238 = vmatpush.bf16.msra.mxu0 %v6784
  %7239 = vmatpush.bf16.msra.mxu0 %v6783
  %7240 = vmatpush.bf16.msra.mxu0 %v6782
  %7241 = vmatpush.bf16.msra.mxu0 %v6781
  %7242 = vmatmul.bf16.gmra.mxu0 %v6650
  %v7243 = vpop.f32.mrf.mxu0
  %v7244 = vadd.f32 %v7155, %v7243
  %v7245 = vpop.f32.mrf.mxu0
  %v7246 = vadd.f32 %v7157, %v7245
  %7247 = vmatmul.bf16.gmra.mxu0 %v6656
  %v7248 = vpop.f32.mrf.mxu0
  %v7249 = vadd.f32 %v7160, %v7248
  %v7250 = vpop.f32.mrf.mxu0
  %v7251 = vadd.f32 %v7162, %v7250
  %7252 = vmatmul.bf16.gmra.mxu0 %v6662
  %v7253 = vpop.f32.mrf.mxu0
  %v7254 = vadd.f32 %v7165, %v7253
  %v7255 = vpop.f32.mrf.mxu0
  %v7256 = vadd.f32 %v7167, %v7255
  %7257 = vmatmul.bf16.gmra.mxu0 %v6668
  %v7258 = vpop.f32.mrf.mxu0
  %v7259 = vadd.f32 %v7170, %v7258
  %v7260 = vpop.f32.mrf.mxu0
  %v7261 = vadd.f32 %v7172, %v7260
  %7262 = vmatmul.bf16.gmra.mxu0 %v6674
  %v7263 = vpop.f32.mrf.mxu0
  %v7264 = vadd.f32 %v7175, %v7263
  %v7265 = vpop.f32.mrf.mxu0
  %v7266 = vadd.f32 %v7177, %v7265
  %7267 = vmatmul.bf16.gmra.mxu0 %v6680
  %v7268 = vpop.f32.mrf.mxu0
  %v7269 = vadd.f32 %v7180, %v7268
  %v7270 = vpop.f32.mrf.mxu0
  %v7271 = vadd.f32 %v7182, %v7270
  %7272 = vmatmul.bf16.gmra.mxu0 %v6686
  %v7273 = vpop.f32.mrf.mxu0
  %v7274 = vadd.f32 %v7185, %v7273
  %v7275 = vpop.f32.mrf.mxu0
  %v7276 = vadd.f32 %v7187, %v7275
  %7277 = vmatmul.bf16.gmra.mxu0 %v6692
  %v7278 = vpop.f32.mrf.mxu0
  %v7279 = vadd.f32 %v7190, %v7278
  %v7280 = vpop.f32.mrf.mxu0
  %v7281 = vadd.f32 %v7192, %v7280
  %7282 = vmatmul.bf16.gmra.mxu0 %v6698
  %v7283 = vpop.f32.mrf.mxu0
  %v7284 = vadd.f32 %v7195, %v7283
  %v7285 = vpop.f32.mrf.mxu0
  %v7286 = vadd.f32 %v7197, %v7285
  %7287 = vmatmul.bf16.gmra.mxu0 %v6704
  %v7288 = vpop.f32.mrf.mxu0
  %v7289 = vadd.f32 %v7200, %v7288
  %v7290 = vpop.f32.mrf.mxu0
  %v7291 = vadd.f32 %v7202, %v7290
  %7292 = vmatmul.bf16.gmra.mxu0 %v6710
  %v7293 = vpop.f32.mrf.mxu0
  %v7294 = vadd.f32 %v7205, %v7293
  %v7295 = vpop.f32.mrf.mxu0
  %v7296 = vadd.f32 %v7207, %v7295
  %7297 = vmatmul.bf16.gmra.mxu0 %v6716
  %v7298 = vpop.f32.mrf.mxu0
  %v7299 = vadd.f32 %v7210, %v7298
  %v7300 = vpop.f32.mrf.mxu0
  %v7301 = vadd.f32 %v7212, %v7300
  %7302 = vmatmul.bf16.gmra.mxu0 %v6722
  %v7303 = vpop.f32.mrf.mxu0
  %v7304 = vadd.f32 %v7215, %v7303
  %v7305 = vpop.f32.mrf.mxu0
  %v7306 = vadd.f32 %v7217, %v7305
  %7307 = vmatmul.bf16.gmra.mxu0 %v6728
  %v7308 = vpop.f32.mrf.mxu0
  %v7309 = vadd.f32 %v7220, %v7308
  %v7310 = vpop.f32.mrf.mxu0
  %v7311 = vadd.f32 %v7222, %v7310
  %7312 = vmatmul.bf16.gmra.mxu0 %v6734
  %v7313 = vpop.f32.mrf.mxu0
  %v7314 = vadd.f32 %v7225, %v7313
  %v7315 = vpop.f32.mrf.mxu0
  %v7316 = vadd.f32 %v7227, %v7315
  %7317 = vmatmul.bf16.gmra.mxu0 %v6740
  %v7318 = vpop.f32.mrf.mxu0
  %v7319 = vadd.f32 %v7230, %v7318
  %v7320 = vpop.f32.mrf.mxu0
  %v7321 = vadd.f32 %v7232, %v7320
  %7322 = vdwg.mxu0
  %v7323 = vld [vmem:[%s12] sm:$0xf]
  %v7324 = vld [vmem:[%s12 + $0x4] sm:$0xf]
  %v7325 = vld [vmem:[%s12 + $0x8] sm:$0xf]
  %v7326 = vld [vmem:[%s12 + $0xc] sm:$0xf]
  %v7327 = vpack.c.bf16 %v7246, %v7244
  %v7328 = vpack.c.bf16 %v7251, %v7249
  %v7329 = vpack.c.bf16 %v7256, %v7254
  %v7330 = vpack.c.bf16 %v7261, %v7259
  %v7331 = vpack.c.bf16 %v7266, %v7264
  %v7332 = vpack.c.bf16 %v7271, %v7269
  %v7333 = vpack.c.bf16 %v7276, %v7274
  %v7334 = vpack.c.bf16 %v7281, %v7279
  %v7335 = vpack.c.bf16 %v7286, %v7284
  %v7336 = vpack.c.bf16 %v7291, %v7289
  %v7337 = vpack.c.bf16 %v7296, %v7294
  %v7338 = vpack.c.bf16 %v7301, %v7299
  %v7339 = vpack.c.bf16 %v7306, %v7304
  %v7340 = vpack.c.bf16 %v7311, %v7309
  %v7341 = vpack.c.bf16 %v7316, %v7314
  %v7342 = vpack.c.bf16 %v7321, %v7319
  %v7343 = vld [vmem:[%s13] sm:$0xf]
  %v7344 = vld [vmem:[%s13 + $0x4] sm:$0xf]
  %v7345 = vld [vmem:[%s13 + $0x8] sm:$0xf]
  %v7346 = vld [vmem:[%s13 + $0xc] sm:$0xf]
  %v7351 = vunpack.c.l.b16 %v7343
  %v7352 = vunpack.c.l.b16 %v7344
  %v7353 = vunpack.c.l.b16 %v7345
  %v7354 = vunpack.c.l.b16 %v7346
  %v7355 = vpack.c.b16 %v7352, %v7351
  %v7356 = vpack.c.b16 %v7354, %v7353
  %v7360 = vsel %vm2701, %v7327, 0
  %v7363 = vsel %vm2701, %v7328, 0
  %v7366 = vsel %vm2701, %v7329, 0
  %v7369 = vsel %vm2701, %v7330, 0
  %v7372 = vsel %vm2701, %v7331, 0
  %v7375 = vsel %vm2701, %v7332, 0
  %v7378 = vsel %vm2701, %v7333, 0
  %v7381 = vsel %vm2701, %v7334, 0
  %v7384 = vsel %vm2701, %v7335, 0
  %v7387 = vsel %vm2701, %v7336, 0
  %v7390 = vsel %vm2701, %v7337, 0
  %v7393 = vsel %vm2701, %v7338, 0
  %v7396 = vsel %vm2701, %v7339, 0
  %v7399 = vsel %vm2701, %v7340, 0
  %v7402 = vsel %vm2701, %v7341, 0
  %v7405 = vsel %vm2701, %v7342, 0
  %7407 = vmatpush.bf16.msra.mxu0 0
  %7408 = vmatpush.bf16.msra.mxu0 0
  %7409 = vmatpush.bf16.msra.mxu0 0
  %7410 = vmatpush.bf16.msra.mxu0 0
  %7411 = vmatpush.bf16.msra.mxu0 0
  %7412 = vmatpush.bf16.msra.mxu0 0
  %7413 = vmatpush.bf16.msra.mxu0 %v7356
  %7414 = vmatpush.bf16.msra.mxu0 %v7355
  %7415 = vmatmul.bf16.gmra.mxu0 %v7360
  %v7416 = vpop.f32.mrf.mxu0
  %v7417 = vadd.f32 0.0, %v7416
  %v7418 = vpop.f32.mrf.mxu0
  %v7419 = vadd.f32 0.0, %v7418
  %7420 = vmatmul.bf16.gmra.mxu0 %v7363
  %v7421 = vpop.f32.mrf.mxu0
  %v7422 = vadd.f32 0.0, %v7421
  %v7423 = vpop.f32.mrf.mxu0
  %v7424 = vadd.f32 0.0, %v7423
  %7425 = vmatmul.bf16.gmra.mxu0 %v7366
  %v7426 = vpop.f32.mrf.mxu0
  %v7427 = vadd.f32 0.0, %v7426
  %v7428 = vpop.f32.mrf.mxu0
  %v7429 = vadd.f32 0.0, %v7428
  %7430 = vmatmul.bf16.gmra.mxu0 %v7369
  %v7431 = vpop.f32.mrf.mxu0
  %v7432 = vadd.f32 0.0, %v7431
  %v7433 = vpop.f32.mrf.mxu0
  %v7434 = vadd.f32 0.0, %v7433
  %7435 = vmatmul.bf16.gmra.mxu0 %v7372
  %v7436 = vpop.f32.mrf.mxu0
  %v7437 = vadd.f32 0.0, %v7436
  %v7438 = vpop.f32.mrf.mxu0
  %v7439 = vadd.f32 0.0, %v7438
  %7440 = vmatmul.bf16.gmra.mxu0 %v7375
  %v7441 = vpop.f32.mrf.mxu0
  %v7442 = vadd.f32 0.0, %v7441
  %v7443 = vpop.f32.mrf.mxu0
  %v7444 = vadd.f32 0.0, %v7443
  %7445 = vmatmul.bf16.gmra.mxu0 %v7378
  %v7446 = vpop.f32.mrf.mxu0
  %v7447 = vadd.f32 0.0, %v7446
  %v7448 = vpop.f32.mrf.mxu0
  %v7449 = vadd.f32 0.0, %v7448
  %7450 = vmatmul.bf16.gmra.mxu0 %v7381
  %v7451 = vpop.f32.mrf.mxu0
  %v7452 = vadd.f32 0.0, %v7451
  %v7453 = vpop.f32.mrf.mxu0
  %v7454 = vadd.f32 0.0, %v7453
  %7455 = vmatmul.bf16.gmra.mxu0 %v7384
  %v7456 = vpop.f32.mrf.mxu0
  %v7457 = vadd.f32 0.0, %v7456
  %v7458 = vpop.f32.mrf.mxu0
  %v7459 = vadd.f32 0.0, %v7458
  %7460 = vmatmul.bf16.gmra.mxu0 %v7387
  %v7461 = vpop.f32.mrf.mxu0
  %v7462 = vadd.f32 0.0, %v7461
  %v7463 = vpop.f32.mrf.mxu0
  %v7464 = vadd.f32 0.0, %v7463
  %7465 = vmatmul.bf16.gmra.mxu0 %v7390
  %v7466 = vpop.f32.mrf.mxu0
  %v7467 = vadd.f32 0.0, %v7466
  %v7468 = vpop.f32.mrf.mxu0
  %v7469 = vadd.f32 0.0, %v7468
  %7470 = vmatmul.bf16.gmra.mxu0 %v7393
  %v7471 = vpop.f32.mrf.mxu0
  %v7472 = vadd.f32 0.0, %v7471
  %v7473 = vpop.f32.mrf.mxu0
  %v7474 = vadd.f32 0.0, %v7473
  %7475 = vmatmul.bf16.gmra.mxu0 %v7396
  %v7476 = vpop.f32.mrf.mxu0
  %v7477 = vadd.f32 0.0, %v7476
  %v7478 = vpop.f32.mrf.mxu0
  %v7479 = vadd.f32 0.0, %v7478
  %7480 = vmatmul.bf16.gmra.mxu0 %v7399
  %v7481 = vpop.f32.mrf.mxu0
  %v7482 = vadd.f32 0.0, %v7481
  %v7483 = vpop.f32.mrf.mxu0
  %v7484 = vadd.f32 0.0, %v7483
  %7485 = vmatmul.bf16.gmra.mxu0 %v7402
  %v7486 = vpop.f32.mrf.mxu0
  %v7487 = vadd.f32 0.0, %v7486
  %v7488 = vpop.f32.mrf.mxu0
  %v7489 = vadd.f32 0.0, %v7488
  %7490 = vmatmul.bf16.gmra.mxu0 %v7405
  %v7491 = vpop.f32.mrf.mxu0
  %v7492 = vadd.f32 0.0, %v7491
  %v7493 = vpop.f32.mrf.mxu0
  %v7494 = vadd.f32 0.0, %v7493
  %7495 = vdwg.mxu0
  %v7500 = vunpack.c.l.b16 %v7323
  %v7501 = vunpack.c.l.b16 %v7324
  %v7502 = vunpack.c.l.b16 %v7325
  %v7503 = vunpack.c.l.b16 %v7326
  %v7504 = vpack.c.b16 %v7501, %v7500
  %v7505 = vpack.c.b16 %v7503, %v7502
  %v7509 = vsel %vm2701, %v97, 0
  %v7512 = vsel %vm2701, %v98, 0
  %v7515 = vsel %vm2701, %v99, 0
  %v7518 = vsel %vm2701, %v100, 0
  %v7521 = vsel %vm2701, %v101, 0
  %v7524 = vsel %vm2701, %v102, 0
  %v7527 = vsel %vm2701, %v103, 0
  %v7530 = vsel %vm2701, %v104, 0
  %v7533 = vsel %vm2701, %v105, 0
  %v7536 = vsel %vm2701, %v106, 0
  %v7539 = vsel %vm2701, %v107, 0
  %v7542 = vsel %vm2701, %v108, 0
  %v7545 = vsel %vm2701, %v109, 0
  %v7548 = vsel %vm2701, %v110, 0
  %v7551 = vsel %vm2701, %v111, 0
  %v7554 = vsel %vm2701, %v112, 0
  %7556 = vmatpush.bf16.msra.mxu0 0
  %7557 = vmatpush.bf16.msra.mxu0 0
  %7558 = vmatpush.bf16.msra.mxu0 0
  %7559 = vmatpush.bf16.msra.mxu0 0
  %7560 = vmatpush.bf16.msra.mxu0 0
  %7561 = vmatpush.bf16.msra.mxu0 0
  %7562 = vmatpush.bf16.msra.mxu0 %v7505
  %7563 = vmatpush.bf16.msra.mxu0 %v7504
  %7564 = vmatmul.bf16.gmra.mxu0 %v7509
  %v7565 = vpop.f32.mrf.mxu0
  %v7566 = vadd.f32 %v7417, %v7565
  %v7567 = vpop.f32.mrf.mxu0
  %v7568 = vadd.f32 %v7419, %v7567
  %7569 = vmatmul.bf16.gmra.mxu0 %v7512
  %v7570 = vpop.f32.mrf.mxu0
  %v7571 = vadd.f32 %v7422, %v7570
  %v7572 = vpop.f32.mrf.mxu0
  %v7573 = vadd.f32 %v7424, %v7572
  %7574 = vmatmul.bf16.gmra.mxu0 %v7515
  %v7575 = vpop.f32.mrf.mxu0
  %v7576 = vadd.f32 %v7427, %v7575
  %v7577 = vpop.f32.mrf.mxu0
  %v7578 = vadd.f32 %v7429, %v7577
  %7579 = vmatmul.bf16.gmra.mxu0 %v7518
  %v7580 = vpop.f32.mrf.mxu0
  %v7581 = vadd.f32 %v7432, %v7580
  %v7582 = vpop.f32.mrf.mxu0
  %v7583 = vadd.f32 %v7434, %v7582
  %7584 = vmatmul.bf16.gmra.mxu0 %v7521
  %v7585 = vpop.f32.mrf.mxu0
  %v7586 = vadd.f32 %v7437, %v7585
  %v7587 = vpop.f32.mrf.mxu0
  %v7588 = vadd.f32 %v7439, %v7587
  %7589 = vmatmul.bf16.gmra.mxu0 %v7524
  %v7590 = vpop.f32.mrf.mxu0
  %v7591 = vadd.f32 %v7442, %v7590
  %v7592 = vpop.f32.mrf.mxu0
  %v7593 = vadd.f32 %v7444, %v7592
  %7594 = vmatmul.bf16.gmra.mxu0 %v7527
  %v7595 = vpop.f32.mrf.mxu0
  %v7596 = vadd.f32 %v7447, %v7595
  %v7597 = vpop.f32.mrf.mxu0
  %v7598 = vadd.f32 %v7449, %v7597
  %7599 = vmatmul.bf16.gmra.mxu0 %v7530
  %v7600 = vpop.f32.mrf.mxu0
  %v7601 = vadd.f32 %v7452, %v7600
  %v7602 = vpop.f32.mrf.mxu0
  %v7603 = vadd.f32 %v7454, %v7602
  %7604 = vmatmul.bf16.gmra.mxu0 %v7533
  %v7605 = vpop.f32.mrf.mxu0
  %v7606 = vadd.f32 %v7457, %v7605
  %v7607 = vpop.f32.mrf.mxu0
  %v7608 = vadd.f32 %v7459, %v7607
  %7609 = vmatmul.bf16.gmra.mxu0 %v7536
  %v7610 = vpop.f32.mrf.mxu0
  %v7611 = vadd.f32 %v7462, %v7610
  %v7612 = vpop.f32.mrf.mxu0
  %v7613 = vadd.f32 %v7464, %v7612
  %7614 = vmatmul.bf16.gmra.mxu0 %v7539
  %v7615 = vpop.f32.mrf.mxu0
  %v7616 = vadd.f32 %v7467, %v7615
  %v7617 = vpop.f32.mrf.mxu0
  %v7618 = vadd.f32 %v7469, %v7617
  %7619 = vmatmul.bf16.gmra.mxu0 %v7542
  %v7620 = vpop.f32.mrf.mxu0
  %v7621 = vadd.f32 %v7472, %v7620
  %v7622 = vpop.f32.mrf.mxu0
  %v7623 = vadd.f32 %v7474, %v7622
  %7624 = vmatmul.bf16.gmra.mxu0 %v7545
  %v7625 = vpop.f32.mrf.mxu0
  %v7626 = vadd.f32 %v7477, %v7625
  %v7627 = vpop.f32.mrf.mxu0
  %v7628 = vadd.f32 %v7479, %v7627
  %7629 = vmatmul.bf16.gmra.mxu0 %v7548
  %v7630 = vpop.f32.mrf.mxu0
  %v7631 = vadd.f32 %v7482, %v7630
  %v7632 = vpop.f32.mrf.mxu0
  %v7633 = vadd.f32 %v7484, %v7632
  %7634 = vmatmul.bf16.gmra.mxu0 %v7551
  %v7635 = vpop.f32.mrf.mxu0
  %v7636 = vadd.f32 %v7487, %v7635
  %v7637 = vpop.f32.mrf.mxu0
  %v7638 = vadd.f32 %v7489, %v7637
  %7639 = vmatmul.bf16.gmra.mxu0 %v7554
  %v7640 = vpop.f32.mrf.mxu0
  %v7641 = vadd.f32 %v7492, %v7640
  %v7642 = vpop.f32.mrf.mxu0
  %v7643 = vadd.f32 %v7494, %v7642
  %7644 = vdwg.mxu0
  %v7645 = vld [vmem:[%s14] sm:$0x1]
  %v7646 = vld [vmem:[%s15] sm:$0x1]
  %v7647 = vadd.f32 %v7566, %v7568
  %v7648 = vadd.f32 %v7647, %v7571
  %v7649 = vadd.f32 %v7648, %v7573
  %v7650 = vadd.f32 %v7649, %v7576
  %v7651 = vadd.f32 %v7650, %v7578
  %v7652 = vadd.f32 %v7651, %v7581
  %v7653 = vadd.f32 %v7652, %v7583
  %v7654 = vadd.f32 %v7653, %v7586
  %v7655 = vadd.f32 %v7654, %v7588
  %v7656 = vadd.f32 %v7655, %v7591
  %v7657 = vadd.f32 %v7656, %v7593
  %v7658 = vadd.f32 %v7657, %v7596
  %v7659 = vadd.f32 %v7658, %v7598
  %v7660 = vadd.f32 %v7659, %v7601
  %v7661 = vadd.f32 %v7660, %v7603
  %v7662 = vadd.f32 %v7661, %v7606
  %v7663 = vadd.f32 %v7662, %v7608
  %v7664 = vadd.f32 %v7663, %v7611
  %v7665 = vadd.f32 %v7664, %v7613
  %v7666 = vadd.f32 %v7665, %v7616
  %v7667 = vadd.f32 %v7666, %v7618
  %v7668 = vadd.f32 %v7667, %v7621
  %v7669 = vadd.f32 %v7668, %v7623
  %v7670 = vadd.f32 %v7669, %v7626
  %v7671 = vadd.f32 %v7670, %v7628
  %v7672 = vadd.f32 %v7671, %v7631
  %v7673 = vadd.f32 %v7672, %v7633
  %v7674 = vadd.f32 %v7673, %v7636
  %v7675 = vadd.f32 %v7674, %v7638
  %v7676 = vadd.f32 %v7675, %v7641
  %v7677 = vadd.f32 %v7676, %v7643
  %v7678 = vrot.slane %v7677, 4
  %v7679 = vadd.f32 %v7677, %v7678
  %v7680 = vrot.slane %v7679, 2
  %v7681 = vadd.f32 %v7679, %v7680
  %v7682 = vrot.slane %v7681, 1
  %v7683 = vadd.f32 %v7681, %v7682
  %v7684 = vmul.f32 %v7683, 0.00390625
  %v7685 = vsub.f32 %v7566, %v7684
  %v7686 = vsub.f32 %v7568, %v7684
  %v7687 = vsub.f32 %v7571, %v7684
  %v7688 = vsub.f32 %v7573, %v7684
  %v7689 = vsub.f32 %v7576, %v7684
  %v7690 = vsub.f32 %v7578, %v7684
  %v7691 = vsub.f32 %v7581, %v7684
  %v7692 = vsub.f32 %v7583, %v7684
  %v7693 = vsub.f32 %v7586, %v7684
  %v7694 = vsub.f32 %v7588, %v7684
  %v7695 = vsub.f32 %v7591, %v7684
  %v7696 = vsub.f32 %v7593, %v7684
  %v7697 = vsub.f32 %v7596, %v7684
  %v7698 = vsub.f32 %v7598, %v7684
  %v7699 = vsub.f32 %v7601, %v7684
  %v7700 = vsub.f32 %v7603, %v7684
  %v7701 = vsub.f32 %v7606, %v7684
  %v7702 = vsub.f32 %v7608, %v7684
  %v7703 = vsub.f32 %v7611, %v7684
  %v7704 = vsub.f32 %v7613, %v7684
  %v7705 = vsub.f32 %v7616, %v7684
  %v7706 = vsub.f32 %v7618, %v7684
  %v7707 = vsub.f32 %v7621, %v7684
  %v7708 = vsub.f32 %v7623, %v7684
  %v7709 = vsub.f32 %v7626, %v7684
  %v7710 = vsub.f32 %v7628, %v7684
  %v7711 = vsub.f32 %v7631, %v7684
  %v7712 = vsub.f32 %v7633, %v7684
  %v7713 = vsub.f32 %v7636, %v7684
  %v7714 = vsub.f32 %v7638, %v7684
  %v7715 = vsub.f32 %v7641, %v7684
  %v7716 = vsub.f32 %v7643, %v7684
  %v7717 = vmul.f32 %v7685, %v7685
  %v7718 = vmul.f32 %v7686, %v7686
  %v7719 = vmul.f32 %v7687, %v7687
  %v7720 = vmul.f32 %v7688, %v7688
  %v7721 = vmul.f32 %v7689, %v7689
  %v7722 = vmul.f32 %v7690, %v7690
  %v7723 = vmul.f32 %v7691, %v7691
  %v7724 = vmul.f32 %v7692, %v7692
  %v7725 = vmul.f32 %v7693, %v7693
  %v7726 = vmul.f32 %v7694, %v7694
  %v7727 = vmul.f32 %v7695, %v7695
  %v7728 = vmul.f32 %v7696, %v7696
  %v7729 = vmul.f32 %v7697, %v7697
  %v7730 = vmul.f32 %v7698, %v7698
  %v7731 = vmul.f32 %v7699, %v7699
  %v7732 = vmul.f32 %v7700, %v7700
  %v7733 = vmul.f32 %v7701, %v7701
  %v7734 = vmul.f32 %v7702, %v7702
  %v7735 = vmul.f32 %v7703, %v7703
  %v7736 = vmul.f32 %v7704, %v7704
  %v7737 = vmul.f32 %v7705, %v7705
  %v7738 = vmul.f32 %v7706, %v7706
  %v7739 = vmul.f32 %v7707, %v7707
  %v7740 = vmul.f32 %v7708, %v7708
  %v7741 = vmul.f32 %v7709, %v7709
  %v7742 = vmul.f32 %v7710, %v7710
  %v7743 = vmul.f32 %v7711, %v7711
  %v7744 = vmul.f32 %v7712, %v7712
  %v7745 = vmul.f32 %v7713, %v7713
  %v7746 = vmul.f32 %v7714, %v7714
  %v7747 = vmul.f32 %v7715, %v7715
  %v7748 = vmul.f32 %v7716, %v7716
  %v7749 = vadd.f32 %v7717, %v7718
  %v7750 = vadd.f32 %v7749, %v7719
  %v7751 = vadd.f32 %v7750, %v7720
  %v7752 = vadd.f32 %v7751, %v7721
  %v7753 = vadd.f32 %v7752, %v7722
  %v7754 = vadd.f32 %v7753, %v7723
  %v7755 = vadd.f32 %v7754, %v7724
  %v7756 = vadd.f32 %v7755, %v7725
  %v7757 = vadd.f32 %v7756, %v7726
  %v7758 = vadd.f32 %v7757, %v7727
  %v7759 = vadd.f32 %v7758, %v7728
  %v7760 = vadd.f32 %v7759, %v7729
  %v7761 = vadd.f32 %v7760, %v7730
  %v7762 = vadd.f32 %v7761, %v7731
  %v7763 = vadd.f32 %v7762, %v7732
  %v7764 = vadd.f32 %v7763, %v7733
  %v7765 = vadd.f32 %v7764, %v7734
  %v7766 = vadd.f32 %v7765, %v7735
  %v7767 = vadd.f32 %v7766, %v7736
  %v7768 = vadd.f32 %v7767, %v7737
  %v7769 = vadd.f32 %v7768, %v7738
  %v7770 = vadd.f32 %v7769, %v7739
  %v7771 = vadd.f32 %v7770, %v7740
  %v7772 = vadd.f32 %v7771, %v7741
  %v7773 = vadd.f32 %v7772, %v7742
  %v7774 = vadd.f32 %v7773, %v7743
  %v7775 = vadd.f32 %v7774, %v7744
  %v7776 = vadd.f32 %v7775, %v7745
  %v7777 = vadd.f32 %v7776, %v7746
  %v7778 = vadd.f32 %v7777, %v7747
  %v7779 = vadd.f32 %v7778, %v7748
  %v7780 = vrot.slane %v7779, 4
  %v7781 = vadd.f32 %v7779, %v7780
  %v7782 = vrot.slane %v7781, 2
  %v7783 = vadd.f32 %v7781, %v7782
  %v7784 = vrot.slane %v7783, 1
  %v7785 = vadd.f32 %v7783, %v7784
  %v7786 = vmul.f32 %v7785, 0.00390625
  %v7787 = vadd.f32 %v7786, 1e-05
  %v7788 = vrsqrt.pop %v7787
  %v7789 = vmul.f32 %v7788, %v7787
  %v7790 = vmul.f32 %v7789, %v7788
  %v7791 = vmul.f32 0.5, %v7790
  %v7792 = vsub.f32 1.5, %v7791
  %v7793 = vmul.f32 %v7788, %v7792
  %vm7794 = vweird.f32 %v7787
  %vm7795 = vweird.f32 %v7788
  %vm7796 = vmor %vm7794, %vm7795
  %v7797 = vsel %vm7796, %v7788, %v7793
  %v7798 = vmul.f32 %v7645, %v7797
  %v7800 = vperm.slane %v7798, 0
  %v7802 = vmul.f32 %v7685, %v7800
  %v7803 = vmul.f32 %v7686, %v7800
  %v7804 = vmul.f32 %v7687, %v7800
  %v7805 = vmul.f32 %v7688, %v7800
  %v7806 = vmul.f32 %v7689, %v7800
  %v7807 = vmul.f32 %v7690, %v7800
  %v7808 = vmul.f32 %v7691, %v7800
  %v7809 = vmul.f32 %v7692, %v7800
  %v7810 = vmul.f32 %v7693, %v7800
  %v7811 = vmul.f32 %v7694, %v7800
  %v7812 = vmul.f32 %v7695, %v7800
  %v7813 = vmul.f32 %v7696, %v7800
  %v7814 = vmul.f32 %v7697, %v7800
  %v7815 = vmul.f32 %v7698, %v7800
  %v7816 = vmul.f32 %v7699, %v7800
  %v7817 = vmul.f32 %v7700, %v7800
  %v7818 = vmul.f32 %v7701, %v7800
  %v7819 = vmul.f32 %v7702, %v7800
  %v7820 = vmul.f32 %v7703, %v7800
  %v7821 = vmul.f32 %v7704, %v7800
  %v7822 = vmul.f32 %v7705, %v7800
  %v7823 = vmul.f32 %v7706, %v7800
  %v7824 = vmul.f32 %v7707, %v7800
  %v7825 = vmul.f32 %v7708, %v7800
  %v7826 = vmul.f32 %v7709, %v7800
  %v7827 = vmul.f32 %v7710, %v7800
  %v7828 = vmul.f32 %v7711, %v7800
  %v7829 = vmul.f32 %v7712, %v7800
  %v7830 = vmul.f32 %v7713, %v7800
  %v7831 = vmul.f32 %v7714, %v7800
  %v7832 = vmul.f32 %v7715, %v7800
  %v7833 = vmul.f32 %v7716, %v7800
  %v7835 = vperm.slane %v7646, 0
  %v7837 = vadd.f32 %v7802, %v7835
  %v7838 = vadd.f32 %v7803, %v7835
  %v7839 = vadd.f32 %v7804, %v7835
  %v7840 = vadd.f32 %v7805, %v7835
  %v7841 = vadd.f32 %v7806, %v7835
  %v7842 = vadd.f32 %v7807, %v7835
  %v7843 = vadd.f32 %v7808, %v7835
  %v7844 = vadd.f32 %v7809, %v7835
  %v7845 = vadd.f32 %v7810, %v7835
  %v7846 = vadd.f32 %v7811, %v7835
  %v7847 = vadd.f32 %v7812, %v7835
  %v7848 = vadd.f32 %v7813, %v7835
  %v7849 = vadd.f32 %v7814, %v7835
  %v7850 = vadd.f32 %v7815, %v7835
  %v7851 = vadd.f32 %v7816, %v7835
  %v7852 = vadd.f32 %v7817, %v7835
  %v7853 = vadd.f32 %v7818, %v7835
  %v7854 = vadd.f32 %v7819, %v7835
  %v7855 = vadd.f32 %v7820, %v7835
  %v7856 = vadd.f32 %v7821, %v7835
  %v7857 = vadd.f32 %v7822, %v7835
  %v7858 = vadd.f32 %v7823, %v7835
  %v7859 = vadd.f32 %v7824, %v7835
  %v7860 = vadd.f32 %v7825, %v7835
  %v7861 = vadd.f32 %v7826, %v7835
  %v7862 = vadd.f32 %v7827, %v7835
  %v7863 = vadd.f32 %v7828, %v7835
  %v7864 = vadd.f32 %v7829, %v7835
  %v7865 = vadd.f32 %v7830, %v7835
  %v7866 = vadd.f32 %v7831, %v7835
  %v7867 = vadd.f32 %v7832, %v7835
  %v7868 = vadd.f32 %v7833, %v7835
  %v7869 = vmax.f32 %v7837, 0.0
  %v7870 = vmax.f32 %v7838, 0.0
  %v7871 = vmax.f32 %v7839, 0.0
  %v7872 = vmax.f32 %v7840, 0.0
  %v7873 = vmax.f32 %v7841, 0.0
  %v7874 = vmax.f32 %v7842, 0.0
  %v7875 = vmax.f32 %v7843, 0.0
  %v7876 = vmax.f32 %v7844, 0.0
  %v7877 = vmax.f32 %v7845, 0.0
  %v7878 = vmax.f32 %v7846, 0.0
  %v7879 = vmax.f32 %v7847, 0.0
  %v7880 = vmax.f32 %v7848, 0.0
  %v7881 = vmax.f32 %v7849, 0.0
  %v7882 = vmax.f32 %v7850, 0.0
  %v7883 = vmax.f32 %v7851, 0.0
  %v7884 = vmax.f32 %v7852, 0.0
  %v7885 = vmax.f32 %v7853, 0.0
  %v7886 = vmax.f32 %v7854, 0.0
  %v7887 = vmax.f32 %v7855, 0.0
  %v7888 = vmax.f32 %v7856, 0.0
  %v7889 = vmax.f32 %v7857, 0.0
  %v7890 = vmax.f32 %v7858, 0.0
  %v7891 = vmax.f32 %v7859, 0.0
  %v7892 = vmax.f32 %v7860, 0.0
  %v7893 = vmax.f32 %v7861, 0.0
  %v7894 = vmax.f32 %v7862, 0.0
  %v7895 = vmax.f32 %v7863, 0.0
  %v7896 = vmax.f32 %v7864, 0.0
  %v7897 = vmax.f32 %v7865, 0.0
  %v7898 = vmax.f32 %v7866, 0.0
  %v7899 = vmax.f32 %v7867, 0.0
  %v7900 = vmax.f32 %v7868, 0.0
  %v7901 = vpack.c.bf16 %v7870, %v7869
  %v7902 = vpack.c.bf16 %v7872, %v7871
  %v7903 = vpack.c.bf16 %v7874, %v7873
  %v7904 = vpack.c.bf16 %v7876, %v7875
  %v7905 = vpack.c.bf16 %v7878, %v7877
  %v7906 = vpack.c.bf16 %v7880, %v7879
  %v7907 = vpack.c.bf16 %v7882, %v7881
  %v7908 = vpack.c.bf16 %v7884, %v7883
  %v7909 = vpack.c.bf16 %v7886, %v7885
  %v7910 = vpack.c.bf16 %v7888, %v7887
  %v7911 = vpack.c.bf16 %v7890, %v7889
  %v7912 = vpack.c.bf16 %v7892, %v7891
  %v7913 = vpack.c.bf16 %v7894, %v7893
  %v7914 = vpack.c.bf16 %v7896, %v7895
  %v7915 = vpack.c.bf16 %v7898, %v7897
  %v7916 = vpack.c.bf16 %v7900, %v7899
  %v7917 = vld [vmem:[%s16] sm:$0xf]
  %v7918 = vld [vmem:[%s16 + $0x4] sm:$0xf]
  %v7919 = vld [vmem:[%s16 + $0x8] sm:$0xf]
  %v7920 = vld [vmem:[%s16 + $0xc] sm:$0xf]
  %v7921 = vld [vmem:[%s16 + $0x10] sm:$0xf]
  %v7922 = vld [vmem:[%s16 + $0x14] sm:$0xf]
  %v7923 = vld [vmem:[%s16 + $0x18] sm:$0xf]
  %v7924 = vld [vmem:[%s16 + $0x1c] sm:$0xf]
  %v7925 = vld [vmem:[%s16 + $0x20] sm:$0xf]
  %v7926 = vld [vmem:[%s16 + $0x24] sm:$0xf]
  %v7927 = vld [vmem:[%s16 + $0x28] sm:$0xf]
  %v7928 = vld [vmem:[%s16 + $0x2c] sm:$0xf]
  %v7929 = vld [vmem:[%s16 + $0x30] sm:$0xf]
  %v7930 = vld [vmem:[%s16 + $0x34] sm:$0xf]
  %v7931 = vld [vmem:[%s16 + $0x38] sm:$0xf]
  %v7932 = vld [vmem:[%s16 + $0x3c] sm:$0xf]
  %v7949 = vunpack.c.l.b16 %v7917
  %v7950 = vunpack.c.l.b16 %v7918
  %v7951 = vunpack.c.l.b16 %v7919
  %v7952 = vunpack.c.l.b16 %v7920
  %v7953 = vunpack.c.l.b16 %v7921
  %v7954 = vunpack.c.l.b16 %v7922
  %v7955 = vunpack.c.l.b16 %v7923
  %v7956 = vunpack.c.l.b16 %v7924
  %v7957 = vunpack.c.l.b16 %v7925
  %v7958 = vunpack.c.l.b16 %v7926
  %v7959 = vunpack.c.l.b16 %v7927
  %v7960 = vunpack.c.l.b16 %v7928
  %v7961 = vunpack.c.l.b16 %v7929
  %v7962 = vunpack.c.l.b16 %v7930
  %v7963 = vunpack.c.l.b16 %v7931
  %v7964 = vunpack.c.l.b16 %v7932
  %v7965 = vpack.c.b16 %v7950, %v7949
  %v7966 = vpack.c.b16 %v7952, %v7951
  %v7967 = vpack.c.b16 %v7954, %v7953
  %v7968 = vpack.c.b16 %v7956, %v7955
  %v7969 = vpack.c.b16 %v7958, %v7957
  %v7970 = vpack.c.b16 %v7960, %v7959
  %v7971 = vpack.c.b16 %v7962, %v7961
  %v7972 = vpack.c.b16 %v7964, %v7963
  %7981 = vmatpush.bf16.msra.mxu0 %v7972
  %7982 = vmatpush.bf16.msra.mxu0 %v7971
  %7983 = vmatpush.bf16.msra.mxu0 %v7970
  %7984 = vmatpush.bf16.msra.mxu0 %v7969
  %7985 = vmatpush.bf16.msra.mxu0 %v7968
  %7986 = vmatpush.bf16.msra.mxu0 %v7967
  %7987 = vmatpush.bf16.msra.mxu0 %v7966
  %7988 = vmatpush.bf16.msra.mxu0 %v7965
  %7989 = vmatmul.bf16.gmra.mxu0 %v7901
  %v7990 = vpop.f32.mrf.mxu0
  %v7991 = vadd.f32 0.0, %v7990
  %v7992 = vpop.f32.mrf.mxu0
  %v7993 = vadd.f32 0.0, %v7992
  %7994 = vmatmul.bf16.gmra.mxu0 %v7902
  %v7995 = vpop.f32.mrf.mxu0
  %v7996 = vadd.f32 0.0, %v7995
  %v7997 = vpop.f32.mrf.mxu0
  %v7998 = vadd.f32 0.0, %v7997
  %7999 = vmatmul.bf16.gmra.mxu0 %v7903
  %v8000 = vpop.f32.mrf.mxu0
  %v8001 = vadd.f32 0.0, %v8000
  %v8002 = vpop.f32.mrf.mxu0
  %v8003 = vadd.f32 0.0, %v8002
  %8004 = vmatmul.bf16.gmra.mxu0 %v7904
  %v8005 = vpop.f32.mrf.mxu0
  %v8006 = vadd.f32 0.0, %v8005
  %v8007 = vpop.f32.mrf.mxu0
  %v8008 = vadd.f32 0.0, %v8007
  %8009 = vmatmul.bf16.gmra.mxu0 %v7905
  %v8010 = vpop.f32.mrf.mxu0
  %v8011 = vadd.f32 0.0, %v8010
  %v8012 = vpop.f32.mrf.mxu0
  %v8013 = vadd.f32 0.0, %v8012
  %8014 = vmatmul.bf16.gmra.mxu0 %v7906
  %v8015 = vpop.f32.mrf.mxu0
  %v8016 = vadd.f32 0.0, %v8015
  %v8017 = vpop.f32.mrf.mxu0
  %v8018 = vadd.f32 0.0, %v8017
  %8019 = vmatmul.bf16.gmra.mxu0 %v7907
  %v8020 = vpop.f32.mrf.mxu0
  %v8021 = vadd.f32 0.0, %v8020
  %v8022 = vpop.f32.mrf.mxu0
  %v8023 = vadd.f32 0.0, %v8022
  %8024 = vmatmul.bf16.gmra.mxu0 %v7908
  %v8025 = vpop.f32.mrf.mxu0
  %v8026 = vadd.f32 0.0, %v8025
  %v8027 = vpop.f32.mrf.mxu0
  %v8028 = vadd.f32 0.0, %v8027
  %8029 = vmatmul.bf16.gmra.mxu0 %v7909
  %v8030 = vpop.f32.mrf.mxu0
  %v8031 = vadd.f32 0.0, %v8030
  %v8032 = vpop.f32.mrf.mxu0
  %v8033 = vadd.f32 0.0, %v8032
  %8034 = vmatmul.bf16.gmra.mxu0 %v7910
  %v8035 = vpop.f32.mrf.mxu0
  %v8036 = vadd.f32 0.0, %v8035
  %v8037 = vpop.f32.mrf.mxu0
  %v8038 = vadd.f32 0.0, %v8037
  %8039 = vmatmul.bf16.gmra.mxu0 %v7911
  %v8040 = vpop.f32.mrf.mxu0
  %v8041 = vadd.f32 0.0, %v8040
  %v8042 = vpop.f32.mrf.mxu0
  %v8043 = vadd.f32 0.0, %v8042
  %8044 = vmatmul.bf16.gmra.mxu0 %v7912
  %v8045 = vpop.f32.mrf.mxu0
  %v8046 = vadd.f32 0.0, %v8045
  %v8047 = vpop.f32.mrf.mxu0
  %v8048 = vadd.f32 0.0, %v8047
  %8049 = vmatmul.bf16.gmra.mxu0 %v7913
  %v8050 = vpop.f32.mrf.mxu0
  %v8051 = vadd.f32 0.0, %v8050
  %v8052 = vpop.f32.mrf.mxu0
  %v8053 = vadd.f32 0.0, %v8052
  %8054 = vmatmul.bf16.gmra.mxu0 %v7914
  %v8055 = vpop.f32.mrf.mxu0
  %v8056 = vadd.f32 0.0, %v8055
  %v8057 = vpop.f32.mrf.mxu0
  %v8058 = vadd.f32 0.0, %v8057
  %8059 = vmatmul.bf16.gmra.mxu0 %v7915
  %v8060 = vpop.f32.mrf.mxu0
  %v8061 = vadd.f32 0.0, %v8060
  %v8062 = vpop.f32.mrf.mxu0
  %v8063 = vadd.f32 0.0, %v8062
  %8064 = vmatmul.bf16.gmra.mxu0 %v7916
  %v8065 = vpop.f32.mrf.mxu0
  %v8066 = vadd.f32 0.0, %v8065
  %v8067 = vpop.f32.mrf.mxu0
  %v8068 = vadd.f32 0.0, %v8067
  %8069 = vdwg.mxu0
  %v8070 = vld [vmem:[%s17] sm:$0x1]
  %v8071 = vld [vmem:[%s18] sm:$0x1]
  %v8072 = vsel %vm2701, %v7991, 0.0
  %v8073 = vsel %vm2701, %v7993, 0.0
  %v8074 = vadd.f32 %v8072, %v8073
  %v8075 = vsel %vm2701, %v7996, 0.0
  %v8076 = vadd.f32 %v8074, %v8075
  %v8077 = vsel %vm2701, %v7998, 0.0
  %v8078 = vadd.f32 %v8076, %v8077
  %v8079 = vsel %vm2701, %v8001, 0.0
  %v8080 = vadd.f32 %v8078, %v8079
  %v8081 = vsel %vm2701, %v8003, 0.0
  %v8082 = vadd.f32 %v8080, %v8081
  %v8083 = vsel %vm2701, %v8006, 0.0
  %v8084 = vadd.f32 %v8082, %v8083
  %v8085 = vsel %vm2701, %v8008, 0.0
  %v8086 = vadd.f32 %v8084, %v8085
  %v8087 = vsel %vm2701, %v8011, 0.0
  %v8088 = vadd.f32 %v8086, %v8087
  %v8089 = vsel %vm2701, %v8013, 0.0
  %v8090 = vadd.f32 %v8088, %v8089
  %v8091 = vsel %vm2701, %v8016, 0.0
  %v8092 = vadd.f32 %v8090, %v8091
  %v8093 = vsel %vm2701, %v8018, 0.0
  %v8094 = vadd.f32 %v8092, %v8093
  %v8095 = vsel %vm2701, %v8021, 0.0
  %v8096 = vadd.f32 %v8094, %v8095
  %v8097 = vsel %vm2701, %v8023, 0.0
  %v8098 = vadd.f32 %v8096, %v8097
  %v8099 = vsel %vm2701, %v8026, 0.0
  %v8100 = vadd.f32 %v8098, %v8099
  %v8101 = vsel %vm2701, %v8028, 0.0
  %v8102 = vadd.f32 %v8100, %v8101
  %v8103 = vsel %vm2701, %v8031, 0.0
  %v8104 = vadd.f32 %v8102, %v8103
  %v8105 = vsel %vm2701, %v8033, 0.0
  %v8106 = vadd.f32 %v8104, %v8105
  %v8107 = vsel %vm2701, %v8036, 0.0
  %v8108 = vadd.f32 %v8106, %v8107
  %v8109 = vsel %vm2701, %v8038, 0.0
  %v8110 = vadd.f32 %v8108, %v8109
  %v8111 = vsel %vm2701, %v8041, 0.0
  %v8112 = vadd.f32 %v8110, %v8111
  %v8113 = vsel %vm2701, %v8043, 0.0
  %v8114 = vadd.f32 %v8112, %v8113
  %v8115 = vsel %vm2701, %v8046, 0.0
  %v8116 = vadd.f32 %v8114, %v8115
  %v8117 = vsel %vm2701, %v8048, 0.0
  %v8118 = vadd.f32 %v8116, %v8117
  %v8119 = vsel %vm2701, %v8051, 0.0
  %v8120 = vadd.f32 %v8118, %v8119
  %v8121 = vsel %vm2701, %v8053, 0.0
  %v8122 = vadd.f32 %v8120, %v8121
  %v8123 = vsel %vm2701, %v8056, 0.0
  %v8124 = vadd.f32 %v8122, %v8123
  %v8125 = vsel %vm2701, %v8058, 0.0
  %v8126 = vadd.f32 %v8124, %v8125
  %v8127 = vsel %vm2701, %v8061, 0.0
  %v8128 = vadd.f32 %v8126, %v8127
  %v8129 = vsel %vm2701, %v8063, 0.0
  %v8130 = vadd.f32 %v8128, %v8129
  %v8131 = vsel %vm2701, %v8066, 0.0
  %v8132 = vadd.f32 %v8130, %v8131
  %v8133 = vsel %vm2701, %v8068, 0.0
  %v8134 = vadd.f32 %v8132, %v8133
  %v8135 = vrot.slane %v8134, 4
  %v8136 = vadd.f32 %v8134, %v8135
  %v8137 = vrot.slane %v8136, 2
  %v8138 = vadd.f32 %v8136, %v8137
  %v8139 = vrot.slane %v8138, 1
  %v8140 = vadd.f32 %v8138, %v8139
  %v8141 = vmul.f32 %v8140, 0.00390625
  %v8142 = vsub.f32 %v7991, %v8141
  %v8143 = vsub.f32 %v7993, %v8141
  %v8144 = vsub.f32 %v7996, %v8141
  %v8145 = vsub.f32 %v7998, %v8141
  %v8146 = vsub.f32 %v8001, %v8141
  %v8147 = vsub.f32 %v8003, %v8141
  %v8148 = vsub.f32 %v8006, %v8141
  %v8149 = vsub.f32 %v8008, %v8141
  %v8150 = vsub.f32 %v8011, %v8141
  %v8151 = vsub.f32 %v8013, %v8141
  %v8152 = vsub.f32 %v8016, %v8141
  %v8153 = vsub.f32 %v8018, %v8141
  %v8154 = vsub.f32 %v8021, %v8141
  %v8155 = vsub.f32 %v8023, %v8141
  %v8156 = vsub.f32 %v8026, %v8141
  %v8157 = vsub.f32 %v8028, %v8141
  %v8158 = vsub.f32 %v8031, %v8141
  %v8159 = vsub.f32 %v8033, %v8141
  %v8160 = vsub.f32 %v8036, %v8141
  %v8161 = vsub.f32 %v8038, %v8141
  %v8162 = vsub.f32 %v8041, %v8141
  %v8163 = vsub.f32 %v8043, %v8141
  %v8164 = vsub.f32 %v8046, %v8141
  %v8165 = vsub.f32 %v8048, %v8141
  %v8166 = vsub.f32 %v8051, %v8141
  %v8167 = vsub.f32 %v8053, %v8141
  %v8168 = vsub.f32 %v8056, %v8141
  %v8169 = vsub.f32 %v8058, %v8141
  %v8170 = vsub.f32 %v8061, %v8141
  %v8171 = vsub.f32 %v8063, %v8141
  %v8172 = vsub.f32 %v8066, %v8141
  %v8173 = vsub.f32 %v8068, %v8141
  %v8174 = vmul.f32 %v8142, %v8142
  %v8175 = vmul.f32 %v8143, %v8143
  %v8176 = vmul.f32 %v8144, %v8144
  %v8177 = vmul.f32 %v8145, %v8145
  %v8178 = vmul.f32 %v8146, %v8146
  %v8179 = vmul.f32 %v8147, %v8147
  %v8180 = vmul.f32 %v8148, %v8148
  %v8181 = vmul.f32 %v8149, %v8149
  %v8182 = vmul.f32 %v8150, %v8150
  %v8183 = vmul.f32 %v8151, %v8151
  %v8184 = vmul.f32 %v8152, %v8152
  %v8185 = vmul.f32 %v8153, %v8153
  %v8186 = vmul.f32 %v8154, %v8154
  %v8187 = vmul.f32 %v8155, %v8155
  %v8188 = vmul.f32 %v8156, %v8156
  %v8189 = vmul.f32 %v8157, %v8157
  %v8190 = vmul.f32 %v8158, %v8158
  %v8191 = vmul.f32 %v8159, %v8159
  %v8192 = vmul.f32 %v8160, %v8160
  %v8193 = vmul.f32 %v8161, %v8161
  %v8194 = vmul.f32 %v8162, %v8162
  %v8195 = vmul.f32 %v8163, %v8163
  %v8196 = vmul.f32 %v8164, %v8164
  %v8197 = vmul.f32 %v8165, %v8165
  %v8198 = vmul.f32 %v8166, %v8166
  %v8199 = vmul.f32 %v8167, %v8167
  %v8200 = vmul.f32 %v8168, %v8168
  %v8201 = vmul.f32 %v8169, %v8169
  %v8202 = vmul.f32 %v8170, %v8170
  %v8203 = vmul.f32 %v8171, %v8171
  %v8204 = vmul.f32 %v8172, %v8172
  %v8205 = vmul.f32 %v8173, %v8173
  %v8206 = vsel %vm2701, %v8174, 0.0
  %v8207 = vsel %vm2701, %v8175, 0.0
  %v8208 = vadd.f32 %v8206, %v8207
  %v8209 = vsel %vm2701, %v8176, 0.0
  %v8210 = vadd.f32 %v8208, %v8209
  %v8211 = vsel %vm2701, %v8177, 0.0
  %v8212 = vadd.f32 %v8210, %v8211
  %v8213 = vsel %vm2701, %v8178, 0.0
  %v8214 = vadd.f32 %v8212, %v8213
  %v8215 = vsel %vm2701, %v8179, 0.0
  %v8216 = vadd.f32 %v8214, %v8215
  %v8217 = vsel %vm2701, %v8180, 0.0
  %v8218 = vadd.f32 %v8216, %v8217
  %v8219 = vsel %vm2701, %v8181, 0.0
  %v8220 = vadd.f32 %v8218, %v8219
  %v8221 = vsel %vm2701, %v8182, 0.0
  %v8222 = vadd.f32 %v8220, %v8221
  %v8223 = vsel %vm2701, %v8183, 0.0
  %v8224 = vadd.f32 %v8222, %v8223
  %v8225 = vsel %vm2701, %v8184, 0.0
  %v8226 = vadd.f32 %v8224, %v8225
  %v8227 = vsel %vm2701, %v8185, 0.0
  %v8228 = vadd.f32 %v8226, %v8227
  %v8229 = vsel %vm2701, %v8186, 0.0
  %v8230 = vadd.f32 %v8228, %v8229
  %v8231 = vsel %vm2701, %v8187, 0.0
  %v8232 = vadd.f32 %v8230, %v8231
  %v8233 = vsel %vm2701, %v8188, 0.0
  %v8234 = vadd.f32 %v8232, %v8233
  %v8235 = vsel %vm2701, %v8189, 0.0
  %v8236 = vadd.f32 %v8234, %v8235
  %v8237 = vsel %vm2701, %v8190, 0.0
  %v8238 = vadd.f32 %v8236, %v8237
  %v8239 = vsel %vm2701, %v8191, 0.0
  %v8240 = vadd.f32 %v8238, %v8239
  %v8241 = vsel %vm2701, %v8192, 0.0
  %v8242 = vadd.f32 %v8240, %v8241
  %v8243 = vsel %vm2701, %v8193, 0.0
  %v8244 = vadd.f32 %v8242, %v8243
  %v8245 = vsel %vm2701, %v8194, 0.0
  %v8246 = vadd.f32 %v8244, %v8245
  %v8247 = vsel %vm2701, %v8195, 0.0
  %v8248 = vadd.f32 %v8246, %v8247
  %v8249 = vsel %vm2701, %v8196, 0.0
  %v8250 = vadd.f32 %v8248, %v8249
  %v8251 = vsel %vm2701, %v8197, 0.0
  %v8252 = vadd.f32 %v8250, %v8251
  %v8253 = vsel %vm2701, %v8198, 0.0
  %v8254 = vadd.f32 %v8252, %v8253
  %v8255 = vsel %vm2701, %v8199, 0.0
  %v8256 = vadd.f32 %v8254, %v8255
  %v8257 = vsel %vm2701, %v8200, 0.0
  %v8258 = vadd.f32 %v8256, %v8257
  %v8259 = vsel %vm2701, %v8201, 0.0
  %v8260 = vadd.f32 %v8258, %v8259
  %v8261 = vsel %vm2701, %v8202, 0.0
  %v8262 = vadd.f32 %v8260, %v8261
  %v8263 = vsel %vm2701, %v8203, 0.0
  %v8264 = vadd.f32 %v8262, %v8263
  %v8265 = vsel %vm2701, %v8204, 0.0
  %v8266 = vadd.f32 %v8264, %v8265
  %v8267 = vsel %vm2701, %v8205, 0.0
  %v8268 = vadd.f32 %v8266, %v8267
  %v8269 = vrot.slane %v8268, 4
  %v8270 = vadd.f32 %v8268, %v8269
  %v8271 = vrot.slane %v8270, 2
  %v8272 = vadd.f32 %v8270, %v8271
  %v8273 = vrot.slane %v8272, 1
  %v8274 = vadd.f32 %v8272, %v8273
  %v8275 = vmul.f32 %v8274, 0.00390625
  %v8276 = vadd.f32 %v8275, 1e-05
  %v8277 = vrsqrt.pop %v8276
  %v8278 = vmul.f32 %v8277, %v8276
  %v8279 = vmul.f32 %v8278, %v8277
  %v8280 = vmul.f32 0.5, %v8279
  %v8281 = vsub.f32 1.5, %v8280
  %v8282 = vmul.f32 %v8277, %v8281
  %vm8283 = vweird.f32 %v8276
  %vm8284 = vweird.f32 %v8277
  %vm8285 = vmor %vm8283, %vm8284
  %v8286 = vsel %vm8285, %v8277, %v8282
  %v8287 = vmul.f32 %v8070, %v8286
  %v8289 = vperm.slane %v8287, 0
  %v8291 = vmul.f32 %v8142, %v8289
  %v8292 = vmul.f32 %v8143, %v8289
  %v8293 = vmul.f32 %v8144, %v8289
  %v8294 = vmul.f32 %v8145, %v8289
  %v8295 = vmul.f32 %v8146, %v8289
  %v8296 = vmul.f32 %v8147, %v8289
  %v8297 = vmul.f32 %v8148, %v8289
  %v8298 = vmul.f32 %v8149, %v8289
  %v8299 = vmul.f32 %v8150, %v8289
  %v8300 = vmul.f32 %v8151, %v8289
  %v8301 = vmul.f32 %v8152, %v8289
  %v8302 = vmul.f32 %v8153, %v8289
  %v8303 = vmul.f32 %v8154, %v8289
  %v8304 = vmul.f32 %v8155, %v8289
  %v8305 = vmul.f32 %v8156, %v8289
  %v8306 = vmul.f32 %v8157, %v8289
  %v8307 = vmul.f32 %v8158, %v8289
  %v8308 = vmul.f32 %v8159, %v8289
  %v8309 = vmul.f32 %v8160, %v8289
  %v8310 = vmul.f32 %v8161, %v8289
  %v8311 = vmul.f32 %v8162, %v8289
  %v8312 = vmul.f32 %v8163, %v8289
  %v8313 = vmul.f32 %v8164, %v8289
  %v8314 = vmul.f32 %v8165, %v8289
  %v8315 = vmul.f32 %v8166, %v8289
  %v8316 = vmul.f32 %v8167, %v8289
  %v8317 = vmul.f32 %v8168, %v8289
  %v8318 = vmul.f32 %v8169, %v8289
  %v8319 = vmul.f32 %v8170, %v8289
  %v8320 = vmul.f32 %v8171, %v8289
  %v8321 = vmul.f32 %v8172, %v8289
  %v8322 = vmul.f32 %v8173, %v8289
  %v8324 = vperm.slane %v8071, 0
  %v8326 = vadd.f32 %v8291, %v8324
  %v8327 = vadd.f32 %v8292, %v8324
  %v8328 = vadd.f32 %v8293, %v8324
  %v8329 = vadd.f32 %v8294, %v8324
  %v8330 = vadd.f32 %v8295, %v8324
  %v8331 = vadd.f32 %v8296, %v8324
  %v8332 = vadd.f32 %v8297, %v8324
  %v8333 = vadd.f32 %v8298, %v8324
  %v8334 = vadd.f32 %v8299, %v8324
  %v8335 = vadd.f32 %v8300, %v8324
  %v8336 = vadd.f32 %v8301, %v8324
  %v8337 = vadd.f32 %v8302, %v8324
  %v8338 = vadd.f32 %v8303, %v8324
  %v8339 = vadd.f32 %v8304, %v8324
  %v8340 = vadd.f32 %v8305, %v8324
  %v8341 = vadd.f32 %v8306, %v8324
  %v8342 = vadd.f32 %v8307, %v8324
  %v8343 = vadd.f32 %v8308, %v8324
  %v8344 = vadd.f32 %v8309, %v8324
  %v8345 = vadd.f32 %v8310, %v8324
  %v8346 = vadd.f32 %v8311, %v8324
  %v8347 = vadd.f32 %v8312, %v8324
  %v8348 = vadd.f32 %v8313, %v8324
  %v8349 = vadd.f32 %v8314, %v8324
  %v8350 = vadd.f32 %v8315, %v8324
  %v8351 = vadd.f32 %v8316, %v8324
  %v8352 = vadd.f32 %v8317, %v8324
  %v8353 = vadd.f32 %v8318, %v8324
  %v8354 = vadd.f32 %v8319, %v8324
  %v8355 = vadd.f32 %v8320, %v8324
  %v8356 = vadd.f32 %v8321, %v8324
  %v8357 = vadd.f32 %v8322, %v8324
  %v8358 = vmax.f32 %v8326, 0.0
  %v8359 = vmax.f32 %v8327, 0.0
  %v8360 = vmax.f32 %v8328, 0.0
  %v8361 = vmax.f32 %v8329, 0.0
  %v8362 = vmax.f32 %v8330, 0.0
  %v8363 = vmax.f32 %v8331, 0.0
  %v8364 = vmax.f32 %v8332, 0.0
  %v8365 = vmax.f32 %v8333, 0.0
  %v8366 = vmax.f32 %v8334, 0.0
  %v8367 = vmax.f32 %v8335, 0.0
  %v8368 = vmax.f32 %v8336, 0.0
  %v8369 = vmax.f32 %v8337, 0.0
  %v8370 = vmax.f32 %v8338, 0.0
  %v8371 = vmax.f32 %v8339, 0.0
  %v8372 = vmax.f32 %v8340, 0.0
  %v8373 = vmax.f32 %v8341, 0.0
  %v8374 = vmax.f32 %v8342, 0.0
  %v8375 = vmax.f32 %v8343, 0.0
  %v8376 = vmax.f32 %v8344, 0.0
  %v8377 = vmax.f32 %v8345, 0.0
  %v8378 = vmax.f32 %v8346, 0.0
  %v8379 = vmax.f32 %v8347, 0.0
  %v8380 = vmax.f32 %v8348, 0.0
  %v8381 = vmax.f32 %v8349, 0.0
  %v8382 = vmax.f32 %v8350, 0.0
  %v8383 = vmax.f32 %v8351, 0.0
  %v8384 = vmax.f32 %v8352, 0.0
  %v8385 = vmax.f32 %v8353, 0.0
  %v8386 = vmax.f32 %v8354, 0.0
  %v8387 = vmax.f32 %v8355, 0.0
  %v8388 = vmax.f32 %v8356, 0.0
  %v8389 = vmax.f32 %v8357, 0.0
  %8390 = vst.msk [vmem:[%s19] sm:$0xff] %vm2701, %v8358
  %8391 = vst.msk [vmem:[%s19 + $0x8] sm:$0xff] %vm2701, %v8359
  %8392 = vst.msk [vmem:[%s19 + $0x10] sm:$0xff] %vm2701, %v8360
  %8393 = vst.msk [vmem:[%s19 + $0x18] sm:$0xff] %vm2701, %v8361
  %8394 = vst.msk [vmem:[%s19 + $0x20] sm:$0xff] %vm2701, %v8362
  %8395 = vst.msk [vmem:[%s19 + $0x28] sm:$0xff] %vm2701, %v8363
  %8396 = vst.msk [vmem:[%s19 + $0x30] sm:$0xff] %vm2701, %v8364
  %8397 = vst.msk [vmem:[%s19 + $0x38] sm:$0xff] %vm2701, %v8365
  %8398 = vst.msk [vmem:[%s19 + $0x40] sm:$0xff] %vm2701, %v8366
  %8399 = vst.msk [vmem:[%s19 + $0x48] sm:$0xff] %vm2701, %v8367
  %8400 = vst.msk [vmem:[%s19 + $0x50] sm:$0xff] %vm2701, %v8368
  %8401 = vst.msk [vmem:[%s19 + $0x58] sm:$0xff] %vm2701, %v8369
  %8402 = vst.msk [vmem:[%s19 + $0x60] sm:$0xff] %vm2701, %v8370
  %8403 = vst.msk [vmem:[%s19 + $0x68] sm:$0xff] %vm2701, %v8371
  %8404 = vst.msk [vmem:[%s19 + $0x70] sm:$0xff] %vm2701, %v8372
  %8405 = vst.msk [vmem:[%s19 + $0x78] sm:$0xff] %vm2701, %v8373
  %8406 = vst.msk [vmem:[%s19 + $0x80] sm:$0xff] %vm2701, %v8374
  %8407 = vst.msk [vmem:[%s19 + $0x88] sm:$0xff] %vm2701, %v8375
  %8408 = vst.msk [vmem:[%s19 + $0x90] sm:$0xff] %vm2701, %v8376
  %8409 = vst.msk [vmem:[%s19 + $0x98] sm:$0xff] %vm2701, %v8377
  %8410 = vst.msk [vmem:[%s19 + $0xa0] sm:$0xff] %vm2701, %v8378
  %8411 = vst.msk [vmem:[%s19 + $0xa8] sm:$0xff] %vm2701, %v8379
  %8412 = vst.msk [vmem:[%s19 + $0xb0] sm:$0xff] %vm2701, %v8380
  %8413 = vst.msk [vmem:[%s19 + $0xb8] sm:$0xff] %vm2701, %v8381
  %8414 = vst.msk [vmem:[%s19 + $0xc0] sm:$0xff] %vm2701, %v8382
  %8415 = vst.msk [vmem:[%s19 + $0xc8] sm:$0xff] %vm2701, %v8383
  %8416 = vst.msk [vmem:[%s19 + $0xd0] sm:$0xff] %vm2701, %v8384
  %8417 = vst.msk [vmem:[%s19 + $0xd8] sm:$0xff] %vm2701, %v8385
  %8418 = vst.msk [vmem:[%s19 + $0xe0] sm:$0xff] %vm2701, %v8386
  %8419 = vst.msk [vmem:[%s19 + $0xe8] sm:$0xff] %vm2701, %v8387
  %8420 = vst.msk [vmem:[%s19 + $0xf0] sm:$0xff] %vm2701, %v8388
  %8421 = vst.msk [vmem:[%s19 + $0xf8] sm:$0xff] %vm2701, %v8389
  // Predicated region
  $region78: #{edge_node_forward.1} parent=0 // pred_check
    _
  $region79: #{edge_node_forward.1} parent=0 // pred_check_branch
    %8423 = sbr.rel (0) target = $region81
  $region80: #{edge_node_forward.1} parent=0 // pred_region
    _
  $region81: #{edge_node_forward.1} parent=0 // pred_fallthru
    _
  // Predicated region
  $region82: #{edge_node_forward.1} parent=0 // pred_check
    _
  $region83: #{edge_node_forward.1} parent=0 // pred_check_branch
    %8425 = sbr.rel (0) target = $region85
  $region84: #{edge_node_forward.1} parent=0 // pred_region
    _
  $region85: #{edge_node_forward.1} parent=0 // pred_fallthru
    _
  // Predicated region
  $region86: #{edge_node_forward.1} parent=0 // pred_check
    _
  $region87: #{edge_node_forward.1} parent=0 // pred_check_branch
    %8427 = sbr.rel (0) target = $region89
  $region88: #{edge_node_forward.1} parent=0 // pred_region
    _
  $region89: #{edge_node_forward.1} parent=0 // pred_fallthru
    _
  // Predicated region
  $region90: #{edge_node_forward.1} parent=0 // pred_check
    _
  $region91: #{edge_node_forward.1} parent=0 // pred_check_branch
    %8429 = sbr.rel (0) target = $region93
  $region92: #{edge_node_forward.1} parent=0 // pred_region
    _
  $region93: #{edge_node_forward.1} parent=0 // pred_fallthru
    _

</llo_original>
